<compile_context>
chip_gen: v5e
topology: v5e:2x2
jax: 0.10.0
libtpu: 0.0.40
codegen_flags: <defaults>
</compile_context>

<pallas_src>
import jax
import jax.numpy as jnp
from jax import lax
from jax.experimental import pallas as pl
from jax.experimental.pallas import tpu as pltpu


def _leaky(v):
    return jnp.where(v > 0, v, 0.2 * v)


_TAPS = tuple((dy, dx) for dy in range(3) for dx in range(3))


# --------------------------------------------------------------------------
# Fused Pallas kernel (whole residual block per batch element)
# --------------------------------------------------------------------------
def _sft_resblk_kernel(refpad_ref, x_ref, ws_ref, bs_ref, wgb_ref, bgb_ref,
                       wc_ref, bc_ref, o_ref,
                       refc_s, patch_s, gbt_pad, h_pad):
    # refpad_ref: (1, H+2, W+2, Pc)   zero-padded pooled ref
    # x_ref:      (1, H*W, xc)        block input (flattened NHWC view)
    # ws_ref:     (9*Pc, 2*nh)        shared-conv weights, both stages stacked
    # bs_ref:     (1, 2*nh)
    # wgb_ref:    (2, nh, 9*2*xc)     fused gamma/beta weights, tap-major cols
    # bgb_ref:    (2, 1, 2*xc)
    # wc_ref:     (2, 9*xc, xc)       conv_0 / conv_1 im2col weights
    # bc_ref:     (2, 1, xc)
    # o_ref:      (1, H*W, xc)
    # refc_s:     (H*W, 9*Pc)   VMEM  ref im2col (built once, both stages)
    # patch_s:    (H*W, 9*xc)   VMEM  conv_0/1 im2col
    # gbt_pad:    (H+2, W+2, 9*2*xc)  zero-bordered tap-major gamma/beta
    # h_pad:      (H+2, W+2, xc)      zero-bordered modulated activation
    H = refpad_ref.shape[1] - 2
    W = refpad_ref.shape[2] - 2
    Pc = refpad_ref.shape[3]
    HW = H * W
    xc = wc_ref.shape[2]
    nh = wgb_ref.shape[1]
    gw = 2 * xc

    # ---- in-kernel im2col of the padded pooled ref (no 9x HBM blow-up) ----
    for t, (dy, dx) in enumerate(_TAPS):
        refc_s[:, t * Pc:(t + 1) * Pc] = (
            refpad_ref[0, dy:dy + H, dx:dx + W, :].reshape(HW, Pc))

    # ---- BOTH stages' shared 3x3 conv + LeakyReLU: ONE MXU matmul ---------
    actv = _leaky(jnp.dot(refc_s[...], ws_ref[...],
                          preferred_element_type=jnp.float32) + bs_ref[...])

    # ---- BOTH stages' fused gamma/beta convs (tap-major columns), hoisted
    #      out of the sequential h chain (ref-only branch). ------------------
    gbt0 = jnp.dot(actv[:, :nh], wgb_ref[0],
                   preferred_element_type=jnp.float32)       # (HW, 9*2*xc)
    gbt1 = jnp.dot(actv[:, nh:], wgb_ref[1],
                   preferred_element_type=jnp.float32)

    # Padded scratches: zero ONCE (only the 1-px borders matter, interiors
    # are fully overwritten below).
    gbt_pad[...] = jnp.zeros(gbt_pad.shape, gbt_pad.dtype)
    h_pad[...] = jnp.zeros(h_pad.shape, h_pad.dtype)

    x_hw = x_ref[0]                                          # (HW, xc)

    def stage(h_prev, gbt, s):
        # 3x3 gamma/beta conv, scatter-turned-gather: one interior write of
        # the tap-major matmul result, then 9 shifted read-only slices
        # (eliminates the per-tap read-modify-write of the old scatter).
        gbt_pad[1:H + 1, 1:W + 1, :] = gbt.reshape(H, W, 9 * gw)
        gb = bgb_ref[s]                                      # (1, 2*xc) bias
        for t, (dy, dx) in enumerate(_TAPS):
            gb = gb + gbt_pad[dy:dy + H, dx:dx + W,
                              t * gw:(t + 1) * gw].reshape(HW, gw)

        # SFT modulation + LeakyReLU epilogue (f32, stays on-chip).
        h = _leaky(h_prev * (1.0 + gb[:, :xc]) + gb[:, xc:])

        # conv_s (3x3, xc -> xc): zero-padded scratch + im2col gather, then
        # ONE matmul with K = 9*xc (instead of 9 chained K=xc matmuls).
        h_pad[1:H + 1, 1:W + 1, :] = h.reshape(H, W, xc)
        for t, (dy, dx) in enumerate(_TAPS):
            patch_s[:, t * xc:(t + 1) * xc] = (
                h_pad[dy:dy + H, dx:dx + W, :].reshape(HW, xc))
        return (jnp.dot(patch_s[...], wc_ref[s],
                        preferred_element_type=jnp.float32) + bc_ref[s])

    dx0 = stage(x_hw, gbt0, 0)
    dx1 = stage(dx0, gbt1, 1)

    # Residual add fused into the final store.
    o_ref[0] = (x_hw + dx1).astype(o_ref.dtype)


# --------------------------------------------------------------------------
# Plain-JAX glue
# --------------------------------------------------------------------------
def adaptive_avg_pool2d_nhwc(x, out_h, out_w):
    """F.adaptive_avg_pool2d semantics (NHWC)."""
    N, H, W, C = x.shape
    if (H, W) == (out_h, out_w):
        return x
    if H % out_h == 0 and W % out_w == 0:
        fh, fw = H // out_h, W // out_w
        return x.reshape(N, out_h, fh, out_w, fw, C).mean(axis=(2, 4))

    def pool_mat(n_in, n_out):
        i = jnp.arange(n_out)
        start = (i * n_in) // n_out
        end = ((i + 1) * n_in + n_out - 1) // n_out
        k = jnp.arange(n_in)
        m = (k[None, :] >= start[:, None]) & (k[None, :] < end[:, None])
        return m.astype(x.dtype) / (end - start)[:, None].astype(x.dtype)

    return jnp.einsum("oh,nhwc,pw->nopc",
                      pool_mat(H, out_h), x, pool_mat(W, out_w))


# --------------------------------------------------------------------------
# SFTResblk forward: one fused pallas_call
# --------------------------------------------------------------------------
def sft_resblk_forward(x, ref, params):
    N, H, W, xc = x.shape
    Pc = ref.shape[-1]
    nh = params["norm_0"]["w_shared"].shape[-1]
    HW = H * W

    # Pooled + zero-padded ref (tiny; the 9-tap im2col is built in-kernel).
    ref_p = adaptive_avg_pool2d_nhwc(ref, H, W)
    ref_pad = jnp.pad(ref_p, ((0, 0), (1, 1), (1, 1), (0, 0)))

    def sft_w(p):
        ws = p["w_shared"].reshape(9 * Pc, nh)
        bs = p["b_shared"].reshape(1, nh)
        # tap-major output columns: [k, t*2*xc + c], gamma then beta per tap
        wgb = jnp.concatenate([p["w_gamma"], p["w_beta"]], axis=-1)
        wgb = wgb.reshape(9, nh, 2 * xc).transpose(1, 0, 2).reshape(
            nh, 9 * 2 * xc)
        bgb = jnp.concatenate([p["b_gamma"], p["b_beta"]]).reshape(1, 2 * xc)
        return ws, bs, wgb, bgb

    ws0, bs0, wgb0, bgb0 = sft_w(params["norm_0"])
    ws1, bs1, wgb1, bgb1 = sft_w(params["norm_1"])
    ws = jnp.concatenate([ws0, ws1], axis=-1)           # (9*Pc, 2*nh)
    bs = jnp.concatenate([bs0, bs1], axis=-1)           # (1, 2*nh)
    wgb = jnp.stack([wgb0, wgb1])                       # (2, nh, 9*2*xc)
    bgb = jnp.stack([bgb0, bgb1])                       # (2, 1, 2*xc)
    wc = jnp.stack([params["w_conv0"].reshape(9 * xc, xc),
                    params["w_conv1"].reshape(9 * xc, xc)])   # (2, 9*xc, xc)
    bc = jnp.stack([params["b_conv0"].reshape(1, xc),
                    params["b_conv1"].reshape(1, xc)])        # (2, 1, xc)

    x_flat = x.reshape(N, HW, xc)                       # pure view of NHWC

    def rep(a):  # weights: same (whole-array) block every grid step
        z = (0,) * a.ndim
        return pl.BlockSpec(a.shape, lambda n, _z=z: _z)

    out = pl.pallas_call(
        _sft_resblk_kernel,
        out_shape=jax.ShapeDtypeStruct((N, HW, xc), x.dtype),
        grid=(N,),
        in_specs=[
            pl.BlockSpec((1, H + 2, W + 2, Pc), lambda n: (n, 0, 0, 0)),
            pl.BlockSpec((1, HW, xc), lambda n: (n, 0, 0)),
            rep(ws), rep(bs), rep(wgb), rep(bgb), rep(wc), rep(bc),
        ],
        out_specs=pl.BlockSpec((1, HW, xc), lambda n: (n, 0, 0)),
        scratch_shapes=[
            pltpu.VMEM((HW, 9 * Pc), jnp.float32),                 # refc_s
            pltpu.VMEM((HW, 9 * xc), jnp.float32),                 # patch_s
            pltpu.VMEM((H + 2, W + 2, 9 * 2 * xc), jnp.float32),   # gbt_pad
            pltpu.VMEM((H + 2, W + 2, xc), jnp.float32),           # h_pad
        ],
        compiler_params=pltpu.CompilerParams(
            dimension_semantics=("parallel",)),
    )(ref_pad, x_flat, ws, bs, wgb, bgb, wc, bc)
    return out.reshape(N, H, W, xc)


# --------------------------------------------------------------------------
# Deterministic parameter init (shapes from SFTResblk.__init__)
# --------------------------------------------------------------------------
def init_params(key, x_nc, prior_nc, ks=3, nhidden=128):
    keys = jax.random.split(key, 16)

    def w(k, shape, scale=0.1):
        return (scale * jax.random.normal(k, shape)).astype(jnp.float32)

    def sft_p(ks_slice):
        it = iter(ks_slice)
        return {
            "w_shared": w(next(it), (ks, ks, prior_nc, nhidden)),
            "b_shared": w(next(it), (nhidden,)),
            "w_gamma": w(next(it), (ks, ks, nhidden, x_nc)),
            "b_gamma": w(next(it), (x_nc,)),
            "w_beta": w(next(it), (ks, ks, nhidden, x_nc)),
            "b_beta": w(next(it), (x_nc,)),
        }

    return {
        "w_conv0": w(keys[0], (3, 3, x_nc, x_nc)),
        "b_conv0": w(keys[1], (x_nc,)),
        "w_conv1": w(keys[2], (3, 3, x_nc, x_nc)),
        "b_conv1": w(keys[3], (x_nc,)),
        "norm_0": sft_p(keys[4:10]),
        "norm_1": sft_p(keys[10:16]),
    }


# --------------------------------------------------------------------------
# Pure-JAX reference (for correctness check)
# --------------------------------------------------------------------------
def _ref_conv3x3(x, w, b, act="none"):
    y = lax.conv_general_dilated(
        x, w, window_strides=(1, 1), padding="SAME",
        dimension_numbers=("NHWC", "HWIO", "NHWC"))
    y = y + b
    if act == "leaky":
        y = jnp.where(y > 0, y, 0.2 * y)
    return y


def _ref_sft(x, ref, p, act_out="none"):
    ref_p = adaptive_avg_pool2d_nhwc(ref, x.shape[1], x.shape[2])
    actv = _ref_conv3x3(ref_p, p["w_shared"], p["b_shared"], act="leaky")
    gamma = _ref_conv3x3(actv, p["w_gamma"], p["b_gamma"])
    beta = _ref_conv3x3(actv, p["w_beta"], p["b_beta"])
    out = x * (1.0 + gamma) + beta
    if act_out == "leaky":
        out = jnp.where(out > 0, out, 0.2 * out)
    return out


def _ref_resblk(x, ref, params):
    h0 = _ref_sft(x, ref, params["norm_0"], act_out="leaky")
    dx = _ref_conv3x3(h0, params["w_conv0"], params["b_conv0"])
    h1 = _ref_sft(dx, ref, params["norm_1"], act_out="leaky")
    dx = _ref_conv3x3(h1, params["w_conv1"], params["b_conv1"])
    return x + dx


# --------------------------------------------------------------------------
if __name__ == "__main__":
    key = jax.random.PRNGKey(0)
    kx, kr, kp = jax.random.split(key, 3)

    N, x_nc, prior_nc = 2, 4, 4
    H = W = 16
    # NHWC inputs (PyTorch NCHW equivalents: x (2,4,16,16), ref (2,4,32,32))
    x = jax.random.normal(kx, (N, H, W, x_nc), jnp.float32)
    ref = jax.random.normal(kr, (N, 2 * H, 2 * W, prior_nc), jnp.float32)
    params = init_params(kp, x_nc, prior_nc)

    fwd = jax.jit(sft_resblk_forward)
    out = jax.block_until_ready(fwd(x, ref, params))
    expected = _ref_resblk(x, ref, params)

    assert out.shape == (N, H, W, x_nc)
    assert jnp.allclose(out, expected, atol=1e-3, rtol=1e-3), "mismatch vs reference"
    print("KERNEL_OK")
</pallas_src>

<mosaic_0001>
module attributes {stable_mosaic.version = 11 : i64} {
  func.func @_sft_resblk_kernel(%arg0: i32, %arg1: memref<1x18x18x4xf32, #tpu.memory_space<vmem>>, %arg2: memref<1x256x4xf32, #tpu.memory_space<vmem>>, %arg3: memref<36x256xf32, #tpu.memory_space<vmem>>, %arg4: memref<1x256xf32, #tpu.memory_space<vmem>>, %arg5: memref<2x128x72xf32, #tpu.memory_space<vmem>>, %arg6: memref<2x1x8xf32, #tpu.memory_space<vmem>>, %arg7: memref<2x36x4xf32, #tpu.memory_space<vmem>>, %arg8: memref<2x1x4xf32, #tpu.memory_space<vmem>>, %arg9: memref<1x256x4xf32, #tpu.memory_space<vmem>>, %arg10: memref<256x36xf32, #tpu.memory_space<vmem>>, %arg11: memref<256x36xf32, #tpu.memory_space<vmem>>, %arg12: memref<18x18x72xf32, #tpu.memory_space<vmem>>, %arg13: memref<18x18x4xf32, #tpu.memory_space<vmem>>) attributes {dimension_semantics = [#tpu.dimension_semantics<parallel>], iteration_bounds = array<i64: 2>, scalar_prefetch = 0 : i64, scratch_operands = 4 : i64, tpu.core_type = #tpu.core_type<tc>, window_params = [{transform_indices = @transform_0, window_bounds = array<i64: 1, 18, 18, 4>}, {transform_indices = @transform_1, window_bounds = array<i64: 1, 256, 4>}, {pipeline_mode = #tpu.pipeline_mode<synchronous>, transform_indices = @transform_2, window_bounds = array<i64: 36, 256>}, {pipeline_mode = #tpu.pipeline_mode<synchronous>, transform_indices = @transform_3, window_bounds = array<i64: 1, 256>}, {pipeline_mode = #tpu.pipeline_mode<synchronous>, transform_indices = @transform_4, window_bounds = array<i64: 2, 128, 72>}, {pipeline_mode = #tpu.pipeline_mode<synchronous>, transform_indices = @transform_5, window_bounds = array<i64: 2, 1, 8>}, {pipeline_mode = #tpu.pipeline_mode<synchronous>, transform_indices = @transform_6, window_bounds = array<i64: 2, 36, 4>}, {pipeline_mode = #tpu.pipeline_mode<synchronous>, transform_indices = @transform_7, window_bounds = array<i64: 2, 1, 4>}, {transform_indices = @transform_8, window_bounds = array<i64: 1, 256, 4>}]} {
    %c0 = arith.constant 0 : index
    %c0_0 = arith.constant 0 : index
    %c0_1 = arith.constant 0 : index
    %c0_2 = arith.constant 0 : index
    %0 = vector.load %arg1[%c0, %c0_0, %c0_1, %c0_2] : memref<1x18x18x4xf32, #tpu.memory_space<vmem>>, vector<1x16x16x4xf32>
    %1 = vector.shape_cast %0 : vector<1x16x16x4xf32> to vector<16x16x4xf32>
    %2 = vector.shape_cast %1 : vector<16x16x4xf32> to vector<256x4xf32>
    %c0_3 = arith.constant 0 : index
    %c0_4 = arith.constant 0 : index
    %3 = vector.load %arg10[%c0_3, %c0_4] : memref<256x36xf32, #tpu.memory_space<vmem>>, vector<256x4xf32>
    tpu.vector_store %arg10[%c0_3, %c0_4], %2 {strides = array<i32>} : memref<256x36xf32, #tpu.memory_space<vmem>>, vector<256x4xf32>,
    %c0_5 = arith.constant 0 : index
    %c0_6 = arith.constant 0 : index
    %c1 = arith.constant 1 : index
    %c0_7 = arith.constant 0 : index
    %4 = vector.load %arg1[%c0_5, %c0_6, %c1, %c0_7] : memref<1x18x18x4xf32, #tpu.memory_space<vmem>>, vector<1x16x16x4xf32>
    %5 = vector.shape_cast %4 : vector<1x16x16x4xf32> to vector<16x16x4xf32>
    %6 = vector.shape_cast %5 : vector<16x16x4xf32> to vector<256x4xf32>
    %c0_8 = arith.constant 0 : index
    %c4 = arith.constant 4 : index
    %7 = vector.load %arg10[%c0_8, %c4] : memref<256x36xf32, #tpu.memory_space<vmem>>, vector<256x4xf32>
    tpu.vector_store %arg10[%c0_8, %c4], %6 {strides = array<i32>} : memref<256x36xf32, #tpu.memory_space<vmem>>, vector<256x4xf32>,
    %c0_9 = arith.constant 0 : index
    %c0_10 = arith.constant 0 : index
    %c2 = arith.constant 2 : index
    %c0_11 = arith.constant 0 : index
    %8 = vector.load %arg1[%c0_9, %c0_10, %c2, %c0_11] : memref<1x18x18x4xf32, #tpu.memory_space<vmem>>, vector<1x16x16x4xf32>
    %9 = vector.shape_cast %8 : vector<1x16x16x4xf32> to vector<16x16x4xf32>
    %10 = vector.shape_cast %9 : vector<16x16x4xf32> to vector<256x4xf32>
    %c0_12 = arith.constant 0 : index
    %c8 = arith.constant 8 : index
    %11 = vector.load %arg10[%c0_12, %c8] : memref<256x36xf32, #tpu.memory_space<vmem>>, vector<256x4xf32>
    tpu.vector_store %arg10[%c0_12, %c8], %10 {strides = array<i32>} : memref<256x36xf32, #tpu.memory_space<vmem>>, vector<256x4xf32>,
    %c0_13 = arith.constant 0 : index
    %c1_14 = arith.constant 1 : index
    %c0_15 = arith.constant 0 : index
    %c0_16 = arith.constant 0 : index
    %12 = vector.load %arg1[%c0_13, %c1_14, %c0_15, %c0_16] : memref<1x18x18x4xf32, #tpu.memory_space<vmem>>, vector<1x16x16x4xf32>
    %13 = vector.shape_cast %12 : vector<1x16x16x4xf32> to vector<16x16x4xf32>
    %14 = vector.shape_cast %13 : vector<16x16x4xf32> to vector<256x4xf32>
    %c0_17 = arith.constant 0 : index
    %c12 = arith.constant 12 : index
    %15 = vector.load %arg10[%c0_17, %c12] : memref<256x36xf32, #tpu.memory_space<vmem>>, vector<256x4xf32>
    tpu.vector_store %arg10[%c0_17, %c12], %14 {strides = array<i32>} : memref<256x36xf32, #tpu.memory_space<vmem>>, vector<256x4xf32>,
    %c0_18 = arith.constant 0 : index
    %c1_19 = arith.constant 1 : index
    %c1_20 = arith.constant 1 : index
    %c0_21 = arith.constant 0 : index
    %16 = vector.load %arg1[%c0_18, %c1_19, %c1_20, %c0_21] : memref<1x18x18x4xf32, #tpu.memory_space<vmem>>, vector<1x16x16x4xf32>
    %17 = vector.shape_cast %16 : vector<1x16x16x4xf32> to vector<16x16x4xf32>
    %18 = vector.shape_cast %17 : vector<16x16x4xf32> to vector<256x4xf32>
    %c0_22 = arith.constant 0 : index
    %c16 = arith.constant 16 : index
    %19 = vector.load %arg10[%c0_22, %c16] : memref<256x36xf32, #tpu.memory_space<vmem>>, vector<256x4xf32>
    tpu.vector_store %arg10[%c0_22, %c16], %18 {strides = array<i32>} : memref<256x36xf32, #tpu.memory_space<vmem>>, vector<256x4xf32>,
    %c0_23 = arith.constant 0 : index
    %c1_24 = arith.constant 1 : index
    %c2_25 = arith.constant 2 : index
    %c0_26 = arith.constant 0 : index
    %20 = vector.load %arg1[%c0_23, %c1_24, %c2_25, %c0_26] : memref<1x18x18x4xf32, #tpu.memory_space<vmem>>, vector<1x16x16x4xf32>
    %21 = vector.shape_cast %20 : vector<1x16x16x4xf32> to vector<16x16x4xf32>
    %22 = vector.shape_cast %21 : vector<16x16x4xf32> to vector<256x4xf32>
    %c0_27 = arith.constant 0 : index
    %c20 = arith.constant 20 : index
    %23 = vector.load %arg10[%c0_27, %c20] : memref<256x36xf32, #tpu.memory_space<vmem>>, vector<256x4xf32>
    tpu.vector_store %arg10[%c0_27, %c20], %22 {strides = array<i32>} : memref<256x36xf32, #tpu.memory_space<vmem>>, vector<256x4xf32>,
    %c0_28 = arith.constant 0 : index
    %c2_29 = arith.constant 2 : index
    %c0_30 = arith.constant 0 : index
    %c0_31 = arith.constant 0 : index
    %24 = vector.load %arg1[%c0_28, %c2_29, %c0_30, %c0_31] : memref<1x18x18x4xf32, #tpu.memory_space<vmem>>, vector<1x16x16x4xf32>
    %25 = vector.shape_cast %24 : vector<1x16x16x4xf32> to vector<16x16x4xf32>
    %26 = vector.shape_cast %25 : vector<16x16x4xf32> to vector<256x4xf32>
    %c0_32 = arith.constant 0 : index
    %c24 = arith.constant 24 : index
    %27 = vector.load %arg10[%c0_32, %c24] : memref<256x36xf32, #tpu.memory_space<vmem>>, vector<256x4xf32>
    tpu.vector_store %arg10[%c0_32, %c24], %26 {strides = array<i32>} : memref<256x36xf32, #tpu.memory_space<vmem>>, vector<256x4xf32>,
    %c0_33 = arith.constant 0 : index
    %c2_34 = arith.constant 2 : index
    %c1_35 = arith.constant 1 : index
    %c0_36 = arith.constant 0 : index
    %28 = vector.load %arg1[%c0_33, %c2_34, %c1_35, %c0_36] : memref<1x18x18x4xf32, #tpu.memory_space<vmem>>, vector<1x16x16x4xf32>
    %29 = vector.shape_cast %28 : vector<1x16x16x4xf32> to vector<16x16x4xf32>
    %30 = vector.shape_cast %29 : vector<16x16x4xf32> to vector<256x4xf32>
    %c0_37 = arith.constant 0 : index
    %c28 = arith.constant 28 : index
    %31 = vector.load %arg10[%c0_37, %c28] : memref<256x36xf32, #tpu.memory_space<vmem>>, vector<256x4xf32>
    tpu.vector_store %arg10[%c0_37, %c28], %30 {strides = array<i32>} : memref<256x36xf32, #tpu.memory_space<vmem>>, vector<256x4xf32>,
    %c0_38 = arith.constant 0 : index
    %c2_39 = arith.constant 2 : index
    %c2_40 = arith.constant 2 : index
    %c0_41 = arith.constant 0 : index
    %32 = vector.load %arg1[%c0_38, %c2_39, %c2_40, %c0_41] : memref<1x18x18x4xf32, #tpu.memory_space<vmem>>, vector<1x16x16x4xf32>
    %33 = vector.shape_cast %32 : vector<1x16x16x4xf32> to vector<16x16x4xf32>
    %34 = vector.shape_cast %33 : vector<16x16x4xf32> to vector<256x4xf32>
    %c0_42 = arith.constant 0 : index
    %c32 = arith.constant 32 : index
    %35 = vector.load %arg10[%c0_42, %c32] : memref<256x36xf32, #tpu.memory_space<vmem>>, vector<256x4xf32>
    tpu.vector_store %arg10[%c0_42, %c32], %34 {strides = array<i32>} : memref<256x36xf32, #tpu.memory_space<vmem>>, vector<256x4xf32>,
    %c0_43 = arith.constant 0 : index
    %c0_44 = arith.constant 0 : index
    %36 = vector.load %arg10[%c0_43, %c0_44] : memref<256x36xf32, #tpu.memory_space<vmem>>, vector<256x36xf32>
    %c0_45 = arith.constant 0 : index
    %c0_46 = arith.constant 0 : index
    %37 = vector.load %arg3[%c0_45, %c0_46] : memref<36x256xf32, #tpu.memory_space<vmem>>, vector<36x256xf32>
    %cst = arith.constant dense<0.000000e+00> : vector<256x256xf32>
    %38 = tpu.matmul %36, %37, %cst {dimension_numbers = #tpu.dot_dimension_numbers<[1], [0], [0], [1], [0, 0, 1, 1], [], []>} : vector<256x36xf32>, vector<36x256xf32>, vector<256x256xf32> -> vector<256x256xf32>
    %c0_47 = arith.constant 0 : index
    %c0_48 = arith.constant 0 : index
    %39 = vector.load %arg4[%c0_47, %c0_48] : memref<1x256xf32, #tpu.memory_space<vmem>>, vector<1x256xf32>
    %40 = vector.broadcast %39 : vector<1x256xf32> to vector<256x256xf32>
    %41 = arith.addf %38, %40 : vector<256x256xf32>
    %cst_49 = arith.constant 0.000000e+00 : f32
    %42 = vector.broadcast %cst_49 : f32 to vector<256x256xf32>
    %43 = arith.cmpf ogt, %41, %42 : vector<256x256xf32>
    %cst_50 = arith.constant 2.000000e-01 : f32
    %44 = vector.broadcast %cst_50 : f32 to vector<256x256xf32>
    %45 = arith.mulf %44, %41 : vector<256x256xf32>
    %46 = arith.select %43, %41, %45 : vector<256x256xi1>, vector<256x256xf32>
    %47 = vector.extract_strided_slice %46 {offsets = [0, 0], sizes = [256, 128], strides = [1, 1]} : vector<256x256xf32> to vector<256x128xf32>
    %c0_51 = arith.constant 0 : index
    %c0_52 = arith.constant 0 : index
    %c0_53 = arith.constant 0 : index
    %48 = vector.load %arg5[%c0_51, %c0_52, %c0_53] : memref<2x128x72xf32, #tpu.memory_space<vmem>>, vector<1x128x72xf32>
    %49 = vector.shape_cast %48 : vector<1x128x72xf32> to vector<128x72xf32>
    %cst_54 = arith.constant dense<0.000000e+00> : vector<256x72xf32>
    %50 = tpu.matmul %47, %49, %cst_54 {dimension_numbers = #tpu.dot_dimension_numbers<[1], [0], [0], [1], [0, 0, 1, 1], [], []>} : vector<256x128xf32>, vector<128x72xf32>, vector<256x72xf32> -> vector<256x72xf32>
    %51 = vector.extract_strided_slice %46 {offsets = [0, 128], sizes = [256, 128], strides = [1, 1]} : vector<256x256xf32> to vector<256x128xf32>
    %c1_55 = arith.constant 1 : index
    %c0_56 = arith.constant 0 : index
    %c0_57 = arith.constant 0 : index
    %52 = vector.load %arg5[%c1_55, %c0_56, %c0_57] : memref<2x128x72xf32, #tpu.memory_space<vmem>>, vector<1x128x72xf32>
    %53 = vector.shape_cast %52 : vector<1x128x72xf32> to vector<128x72xf32>
    %cst_58 = arith.constant dense<0.000000e+00> : vector<256x72xf32>
    %54 = tpu.matmul %51, %53, %cst_58 {dimension_numbers = #tpu.dot_dimension_numbers<[1], [0], [0], [1], [0, 0, 1, 1], [], []>} : vector<256x128xf32>, vector<128x72xf32>, vector<256x72xf32> -> vector<256x72xf32>
    %cst_59 = arith.constant 0.000000e+00 : f32
    %55 = vector.broadcast %cst_59 : f32 to vector<18x18x72xf32>
    %c0_60 = arith.constant 0 : index
    %c0_61 = arith.constant 0 : index
    %c0_62 = arith.constant 0 : index
    %56 = vector.load %arg12[%c0_60, %c0_61, %c0_62] : memref<18x18x72xf32, #tpu.memory_space<vmem>>, vector<18x18x72xf32>
    tpu.vector_store %arg12[%c0_60, %c0_61, %c0_62], %55 {strides = array<i32>} : memref<18x18x72xf32, #tpu.memory_space<vmem>>, vector<18x18x72xf32>,
    %cst_63 = arith.constant 0.000000e+00 : f32
    %57 = vector.broadcast %cst_63 : f32 to vector<18x18x4xf32>
    %c0_64 = arith.constant 0 : index
    %c0_65 = arith.constant 0 : index
    %c0_66 = arith.constant 0 : index
    %58 = vector.load %arg13[%c0_64, %c0_65, %c0_66] : memref<18x18x4xf32, #tpu.memory_space<vmem>>, vector<18x18x4xf32>
    tpu.vector_store %arg13[%c0_64, %c0_65, %c0_66], %57 {strides = array<i32>} : memref<18x18x4xf32, #tpu.memory_space<vmem>>, vector<18x18x4xf32>,
    %c0_67 = arith.constant 0 : index
    %c0_68 = arith.constant 0 : index
    %c0_69 = arith.constant 0 : index
    %59 = vector.load %arg2[%c0_67, %c0_68, %c0_69] : memref<1x256x4xf32, #tpu.memory_space<vmem>>, vector<1x256x4xf32>
    %60 = vector.shape_cast %59 : vector<1x256x4xf32> to vector<256x4xf32>
    %61 = vector.shape_cast %50 : vector<256x72xf32> to vector<16x16x72xf32>
    %c1_70 = arith.constant 1 : index
    %c1_71 = arith.constant 1 : index
    %c0_72 = arith.constant 0 : index
    %62 = vector.load %arg12[%c1_70, %c1_71, %c0_72] : memref<18x18x72xf32, #tpu.memory_space<vmem>>, vector<16x16x72xf32>
    tpu.vector_store %arg12[%c1_70, %c1_71, %c0_72], %61 {strides = array<i32>} : memref<18x18x72xf32, #tpu.memory_space<vmem>>, vector<16x16x72xf32>,
    %c0_73 = arith.constant 0 : index
    %c0_74 = arith.constant 0 : index
    %c0_75 = arith.constant 0 : index
    %63 = vector.load %arg6[%c0_73, %c0_74, %c0_75] : memref<2x1x8xf32, #tpu.memory_space<vmem>>, vector<1x1x8xf32>
    %64 = vector.shape_cast %63 : vector<1x1x8xf32> to vector<1x8xf32>
    %c0_76 = arith.constant 0 : index
    %c0_77 = arith.constant 0 : index
    %c0_78 = arith.constant 0 : index
    %65 = vector.load %arg12[%c0_76, %c0_77, %c0_78] : memref<18x18x72xf32, #tpu.memory_space<vmem>>, vector<16x16x8xf32>
    %66 = vector.shape_cast %65 : vector<16x16x8xf32> to vector<256x8xf32>
    %67 = vector.broadcast %64 : vector<1x8xf32> to vector<256x8xf32>
    %68 = arith.addf %67, %66 : vector<256x8xf32>
    %c0_79 = arith.constant 0 : index
    %c1_80 = arith.constant 1 : index
    %c8_81 = arith.constant 8 : index
    %69 = vector.load %arg12[%c0_79, %c1_80, %c8_81] : memref<18x18x72xf32, #tpu.memory_space<vmem>>, vector<16x16x8xf32>
    %70 = vector.shape_cast %69 : vector<16x16x8xf32> to vector<256x8xf32>
    %71 = arith.addf %68, %70 : vector<256x8xf32>
    %c0_82 = arith.constant 0 : index
    %c2_83 = arith.constant 2 : index
    %c16_84 = arith.constant 16 : index
    %72 = vector.load %arg12[%c0_82, %c2_83, %c16_84] : memref<18x18x72xf32, #tpu.memory_space<vmem>>, vector<16x16x8xf32>
    %73 = vector.shape_cast %72 : vector<16x16x8xf32> to vector<256x8xf32>
    %74 = arith.addf %71, %73 : vector<256x8xf32>
    %c1_85 = arith.constant 1 : index
    %c0_86 = arith.constant 0 : index
    %c24_87 = arith.constant 24 : index
    %75 = vector.load %arg12[%c1_85, %c0_86, %c24_87] : memref<18x18x72xf32, #tpu.memory_space<vmem>>, vector<16x16x8xf32>
    %76 = vector.shape_cast %75 : vector<16x16x8xf32> to vector<256x8xf32>
    %77 = arith.addf %74, %76 : vector<256x8xf32>
    %c1_88 = arith.constant 1 : index
    %c1_89 = arith.constant 1 : index
    %c32_90 = arith.constant 32 : index
    %78 = vector.load %arg12[%c1_88, %c1_89, %c32_90] : memref<18x18x72xf32, #tpu.memory_space<vmem>>, vector<16x16x8xf32>
    %79 = vector.shape_cast %78 : vector<16x16x8xf32> to vector<256x8xf32>
    %80 = arith.addf %77, %79 : vector<256x8xf32>
    %c1_91 = arith.constant 1 : index
    %c2_92 = arith.constant 2 : index
    %c40 = arith.constant 40 : index
    %81 = vector.load %arg12[%c1_91, %c2_92, %c40] : memref<18x18x72xf32, #tpu.memory_space<vmem>>, vector<16x16x8xf32>
    %82 = vector.shape_cast %81 : vector<16x16x8xf32> to vector<256x8xf32>
    %83 = arith.addf %80, %82 : vector<256x8xf32>
    %c2_93 = arith.constant 2 : index
    %c0_94 = arith.constant 0 : index
    %c48 = arith.constant 48 : index
    %84 = vector.load %arg12[%c2_93, %c0_94, %c48] : memref<18x18x72xf32, #tpu.memory_space<vmem>>, vector<16x16x8xf32>
    %85 = vector.shape_cast %84 : vector<16x16x8xf32> to vector<256x8xf32>
    %86 = arith.addf %83, %85 : vector<256x8xf32>
    %c2_95 = arith.constant 2 : index
    %c1_96 = arith.constant 1 : index
    %c56 = arith.constant 56 : index
    %87 = vector.load %arg12[%c2_95, %c1_96, %c56] : memref<18x18x72xf32, #tpu.memory_space<vmem>>, vector<16x16x8xf32>
    %88 = vector.shape_cast %87 : vector<16x16x8xf32> to vector<256x8xf32>
    %89 = arith.addf %86, %88 : vector<256x8xf32>
    %c2_97 = arith.constant 2 : index
    %c2_98 = arith.constant 2 : index
    %c64 = arith.constant 64 : index
    %90 = vector.load %arg12[%c2_97, %c2_98, %c64] : memref<18x18x72xf32, #tpu.memory_space<vmem>>, vector<16x16x8xf32>
    %91 = vector.shape_cast %90 : vector<16x16x8xf32> to vector<256x8xf32>
    %92 = arith.addf %89, %91 : vector<256x8xf32>
    %93 = vector.extract_strided_slice %92 {offsets = [0, 0], sizes = [256, 4], strides = [1, 1]} : vector<256x8xf32> to vector<256x4xf32>
    %cst_99 = arith.constant 1.000000e+00 : f32
    %94 = vector.broadcast %cst_99 : f32 to vector<256x4xf32>
    %95 = arith.addf %94, %93 : vector<256x4xf32>
    %96 = arith.mulf %60, %95 : vector<256x4xf32>
    %97 = vector.extract_strided_slice %92 {offsets = [0, 4], sizes = [256, 4], strides = [1, 1]} : vector<256x8xf32> to vector<256x4xf32>
    %98 = arith.addf %96, %97 : vector<256x4xf32>
    %cst_100 = arith.constant 0.000000e+00 : f32
    %99 = vector.broadcast %cst_100 : f32 to vector<256x4xf32>
    %100 = arith.cmpf ogt, %98, %99 : vector<256x4xf32>
    %cst_101 = arith.constant 2.000000e-01 : f32
    %101 = vector.broadcast %cst_101 : f32 to vector<256x4xf32>
    %102 = arith.mulf %101, %98 : vector<256x4xf32>
    %103 = arith.select %100, %98, %102 : vector<256x4xi1>, vector<256x4xf32>
    %104 = vector.shape_cast %103 : vector<256x4xf32> to vector<16x16x4xf32>
    %c1_102 = arith.constant 1 : index
    %c1_103 = arith.constant 1 : index
    %c0_104 = arith.constant 0 : index
    %105 = vector.load %arg13[%c1_102, %c1_103, %c0_104] : memref<18x18x4xf32, #tpu.memory_space<vmem>>, vector<16x16x4xf32>
    tpu.vector_store %arg13[%c1_102, %c1_103, %c0_104], %104 {strides = array<i32>} : memref<18x18x4xf32, #tpu.memory_space<vmem>>, vector<16x16x4xf32>,
    %c0_105 = arith.constant 0 : index
    %c0_106 = arith.constant 0 : index
    %c0_107 = arith.constant 0 : index
    %106 = vector.load %arg13[%c0_105, %c0_106, %c0_107] : memref<18x18x4xf32, #tpu.memory_space<vmem>>, vector<16x16x4xf32>
    %107 = vector.shape_cast %106 : vector<16x16x4xf32> to vector<256x4xf32>
    %c0_108 = arith.constant 0 : index
    %c0_109 = arith.constant 0 : index
    %108 = vector.load %arg11[%c0_108, %c0_109] : memref<256x36xf32, #tpu.memory_space<vmem>>, vector<256x4xf32>
    tpu.vector_store %arg11[%c0_108, %c0_109], %107 {strides = array<i32>} : memref<256x36xf32, #tpu.memory_space<vmem>>, vector<256x4xf32>,
    %c0_110 = arith.constant 0 : index
    %c1_111 = arith.constant 1 : index
    %c0_112 = arith.constant 0 : index
    %109 = vector.load %arg13[%c0_110, %c1_111, %c0_112] : memref<18x18x4xf32, #tpu.memory_space<vmem>>, vector<16x16x4xf32>
    %110 = vector.shape_cast %109 : vector<16x16x4xf32> to vector<256x4xf32>
    %c0_113 = arith.constant 0 : index
    %c4_114 = arith.constant 4 : index
    %111 = vector.load %arg11[%c0_113, %c4_114] : memref<256x36xf32, #tpu.memory_space<vmem>>, vector<256x4xf32>
    tpu.vector_store %arg11[%c0_113, %c4_114], %110 {strides = array<i32>} : memref<256x36xf32, #tpu.memory_space<vmem>>, vector<256x4xf32>,
    %c0_115 = arith.constant 0 : index
    %c2_116 = arith.constant 2 : index
    %c0_117 = arith.constant 0 : index
    %112 = vector.load %arg13[%c0_115, %c2_116, %c0_117] : memref<18x18x4xf32, #tpu.memory_space<vmem>>, vector<16x16x4xf32>
    %113 = vector.shape_cast %112 : vector<16x16x4xf32> to vector<256x4xf32>
    %c0_118 = arith.constant 0 : index
    %c8_119 = arith.constant 8 : index
    %114 = vector.load %arg11[%c0_118, %c8_119] : memref<256x36xf32, #tpu.memory_space<vmem>>, vector<256x4xf32>
    tpu.vector_store %arg11[%c0_118, %c8_119], %113 {strides = array<i32>} : memref<256x36xf32, #tpu.memory_space<vmem>>, vector<256x4xf32>,
    %c1_120 = arith.constant 1 : index
    %c0_121 = arith.constant 0 : index
    %c0_122 = arith.constant 0 : index
    %115 = vector.load %arg13[%c1_120, %c0_121, %c0_122] : memref<18x18x4xf32, #tpu.memory_space<vmem>>, vector<16x16x4xf32>
    %116 = vector.shape_cast %115 : vector<16x16x4xf32> to vector<256x4xf32>
    %c0_123 = arith.constant 0 : index
    %c12_124 = arith.constant 12 : index
    %117 = vector.load %arg11[%c0_123, %c12_124] : memref<256x36xf32, #tpu.memory_space<vmem>>, vector<256x4xf32>
    tpu.vector_store %arg11[%c0_123, %c12_124], %116 {strides = array<i32>} : memref<256x36xf32, #tpu.memory_space<vmem>>, vector<256x4xf32>,
    %c1_125 = arith.constant 1 : index
    %c1_126 = arith.constant 1 : index
    %c0_127 = arith.constant 0 : index
    %118 = vector.load %arg13[%c1_125, %c1_126, %c0_127] : memref<18x18x4xf32, #tpu.memory_space<vmem>>, vector<16x16x4xf32>
    %119 = vector.shape_cast %118 : vector<16x16x4xf32> to vector<256x4xf32>
    %c0_128 = arith.constant 0 : index
    %c16_129 = arith.constant 16 : index
    %120 = vector.load %arg11[%c0_128, %c16_129] : memref<256x36xf32, #tpu.memory_space<vmem>>, vector<256x4xf32>
    tpu.vector_store %arg11[%c0_128, %c16_129], %119 {strides = array<i32>} : memref<256x36xf32, #tpu.memory_space<vmem>>, vector<256x4xf32>,
    %c1_130 = arith.constant 1 : index
    %c2_131 = arith.constant 2 : index
    %c0_132 = arith.constant 0 : index
    %121 = vector.load %arg13[%c1_130, %c2_131, %c0_132] : memref<18x18x4xf32, #tpu.memory_space<vmem>>, vector<16x16x4xf32>
    %122 = vector.shape_cast %121 : vector<16x16x4xf32> to vector<256x4xf32>
    %c0_133 = arith.constant 0 : index
    %c20_134 = arith.constant 20 : index
    %123 = vector.load %arg11[%c0_133, %c20_134] : memref<256x36xf32, #tpu.memory_space<vmem>>, vector<256x4xf32>
    tpu.vector_store %arg11[%c0_133, %c20_134], %122 {strides = array<i32>} : memref<256x36xf32, #tpu.memory_space<vmem>>, vector<256x4xf32>,
    %c2_135 = arith.constant 2 : index
    %c0_136 = arith.constant 0 : index
    %c0_137 = arith.constant 0 : index
    %124 = vector.load %arg13[%c2_135, %c0_136, %c0_137] : memref<18x18x4xf32, #tpu.memory_space<vmem>>, vector<16x16x4xf32>
    %125 = vector.shape_cast %124 : vector<16x16x4xf32> to vector<256x4xf32>
    %c0_138 = arith.constant 0 : index
    %c24_139 = arith.constant 24 : index
    %126 = vector.load %arg11[%c0_138, %c24_139] : memref<256x36xf32, #tpu.memory_space<vmem>>, vector<256x4xf32>
    tpu.vector_store %arg11[%c0_138, %c24_139], %125 {strides = array<i32>} : memref<256x36xf32, #tpu.memory_space<vmem>>, vector<256x4xf32>,
    %c2_140 = arith.constant 2 : index
    %c1_141 = arith.constant 1 : index
    %c0_142 = arith.constant 0 : index
    %127 = vector.load %arg13[%c2_140, %c1_141, %c0_142] : memref<18x18x4xf32, #tpu.memory_space<vmem>>, vector<16x16x4xf32>
    %128 = vector.shape_cast %127 : vector<16x16x4xf32> to vector<256x4xf32>
    %c0_143 = arith.constant 0 : index
    %c28_144 = arith.constant 28 : index
    %129 = vector.load %arg11[%c0_143, %c28_144] : memref<256x36xf32, #tpu.memory_space<vmem>>, vector<256x4xf32>
    tpu.vector_store %arg11[%c0_143, %c28_144], %128 {strides = array<i32>} : memref<256x36xf32, #tpu.memory_space<vmem>>, vector<256x4xf32>,
    %c2_145 = arith.constant 2 : index
    %c2_146 = arith.constant 2 : index
    %c0_147 = arith.constant 0 : index
    %130 = vector.load %arg13[%c2_145, %c2_146, %c0_147] : memref<18x18x4xf32, #tpu.memory_space<vmem>>, vector<16x16x4xf32>
    %131 = vector.shape_cast %130 : vector<16x16x4xf32> to vector<256x4xf32>
    %c0_148 = arith.constant 0 : index
    %c32_149 = arith.constant 32 : index
    %132 = vector.load %arg11[%c0_148, %c32_149] : memref<256x36xf32, #tpu.memory_space<vmem>>, vector<256x4xf32>
    tpu.vector_store %arg11[%c0_148, %c32_149], %131 {strides = array<i32>} : memref<256x36xf32, #tpu.memory_space<vmem>>, vector<256x4xf32>,
    %c0_150 = arith.constant 0 : index
    %c0_151 = arith.constant 0 : index
    %133 = vector.load %arg11[%c0_150, %c0_151] : memref<256x36xf32, #tpu.memory_space<vmem>>, vector<256x36xf32>
    %c0_152 = arith.constant 0 : index
    %c0_153 = arith.constant 0 : index
    %c0_154 = arith.constant 0 : index
    %134 = vector.load %arg7[%c0_152, %c0_153, %c0_154] : memref<2x36x4xf32, #tpu.memory_space<vmem>>, vector<1x36x4xf32>
    %135 = vector.shape_cast %134 : vector<1x36x4xf32> to vector<36x4xf32>
    %cst_155 = arith.constant dense<0.000000e+00> : vector<256x4xf32>
    %136 = tpu.matmul %133, %135, %cst_155 {dimension_numbers = #tpu.dot_dimension_numbers<[1], [0], [0], [1], [0, 0, 1, 1], [], []>} : vector<256x36xf32>, vector<36x4xf32>, vector<256x4xf32> -> vector<256x4xf32>
    %c0_156 = arith.constant 0 : index
    %c0_157 = arith.constant 0 : index
    %c0_158 = arith.constant 0 : index
    %137 = vector.load %arg8[%c0_156, %c0_157, %c0_158] : memref<2x1x4xf32, #tpu.memory_space<vmem>>, vector<1x1x4xf32>
    %138 = vector.shape_cast %137 : vector<1x1x4xf32> to vector<1x4xf32>
    %139 = vector.broadcast %138 : vector<1x4xf32> to vector<256x4xf32>
    %140 = arith.addf %136, %139 : vector<256x4xf32>
    %141 = vector.shape_cast %54 : vector<256x72xf32> to vector<16x16x72xf32>
    %c1_159 = arith.constant 1 : index
    %c1_160 = arith.constant 1 : index
    %c0_161 = arith.constant 0 : index
    %142 = vector.load %arg12[%c1_159, %c1_160, %c0_161] : memref<18x18x72xf32, #tpu.memory_space<vmem>>, vector<16x16x72xf32>
    tpu.vector_store %arg12[%c1_159, %c1_160, %c0_161], %141 {strides = array<i32>} : memref<18x18x72xf32, #tpu.memory_space<vmem>>, vector<16x16x72xf32>,
    %c1_162 = arith.constant 1 : index
    %c0_163 = arith.constant 0 : index
    %c0_164 = arith.constant 0 : index
    %143 = vector.load %arg6[%c1_162, %c0_163, %c0_164] : memref<2x1x8xf32, #tpu.memory_space<vmem>>, vector<1x1x8xf32>
    %144 = vector.shape_cast %143 : vector<1x1x8xf32> to vector<1x8xf32>
    %c0_165 = arith.constant 0 : index
    %c0_166 = arith.constant 0 : index
    %c0_167 = arith.constant 0 : index
    %145 = vector.load %arg12[%c0_165, %c0_166, %c0_167] : memref<18x18x72xf32, #tpu.memory_space<vmem>>, vector<16x16x8xf32>
    %146 = vector.shape_cast %145 : vector<16x16x8xf32> to vector<256x8xf32>
    %147 = vector.broadcast %144 : vector<1x8xf32> to vector<256x8xf32>
    %148 = arith.addf %147, %146 : vector<256x8xf32>
    %c0_168 = arith.constant 0 : index
    %c1_169 = arith.constant 1 : index
    %c8_170 = arith.constant 8 : index
    %149 = vector.load %arg12[%c0_168, %c1_169, %c8_170] : memref<18x18x72xf32, #tpu.memory_space<vmem>>, vector<16x16x8xf32>
    %150 = vector.shape_cast %149 : vector<16x16x8xf32> to vector<256x8xf32>
    %151 = arith.addf %148, %150 : vector<256x8xf32>
    %c0_171 = arith.constant 0 : index
    %c2_172 = arith.constant 2 : index
    %c16_173 = arith.constant 16 : index
    %152 = vector.load %arg12[%c0_171, %c2_172, %c16_173] : memref<18x18x72xf32, #tpu.memory_space<vmem>>, vector<16x16x8xf32>
    %153 = vector.shape_cast %152 : vector<16x16x8xf32> to vector<256x8xf32>
    %154 = arith.addf %151, %153 : vector<256x8xf32>
    %c1_174 = arith.constant 1 : index
    %c0_175 = arith.constant 0 : index
    %c24_176 = arith.constant 24 : index
    %155 = vector.load %arg12[%c1_174, %c0_175, %c24_176] : memref<18x18x72xf32, #tpu.memory_space<vmem>>, vector<16x16x8xf32>
    %156 = vector.shape_cast %155 : vector<16x16x8xf32> to vector<256x8xf32>
    %157 = arith.addf %154, %156 : vector<256x8xf32>
    %c1_177 = arith.constant 1 : index
    %c1_178 = arith.constant 1 : index
    %c32_179 = arith.constant 32 : index
    %158 = vector.load %arg12[%c1_177, %c1_178, %c32_179] : memref<18x18x72xf32, #tpu.memory_space<vmem>>, vector<16x16x8xf32>
    %159 = vector.shape_cast %158 : vector<16x16x8xf32> to vector<256x8xf32>
    %160 = arith.addf %157, %159 : vector<256x8xf32>
    %c1_180 = arith.constant 1 : index
    %c2_181 = arith.constant 2 : index
    %c40_182 = arith.constant 40 : index
    %161 = vector.load %arg12[%c1_180, %c2_181, %c40_182] : memref<18x18x72xf32, #tpu.memory_space<vmem>>, vector<16x16x8xf32>
    %162 = vector.shape_cast %161 : vector<16x16x8xf32> to vector<256x8xf32>
    %163 = arith.addf %160, %162 : vector<256x8xf32>
    %c2_183 = arith.constant 2 : index
    %c0_184 = arith.constant 0 : index
    %c48_185 = arith.constant 48 : index
    %164 = vector.load %arg12[%c2_183, %c0_184, %c48_185] : memref<18x18x72xf32, #tpu.memory_space<vmem>>, vector<16x16x8xf32>
    %165 = vector.shape_cast %164 : vector<16x16x8xf32> to vector<256x8xf32>
    %166 = arith.addf %163, %165 : vector<256x8xf32>
    %c2_186 = arith.constant 2 : index
    %c1_187 = arith.constant 1 : index
    %c56_188 = arith.constant 56 : index
    %167 = vector.load %arg12[%c2_186, %c1_187, %c56_188] : memref<18x18x72xf32, #tpu.memory_space<vmem>>, vector<16x16x8xf32>
    %168 = vector.shape_cast %167 : vector<16x16x8xf32> to vector<256x8xf32>
    %169 = arith.addf %166, %168 : vector<256x8xf32>
    %c2_189 = arith.constant 2 : index
    %c2_190 = arith.constant 2 : index
    %c64_191 = arith.constant 64 : index
    %170 = vector.load %arg12[%c2_189, %c2_190, %c64_191] : memref<18x18x72xf32, #tpu.memory_space<vmem>>, vector<16x16x8xf32>
    %171 = vector.shape_cast %170 : vector<16x16x8xf32> to vector<256x8xf32>
    %172 = arith.addf %169, %171 : vector<256x8xf32>
    %173 = vector.extract_strided_slice %172 {offsets = [0, 0], sizes = [256, 4], strides = [1, 1]} : vector<256x8xf32> to vector<256x4xf32>
    %cst_192 = arith.constant 1.000000e+00 : f32
    %174 = vector.broadcast %cst_192 : f32 to vector<256x4xf32>
    %175 = arith.addf %174, %173 : vector<256x4xf32>
    %176 = arith.mulf %140, %175 : vector<256x4xf32>
    %177 = vector.extract_strided_slice %172 {offsets = [0, 4], sizes = [256, 4], strides = [1, 1]} : vector<256x8xf32> to vector<256x4xf32>
    %178 = arith.addf %176, %177 : vector<256x4xf32>
    %cst_193 = arith.constant 0.000000e+00 : f32
    %179 = vector.broadcast %cst_193 : f32 to vector<256x4xf32>
    %180 = arith.cmpf ogt, %178, %179 : vector<256x4xf32>
    %cst_194 = arith.constant 2.000000e-01 : f32
    %181 = vector.broadcast %cst_194 : f32 to vector<256x4xf32>
    %182 = arith.mulf %181, %178 : vector<256x4xf32>
    %183 = arith.select %180, %178, %182 : vector<256x4xi1>, vector<256x4xf32>
    %184 = vector.shape_cast %183 : vector<256x4xf32> to vector<16x16x4xf32>
    %c1_195 = arith.constant 1 : index
    %c1_196 = arith.constant 1 : index
    %c0_197 = arith.constant 0 : index
    %185 = vector.load %arg13[%c1_195, %c1_196, %c0_197] : memref<18x18x4xf32, #tpu.memory_space<vmem>>, vector<16x16x4xf32>
    tpu.vector_store %arg13[%c1_195, %c1_196, %c0_197], %184 {strides = array<i32>} : memref<18x18x4xf32, #tpu.memory_space<vmem>>, vector<16x16x4xf32>,
    %c0_198 = arith.constant 0 : index
    %c0_199 = arith.constant 0 : index
    %c0_200 = arith.constant 0 : index
    %186 = vector.load %arg13[%c0_198, %c0_199, %c0_200] : memref<18x18x4xf32, #tpu.memory_space<vmem>>, vector<16x16x4xf32>
    %187 = vector.shape_cast %186 : vector<16x16x4xf32> to vector<256x4xf32>
    %c0_201 = arith.constant 0 : index
    %c0_202 = arith.constant 0 : index
    %188 = vector.load %arg11[%c0_201, %c0_202] : memref<256x36xf32, #tpu.memory_space<vmem>>, vector<256x4xf32>
    tpu.vector_store %arg11[%c0_201, %c0_202], %187 {strides = array<i32>} : memref<256x36xf32, #tpu.memory_space<vmem>>, vector<256x4xf32>,
    %c0_203 = arith.constant 0 : index
    %c1_204 = arith.constant 1 : index
    %c0_205 = arith.constant 0 : index
    %189 = vector.load %arg13[%c0_203, %c1_204, %c0_205] : memref<18x18x4xf32, #tpu.memory_space<vmem>>, vector<16x16x4xf32>
    %190 = vector.shape_cast %189 : vector<16x16x4xf32> to vector<256x4xf32>
    %c0_206 = arith.constant 0 : index
    %c4_207 = arith.constant 4 : index
    %191 = vector.load %arg11[%c0_206, %c4_207] : memref<256x36xf32, #tpu.memory_space<vmem>>, vector<256x4xf32>
    tpu.vector_store %arg11[%c0_206, %c4_207], %190 {strides = array<i32>} : memref<256x36xf32, #tpu.memory_space<vmem>>, vector<256x4xf32>,
    %c0_208 = arith.constant 0 : index
    %c2_209 = arith.constant 2 : index
    %c0_210 = arith.constant 0 : index
    %192 = vector.load %arg13[%c0_208, %c2_209, %c0_210] : memref<18x18x4xf32, #tpu.memory_space<vmem>>, vector<16x16x4xf32>
    %193 = vector.shape_cast %192 : vector<16x16x4xf32> to vector<256x4xf32>
    %c0_211 = arith.constant 0 : index
    %c8_212 = arith.constant 8 : index
    %194 = vector.load %arg11[%c0_211, %c8_212] : memref<256x36xf32, #tpu.memory_space<vmem>>, vector<256x4xf32>
    tpu.vector_store %arg11[%c0_211, %c8_212], %193 {strides = array<i32>} : memref<256x36xf32, #tpu.memory_space<vmem>>, vector<256x4xf32>,
    %c1_213 = arith.constant 1 : index
    %c0_214 = arith.constant 0 : index
    %c0_215 = arith.constant 0 : index
    %195 = vector.load %arg13[%c1_213, %c0_214, %c0_215] : memref<18x18x4xf32, #tpu.memory_space<vmem>>, vector<16x16x4xf32>
    %196 = vector.shape_cast %195 : vector<16x16x4xf32> to vector<256x4xf32>
    %c0_216 = arith.constant 0 : index
    %c12_217 = arith.constant 12 : index
    %197 = vector.load %arg11[%c0_216, %c12_217] : memref<256x36xf32, #tpu.memory_space<vmem>>, vector<256x4xf32>
    tpu.vector_store %arg11[%c0_216, %c12_217], %196 {strides = array<i32>} : memref<256x36xf32, #tpu.memory_space<vmem>>, vector<256x4xf32>,
    %c1_218 = arith.constant 1 : index
    %c1_219 = arith.constant 1 : index
    %c0_220 = arith.constant 0 : index
    %198 = vector.load %arg13[%c1_218, %c1_219, %c0_220] : memref<18x18x4xf32, #tpu.memory_space<vmem>>, vector<16x16x4xf32>
    %199 = vector.shape_cast %198 : vector<16x16x4xf32> to vector<256x4xf32>
    %c0_221 = arith.constant 0 : index
    %c16_222 = arith.constant 16 : index
    %200 = vector.load %arg11[%c0_221, %c16_222] : memref<256x36xf32, #tpu.memory_space<vmem>>, vector<256x4xf32>
    tpu.vector_store %arg11[%c0_221, %c16_222], %199 {strides = array<i32>} : memref<256x36xf32, #tpu.memory_space<vmem>>, vector<256x4xf32>,
    %c1_223 = arith.constant 1 : index
    %c2_224 = arith.constant 2 : index
    %c0_225 = arith.constant 0 : index
    %201 = vector.load %arg13[%c1_223, %c2_224, %c0_225] : memref<18x18x4xf32, #tpu.memory_space<vmem>>, vector<16x16x4xf32>
    %202 = vector.shape_cast %201 : vector<16x16x4xf32> to vector<256x4xf32>
    %c0_226 = arith.constant 0 : index
    %c20_227 = arith.constant 20 : index
    %203 = vector.load %arg11[%c0_226, %c20_227] : memref<256x36xf32, #tpu.memory_space<vmem>>, vector<256x4xf32>
    tpu.vector_store %arg11[%c0_226, %c20_227], %202 {strides = array<i32>} : memref<256x36xf32, #tpu.memory_space<vmem>>, vector<256x4xf32>,
    %c2_228 = arith.constant 2 : index
    %c0_229 = arith.constant 0 : index
    %c0_230 = arith.constant 0 : index
    %204 = vector.load %arg13[%c2_228, %c0_229, %c0_230] : memref<18x18x4xf32, #tpu.memory_space<vmem>>, vector<16x16x4xf32>
    %205 = vector.shape_cast %204 : vector<16x16x4xf32> to vector<256x4xf32>
    %c0_231 = arith.constant 0 : index
    %c24_232 = arith.constant 24 : index
    %206 = vector.load %arg11[%c0_231, %c24_232] : memref<256x36xf32, #tpu.memory_space<vmem>>, vector<256x4xf32>
    tpu.vector_store %arg11[%c0_231, %c24_232], %205 {strides = array<i32>} : memref<256x36xf32, #tpu.memory_space<vmem>>, vector<256x4xf32>,
    %c2_233 = arith.constant 2 : index
    %c1_234 = arith.constant 1 : index
    %c0_235 = arith.constant 0 : index
    %207 = vector.load %arg13[%c2_233, %c1_234, %c0_235] : memref<18x18x4xf32, #tpu.memory_space<vmem>>, vector<16x16x4xf32>
    %208 = vector.shape_cast %207 : vector<16x16x4xf32> to vector<256x4xf32>
    %c0_236 = arith.constant 0 : index
    %c28_237 = arith.constant 28 : index
    %209 = vector.load %arg11[%c0_236, %c28_237] : memref<256x36xf32, #tpu.memory_space<vmem>>, vector<256x4xf32>
    tpu.vector_store %arg11[%c0_236, %c28_237], %208 {strides = array<i32>} : memref<256x36xf32, #tpu.memory_space<vmem>>, vector<256x4xf32>,
    %c2_238 = arith.constant 2 : index
    %c2_239 = arith.constant 2 : index
    %c0_240 = arith.constant 0 : index
    %210 = vector.load %arg13[%c2_238, %c2_239, %c0_240] : memref<18x18x4xf32, #tpu.memory_space<vmem>>, vector<16x16x4xf32>
    %211 = vector.shape_cast %210 : vector<16x16x4xf32> to vector<256x4xf32>
    %c0_241 = arith.constant 0 : index
    %c32_242 = arith.constant 32 : index
    %212 = vector.load %arg11[%c0_241, %c32_242] : memref<256x36xf32, #tpu.memory_space<vmem>>, vector<256x4xf32>
    tpu.vector_store %arg11[%c0_241, %c32_242], %211 {strides = array<i32>} : memref<256x36xf32, #tpu.memory_space<vmem>>, vector<256x4xf32>,
    %c0_243 = arith.constant 0 : index
    %c0_244 = arith.constant 0 : index
    %213 = vector.load %arg11[%c0_243, %c0_244] : memref<256x36xf32, #tpu.memory_space<vmem>>, vector<256x36xf32>
    %c1_245 = arith.constant 1 : index
    %c0_246 = arith.constant 0 : index
    %c0_247 = arith.constant 0 : index
    %214 = vector.load %arg7[%c1_245, %c0_246, %c0_247] : memref<2x36x4xf32, #tpu.memory_space<vmem>>, vector<1x36x4xf32>
    %215 = vector.shape_cast %214 : vector<1x36x4xf32> to vector<36x4xf32>
    %cst_248 = arith.constant dense<0.000000e+00> : vector<256x4xf32>
    %216 = tpu.matmul %213, %215, %cst_248 {dimension_numbers = #tpu.dot_dimension_numbers<[1], [0], [0], [1], [0, 0, 1, 1], [], []>} : vector<256x36xf32>, vector<36x4xf32>, vector<256x4xf32> -> vector<256x4xf32>
    %c1_249 = arith.constant 1 : index
    %c0_250 = arith.constant 0 : index
    %c0_251 = arith.constant 0 : index
    %217 = vector.load %arg8[%c1_249, %c0_250, %c0_251] : memref<2x1x4xf32, #tpu.memory_space<vmem>>, vector<1x1x4xf32>
    %218 = vector.shape_cast %217 : vector<1x1x4xf32> to vector<1x4xf32>
    %219 = vector.broadcast %218 : vector<1x4xf32> to vector<256x4xf32>
    %220 = arith.addf %216, %219 : vector<256x4xf32>
    %221 = arith.addf %60, %220 : vector<256x4xf32>
    %c0_252 = arith.constant 0 : index
    %c0_253 = arith.constant 0 : index
    %c0_254 = arith.constant 0 : index
    %222 = vector.load %arg9[%c0_252, %c0_253, %c0_254] : memref<1x256x4xf32, #tpu.memory_space<vmem>>, vector<1x256x4xf32>
    %223 = vector.shape_cast %222 : vector<1x256x4xf32> to vector<256x4xf32>
    %224 = vector.shape_cast %221 : vector<256x4xf32> to vector<1x256x4xf32>
    tpu.vector_store %arg9[%c0_252, %c0_253, %c0_254], %224 {strides = array<i32>} : memref<1x256x4xf32, #tpu.memory_space<vmem>>, vector<1x256x4xf32>,
    return
  }
  func.func @transform_0(%arg0: i32) -> (i32, i32, i32, i32) {
    %c0_i32 = arith.constant 0 : i32
    %c0_i32_0 = arith.constant 0 : i32
    %c0_i32_1 = arith.constant 0 : i32
    %c0_i32_2 = arith.constant 0 : i32
    return %arg0, %c0_i32, %c0_i32_0, %c0_i32_1 : i32, i32, i32, i32
  }
  func.func @transform_1(%arg0: i32) -> (i32, i32, i32) {
    %c0_i32 = arith.constant 0 : i32
    %c0_i32_0 = arith.constant 0 : i32
    %c0_i32_1 = arith.constant 0 : i32
    return %arg0, %c0_i32, %c0_i32_0 : i32, i32, i32
  }
  func.func @transform_2(%arg0: i32) -> (i32, i32) {
    %c0_i32 = arith.constant 0 : i32
    %c0_i32_0 = arith.constant 0 : i32
    %c0_i32_1 = arith.constant 0 : i32
    return %c0_i32, %c0_i32_0 : i32, i32
  }
  func.func @transform_3(%arg0: i32) -> (i32, i32) {
    %c0_i32 = arith.constant 0 : i32
    %c0_i32_0 = arith.constant 0 : i32
    %c0_i32_1 = arith.constant 0 : i32
    return %c0_i32, %c0_i32_0 : i32, i32
  }
  func.func @transform_4(%arg0: i32) -> (i32, i32, i32) {
    %c0_i32 = arith.constant 0 : i32
    %c0_i32_0 = arith.constant 0 : i32
    %c0_i32_1 = arith.constant 0 : i32
    %c0_i32_2 = arith.constant 0 : i32
    return %c0_i32, %c0_i32_0, %c0_i32_1 : i32, i32, i32
  }
  func.func @transform_5(%arg0: i32) -> (i32, i32, i32) {
    %c0_i32 = arith.constant 0 : i32
    %c0_i32_0 = arith.constant 0 : i32
    %c0_i32_1 = arith.constant 0 : i32
    %c0_i32_2 = arith.constant 0 : i32
    return %c0_i32, %c0_i32_0, %c0_i32_1 : i32, i32, i32
  }
  func.func @transform_6(%arg0: i32) -> (i32, i32, i32) {
    %c0_i32 = arith.constant 0 : i32
    %c0_i32_0 = arith.constant 0 : i32
    %c0_i32_1 = arith.constant 0 : i32
    %c0_i32_2 = arith.constant 0 : i32
    return %c0_i32, %c0_i32_0, %c0_i32_1 : i32, i32, i32
  }
  func.func @transform_7(%arg0: i32) -> (i32, i32, i32) {
    %c0_i32 = arith.constant 0 : i32
    %c0_i32_0 = arith.constant 0 : i32
    %c0_i32_1 = arith.constant 0 : i32
    %c0_i32_2 = arith.constant 0 : i32
    return %c0_i32, %c0_i32_0, %c0_i32_1 : i32, i32, i32
  }
  func.func @transform_8(%arg0: i32) -> (i32, i32, i32) {
    %c0_i32 = arith.constant 0 : i32
    %c0_i32_0 = arith.constant 0 : i32
    %c0_i32_1 = arith.constant 0 : i32
    return %arg0, %c0_i32, %c0_i32_0 : i32, i32, i32
  }
}

</mosaic_0001>

<llo_original>
// kernel: sft_resblk_forward.1
$region0: #{sft_resblk_forward.1}
  #allocation0 [shape = 'u32[]', space=smem, size = 0x4, offset = 0x4, fixed_abs, tag = 'smem constant byte address 0x4 - core index']
  #allocation1 [shape = 'u32[72,128]{1,0:T(1,128)}', space=vmem, size = 0x9000, scoped, tag = 'internal scratch']
  #allocation2 [shape = 'f32[256,36]{1,0:T(8,128)}', space=vmem, size = 0x20000, scoped, tag = 'scratch operand']
  #allocation3 [shape = 'f32[256,36]{1,0:T(8,128)}', space=vmem, size = 0x20000, scoped, tag = 'scratch operand']
  #allocation4 [shape = 'f32[18,18,72]{2,1,0:T(8,128)}', space=vmem, size = 0x36000, scoped, tag = 'scratch operand']
  #allocation5 [shape = 'f32[18,18,4]{2,1,0:T(8,128)}', space=vmem, size = 0x36000, scoped, tag = 'scratch operand']
  %s0 = inlined_call_operand.vmem [shape: f32[2,18,18,4], index: 0, kind: input, shape index: {}]
  %s1 = inlined_call_operand.vmem [shape: f32[2,256,4], index: 1, kind: input, shape index: {}]
  %s2 = inlined_call_operand.vmem [shape: f32[36,256], index: 2, kind: input, shape index: {}]
  %s3 = inlined_call_operand.vmem [shape: f32[1,256], index: 3, kind: input, shape index: {}]
  %s4 = inlined_call_operand.vmem [shape: f32[2,128,72], index: 4, kind: input, shape index: {}]
  %s5 = inlined_call_operand.vmem [shape: f32[2,1,8], index: 5, kind: input, shape index: {}]
  %s6 = inlined_call_operand.vmem [shape: f32[2,36,4], index: 6, kind: input, shape index: {}]
  %s7 = inlined_call_operand.vmem [shape: f32[2,1,4], index: 7, kind: input, shape index: {}]
  %s8 = inlined_call_operand.vmem [shape: f32[2,256,4], index: 8, kind: output, shape index: {}]
  %s9 = sld [smem:[#allocation0]]
  $region65: #{sft_resblk_forward.1} parent=0
    _
  %s11 = ssub.s32 1, %s9
  %s12 = scalar_select 0, %s11, %s9
  loop: start=0, step=1, limit=4
  $region2: #{sft_resblk_forward.1} parent=0 // loop_pre_header
    _
  $region3: #{sft_resblk_forward.1} parent=0 // loop_header
    %s14 = sphi 0, %s18
    %p15 = scmp.ge.s32.totalorder %s14, 4
    %s24 = sphi 0, %s26
    %s27 = sphi 0, %s24
    %s28 = sphi 0, %s27
    %s44 = sphi 0, %s28
    %s50 = sphi 0, %s52
    %s53 = sphi 0, %s50
    %s54 = sphi 0, %s53
    %s70 = sphi 0, %s54
    %s74 = sphi 0, %s74
    %s76 = sphi 0, %s74
    %s77 = sphi 0, %s76
    %s91 = sphi 0, %s77
    %s95 = sphi 0, %s95
    %s97 = sphi 0, %s95
    %s98 = sphi 0, %s97
    %s112 = sphi 0, %s98
    %s116 = sphi 0, %s116
    %s118 = sphi 0, %s116
    %s119 = sphi 0, %s118
    %s133 = sphi 0, %s119
    %s137 = sphi 0, %s137
    %s139 = sphi 0, %s137
    %s140 = sphi 0, %s139
    %s154 = sphi 0, %s140
    %s158 = sphi 0, %s158
    %s160 = sphi 0, %s158
    %s161 = sphi 0, %s160
    %s175 = sphi 0, %s161
    %s179 = sphi 0, %s179
    %s181 = sphi 0, %s179
    %s182 = sphi 0, %s181
    %s196 = sphi 0, %s182
    %s202 = sphi 0, %s204
    %s205 = sphi 0, %s202
    %s206 = sphi 0, %s205
    %s222 = sphi 0, %s206
  $region4: #{sft_resblk_forward.1} parent=0 // loop_header_branch
    %17 = sbr.rel (%p15) target = $region8
  $region5: #{sft_resblk_forward.1} parent=0 // loop_body
    %s19 = ssub.s32 %s14, 1
    %s20 = ssub.s32 %s14, 2
    %s21 = sadd.s32 %s14, 1
    %s22 = ssub.s32 %s14, %s21
    %p23 = scmp.eq.s32.totalorder %s22, 0
    %s25 = sadd.s32 %s24, 1
    %s26 = scalar_select %p23, %s24, %s25
    %p29 = pneg %p23
    %p30 = scmp.eq.s32.totalorder %s14, 1
    %p31 = por %p29, %p30
    %p32 = scmp.ne.s32.totalorder %s24, %s27
    %p33 = scmp.eq.s32.totalorder %s14, 0
    %p34 = por %p32, %p33
    %p35 = scmp.ne.s32.totalorder %s24, %s27
    %p36 = scmp.eq.s32.totalorder %s19, 1
    %p37 = por %p35, %p36
    %p38 = scmp.ne.s32.totalorder %s27, %s28
    %p39 = scmp.eq.s32.totalorder %s19, 0
    %p40 = por %p38, %p39
    %p41 = scmp.ne.s32.totalorder %s27, %s28
    %p42 = scmp.eq.s32.totalorder %s20, 1
    %p43 = por %p41, %p42
    %p45 = scmp.ne.s32.totalorder %s28, %s44
    %p46 = scmp.eq.s32.totalorder %s20, 0
    %p47 = por %p45, %p46
    %s48 = ssub.s32 %s14, %s21
    %p49 = scmp.eq.s32.totalorder %s48, 0
    %s51 = sadd.s32 %s50, 1
    %s52 = scalar_select %p49, %s50, %s51
    %p55 = pneg %p49
    %p56 = scmp.eq.s32.totalorder %s14, 1
    %p57 = por %p55, %p56
    %p58 = scmp.ne.s32.totalorder %s50, %s53
    %p59 = scmp.eq.s32.totalorder %s14, 0
    %p60 = por %p58, %p59
    %p61 = scmp.ne.s32.totalorder %s50, %s53
    %p62 = scmp.eq.s32.totalorder %s19, 1
    %p63 = por %p61, %p62
    %p64 = scmp.ne.s32.totalorder %s53, %s54
    %p65 = scmp.eq.s32.totalorder %s19, 0
    %p66 = por %p64, %p65
    %p67 = scmp.ne.s32.totalorder %s53, %s54
    %p68 = scmp.eq.s32.totalorder %s20, 1
    %p69 = por %p67, %p68
    %p71 = scmp.ne.s32.totalorder %s54, %s70
    %p72 = scmp.eq.s32.totalorder %s20, 0
    %p73 = por %p71, %p72
    %s75 = sadd.s32 %s74, 1
    %p78 = scmp.eq.s32.totalorder %s14, 1
    %p79 = scmp.ne.s32.totalorder %s74, %s76
    %p80 = scmp.eq.s32.totalorder %s14, 0
    %p81 = por %p79, %p80
    %p82 = scmp.ne.s32.totalorder %s74, %s76
    %p83 = scmp.eq.s32.totalorder %s19, 1
    %p84 = por %p82, %p83
    %p85 = scmp.ne.s32.totalorder %s76, %s77
    %p86 = scmp.eq.s32.totalorder %s19, 0
    %p87 = por %p85, %p86
    %p88 = scmp.ne.s32.totalorder %s76, %s77
    %p89 = scmp.eq.s32.totalorder %s20, 1
    %p90 = por %p88, %p89
    %p92 = scmp.ne.s32.totalorder %s77, %s91
    %p93 = scmp.eq.s32.totalorder %s20, 0
    %p94 = por %p92, %p93
    %s96 = sadd.s32 %s95, 1
    %p99 = scmp.eq.s32.totalorder %s14, 1
    %p100 = scmp.ne.s32.totalorder %s95, %s97
    %p101 = scmp.eq.s32.totalorder %s14, 0
    %p102 = por %p100, %p101
    %p103 = scmp.ne.s32.totalorder %s95, %s97
    %p104 = scmp.eq.s32.totalorder %s19, 1
    %p105 = por %p103, %p104
    %p106 = scmp.ne.s32.totalorder %s97, %s98
    %p107 = scmp.eq.s32.totalorder %s19, 0
    %p108 = por %p106, %p107
    %p109 = scmp.ne.s32.totalorder %s97, %s98
    %p110 = scmp.eq.s32.totalorder %s20, 1
    %p111 = por %p109, %p110
    %p113 = scmp.ne.s32.totalorder %s98, %s112
    %p114 = scmp.eq.s32.totalorder %s20, 0
    %p115 = por %p113, %p114
    %s117 = sadd.s32 %s116, 1
    %p120 = scmp.eq.s32.totalorder %s14, 1
    %p121 = scmp.ne.s32.totalorder %s116, %s118
    %p122 = scmp.eq.s32.totalorder %s14, 0
    %p123 = por %p121, %p122
    %p124 = scmp.ne.s32.totalorder %s116, %s118
    %p125 = scmp.eq.s32.totalorder %s19, 1
    %p126 = por %p124, %p125
    %p127 = scmp.ne.s32.totalorder %s118, %s119
    %p128 = scmp.eq.s32.totalorder %s19, 0
    %p129 = por %p127, %p128
    %p130 = scmp.ne.s32.totalorder %s118, %s119
    %p131 = scmp.eq.s32.totalorder %s20, 1
    %p132 = por %p130, %p131
    %p134 = scmp.ne.s32.totalorder %s119, %s133
    %p135 = scmp.eq.s32.totalorder %s20, 0
    %p136 = por %p134, %p135
    %s138 = sadd.s32 %s137, 1
    %p141 = scmp.eq.s32.totalorder %s14, 1
    %p142 = scmp.ne.s32.totalorder %s137, %s139
    %p143 = scmp.eq.s32.totalorder %s14, 0
    %p144 = por %p142, %p143
    %p145 = scmp.ne.s32.totalorder %s137, %s139
    %p146 = scmp.eq.s32.totalorder %s19, 1
    %p147 = por %p145, %p146
    %p148 = scmp.ne.s32.totalorder %s139, %s140
    %p149 = scmp.eq.s32.totalorder %s19, 0
    %p150 = por %p148, %p149
    %p151 = scmp.ne.s32.totalorder %s139, %s140
    %p152 = scmp.eq.s32.totalorder %s20, 1
    %p153 = por %p151, %p152
    %p155 = scmp.ne.s32.totalorder %s140, %s154
    %p156 = scmp.eq.s32.totalorder %s20, 0
    %p157 = por %p155, %p156
    %s159 = sadd.s32 %s158, 1
    %p162 = scmp.eq.s32.totalorder %s14, 1
    %p163 = scmp.ne.s32.totalorder %s158, %s160
    %p164 = scmp.eq.s32.totalorder %s14, 0
    %p165 = por %p163, %p164
    %p166 = scmp.ne.s32.totalorder %s158, %s160
    %p167 = scmp.eq.s32.totalorder %s19, 1
    %p168 = por %p166, %p167
    %p169 = scmp.ne.s32.totalorder %s160, %s161
    %p170 = scmp.eq.s32.totalorder %s19, 0
    %p171 = por %p169, %p170
    %p172 = scmp.ne.s32.totalorder %s160, %s161
    %p173 = scmp.eq.s32.totalorder %s20, 1
    %p174 = por %p172, %p173
    %p176 = scmp.ne.s32.totalorder %s161, %s175
    %p177 = scmp.eq.s32.totalorder %s20, 0
    %p178 = por %p176, %p177
    %s180 = sadd.s32 %s179, 1
    %p183 = scmp.eq.s32.totalorder %s14, 1
    %p184 = scmp.ne.s32.totalorder %s179, %s181
    %p185 = scmp.eq.s32.totalorder %s14, 0
    %p186 = por %p184, %p185
    %p187 = scmp.ne.s32.totalorder %s179, %s181
    %p188 = scmp.eq.s32.totalorder %s19, 1
    %p189 = por %p187, %p188
    %p190 = scmp.ne.s32.totalorder %s181, %s182
    %p191 = scmp.eq.s32.totalorder %s19, 0
    %p192 = por %p190, %p191
    %p193 = scmp.ne.s32.totalorder %s181, %s182
    %p194 = scmp.eq.s32.totalorder %s20, 1
    %p195 = por %p193, %p194
    %p197 = scmp.ne.s32.totalorder %s182, %s196
    %p198 = scmp.eq.s32.totalorder %s20, 0
    %p199 = por %p197, %p198
    %s200 = ssub.s32 %s14, %s21
    %p201 = scmp.eq.s32.totalorder %s200, 0
    %s203 = sadd.s32 %s202, 1
    %s204 = scalar_select %p201, %s202, %s203
    %p207 = pneg %p201
    %p208 = scmp.eq.s32.totalorder %s14, 1
    %p209 = por %p207, %p208
    %p210 = scmp.ne.s32.totalorder %s202, %s205
    %p211 = scmp.eq.s32.totalorder %s14, 0
    %p212 = por %p210, %p211
    %p213 = scmp.ne.s32.totalorder %s202, %s205
    %p214 = scmp.eq.s32.totalorder %s19, 1
    %p215 = por %p213, %p214
    %p216 = scmp.ne.s32.totalorder %s205, %s206
    %p217 = scmp.eq.s32.totalorder %s19, 0
    %p218 = por %p216, %p217
    %p219 = scmp.ne.s32.totalorder %s205, %s206
    %p220 = scmp.eq.s32.totalorder %s20, 1
    %p221 = por %p219, %p220
    %p223 = scmp.ne.s32.totalorder %s206, %s222
    %p224 = scmp.eq.s32.totalorder %s20, 0
    %p225 = por %p223, %p224
    %p226 = scmp.le.s32.totalorder 1, %s14
    %p227 = scmp.lt.s32.totalorder %s14, 3
    %p228 = pnand %p226, %p227
    %p229 = pneg %p228
    // Predicated region
    $region9: #{sft_resblk_forward.1} parent=5 // pred_check
      _
    $region10: #{sft_resblk_forward.1} parent=5 // pred_check_branch
      %231 = sbr.rel (%p228) target = $region12
    $region11: #{sft_resblk_forward.1} parent=5 // pred_region
      %s232 = ssub.s32 %s14, 1
      // Predicated region
      $region13: #{sft_resblk_forward.1} parent=11 // pred_check
        %p233 = pneg %p87
      $region14: #{sft_resblk_forward.1} parent=11 // pred_check_branch
        %235 = sbr.rel (%p233) target = $region16
      $region15: #{sft_resblk_forward.1} parent=11 // pred_region
        _
      $region16: #{sft_resblk_forward.1} parent=11 // pred_fallthru
        _
      // Predicated region
      $region17: #{sft_resblk_forward.1} parent=11 // pred_check
        %p236 = pneg %p108
      $region18: #{sft_resblk_forward.1} parent=11 // pred_check_branch
        %238 = sbr.rel (%p236) target = $region20
      $region19: #{sft_resblk_forward.1} parent=11 // pred_region
        _
      $region20: #{sft_resblk_forward.1} parent=11 // pred_fallthru
        _
      // Predicated region
      $region21: #{sft_resblk_forward.1} parent=11 // pred_check
        %p239 = pneg %p129
      $region22: #{sft_resblk_forward.1} parent=11 // pred_check_branch
        %241 = sbr.rel (%p239) target = $region24
      $region23: #{sft_resblk_forward.1} parent=11 // pred_region
        _
      $region24: #{sft_resblk_forward.1} parent=11 // pred_fallthru
        _
      // Predicated region
      $region25: #{sft_resblk_forward.1} parent=11 // pred_check
        %p242 = pneg %p150
      $region26: #{sft_resblk_forward.1} parent=11 // pred_check_branch
        %244 = sbr.rel (%p242) target = $region28
      $region27: #{sft_resblk_forward.1} parent=11 // pred_region
        _
      $region28: #{sft_resblk_forward.1} parent=11 // pred_fallthru
        _
      // Predicated region
      $region29: #{sft_resblk_forward.1} parent=11 // pred_check
        %p245 = pneg %p171
      $region30: #{sft_resblk_forward.1} parent=11 // pred_check_branch
        %247 = sbr.rel (%p245) target = $region32
      $region31: #{sft_resblk_forward.1} parent=11 // pred_region
        _
      $region32: #{sft_resblk_forward.1} parent=11 // pred_fallthru
        _
      // Predicated region
      $region33: #{sft_resblk_forward.1} parent=11 // pred_check
        %p248 = pneg %p192
      $region34: #{sft_resblk_forward.1} parent=11 // pred_check_branch
        %250 = sbr.rel (%p248) target = $region36
      $region35: #{sft_resblk_forward.1} parent=11 // pred_region
        _
      $region36: #{sft_resblk_forward.1} parent=11 // pred_fallthru
        _
    $region12: #{sft_resblk_forward.1} parent=5 // pred_fallthru
      _
    %p251 = scmp.lt.s32.totalorder %s14, 2
    // Predicated region
    $region37: #{sft_resblk_forward.1} parent=5 // pred_check
      %p252 = pneg %p251
    $region38: #{sft_resblk_forward.1} parent=5 // pred_check_branch
      %254 = sbr.rel (%p252) target = $region40
    $region39: #{sft_resblk_forward.1} parent=5 // pred_region
      // Predicated region
      $region41: #{sft_resblk_forward.1} parent=39 // pred_check
        %p255 = pneg %p34
      $region42: #{sft_resblk_forward.1} parent=39 // pred_check_branch
        %257 = sbr.rel (%p255) target = $region44
      $region43: #{sft_resblk_forward.1} parent=39 // pred_region
        %p258 = scmp.lt.s32.totalorder %s14, 1
        %s259 = scalar_select %p258, %s14, 1
        %s260 = smul.addr %s259, 54
        %s261 = smul.addr %s260, 8
        %s262 = scalar_lea.vmem %s0, %s261
      $region44: #{sft_resblk_forward.1} parent=39 // pred_fallthru
        _
      // Predicated region
      $region45: #{sft_resblk_forward.1} parent=39 // pred_check
        %p263 = pneg %p60
      $region46: #{sft_resblk_forward.1} parent=39 // pred_check_branch
        %265 = sbr.rel (%p263) target = $region48
      $region47: #{sft_resblk_forward.1} parent=39 // pred_region
        %p266 = scmp.lt.s32.totalorder %s14, 1
        %s267 = scalar_select %p266, %s14, 1
        %s268 = smul.addr %s267, 32
        %s269 = smul.addr %s268, 8
        %s270 = scalar_lea.vmem %s1, %s269
      $region48: #{sft_resblk_forward.1} parent=39 // pred_fallthru
        _
    $region40: #{sft_resblk_forward.1} parent=5 // pred_fallthru
      _
    %p271 = scmp.le.s32.totalorder 1, %s14
    %p272 = scmp.lt.s32.totalorder %s14, 3
    %p273 = pnand %p271, %p272
    %p274 = pneg %p273
    // Predicated region
    $region49: #{sft_resblk_forward.1} parent=5 // pred_check
      _
    $region50: #{sft_resblk_forward.1} parent=5 // pred_check_branch
      %276 = sbr.rel (%p273) target = $region52
    $region51: #{sft_resblk_forward.1} parent=5 // pred_region
      %s277 = ssub.s32 %s14, 1
      %p278 = scmp.lt.s32.totalorder %s19, 1
      %s279 = scalar_select %p278, %s19, 1
      %s280 = smul.addr %s279, 54
      %s281 = smul.addr %s280, 8
      %s282 = scalar_lea.vmem %s0, %s281
      %p283 = pneg %p40
      %p284 = pneg %p37
      %p285 = scmp.lt.s32.totalorder %s19, 1
      %s286 = scalar_select %p285, %s19, 1
      %s287 = smul.addr %s286, 32
      %s288 = smul.addr %s287, 8
      %s289 = scalar_lea.vmem %s1, %s288
      %p290 = pneg %p66
      %p291 = pneg %p63
      %p292 = pneg %p87
      %p293 = pneg %p84
      %p294 = pneg %p108
      %p295 = pneg %p105
      %p296 = pneg %p129
      %p297 = pneg %p126
      %p298 = pneg %p150
      %p299 = pneg %p147
      %p300 = pneg %p171
      %p301 = pneg %p168
      %p302 = pneg %p192
      %p303 = pneg %p189
      %p304 = pneg %p218
      %p305 = pneg %p215
      %p306 = scmp.lt.s32.totalorder %s19, 1
      %s307 = scalar_select %p306, %s19, 1
      %s308 = smul.addr %s307, 32
      %s309 = smul.addr %s308, 8
      %s310 = scalar_lea.vmem %s8, %s309
      %p311 = scmp.lt.s32.totalorder %s19, 1
      %s312 = scalar_select %p311, %s19, 1
      %s313 = smul.addr %s312, 54
      %s314 = smul.addr %s313, 8
      %s315 = scalar_lea.vmem %s0, %s314
      %p316 = scmp.lt.s32.totalorder %s19, 1
      %s317 = scalar_select %p316, %s19, 1
      %s318 = smul.addr %s317, 32
      %s319 = smul.addr %s318, 8
      %s320 = scalar_lea.vmem %s1, %s319
      %p321 = scmp.lt.s32.totalorder %s19, 1
      %s322 = scalar_select %p321, %s19, 1
      %s323 = smul.addr %s322, 32
      %s324 = smul.addr %s323, 8
      %s325 = scalar_lea.vmem %s8, %s324
      %v326 = vld [vmem:[%s315] sm:$0xff]
      %v327 = vld [vmem:[%s315 + $0x8] sm:$0xff]
      %v328 = vld [vmem:[%s315 + $0x18] sm:$0xff]
      %v329 = vld [vmem:[%s315 + $0x20] sm:$0xff]
      %v330 = vld [vmem:[%s315 + $0x30] sm:$0xff]
      %v331 = vld [vmem:[%s315 + $0x38] sm:$0xff]
      %v332 = vld [vmem:[%s315 + $0x48] sm:$0xff]
      %v333 = vld [vmem:[%s315 + $0x50] sm:$0xff]
      %v334 = vld [vmem:[%s315 + $0x60] sm:$0xff]
      %v335 = vld [vmem:[%s315 + $0x68] sm:$0xff]
      %v336 = vld [vmem:[%s315 + $0x78] sm:$0xff]
      %v337 = vld [vmem:[%s315 + $0x80] sm:$0xff]
      %v338 = vld [vmem:[%s315 + $0x90] sm:$0xff]
      %v339 = vld [vmem:[%s315 + $0x98] sm:$0xff]
      %v340 = vld [vmem:[%s315 + $0xa8] sm:$0xff]
      %v341 = vld [vmem:[%s315 + $0xb0] sm:$0xff]
      %v342 = vld [vmem:[%s315 + $0xc0] sm:$0xff]
      %v343 = vld [vmem:[%s315 + $0xc8] sm:$0xff]
      %v344 = vld [vmem:[%s315 + $0xd8] sm:$0xff]
      %v345 = vld [vmem:[%s315 + $0xe0] sm:$0xff]
      %v346 = vld [vmem:[%s315 + $0xf0] sm:$0xff]
      %v347 = vld [vmem:[%s315 + $0xf8] sm:$0xff]
      %v348 = vld [vmem:[%s315 + $0x108] sm:$0xff]
      %v349 = vld [vmem:[%s315 + $0x110] sm:$0xff]
      %v350 = vld [vmem:[%s315 + $0x120] sm:$0xff]
      %v351 = vld [vmem:[%s315 + $0x128] sm:$0xff]
      %v352 = vld [vmem:[%s315 + $0x138] sm:$0xff]
      %v353 = vld [vmem:[%s315 + $0x140] sm:$0xff]
      %v354 = vld [vmem:[%s315 + $0x150] sm:$0xff]
      %v355 = vld [vmem:[%s315 + $0x158] sm:$0xff]
      %v356 = vld [vmem:[%s315 + $0x168] sm:$0xff]
      %v357 = vld [vmem:[%s315 + $0x170] sm:$0xff]
      %vm358 = vcmask 31744
      %359 = vst.msk [vmem:[#allocation2] sm:$0xff] %vm358, %v326
      %360 = vst.msk [vmem:[#allocation2 + $0x8] sm:$0xff] %vm358, %v327
      %361 = vst.msk [vmem:[#allocation2 + $0x10] sm:$0xff] %vm358, %v328
      %362 = vst.msk [vmem:[#allocation2 + $0x18] sm:$0xff] %vm358, %v329
      %363 = vst.msk [vmem:[#allocation2 + $0x20] sm:$0xff] %vm358, %v330
      %364 = vst.msk [vmem:[#allocation2 + $0x28] sm:$0xff] %vm358, %v331
      %365 = vst.msk [vmem:[#allocation2 + $0x30] sm:$0xff] %vm358, %v332
      %366 = vst.msk [vmem:[#allocation2 + $0x38] sm:$0xff] %vm358, %v333
      %367 = vst.msk [vmem:[#allocation2 + $0x40] sm:$0xff] %vm358, %v334
      %368 = vst.msk [vmem:[#allocation2 + $0x48] sm:$0xff] %vm358, %v335
      %369 = vst.msk [vmem:[#allocation2 + $0x50] sm:$0xff] %vm358, %v336
      %370 = vst.msk [vmem:[#allocation2 + $0x58] sm:$0xff] %vm358, %v337
      %371 = vst.msk [vmem:[#allocation2 + $0x60] sm:$0xff] %vm358, %v338
      %372 = vst.msk [vmem:[#allocation2 + $0x68] sm:$0xff] %vm358, %v339
      %373 = vst.msk [vmem:[#allocation2 + $0x70] sm:$0xff] %vm358, %v340
      %374 = vst.msk [vmem:[#allocation2 + $0x78] sm:$0xff] %vm358, %v341
      %375 = vst.msk [vmem:[#allocation2 + $0x80] sm:$0xff] %vm358, %v342
      %376 = vst.msk [vmem:[#allocation2 + $0x88] sm:$0xff] %vm358, %v343
      %377 = vst.msk [vmem:[#allocation2 + $0x90] sm:$0xff] %vm358, %v344
      %378 = vst.msk [vmem:[#allocation2 + $0x98] sm:$0xff] %vm358, %v345
      %379 = vst.msk [vmem:[#allocation2 + $0xa0] sm:$0xff] %vm358, %v346
      %380 = vst.msk [vmem:[#allocation2 + $0xa8] sm:$0xff] %vm358, %v347
      %381 = vst.msk [vmem:[#allocation2 + $0xb0] sm:$0xff] %vm358, %v348
      %382 = vst.msk [vmem:[#allocation2 + $0xb8] sm:$0xff] %vm358, %v349
      %383 = vst.msk [vmem:[#allocation2 + $0xc0] sm:$0xff] %vm358, %v350
      %384 = vst.msk [vmem:[#allocation2 + $0xc8] sm:$0xff] %vm358, %v351
      %385 = vst.msk [vmem:[#allocation2 + $0xd0] sm:$0xff] %vm358, %v352
      %386 = vst.msk [vmem:[#allocation2 + $0xd8] sm:$0xff] %vm358, %v353
      %387 = vst.msk [vmem:[#allocation2 + $0xe0] sm:$0xff] %vm358, %v354
      %388 = vst.msk [vmem:[#allocation2 + $0xe8] sm:$0xff] %vm358, %v355
      %389 = vst.msk [vmem:[#allocation2 + $0xf0] sm:$0xff] %vm358, %v356
      %390 = vst.msk [vmem:[#allocation2 + $0xf8] sm:$0xff] %vm358, %v357
      %v391 = vld [vmem:[%s315 + $0x1] sm:$0xff]
      %v392 = vld [vmem:[%s315 + $0x9] sm:$0xff]
      %v393 = vld [vmem:[%s315 + $0x19] sm:$0xff]
      %v394 = vld [vmem:[%s315 + $0x21] sm:$0xff]
      %v395 = vld [vmem:[%s315 + $0x31] sm:$0xff]
      %v396 = vld [vmem:[%s315 + $0x39] sm:$0xff]
      %v397 = vld [vmem:[%s315 + $0x49] sm:$0xff]
      %v398 = vld [vmem:[%s315 + $0x51] sm:$0xff]
      %v399 = vld [vmem:[%s315 + $0x61] sm:$0xff]
      %v400 = vld [vmem:[%s315 + $0x69] sm:$0xff]
      %v401 = vld [vmem:[%s315 + $0x79] sm:$0xff]
      %v402 = vld [vmem:[%s315 + $0x81] sm:$0xff]
      %v403 = vld [vmem:[%s315 + $0x91] sm:$0xff]
      %v404 = vld [vmem:[%s315 + $0x99] sm:$0xff]
      %v405 = vld [vmem:[%s315 + $0xa9] sm:$0xff]
      %v406 = vld [vmem:[%s315 + $0xb1] sm:$0xff]
      %v407 = vld [vmem:[%s315 + $0xc1] sm:$0xff]
      %v408 = vld [vmem:[%s315 + $0xc9] sm:$0xff]
      %v409 = vld [vmem:[%s315 + $0xd9] sm:$0xff]
      %v410 = vld [vmem:[%s315 + $0xe1] sm:$0xff]
      %v411 = vld [vmem:[%s315 + $0xf1] sm:$0xff]
      %v412 = vld [vmem:[%s315 + $0xf9] sm:$0xff]
      %v413 = vld [vmem:[%s315 + $0x109] sm:$0xff]
      %v414 = vld [vmem:[%s315 + $0x111] sm:$0xff]
      %v415 = vld [vmem:[%s315 + $0x121] sm:$0xff]
      %v416 = vld [vmem:[%s315 + $0x129] sm:$0xff]
      %v417 = vld [vmem:[%s315 + $0x139] sm:$0xff]
      %v418 = vld [vmem:[%s315 + $0x141] sm:$0xff]
      %v419 = vld [vmem:[%s315 + $0x151] sm:$0xff]
      %v420 = vld [vmem:[%s315 + $0x159] sm:$0xff]
      %v421 = vld [vmem:[%s315 + $0x169] sm:$0xff]
      %v422 = vld [vmem:[%s315 + $0x171] sm:$0xff]
      %455 = vrot.lane.b32.xlu0 %v391, 4
      %v456 = vpop.permute.xlu0 %455
      %457 = vrot.lane.b32.xlu0 %v392, 4
      %v458 = vpop.permute.xlu0 %457
      %459 = vrot.lane.b32.xlu0 %v393, 4
      %v460 = vpop.permute.xlu0 %459
      %461 = vrot.lane.b32.xlu0 %v394, 4
      %v462 = vpop.permute.xlu0 %461
      %463 = vrot.lane.b32.xlu0 %v395, 4
      %v464 = vpop.permute.xlu0 %463
      %465 = vrot.lane.b32.xlu0 %v396, 4
      %v466 = vpop.permute.xlu0 %465
      %467 = vrot.lane.b32.xlu0 %v397, 4
      %v468 = vpop.permute.xlu0 %467
      %469 = vrot.lane.b32.xlu0 %v398, 4
      %v470 = vpop.permute.xlu0 %469
      %471 = vrot.lane.b32.xlu0 %v399, 4
      %v472 = vpop.permute.xlu0 %471
      %473 = vrot.lane.b32.xlu0 %v400, 4
      %v474 = vpop.permute.xlu0 %473
      %475 = vrot.lane.b32.xlu0 %v401, 4
      %v476 = vpop.permute.xlu0 %475
      %477 = vrot.lane.b32.xlu0 %v402, 4
      %v478 = vpop.permute.xlu0 %477
      %479 = vrot.lane.b32.xlu0 %v403, 4
      %v480 = vpop.permute.xlu0 %479
      %481 = vrot.lane.b32.xlu0 %v404, 4
      %v482 = vpop.permute.xlu0 %481
      %483 = vrot.lane.b32.xlu0 %v405, 4
      %v484 = vpop.permute.xlu0 %483
      %485 = vrot.lane.b32.xlu0 %v406, 4
      %v486 = vpop.permute.xlu0 %485
      %487 = vrot.lane.b32.xlu0 %v407, 4
      %v488 = vpop.permute.xlu0 %487
      %489 = vrot.lane.b32.xlu0 %v408, 4
      %v490 = vpop.permute.xlu0 %489
      %491 = vrot.lane.b32.xlu0 %v409, 4
      %v492 = vpop.permute.xlu0 %491
      %493 = vrot.lane.b32.xlu0 %v410, 4
      %v494 = vpop.permute.xlu0 %493
      %495 = vrot.lane.b32.xlu0 %v411, 4
      %v496 = vpop.permute.xlu0 %495
      %497 = vrot.lane.b32.xlu0 %v412, 4
      %v498 = vpop.permute.xlu0 %497
      %499 = vrot.lane.b32.xlu0 %v413, 4
      %v500 = vpop.permute.xlu0 %499
      %501 = vrot.lane.b32.xlu0 %v414, 4
      %v502 = vpop.permute.xlu0 %501
      %503 = vrot.lane.b32.xlu0 %v415, 4
      %v504 = vpop.permute.xlu0 %503
      %505 = vrot.lane.b32.xlu0 %v416, 4
      %v506 = vpop.permute.xlu0 %505
      %507 = vrot.lane.b32.xlu0 %v417, 4
      %v508 = vpop.permute.xlu0 %507
      %509 = vrot.lane.b32.xlu0 %v418, 4
      %v510 = vpop.permute.xlu0 %509
      %511 = vrot.lane.b32.xlu0 %v419, 4
      %v512 = vpop.permute.xlu0 %511
      %513 = vrot.lane.b32.xlu0 %v420, 4
      %v514 = vpop.permute.xlu0 %513
      %515 = vrot.lane.b32.xlu0 %v421, 4
      %v516 = vpop.permute.xlu0 %515
      %517 = vrot.lane.b32.xlu0 %v422, 4
      %v518 = vpop.permute.xlu0 %517
      %vm551 = vcmask 64544
      %552 = vst.msk [vmem:[#allocation2] sm:$0xff] %vm551, %v456
      %553 = vst.msk [vmem:[#allocation2 + $0x8] sm:$0xff] %vm551, %v458
      %554 = vst.msk [vmem:[#allocation2 + $0x10] sm:$0xff] %vm551, %v460
      %555 = vst.msk [vmem:[#allocation2 + $0x18] sm:$0xff] %vm551, %v462
      %556 = vst.msk [vmem:[#allocation2 + $0x20] sm:$0xff] %vm551, %v464
      %557 = vst.msk [vmem:[#allocation2 + $0x28] sm:$0xff] %vm551, %v466
      %558 = vst.msk [vmem:[#allocation2 + $0x30] sm:$0xff] %vm551, %v468
      %559 = vst.msk [vmem:[#allocation2 + $0x38] sm:$0xff] %vm551, %v470
      %560 = vst.msk [vmem:[#allocation2 + $0x40] sm:$0xff] %vm551, %v472
      %561 = vst.msk [vmem:[#allocation2 + $0x48] sm:$0xff] %vm551, %v474
      %562 = vst.msk [vmem:[#allocation2 + $0x50] sm:$0xff] %vm551, %v476
      %563 = vst.msk [vmem:[#allocation2 + $0x58] sm:$0xff] %vm551, %v478
      %564 = vst.msk [vmem:[#allocation2 + $0x60] sm:$0xff] %vm551, %v480
      %565 = vst.msk [vmem:[#allocation2 + $0x68] sm:$0xff] %vm551, %v482
      %566 = vst.msk [vmem:[#allocation2 + $0x70] sm:$0xff] %vm551, %v484
      %567 = vst.msk [vmem:[#allocation2 + $0x78] sm:$0xff] %vm551, %v486
      %568 = vst.msk [vmem:[#allocation2 + $0x80] sm:$0xff] %vm551, %v488
      %569 = vst.msk [vmem:[#allocation2 + $0x88] sm:$0xff] %vm551, %v490
      %570 = vst.msk [vmem:[#allocation2 + $0x90] sm:$0xff] %vm551, %v492
      %571 = vst.msk [vmem:[#allocation2 + $0x98] sm:$0xff] %vm551, %v494
      %572 = vst.msk [vmem:[#allocation2 + $0xa0] sm:$0xff] %vm551, %v496
      %573 = vst.msk [vmem:[#allocation2 + $0xa8] sm:$0xff] %vm551, %v498
      %574 = vst.msk [vmem:[#allocation2 + $0xb0] sm:$0xff] %vm551, %v500
      %575 = vst.msk [vmem:[#allocation2 + $0xb8] sm:$0xff] %vm551, %v502
      %576 = vst.msk [vmem:[#allocation2 + $0xc0] sm:$0xff] %vm551, %v504
      %577 = vst.msk [vmem:[#allocation2 + $0xc8] sm:$0xff] %vm551, %v506
      %578 = vst.msk [vmem:[#allocation2 + $0xd0] sm:$0xff] %vm551, %v508
      %579 = vst.msk [vmem:[#allocation2 + $0xd8] sm:$0xff] %vm551, %v510
      %580 = vst.msk [vmem:[#allocation2 + $0xe0] sm:$0xff] %vm551, %v512
      %581 = vst.msk [vmem:[#allocation2 + $0xe8] sm:$0xff] %vm551, %v514
      %582 = vst.msk [vmem:[#allocation2 + $0xf0] sm:$0xff] %vm551, %v516
      %583 = vst.msk [vmem:[#allocation2 + $0xf8] sm:$0xff] %vm551, %v518
      %v584 = vld [vmem:[%s315 + $0x2] sm:$0xff]
      %v585 = vld [vmem:[%s315 + $0xa] sm:$0xff]
      %v586 = vld [vmem:[%s315 + $0x1a] sm:$0xff]
      %v587 = vld [vmem:[%s315 + $0x22] sm:$0xff]
      %v588 = vld [vmem:[%s315 + $0x32] sm:$0xff]
      %v589 = vld [vmem:[%s315 + $0x3a] sm:$0xff]
      %v590 = vld [vmem:[%s315 + $0x4a] sm:$0xff]
      %v591 = vld [vmem:[%s315 + $0x52] sm:$0xff]
      %v592 = vld [vmem:[%s315 + $0x62] sm:$0xff]
      %v593 = vld [vmem:[%s315 + $0x6a] sm:$0xff]
      %v594 = vld [vmem:[%s315 + $0x7a] sm:$0xff]
      %v595 = vld [vmem:[%s315 + $0x82] sm:$0xff]
      %v596 = vld [vmem:[%s315 + $0x92] sm:$0xff]
      %v597 = vld [vmem:[%s315 + $0x9a] sm:$0xff]
      %v598 = vld [vmem:[%s315 + $0xaa] sm:$0xff]
      %v599 = vld [vmem:[%s315 + $0xb2] sm:$0xff]
      %v600 = vld [vmem:[%s315 + $0xc2] sm:$0xff]
      %v601 = vld [vmem:[%s315 + $0xca] sm:$0xff]
      %v602 = vld [vmem:[%s315 + $0xda] sm:$0xff]
      %v603 = vld [vmem:[%s315 + $0xe2] sm:$0xff]
      %v604 = vld [vmem:[%s315 + $0xf2] sm:$0xff]
      %v605 = vld [vmem:[%s315 + $0xfa] sm:$0xff]
      %v606 = vld [vmem:[%s315 + $0x10a] sm:$0xff]
      %v607 = vld [vmem:[%s315 + $0x112] sm:$0xff]
      %v608 = vld [vmem:[%s315 + $0x122] sm:$0xff]
      %v609 = vld [vmem:[%s315 + $0x12a] sm:$0xff]
      %v610 = vld [vmem:[%s315 + $0x13a] sm:$0xff]
      %v611 = vld [vmem:[%s315 + $0x142] sm:$0xff]
      %v612 = vld [vmem:[%s315 + $0x152] sm:$0xff]
      %v613 = vld [vmem:[%s315 + $0x15a] sm:$0xff]
      %v614 = vld [vmem:[%s315 + $0x16a] sm:$0xff]
      %v615 = vld [vmem:[%s315 + $0x172] sm:$0xff]
      %648 = vrot.lane.b32.xlu0 %v584, 8
      %v649 = vpop.permute.xlu0 %648
      %650 = vrot.lane.b32.xlu0 %v585, 8
      %v651 = vpop.permute.xlu0 %650
      %652 = vrot.lane.b32.xlu0 %v586, 8
      %v653 = vpop.permute.xlu0 %652
      %654 = vrot.lane.b32.xlu0 %v587, 8
      %v655 = vpop.permute.xlu0 %654
      %656 = vrot.lane.b32.xlu0 %v588, 8
      %v657 = vpop.permute.xlu0 %656
      %658 = vrot.lane.b32.xlu0 %v589, 8
      %v659 = vpop.permute.xlu0 %658
      %660 = vrot.lane.b32.xlu0 %v590, 8
      %v661 = vpop.permute.xlu0 %660
      %662 = vrot.lane.b32.xlu0 %v591, 8
      %v663 = vpop.permute.xlu0 %662
      %664 = vrot.lane.b32.xlu0 %v592, 8
      %v665 = vpop.permute.xlu0 %664
      %666 = vrot.lane.b32.xlu0 %v593, 8
      %v667 = vpop.permute.xlu0 %666
      %668 = vrot.lane.b32.xlu0 %v594, 8
      %v669 = vpop.permute.xlu0 %668
      %670 = vrot.lane.b32.xlu0 %v595, 8
      %v671 = vpop.permute.xlu0 %670
      %672 = vrot.lane.b32.xlu0 %v596, 8
      %v673 = vpop.permute.xlu0 %672
      %674 = vrot.lane.b32.xlu0 %v597, 8
      %v675 = vpop.permute.xlu0 %674
      %676 = vrot.lane.b32.xlu0 %v598, 8
      %v677 = vpop.permute.xlu0 %676
      %678 = vrot.lane.b32.xlu0 %v599, 8
      %v679 = vpop.permute.xlu0 %678
      %680 = vrot.lane.b32.xlu0 %v600, 8
      %v681 = vpop.permute.xlu0 %680
      %682 = vrot.lane.b32.xlu0 %v601, 8
      %v683 = vpop.permute.xlu0 %682
      %684 = vrot.lane.b32.xlu0 %v602, 8
      %v685 = vpop.permute.xlu0 %684
      %686 = vrot.lane.b32.xlu0 %v603, 8
      %v687 = vpop.permute.xlu0 %686
      %688 = vrot.lane.b32.xlu0 %v604, 8
      %v689 = vpop.permute.xlu0 %688
      %690 = vrot.lane.b32.xlu0 %v605, 8
      %v691 = vpop.permute.xlu0 %690
      %692 = vrot.lane.b32.xlu0 %v606, 8
      %v693 = vpop.permute.xlu0 %692
      %694 = vrot.lane.b32.xlu0 %v607, 8
      %v695 = vpop.permute.xlu0 %694
      %696 = vrot.lane.b32.xlu0 %v608, 8
      %v697 = vpop.permute.xlu0 %696
      %698 = vrot.lane.b32.xlu0 %v609, 8
      %v699 = vpop.permute.xlu0 %698
      %700 = vrot.lane.b32.xlu0 %v610, 8
      %v701 = vpop.permute.xlu0 %700
      %702 = vrot.lane.b32.xlu0 %v611, 8
      %v703 = vpop.permute.xlu0 %702
      %704 = vrot.lane.b32.xlu0 %v612, 8
      %v705 = vpop.permute.xlu0 %704
      %706 = vrot.lane.b32.xlu0 %v613, 8
      %v707 = vpop.permute.xlu0 %706
      %708 = vrot.lane.b32.xlu0 %v614, 8
      %v709 = vpop.permute.xlu0 %708
      %710 = vrot.lane.b32.xlu0 %v615, 8
      %v711 = vpop.permute.xlu0 %710
      %vm744 = vcmask 97344
      %745 = vst.msk [vmem:[#allocation2] sm:$0xff] %vm744, %v649
      %746 = vst.msk [vmem:[#allocation2 + $0x8] sm:$0xff] %vm744, %v651
      %747 = vst.msk [vmem:[#allocation2 + $0x10] sm:$0xff] %vm744, %v653
      %748 = vst.msk [vmem:[#allocation2 + $0x18] sm:$0xff] %vm744, %v655
      %749 = vst.msk [vmem:[#allocation2 + $0x20] sm:$0xff] %vm744, %v657
      %750 = vst.msk [vmem:[#allocation2 + $0x28] sm:$0xff] %vm744, %v659
      %751 = vst.msk [vmem:[#allocation2 + $0x30] sm:$0xff] %vm744, %v661
      %752 = vst.msk [vmem:[#allocation2 + $0x38] sm:$0xff] %vm744, %v663
      %753 = vst.msk [vmem:[#allocation2 + $0x40] sm:$0xff] %vm744, %v665
      %754 = vst.msk [vmem:[#allocation2 + $0x48] sm:$0xff] %vm744, %v667
      %755 = vst.msk [vmem:[#allocation2 + $0x50] sm:$0xff] %vm744, %v669
      %756 = vst.msk [vmem:[#allocation2 + $0x58] sm:$0xff] %vm744, %v671
      %757 = vst.msk [vmem:[#allocation2 + $0x60] sm:$0xff] %vm744, %v673
      %758 = vst.msk [vmem:[#allocation2 + $0x68] sm:$0xff] %vm744, %v675
      %759 = vst.msk [vmem:[#allocation2 + $0x70] sm:$0xff] %vm744, %v677
      %760 = vst.msk [vmem:[#allocation2 + $0x78] sm:$0xff] %vm744, %v679
      %761 = vst.msk [vmem:[#allocation2 + $0x80] sm:$0xff] %vm744, %v681
      %762 = vst.msk [vmem:[#allocation2 + $0x88] sm:$0xff] %vm744, %v683
      %763 = vst.msk [vmem:[#allocation2 + $0x90] sm:$0xff] %vm744, %v685
      %764 = vst.msk [vmem:[#allocation2 + $0x98] sm:$0xff] %vm744, %v687
      %765 = vst.msk [vmem:[#allocation2 + $0xa0] sm:$0xff] %vm744, %v689
      %766 = vst.msk [vmem:[#allocation2 + $0xa8] sm:$0xff] %vm744, %v691
      %767 = vst.msk [vmem:[#allocation2 + $0xb0] sm:$0xff] %vm744, %v693
      %768 = vst.msk [vmem:[#allocation2 + $0xb8] sm:$0xff] %vm744, %v695
      %769 = vst.msk [vmem:[#allocation2 + $0xc0] sm:$0xff] %vm744, %v697
      %770 = vst.msk [vmem:[#allocation2 + $0xc8] sm:$0xff] %vm744, %v699
      %771 = vst.msk [vmem:[#allocation2 + $0xd0] sm:$0xff] %vm744, %v701
      %772 = vst.msk [vmem:[#allocation2 + $0xd8] sm:$0xff] %vm744, %v703
      %773 = vst.msk [vmem:[#allocation2 + $0xe0] sm:$0xff] %vm744, %v705
      %774 = vst.msk [vmem:[#allocation2 + $0xe8] sm:$0xff] %vm744, %v707
      %775 = vst.msk [vmem:[#allocation2 + $0xf0] sm:$0xff] %vm744, %v709
      %776 = vst.msk [vmem:[#allocation2 + $0xf8] sm:$0xff] %vm744, %v711
      %s777 = scalar_lea.vmem %s315, 24
      %v778 = vld [vmem:[%s777] sm:$0xff]
      %v779 = vld [vmem:[%s777 + $0x8] sm:$0xff]
      %v780 = vld [vmem:[%s777 + $0x18] sm:$0xff]
      %v781 = vld [vmem:[%s777 + $0x20] sm:$0xff]
      %v782 = vld [vmem:[%s777 + $0x30] sm:$0xff]
      %v783 = vld [vmem:[%s777 + $0x38] sm:$0xff]
      %v784 = vld [vmem:[%s777 + $0x48] sm:$0xff]
      %v785 = vld [vmem:[%s777 + $0x50] sm:$0xff]
      %v786 = vld [vmem:[%s777 + $0x60] sm:$0xff]
      %v787 = vld [vmem:[%s777 + $0x68] sm:$0xff]
      %v788 = vld [vmem:[%s777 + $0x78] sm:$0xff]
      %v789 = vld [vmem:[%s777 + $0x80] sm:$0xff]
      %v790 = vld [vmem:[%s777 + $0x90] sm:$0xff]
      %v791 = vld [vmem:[%s777 + $0x98] sm:$0xff]
      %v792 = vld [vmem:[%s777 + $0xa8] sm:$0xff]
      %v793 = vld [vmem:[%s777 + $0xb0] sm:$0xff]
      %v794 = vld [vmem:[%s777 + $0xc0] sm:$0xff]
      %v795 = vld [vmem:[%s777 + $0xc8] sm:$0xff]
      %v796 = vld [vmem:[%s777 + $0xd8] sm:$0xff]
      %v797 = vld [vmem:[%s777 + $0xe0] sm:$0xff]
      %v798 = vld [vmem:[%s777 + $0xf0] sm:$0xff]
      %v799 = vld [vmem:[%s777 + $0xf8] sm:$0xff]
      %v800 = vld [vmem:[%s777 + $0x108] sm:$0xff]
      %v801 = vld [vmem:[%s777 + $0x110] sm:$0xff]
      %v802 = vld [vmem:[%s777 + $0x120] sm:$0xff]
      %v803 = vld [vmem:[%s777 + $0x128] sm:$0xff]
      %v804 = vld [vmem:[%s777 + $0x138] sm:$0xff]
      %v805 = vld [vmem:[%s777 + $0x140] sm:$0xff]
      %v806 = vld [vmem:[%s777 + $0x150] sm:$0xff]
      %v807 = vld [vmem:[%s777 + $0x158] sm:$0xff]
      %v808 = vld [vmem:[%s777 + $0x168] sm:$0xff]
      %v809 = vld [vmem:[%s777 + $0x170] sm:$0xff]
      %842 = vrot.lane.b32.xlu0 %v778, 12
      %v843 = vpop.permute.xlu0 %842
      %844 = vrot.lane.b32.xlu0 %v779, 12
      %v845 = vpop.permute.xlu0 %844
      %846 = vrot.lane.b32.xlu0 %v780, 12
      %v847 = vpop.permute.xlu0 %846
      %848 = vrot.lane.b32.xlu0 %v781, 12
      %v849 = vpop.permute.xlu0 %848
      %850 = vrot.lane.b32.xlu0 %v782, 12
      %v851 = vpop.permute.xlu0 %850
      %852 = vrot.lane.b32.xlu0 %v783, 12
      %v853 = vpop.permute.xlu0 %852
      %854 = vrot.lane.b32.xlu0 %v784, 12
      %v855 = vpop.permute.xlu0 %854
      %856 = vrot.lane.b32.xlu0 %v785, 12
      %v857 = vpop.permute.xlu0 %856
      %858 = vrot.lane.b32.xlu0 %v786, 12
      %v859 = vpop.permute.xlu0 %858
      %860 = vrot.lane.b32.xlu0 %v787, 12
      %v861 = vpop.permute.xlu0 %860
      %862 = vrot.lane.b32.xlu0 %v788, 12
      %v863 = vpop.permute.xlu0 %862
      %864 = vrot.lane.b32.xlu0 %v789, 12
      %v865 = vpop.permute.xlu0 %864
      %866 = vrot.lane.b32.xlu0 %v790, 12
      %v867 = vpop.permute.xlu0 %866
      %868 = vrot.lane.b32.xlu0 %v791, 12
      %v869 = vpop.permute.xlu0 %868
      %870 = vrot.lane.b32.xlu0 %v792, 12
      %v871 = vpop.permute.xlu0 %870
      %872 = vrot.lane.b32.xlu0 %v793, 12
      %v873 = vpop.permute.xlu0 %872
      %874 = vrot.lane.b32.xlu0 %v794, 12
      %v875 = vpop.permute.xlu0 %874
      %876 = vrot.lane.b32.xlu0 %v795, 12
      %v877 = vpop.permute.xlu0 %876
      %878 = vrot.lane.b32.xlu0 %v796, 12
      %v879 = vpop.permute.xlu0 %878
      %880 = vrot.lane.b32.xlu0 %v797, 12
      %v881 = vpop.permute.xlu0 %880
      %882 = vrot.lane.b32.xlu0 %v798, 12
      %v883 = vpop.permute.xlu0 %882
      %884 = vrot.lane.b32.xlu0 %v799, 12
      %v885 = vpop.permute.xlu0 %884
      %886 = vrot.lane.b32.xlu0 %v800, 12
      %v887 = vpop.permute.xlu0 %886
      %888 = vrot.lane.b32.xlu0 %v801, 12
      %v889 = vpop.permute.xlu0 %888
      %890 = vrot.lane.b32.xlu0 %v802, 12
      %v891 = vpop.permute.xlu0 %890
      %892 = vrot.lane.b32.xlu0 %v803, 12
      %v893 = vpop.permute.xlu0 %892
      %894 = vrot.lane.b32.xlu0 %v804, 12
      %v895 = vpop.permute.xlu0 %894
      %896 = vrot.lane.b32.xlu0 %v805, 12
      %v897 = vpop.permute.xlu0 %896
      %898 = vrot.lane.b32.xlu0 %v806, 12
      %v899 = vpop.permute.xlu0 %898
      %900 = vrot.lane.b32.xlu0 %v807, 12
      %v901 = vpop.permute.xlu0 %900
      %902 = vrot.lane.b32.xlu0 %v808, 12
      %v903 = vpop.permute.xlu0 %902
      %904 = vrot.lane.b32.xlu0 %v809, 12
      %v905 = vpop.permute.xlu0 %904
      %vm938 = vcmask 130144
      %939 = vst.msk [vmem:[#allocation2] sm:$0xff] %vm938, %v843
      %940 = vst.msk [vmem:[#allocation2 + $0x8] sm:$0xff] %vm938, %v845
      %941 = vst.msk [vmem:[#allocation2 + $0x10] sm:$0xff] %vm938, %v847
      %942 = vst.msk [vmem:[#allocation2 + $0x18] sm:$0xff] %vm938, %v849
      %943 = vst.msk [vmem:[#allocation2 + $0x20] sm:$0xff] %vm938, %v851
      %944 = vst.msk [vmem:[#allocation2 + $0x28] sm:$0xff] %vm938, %v853
      %945 = vst.msk [vmem:[#allocation2 + $0x30] sm:$0xff] %vm938, %v855
      %946 = vst.msk [vmem:[#allocation2 + $0x38] sm:$0xff] %vm938, %v857
      %947 = vst.msk [vmem:[#allocation2 + $0x40] sm:$0xff] %vm938, %v859
      %948 = vst.msk [vmem:[#allocation2 + $0x48] sm:$0xff] %vm938, %v861
      %949 = vst.msk [vmem:[#allocation2 + $0x50] sm:$0xff] %vm938, %v863
      %950 = vst.msk [vmem:[#allocation2 + $0x58] sm:$0xff] %vm938, %v865
      %951 = vst.msk [vmem:[#allocation2 + $0x60] sm:$0xff] %vm938, %v867
      %952 = vst.msk [vmem:[#allocation2 + $0x68] sm:$0xff] %vm938, %v869
      %953 = vst.msk [vmem:[#allocation2 + $0x70] sm:$0xff] %vm938, %v871
      %954 = vst.msk [vmem:[#allocation2 + $0x78] sm:$0xff] %vm938, %v873
      %955 = vst.msk [vmem:[#allocation2 + $0x80] sm:$0xff] %vm938, %v875
      %956 = vst.msk [vmem:[#allocation2 + $0x88] sm:$0xff] %vm938, %v877
      %957 = vst.msk [vmem:[#allocation2 + $0x90] sm:$0xff] %vm938, %v879
      %958 = vst.msk [vmem:[#allocation2 + $0x98] sm:$0xff] %vm938, %v881
      %959 = vst.msk [vmem:[#allocation2 + $0xa0] sm:$0xff] %vm938, %v883
      %960 = vst.msk [vmem:[#allocation2 + $0xa8] sm:$0xff] %vm938, %v885
      %961 = vst.msk [vmem:[#allocation2 + $0xb0] sm:$0xff] %vm938, %v887
      %962 = vst.msk [vmem:[#allocation2 + $0xb8] sm:$0xff] %vm938, %v889
      %963 = vst.msk [vmem:[#allocation2 + $0xc0] sm:$0xff] %vm938, %v891
      %964 = vst.msk [vmem:[#allocation2 + $0xc8] sm:$0xff] %vm938, %v893
      %965 = vst.msk [vmem:[#allocation2 + $0xd0] sm:$0xff] %vm938, %v895
      %966 = vst.msk [vmem:[#allocation2 + $0xd8] sm:$0xff] %vm938, %v897
      %967 = vst.msk [vmem:[#allocation2 + $0xe0] sm:$0xff] %vm938, %v899
      %968 = vst.msk [vmem:[#allocation2 + $0xe8] sm:$0xff] %vm938, %v901
      %969 = vst.msk [vmem:[#allocation2 + $0xf0] sm:$0xff] %vm938, %v903
      %970 = vst.msk [vmem:[#allocation2 + $0xf8] sm:$0xff] %vm938, %v905
      %v971 = vld [vmem:[%s777 + $0x1] sm:$0xff]
      %v972 = vld [vmem:[%s777 + $0x9] sm:$0xff]
      %v973 = vld [vmem:[%s777 + $0x19] sm:$0xff]
      %v974 = vld [vmem:[%s777 + $0x21] sm:$0xff]
      %v975 = vld [vmem:[%s777 + $0x31] sm:$0xff]
      %v976 = vld [vmem:[%s777 + $0x39] sm:$0xff]
      %v977 = vld [vmem:[%s777 + $0x49] sm:$0xff]
      %v978 = vld [vmem:[%s777 + $0x51] sm:$0xff]
      %v979 = vld [vmem:[%s777 + $0x61] sm:$0xff]
      %v980 = vld [vmem:[%s777 + $0x69] sm:$0xff]
      %v981 = vld [vmem:[%s777 + $0x79] sm:$0xff]
      %v982 = vld [vmem:[%s777 + $0x81] sm:$0xff]
      %v983 = vld [vmem:[%s777 + $0x91] sm:$0xff]
      %v984 = vld [vmem:[%s777 + $0x99] sm:$0xff]
      %v985 = vld [vmem:[%s777 + $0xa9] sm:$0xff]
      %v986 = vld [vmem:[%s777 + $0xb1] sm:$0xff]
      %v987 = vld [vmem:[%s777 + $0xc1] sm:$0xff]
      %v988 = vld [vmem:[%s777 + $0xc9] sm:$0xff]
      %v989 = vld [vmem:[%s777 + $0xd9] sm:$0xff]
      %v990 = vld [vmem:[%s777 + $0xe1] sm:$0xff]
      %v991 = vld [vmem:[%s777 + $0xf1] sm:$0xff]
      %v992 = vld [vmem:[%s777 + $0xf9] sm:$0xff]
      %v993 = vld [vmem:[%s777 + $0x109] sm:$0xff]
      %v994 = vld [vmem:[%s777 + $0x111] sm:$0xff]
      %v995 = vld [vmem:[%s777 + $0x121] sm:$0xff]
      %v996 = vld [vmem:[%s777 + $0x129] sm:$0xff]
      %v997 = vld [vmem:[%s777 + $0x139] sm:$0xff]
      %v998 = vld [vmem:[%s777 + $0x141] sm:$0xff]
      %v999 = vld [vmem:[%s777 + $0x151] sm:$0xff]
      %v1000 = vld [vmem:[%s777 + $0x159] sm:$0xff]
      %v1001 = vld [vmem:[%s777 + $0x169] sm:$0xff]
      %v1002 = vld [vmem:[%s777 + $0x171] sm:$0xff]
      %1035 = vrot.lane.b32.xlu0 %v971, 16
      %v1036 = vpop.permute.xlu0 %1035
      %1037 = vrot.lane.b32.xlu0 %v972, 16
      %v1038 = vpop.permute.xlu0 %1037
      %1039 = vrot.lane.b32.xlu0 %v973, 16
      %v1040 = vpop.permute.xlu0 %1039
      %1041 = vrot.lane.b32.xlu0 %v974, 16
      %v1042 = vpop.permute.xlu0 %1041
      %1043 = vrot.lane.b32.xlu0 %v975, 16
      %v1044 = vpop.permute.xlu0 %1043
      %1045 = vrot.lane.b32.xlu0 %v976, 16
      %v1046 = vpop.permute.xlu0 %1045
      %1047 = vrot.lane.b32.xlu0 %v977, 16
      %v1048 = vpop.permute.xlu0 %1047
      %1049 = vrot.lane.b32.xlu0 %v978, 16
      %v1050 = vpop.permute.xlu0 %1049
      %1051 = vrot.lane.b32.xlu0 %v979, 16
      %v1052 = vpop.permute.xlu0 %1051
      %1053 = vrot.lane.b32.xlu0 %v980, 16
      %v1054 = vpop.permute.xlu0 %1053
      %1055 = vrot.lane.b32.xlu0 %v981, 16
      %v1056 = vpop.permute.xlu0 %1055
      %1057 = vrot.lane.b32.xlu0 %v982, 16
      %v1058 = vpop.permute.xlu0 %1057
      %1059 = vrot.lane.b32.xlu0 %v983, 16
      %v1060 = vpop.permute.xlu0 %1059
      %1061 = vrot.lane.b32.xlu0 %v984, 16
      %v1062 = vpop.permute.xlu0 %1061
      %1063 = vrot.lane.b32.xlu0 %v985, 16
      %v1064 = vpop.permute.xlu0 %1063
      %1065 = vrot.lane.b32.xlu0 %v986, 16
      %v1066 = vpop.permute.xlu0 %1065
      %1067 = vrot.lane.b32.xlu0 %v987, 16
      %v1068 = vpop.permute.xlu0 %1067
      %1069 = vrot.lane.b32.xlu0 %v988, 16
      %v1070 = vpop.permute.xlu0 %1069
      %1071 = vrot.lane.b32.xlu0 %v989, 16
      %v1072 = vpop.permute.xlu0 %1071
      %1073 = vrot.lane.b32.xlu0 %v990, 16
      %v1074 = vpop.permute.xlu0 %1073
      %1075 = vrot.lane.b32.xlu0 %v991, 16
      %v1076 = vpop.permute.xlu0 %1075
      %1077 = vrot.lane.b32.xlu0 %v992, 16
      %v1078 = vpop.permute.xlu0 %1077
      %1079 = vrot.lane.b32.xlu0 %v993, 16
      %v1080 = vpop.permute.xlu0 %1079
      %1081 = vrot.lane.b32.xlu0 %v994, 16
      %v1082 = vpop.permute.xlu0 %1081
      %1083 = vrot.lane.b32.xlu0 %v995, 16
      %v1084 = vpop.permute.xlu0 %1083
      %1085 = vrot.lane.b32.xlu0 %v996, 16
      %v1086 = vpop.permute.xlu0 %1085
      %1087 = vrot.lane.b32.xlu0 %v997, 16
      %v1088 = vpop.permute.xlu0 %1087
      %1089 = vrot.lane.b32.xlu0 %v998, 16
      %v1090 = vpop.permute.xlu0 %1089
      %1091 = vrot.lane.b32.xlu0 %v999, 16
      %v1092 = vpop.permute.xlu0 %1091
      %1093 = vrot.lane.b32.xlu0 %v1000, 16
      %v1094 = vpop.permute.xlu0 %1093
      %1095 = vrot.lane.b32.xlu0 %v1001, 16
      %v1096 = vpop.permute.xlu0 %1095
      %1097 = vrot.lane.b32.xlu0 %v1002, 16
      %v1098 = vpop.permute.xlu0 %1097
      %vm1131 = vcmask 162944
      %1132 = vst.msk [vmem:[#allocation2] sm:$0xff] %vm1131, %v1036
      %1133 = vst.msk [vmem:[#allocation2 + $0x8] sm:$0xff] %vm1131, %v1038
      %1134 = vst.msk [vmem:[#allocation2 + $0x10] sm:$0xff] %vm1131, %v1040
      %1135 = vst.msk [vmem:[#allocation2 + $0x18] sm:$0xff] %vm1131, %v1042
      %1136 = vst.msk [vmem:[#allocation2 + $0x20] sm:$0xff] %vm1131, %v1044
      %1137 = vst.msk [vmem:[#allocation2 + $0x28] sm:$0xff] %vm1131, %v1046
      %1138 = vst.msk [vmem:[#allocation2 + $0x30] sm:$0xff] %vm1131, %v1048
      %1139 = vst.msk [vmem:[#allocation2 + $0x38] sm:$0xff] %vm1131, %v1050
      %1140 = vst.msk [vmem:[#allocation2 + $0x40] sm:$0xff] %vm1131, %v1052
      %1141 = vst.msk [vmem:[#allocation2 + $0x48] sm:$0xff] %vm1131, %v1054
      %1142 = vst.msk [vmem:[#allocation2 + $0x50] sm:$0xff] %vm1131, %v1056
      %1143 = vst.msk [vmem:[#allocation2 + $0x58] sm:$0xff] %vm1131, %v1058
      %1144 = vst.msk [vmem:[#allocation2 + $0x60] sm:$0xff] %vm1131, %v1060
      %1145 = vst.msk [vmem:[#allocation2 + $0x68] sm:$0xff] %vm1131, %v1062
      %1146 = vst.msk [vmem:[#allocation2 + $0x70] sm:$0xff] %vm1131, %v1064
      %1147 = vst.msk [vmem:[#allocation2 + $0x78] sm:$0xff] %vm1131, %v1066
      %1148 = vst.msk [vmem:[#allocation2 + $0x80] sm:$0xff] %vm1131, %v1068
      %1149 = vst.msk [vmem:[#allocation2 + $0x88] sm:$0xff] %vm1131, %v1070
      %1150 = vst.msk [vmem:[#allocation2 + $0x90] sm:$0xff] %vm1131, %v1072
      %1151 = vst.msk [vmem:[#allocation2 + $0x98] sm:$0xff] %vm1131, %v1074
      %1152 = vst.msk [vmem:[#allocation2 + $0xa0] sm:$0xff] %vm1131, %v1076
      %1153 = vst.msk [vmem:[#allocation2 + $0xa8] sm:$0xff] %vm1131, %v1078
      %1154 = vst.msk [vmem:[#allocation2 + $0xb0] sm:$0xff] %vm1131, %v1080
      %1155 = vst.msk [vmem:[#allocation2 + $0xb8] sm:$0xff] %vm1131, %v1082
      %1156 = vst.msk [vmem:[#allocation2 + $0xc0] sm:$0xff] %vm1131, %v1084
      %1157 = vst.msk [vmem:[#allocation2 + $0xc8] sm:$0xff] %vm1131, %v1086
      %1158 = vst.msk [vmem:[#allocation2 + $0xd0] sm:$0xff] %vm1131, %v1088
      %1159 = vst.msk [vmem:[#allocation2 + $0xd8] sm:$0xff] %vm1131, %v1090
      %1160 = vst.msk [vmem:[#allocation2 + $0xe0] sm:$0xff] %vm1131, %v1092
      %1161 = vst.msk [vmem:[#allocation2 + $0xe8] sm:$0xff] %vm1131, %v1094
      %1162 = vst.msk [vmem:[#allocation2 + $0xf0] sm:$0xff] %vm1131, %v1096
      %1163 = vst.msk [vmem:[#allocation2 + $0xf8] sm:$0xff] %vm1131, %v1098
      %v1164 = vld [vmem:[%s777 + $0x2] sm:$0xff]
      %v1165 = vld [vmem:[%s777 + $0xa] sm:$0xff]
      %v1166 = vld [vmem:[%s777 + $0x1a] sm:$0xff]
      %v1167 = vld [vmem:[%s777 + $0x22] sm:$0xff]
      %v1168 = vld [vmem:[%s777 + $0x32] sm:$0xff]
      %v1169 = vld [vmem:[%s777 + $0x3a] sm:$0xff]
      %v1170 = vld [vmem:[%s777 + $0x4a] sm:$0xff]
      %v1171 = vld [vmem:[%s777 + $0x52] sm:$0xff]
      %v1172 = vld [vmem:[%s777 + $0x62] sm:$0xff]
      %v1173 = vld [vmem:[%s777 + $0x6a] sm:$0xff]
      %v1174 = vld [vmem:[%s777 + $0x7a] sm:$0xff]
      %v1175 = vld [vmem:[%s777 + $0x82] sm:$0xff]
      %v1176 = vld [vmem:[%s777 + $0x92] sm:$0xff]
      %v1177 = vld [vmem:[%s777 + $0x9a] sm:$0xff]
      %v1178 = vld [vmem:[%s777 + $0xaa] sm:$0xff]
      %v1179 = vld [vmem:[%s777 + $0xb2] sm:$0xff]
      %v1180 = vld [vmem:[%s777 + $0xc2] sm:$0xff]
      %v1181 = vld [vmem:[%s777 + $0xca] sm:$0xff]
      %v1182 = vld [vmem:[%s777 + $0xda] sm:$0xff]
      %v1183 = vld [vmem:[%s777 + $0xe2] sm:$0xff]
      %v1184 = vld [vmem:[%s777 + $0xf2] sm:$0xff]
      %v1185 = vld [vmem:[%s777 + $0xfa] sm:$0xff]
      %v1186 = vld [vmem:[%s777 + $0x10a] sm:$0xff]
      %v1187 = vld [vmem:[%s777 + $0x112] sm:$0xff]
      %v1188 = vld [vmem:[%s777 + $0x122] sm:$0xff]
      %v1189 = vld [vmem:[%s777 + $0x12a] sm:$0xff]
      %v1190 = vld [vmem:[%s777 + $0x13a] sm:$0xff]
      %v1191 = vld [vmem:[%s777 + $0x142] sm:$0xff]
      %v1192 = vld [vmem:[%s777 + $0x152] sm:$0xff]
      %v1193 = vld [vmem:[%s777 + $0x15a] sm:$0xff]
      %v1194 = vld [vmem:[%s777 + $0x16a] sm:$0xff]
      %v1195 = vld [vmem:[%s777 + $0x172] sm:$0xff]
      %1228 = vrot.lane.b32.xlu0 %v1164, 20
      %v1229 = vpop.permute.xlu0 %1228
      %1230 = vrot.lane.b32.xlu0 %v1165, 20
      %v1231 = vpop.permute.xlu0 %1230
      %1232 = vrot.lane.b32.xlu0 %v1166, 20
      %v1233 = vpop.permute.xlu0 %1232
      %1234 = vrot.lane.b32.xlu0 %v1167, 20
      %v1235 = vpop.permute.xlu0 %1234
      %1236 = vrot.lane.b32.xlu0 %v1168, 20
      %v1237 = vpop.permute.xlu0 %1236
      %1238 = vrot.lane.b32.xlu0 %v1169, 20
      %v1239 = vpop.permute.xlu0 %1238
      %1240 = vrot.lane.b32.xlu0 %v1170, 20
      %v1241 = vpop.permute.xlu0 %1240
      %1242 = vrot.lane.b32.xlu0 %v1171, 20
      %v1243 = vpop.permute.xlu0 %1242
      %1244 = vrot.lane.b32.xlu0 %v1172, 20
      %v1245 = vpop.permute.xlu0 %1244
      %1246 = vrot.lane.b32.xlu0 %v1173, 20
      %v1247 = vpop.permute.xlu0 %1246
      %1248 = vrot.lane.b32.xlu0 %v1174, 20
      %v1249 = vpop.permute.xlu0 %1248
      %1250 = vrot.lane.b32.xlu0 %v1175, 20
      %v1251 = vpop.permute.xlu0 %1250
      %1252 = vrot.lane.b32.xlu0 %v1176, 20
      %v1253 = vpop.permute.xlu0 %1252
      %1254 = vrot.lane.b32.xlu0 %v1177, 20
      %v1255 = vpop.permute.xlu0 %1254
      %1256 = vrot.lane.b32.xlu0 %v1178, 20
      %v1257 = vpop.permute.xlu0 %1256
      %1258 = vrot.lane.b32.xlu0 %v1179, 20
      %v1259 = vpop.permute.xlu0 %1258
      %1260 = vrot.lane.b32.xlu0 %v1180, 20
      %v1261 = vpop.permute.xlu0 %1260
      %1262 = vrot.lane.b32.xlu0 %v1181, 20
      %v1263 = vpop.permute.xlu0 %1262
      %1264 = vrot.lane.b32.xlu0 %v1182, 20
      %v1265 = vpop.permute.xlu0 %1264
      %1266 = vrot.lane.b32.xlu0 %v1183, 20
      %v1267 = vpop.permute.xlu0 %1266
      %1268 = vrot.lane.b32.xlu0 %v1184, 20
      %v1269 = vpop.permute.xlu0 %1268
      %1270 = vrot.lane.b32.xlu0 %v1185, 20
      %v1271 = vpop.permute.xlu0 %1270
      %1272 = vrot.lane.b32.xlu0 %v1186, 20
      %v1273 = vpop.permute.xlu0 %1272
      %1274 = vrot.lane.b32.xlu0 %v1187, 20
      %v1275 = vpop.permute.xlu0 %1274
      %1276 = vrot.lane.b32.xlu0 %v1188, 20
      %v1277 = vpop.permute.xlu0 %1276
      %1278 = vrot.lane.b32.xlu0 %v1189, 20
      %v1279 = vpop.permute.xlu0 %1278
      %1280 = vrot.lane.b32.xlu0 %v1190, 20
      %v1281 = vpop.permute.xlu0 %1280
      %1282 = vrot.lane.b32.xlu0 %v1191, 20
      %v1283 = vpop.permute.xlu0 %1282
      %1284 = vrot.lane.b32.xlu0 %v1192, 20
      %v1285 = vpop.permute.xlu0 %1284
      %1286 = vrot.lane.b32.xlu0 %v1193, 20
      %v1287 = vpop.permute.xlu0 %1286
      %1288 = vrot.lane.b32.xlu0 %v1194, 20
      %v1289 = vpop.permute.xlu0 %1288
      %1290 = vrot.lane.b32.xlu0 %v1195, 20
      %v1291 = vpop.permute.xlu0 %1290
      %vm1324 = vcmask 195744
      %1325 = vst.msk [vmem:[#allocation2] sm:$0xff] %vm1324, %v1229
      %1326 = vst.msk [vmem:[#allocation2 + $0x8] sm:$0xff] %vm1324, %v1231
      %1327 = vst.msk [vmem:[#allocation2 + $0x10] sm:$0xff] %vm1324, %v1233
      %1328 = vst.msk [vmem:[#allocation2 + $0x18] sm:$0xff] %vm1324, %v1235
      %1329 = vst.msk [vmem:[#allocation2 + $0x20] sm:$0xff] %vm1324, %v1237
      %1330 = vst.msk [vmem:[#allocation2 + $0x28] sm:$0xff] %vm1324, %v1239
      %1331 = vst.msk [vmem:[#allocation2 + $0x30] sm:$0xff] %vm1324, %v1241
      %1332 = vst.msk [vmem:[#allocation2 + $0x38] sm:$0xff] %vm1324, %v1243
      %1333 = vst.msk [vmem:[#allocation2 + $0x40] sm:$0xff] %vm1324, %v1245
      %1334 = vst.msk [vmem:[#allocation2 + $0x48] sm:$0xff] %vm1324, %v1247
      %1335 = vst.msk [vmem:[#allocation2 + $0x50] sm:$0xff] %vm1324, %v1249
      %1336 = vst.msk [vmem:[#allocation2 + $0x58] sm:$0xff] %vm1324, %v1251
      %1337 = vst.msk [vmem:[#allocation2 + $0x60] sm:$0xff] %vm1324, %v1253
      %1338 = vst.msk [vmem:[#allocation2 + $0x68] sm:$0xff] %vm1324, %v1255
      %1339 = vst.msk [vmem:[#allocation2 + $0x70] sm:$0xff] %vm1324, %v1257
      %1340 = vst.msk [vmem:[#allocation2 + $0x78] sm:$0xff] %vm1324, %v1259
      %1341 = vst.msk [vmem:[#allocation2 + $0x80] sm:$0xff] %vm1324, %v1261
      %1342 = vst.msk [vmem:[#allocation2 + $0x88] sm:$0xff] %vm1324, %v1263
      %1343 = vst.msk [vmem:[#allocation2 + $0x90] sm:$0xff] %vm1324, %v1265
      %1344 = vst.msk [vmem:[#allocation2 + $0x98] sm:$0xff] %vm1324, %v1267
      %1345 = vst.msk [vmem:[#allocation2 + $0xa0] sm:$0xff] %vm1324, %v1269
      %1346 = vst.msk [vmem:[#allocation2 + $0xa8] sm:$0xff] %vm1324, %v1271
      %1347 = vst.msk [vmem:[#allocation2 + $0xb0] sm:$0xff] %vm1324, %v1273
      %1348 = vst.msk [vmem:[#allocation2 + $0xb8] sm:$0xff] %vm1324, %v1275
      %1349 = vst.msk [vmem:[#allocation2 + $0xc0] sm:$0xff] %vm1324, %v1277
      %1350 = vst.msk [vmem:[#allocation2 + $0xc8] sm:$0xff] %vm1324, %v1279
      %1351 = vst.msk [vmem:[#allocation2 + $0xd0] sm:$0xff] %vm1324, %v1281
      %1352 = vst.msk [vmem:[#allocation2 + $0xd8] sm:$0xff] %vm1324, %v1283
      %1353 = vst.msk [vmem:[#allocation2 + $0xe0] sm:$0xff] %vm1324, %v1285
      %1354 = vst.msk [vmem:[#allocation2 + $0xe8] sm:$0xff] %vm1324, %v1287
      %1355 = vst.msk [vmem:[#allocation2 + $0xf0] sm:$0xff] %vm1324, %v1289
      %1356 = vst.msk [vmem:[#allocation2 + $0xf8] sm:$0xff] %vm1324, %v1291
      %s1357 = scalar_lea.vmem %s315, 48
      %v1358 = vld [vmem:[%s1357] sm:$0xff]
      %v1359 = vld [vmem:[%s1357 + $0x8] sm:$0xff]
      %v1360 = vld [vmem:[%s1357 + $0x18] sm:$0xff]
      %v1361 = vld [vmem:[%s1357 + $0x20] sm:$0xff]
      %v1362 = vld [vmem:[%s1357 + $0x30] sm:$0xff]
      %v1363 = vld [vmem:[%s1357 + $0x38] sm:$0xff]
      %v1364 = vld [vmem:[%s1357 + $0x48] sm:$0xff]
      %v1365 = vld [vmem:[%s1357 + $0x50] sm:$0xff]
      %v1366 = vld [vmem:[%s1357 + $0x60] sm:$0xff]
      %v1367 = vld [vmem:[%s1357 + $0x68] sm:$0xff]
      %v1368 = vld [vmem:[%s1357 + $0x78] sm:$0xff]
      %v1369 = vld [vmem:[%s1357 + $0x80] sm:$0xff]
      %v1370 = vld [vmem:[%s1357 + $0x90] sm:$0xff]
      %v1371 = vld [vmem:[%s1357 + $0x98] sm:$0xff]
      %v1372 = vld [vmem:[%s1357 + $0xa8] sm:$0xff]
      %v1373 = vld [vmem:[%s1357 + $0xb0] sm:$0xff]
      %v1374 = vld [vmem:[%s1357 + $0xc0] sm:$0xff]
      %v1375 = vld [vmem:[%s1357 + $0xc8] sm:$0xff]
      %v1376 = vld [vmem:[%s1357 + $0xd8] sm:$0xff]
      %v1377 = vld [vmem:[%s1357 + $0xe0] sm:$0xff]
      %v1378 = vld [vmem:[%s1357 + $0xf0] sm:$0xff]
      %v1379 = vld [vmem:[%s1357 + $0xf8] sm:$0xff]
      %v1380 = vld [vmem:[%s1357 + $0x108] sm:$0xff]
      %v1381 = vld [vmem:[%s1357 + $0x110] sm:$0xff]
      %v1382 = vld [vmem:[%s1357 + $0x120] sm:$0xff]
      %v1383 = vld [vmem:[%s1357 + $0x128] sm:$0xff]
      %v1384 = vld [vmem:[%s1357 + $0x138] sm:$0xff]
      %v1385 = vld [vmem:[%s1357 + $0x140] sm:$0xff]
      %v1386 = vld [vmem:[%s1357 + $0x150] sm:$0xff]
      %v1387 = vld [vmem:[%s1357 + $0x158] sm:$0xff]
      %v1388 = vld [vmem:[%s1357 + $0x168] sm:$0xff]
      %v1389 = vld [vmem:[%s1357 + $0x170] sm:$0xff]
      %1422 = vrot.lane.b32.xlu0 %v1358, 24
      %v1423 = vpop.permute.xlu0 %1422
      %1424 = vrot.lane.b32.xlu0 %v1359, 24
      %v1425 = vpop.permute.xlu0 %1424
      %1426 = vrot.lane.b32.xlu0 %v1360, 24
      %v1427 = vpop.permute.xlu0 %1426
      %1428 = vrot.lane.b32.xlu0 %v1361, 24
      %v1429 = vpop.permute.xlu0 %1428
      %1430 = vrot.lane.b32.xlu0 %v1362, 24
      %v1431 = vpop.permute.xlu0 %1430
      %1432 = vrot.lane.b32.xlu0 %v1363, 24
      %v1433 = vpop.permute.xlu0 %1432
      %1434 = vrot.lane.b32.xlu0 %v1364, 24
      %v1435 = vpop.permute.xlu0 %1434
      %1436 = vrot.lane.b32.xlu0 %v1365, 24
      %v1437 = vpop.permute.xlu0 %1436
      %1438 = vrot.lane.b32.xlu0 %v1366, 24
      %v1439 = vpop.permute.xlu0 %1438
      %1440 = vrot.lane.b32.xlu0 %v1367, 24
      %v1441 = vpop.permute.xlu0 %1440
      %1442 = vrot.lane.b32.xlu0 %v1368, 24
      %v1443 = vpop.permute.xlu0 %1442
      %1444 = vrot.lane.b32.xlu0 %v1369, 24
      %v1445 = vpop.permute.xlu0 %1444
      %1446 = vrot.lane.b32.xlu0 %v1370, 24
      %v1447 = vpop.permute.xlu0 %1446
      %1448 = vrot.lane.b32.xlu0 %v1371, 24
      %v1449 = vpop.permute.xlu0 %1448
      %1450 = vrot.lane.b32.xlu0 %v1372, 24
      %v1451 = vpop.permute.xlu0 %1450
      %1452 = vrot.lane.b32.xlu0 %v1373, 24
      %v1453 = vpop.permute.xlu0 %1452
      %1454 = vrot.lane.b32.xlu0 %v1374, 24
      %v1455 = vpop.permute.xlu0 %1454
      %1456 = vrot.lane.b32.xlu0 %v1375, 24
      %v1457 = vpop.permute.xlu0 %1456
      %1458 = vrot.lane.b32.xlu0 %v1376, 24
      %v1459 = vpop.permute.xlu0 %1458
      %1460 = vrot.lane.b32.xlu0 %v1377, 24
      %v1461 = vpop.permute.xlu0 %1460
      %1462 = vrot.lane.b32.xlu0 %v1378, 24
      %v1463 = vpop.permute.xlu0 %1462
      %1464 = vrot.lane.b32.xlu0 %v1379, 24
      %v1465 = vpop.permute.xlu0 %1464
      %1466 = vrot.lane.b32.xlu0 %v1380, 24
      %v1467 = vpop.permute.xlu0 %1466
      %1468 = vrot.lane.b32.xlu0 %v1381, 24
      %v1469 = vpop.permute.xlu0 %1468
      %1470 = vrot.lane.b32.xlu0 %v1382, 24
      %v1471 = vpop.permute.xlu0 %1470
      %1472 = vrot.lane.b32.xlu0 %v1383, 24
      %v1473 = vpop.permute.xlu0 %1472
      %1474 = vrot.lane.b32.xlu0 %v1384, 24
      %v1475 = vpop.permute.xlu0 %1474
      %1476 = vrot.lane.b32.xlu0 %v1385, 24
      %v1477 = vpop.permute.xlu0 %1476
      %1478 = vrot.lane.b32.xlu0 %v1386, 24
      %v1479 = vpop.permute.xlu0 %1478
      %1480 = vrot.lane.b32.xlu0 %v1387, 24
      %v1481 = vpop.permute.xlu0 %1480
      %1482 = vrot.lane.b32.xlu0 %v1388, 24
      %v1483 = vpop.permute.xlu0 %1482
      %1484 = vrot.lane.b32.xlu0 %v1389, 24
      %v1485 = vpop.permute.xlu0 %1484
      %vm1518 = vcmask 228544
      %1519 = vst.msk [vmem:[#allocation2] sm:$0xff] %vm1518, %v1423
      %1520 = vst.msk [vmem:[#allocation2 + $0x8] sm:$0xff] %vm1518, %v1425
      %1521 = vst.msk [vmem:[#allocation2 + $0x10] sm:$0xff] %vm1518, %v1427
      %1522 = vst.msk [vmem:[#allocation2 + $0x18] sm:$0xff] %vm1518, %v1429
      %1523 = vst.msk [vmem:[#allocation2 + $0x20] sm:$0xff] %vm1518, %v1431
      %1524 = vst.msk [vmem:[#allocation2 + $0x28] sm:$0xff] %vm1518, %v1433
      %1525 = vst.msk [vmem:[#allocation2 + $0x30] sm:$0xff] %vm1518, %v1435
      %1526 = vst.msk [vmem:[#allocation2 + $0x38] sm:$0xff] %vm1518, %v1437
      %1527 = vst.msk [vmem:[#allocation2 + $0x40] sm:$0xff] %vm1518, %v1439
      %1528 = vst.msk [vmem:[#allocation2 + $0x48] sm:$0xff] %vm1518, %v1441
      %1529 = vst.msk [vmem:[#allocation2 + $0x50] sm:$0xff] %vm1518, %v1443
      %1530 = vst.msk [vmem:[#allocation2 + $0x58] sm:$0xff] %vm1518, %v1445
      %1531 = vst.msk [vmem:[#allocation2 + $0x60] sm:$0xff] %vm1518, %v1447
      %1532 = vst.msk [vmem:[#allocation2 + $0x68] sm:$0xff] %vm1518, %v1449
      %1533 = vst.msk [vmem:[#allocation2 + $0x70] sm:$0xff] %vm1518, %v1451
      %1534 = vst.msk [vmem:[#allocation2 + $0x78] sm:$0xff] %vm1518, %v1453
      %1535 = vst.msk [vmem:[#allocation2 + $0x80] sm:$0xff] %vm1518, %v1455
      %1536 = vst.msk [vmem:[#allocation2 + $0x88] sm:$0xff] %vm1518, %v1457
      %1537 = vst.msk [vmem:[#allocation2 + $0x90] sm:$0xff] %vm1518, %v1459
      %1538 = vst.msk [vmem:[#allocation2 + $0x98] sm:$0xff] %vm1518, %v1461
      %1539 = vst.msk [vmem:[#allocation2 + $0xa0] sm:$0xff] %vm1518, %v1463
      %1540 = vst.msk [vmem:[#allocation2 + $0xa8] sm:$0xff] %vm1518, %v1465
      %1541 = vst.msk [vmem:[#allocation2 + $0xb0] sm:$0xff] %vm1518, %v1467
      %1542 = vst.msk [vmem:[#allocation2 + $0xb8] sm:$0xff] %vm1518, %v1469
      %1543 = vst.msk [vmem:[#allocation2 + $0xc0] sm:$0xff] %vm1518, %v1471
      %1544 = vst.msk [vmem:[#allocation2 + $0xc8] sm:$0xff] %vm1518, %v1473
      %1545 = vst.msk [vmem:[#allocation2 + $0xd0] sm:$0xff] %vm1518, %v1475
      %1546 = vst.msk [vmem:[#allocation2 + $0xd8] sm:$0xff] %vm1518, %v1477
      %1547 = vst.msk [vmem:[#allocation2 + $0xe0] sm:$0xff] %vm1518, %v1479
      %1548 = vst.msk [vmem:[#allocation2 + $0xe8] sm:$0xff] %vm1518, %v1481
      %1549 = vst.msk [vmem:[#allocation2 + $0xf0] sm:$0xff] %vm1518, %v1483
      %1550 = vst.msk [vmem:[#allocation2 + $0xf8] sm:$0xff] %vm1518, %v1485
      %v1551 = vld [vmem:[%s1357 + $0x1] sm:$0xff]
      %v1552 = vld [vmem:[%s1357 + $0x9] sm:$0xff]
      %v1553 = vld [vmem:[%s1357 + $0x19] sm:$0xff]
      %v1554 = vld [vmem:[%s1357 + $0x21] sm:$0xff]
      %v1555 = vld [vmem:[%s1357 + $0x31] sm:$0xff]
      %v1556 = vld [vmem:[%s1357 + $0x39] sm:$0xff]
      %v1557 = vld [vmem:[%s1357 + $0x49] sm:$0xff]
      %v1558 = vld [vmem:[%s1357 + $0x51] sm:$0xff]
      %v1559 = vld [vmem:[%s1357 + $0x61] sm:$0xff]
      %v1560 = vld [vmem:[%s1357 + $0x69] sm:$0xff]
      %v1561 = vld [vmem:[%s1357 + $0x79] sm:$0xff]
      %v1562 = vld [vmem:[%s1357 + $0x81] sm:$0xff]
      %v1563 = vld [vmem:[%s1357 + $0x91] sm:$0xff]
      %v1564 = vld [vmem:[%s1357 + $0x99] sm:$0xff]
      %v1565 = vld [vmem:[%s1357 + $0xa9] sm:$0xff]
      %v1566 = vld [vmem:[%s1357 + $0xb1] sm:$0xff]
      %v1567 = vld [vmem:[%s1357 + $0xc1] sm:$0xff]
      %v1568 = vld [vmem:[%s1357 + $0xc9] sm:$0xff]
      %v1569 = vld [vmem:[%s1357 + $0xd9] sm:$0xff]
      %v1570 = vld [vmem:[%s1357 + $0xe1] sm:$0xff]
      %v1571 = vld [vmem:[%s1357 + $0xf1] sm:$0xff]
      %v1572 = vld [vmem:[%s1357 + $0xf9] sm:$0xff]
      %v1573 = vld [vmem:[%s1357 + $0x109] sm:$0xff]
      %v1574 = vld [vmem:[%s1357 + $0x111] sm:$0xff]
      %v1575 = vld [vmem:[%s1357 + $0x121] sm:$0xff]
      %v1576 = vld [vmem:[%s1357 + $0x129] sm:$0xff]
      %v1577 = vld [vmem:[%s1357 + $0x139] sm:$0xff]
      %v1578 = vld [vmem:[%s1357 + $0x141] sm:$0xff]
      %v1579 = vld [vmem:[%s1357 + $0x151] sm:$0xff]
      %v1580 = vld [vmem:[%s1357 + $0x159] sm:$0xff]
      %v1581 = vld [vmem:[%s1357 + $0x169] sm:$0xff]
      %v1582 = vld [vmem:[%s1357 + $0x171] sm:$0xff]
      %1615 = vrot.lane.b32.xlu0 %v1551, 28
      %v1616 = vpop.permute.xlu0 %1615
      %1617 = vrot.lane.b32.xlu0 %v1552, 28
      %v1618 = vpop.permute.xlu0 %1617
      %1619 = vrot.lane.b32.xlu0 %v1553, 28
      %v1620 = vpop.permute.xlu0 %1619
      %1621 = vrot.lane.b32.xlu0 %v1554, 28
      %v1622 = vpop.permute.xlu0 %1621
      %1623 = vrot.lane.b32.xlu0 %v1555, 28
      %v1624 = vpop.permute.xlu0 %1623
      %1625 = vrot.lane.b32.xlu0 %v1556, 28
      %v1626 = vpop.permute.xlu0 %1625
      %1627 = vrot.lane.b32.xlu0 %v1557, 28
      %v1628 = vpop.permute.xlu0 %1627
      %1629 = vrot.lane.b32.xlu0 %v1558, 28
      %v1630 = vpop.permute.xlu0 %1629
      %1631 = vrot.lane.b32.xlu0 %v1559, 28
      %v1632 = vpop.permute.xlu0 %1631
      %1633 = vrot.lane.b32.xlu0 %v1560, 28
      %v1634 = vpop.permute.xlu0 %1633
      %1635 = vrot.lane.b32.xlu0 %v1561, 28
      %v1636 = vpop.permute.xlu0 %1635
      %1637 = vrot.lane.b32.xlu0 %v1562, 28
      %v1638 = vpop.permute.xlu0 %1637
      %1639 = vrot.lane.b32.xlu0 %v1563, 28
      %v1640 = vpop.permute.xlu0 %1639
      %1641 = vrot.lane.b32.xlu0 %v1564, 28
      %v1642 = vpop.permute.xlu0 %1641
      %1643 = vrot.lane.b32.xlu0 %v1565, 28
      %v1644 = vpop.permute.xlu0 %1643
      %1645 = vrot.lane.b32.xlu0 %v1566, 28
      %v1646 = vpop.permute.xlu0 %1645
      %1647 = vrot.lane.b32.xlu0 %v1567, 28
      %v1648 = vpop.permute.xlu0 %1647
      %1649 = vrot.lane.b32.xlu0 %v1568, 28
      %v1650 = vpop.permute.xlu0 %1649
      %1651 = vrot.lane.b32.xlu0 %v1569, 28
      %v1652 = vpop.permute.xlu0 %1651
      %1653 = vrot.lane.b32.xlu0 %v1570, 28
      %v1654 = vpop.permute.xlu0 %1653
      %1655 = vrot.lane.b32.xlu0 %v1571, 28
      %v1656 = vpop.permute.xlu0 %1655
      %1657 = vrot.lane.b32.xlu0 %v1572, 28
      %v1658 = vpop.permute.xlu0 %1657
      %1659 = vrot.lane.b32.xlu0 %v1573, 28
      %v1660 = vpop.permute.xlu0 %1659
      %1661 = vrot.lane.b32.xlu0 %v1574, 28
      %v1662 = vpop.permute.xlu0 %1661
      %1663 = vrot.lane.b32.xlu0 %v1575, 28
      %v1664 = vpop.permute.xlu0 %1663
      %1665 = vrot.lane.b32.xlu0 %v1576, 28
      %v1666 = vpop.permute.xlu0 %1665
      %1667 = vrot.lane.b32.xlu0 %v1577, 28
      %v1668 = vpop.permute.xlu0 %1667
      %1669 = vrot.lane.b32.xlu0 %v1578, 28
      %v1670 = vpop.permute.xlu0 %1669
      %1671 = vrot.lane.b32.xlu0 %v1579, 28
      %v1672 = vpop.permute.xlu0 %1671
      %1673 = vrot.lane.b32.xlu0 %v1580, 28
      %v1674 = vpop.permute.xlu0 %1673
      %1675 = vrot.lane.b32.xlu0 %v1581, 28
      %v1676 = vpop.permute.xlu0 %1675
      %1677 = vrot.lane.b32.xlu0 %v1582, 28
      %v1678 = vpop.permute.xlu0 %1677
      %vm1711 = vcmask 261344
      %1712 = vst.msk [vmem:[#allocation2] sm:$0xff] %vm1711, %v1616
      %1713 = vst.msk [vmem:[#allocation2 + $0x8] sm:$0xff] %vm1711, %v1618
      %1714 = vst.msk [vmem:[#allocation2 + $0x10] sm:$0xff] %vm1711, %v1620
      %1715 = vst.msk [vmem:[#allocation2 + $0x18] sm:$0xff] %vm1711, %v1622
      %1716 = vst.msk [vmem:[#allocation2 + $0x20] sm:$0xff] %vm1711, %v1624
      %1717 = vst.msk [vmem:[#allocation2 + $0x28] sm:$0xff] %vm1711, %v1626
      %1718 = vst.msk [vmem:[#allocation2 + $0x30] sm:$0xff] %vm1711, %v1628
      %1719 = vst.msk [vmem:[#allocation2 + $0x38] sm:$0xff] %vm1711, %v1630
      %1720 = vst.msk [vmem:[#allocation2 + $0x40] sm:$0xff] %vm1711, %v1632
      %1721 = vst.msk [vmem:[#allocation2 + $0x48] sm:$0xff] %vm1711, %v1634
      %1722 = vst.msk [vmem:[#allocation2 + $0x50] sm:$0xff] %vm1711, %v1636
      %1723 = vst.msk [vmem:[#allocation2 + $0x58] sm:$0xff] %vm1711, %v1638
      %1724 = vst.msk [vmem:[#allocation2 + $0x60] sm:$0xff] %vm1711, %v1640
      %1725 = vst.msk [vmem:[#allocation2 + $0x68] sm:$0xff] %vm1711, %v1642
      %1726 = vst.msk [vmem:[#allocation2 + $0x70] sm:$0xff] %vm1711, %v1644
      %1727 = vst.msk [vmem:[#allocation2 + $0x78] sm:$0xff] %vm1711, %v1646
      %1728 = vst.msk [vmem:[#allocation2 + $0x80] sm:$0xff] %vm1711, %v1648
      %1729 = vst.msk [vmem:[#allocation2 + $0x88] sm:$0xff] %vm1711, %v1650
      %1730 = vst.msk [vmem:[#allocation2 + $0x90] sm:$0xff] %vm1711, %v1652
      %1731 = vst.msk [vmem:[#allocation2 + $0x98] sm:$0xff] %vm1711, %v1654
      %1732 = vst.msk [vmem:[#allocation2 + $0xa0] sm:$0xff] %vm1711, %v1656
      %1733 = vst.msk [vmem:[#allocation2 + $0xa8] sm:$0xff] %vm1711, %v1658
      %1734 = vst.msk [vmem:[#allocation2 + $0xb0] sm:$0xff] %vm1711, %v1660
      %1735 = vst.msk [vmem:[#allocation2 + $0xb8] sm:$0xff] %vm1711, %v1662
      %1736 = vst.msk [vmem:[#allocation2 + $0xc0] sm:$0xff] %vm1711, %v1664
      %1737 = vst.msk [vmem:[#allocation2 + $0xc8] sm:$0xff] %vm1711, %v1666
      %1738 = vst.msk [vmem:[#allocation2 + $0xd0] sm:$0xff] %vm1711, %v1668
      %1739 = vst.msk [vmem:[#allocation2 + $0xd8] sm:$0xff] %vm1711, %v1670
      %1740 = vst.msk [vmem:[#allocation2 + $0xe0] sm:$0xff] %vm1711, %v1672
      %1741 = vst.msk [vmem:[#allocation2 + $0xe8] sm:$0xff] %vm1711, %v1674
      %1742 = vst.msk [vmem:[#allocation2 + $0xf0] sm:$0xff] %vm1711, %v1676
      %1743 = vst.msk [vmem:[#allocation2 + $0xf8] sm:$0xff] %vm1711, %v1678
      %v1744 = vld [vmem:[%s1357 + $0x2] sm:$0xff]
      %v1745 = vld [vmem:[%s1357 + $0xa] sm:$0xff]
      %v1746 = vld [vmem:[%s1357 + $0x1a] sm:$0xff]
      %v1747 = vld [vmem:[%s1357 + $0x22] sm:$0xff]
      %v1748 = vld [vmem:[%s1357 + $0x32] sm:$0xff]
      %v1749 = vld [vmem:[%s1357 + $0x3a] sm:$0xff]
      %v1750 = vld [vmem:[%s1357 + $0x4a] sm:$0xff]
      %v1751 = vld [vmem:[%s1357 + $0x52] sm:$0xff]
      %v1752 = vld [vmem:[%s1357 + $0x62] sm:$0xff]
      %v1753 = vld [vmem:[%s1357 + $0x6a] sm:$0xff]
      %v1754 = vld [vmem:[%s1357 + $0x7a] sm:$0xff]
      %v1755 = vld [vmem:[%s1357 + $0x82] sm:$0xff]
      %v1756 = vld [vmem:[%s1357 + $0x92] sm:$0xff]
      %v1757 = vld [vmem:[%s1357 + $0x9a] sm:$0xff]
      %v1758 = vld [vmem:[%s1357 + $0xaa] sm:$0xff]
      %v1759 = vld [vmem:[%s1357 + $0xb2] sm:$0xff]
      %v1760 = vld [vmem:[%s1357 + $0xc2] sm:$0xff]
      %v1761 = vld [vmem:[%s1357 + $0xca] sm:$0xff]
      %v1762 = vld [vmem:[%s1357 + $0xda] sm:$0xff]
      %v1763 = vld [vmem:[%s1357 + $0xe2] sm:$0xff]
      %v1764 = vld [vmem:[%s1357 + $0xf2] sm:$0xff]
      %v1765 = vld [vmem:[%s1357 + $0xfa] sm:$0xff]
      %v1766 = vld [vmem:[%s1357 + $0x10a] sm:$0xff]
      %v1767 = vld [vmem:[%s1357 + $0x112] sm:$0xff]
      %v1768 = vld [vmem:[%s1357 + $0x122] sm:$0xff]
      %v1769 = vld [vmem:[%s1357 + $0x12a] sm:$0xff]
      %v1770 = vld [vmem:[%s1357 + $0x13a] sm:$0xff]
      %v1771 = vld [vmem:[%s1357 + $0x142] sm:$0xff]
      %v1772 = vld [vmem:[%s1357 + $0x152] sm:$0xff]
      %v1773 = vld [vmem:[%s1357 + $0x15a] sm:$0xff]
      %v1774 = vld [vmem:[%s1357 + $0x16a] sm:$0xff]
      %v1775 = vld [vmem:[%s1357 + $0x172] sm:$0xff]
      %1808 = vrot.lane.b32.xlu0 %v1744, 32
      %v1809 = vpop.permute.xlu0 %1808
      %1810 = vrot.lane.b32.xlu0 %v1745, 32
      %v1811 = vpop.permute.xlu0 %1810
      %1812 = vrot.lane.b32.xlu0 %v1746, 32
      %v1813 = vpop.permute.xlu0 %1812
      %1814 = vrot.lane.b32.xlu0 %v1747, 32
      %v1815 = vpop.permute.xlu0 %1814
      %1816 = vrot.lane.b32.xlu0 %v1748, 32
      %v1817 = vpop.permute.xlu0 %1816
      %1818 = vrot.lane.b32.xlu0 %v1749, 32
      %v1819 = vpop.permute.xlu0 %1818
      %1820 = vrot.lane.b32.xlu0 %v1750, 32
      %v1821 = vpop.permute.xlu0 %1820
      %1822 = vrot.lane.b32.xlu0 %v1751, 32
      %v1823 = vpop.permute.xlu0 %1822
      %1824 = vrot.lane.b32.xlu0 %v1752, 32
      %v1825 = vpop.permute.xlu0 %1824
      %1826 = vrot.lane.b32.xlu0 %v1753, 32
      %v1827 = vpop.permute.xlu0 %1826
      %1828 = vrot.lane.b32.xlu0 %v1754, 32
      %v1829 = vpop.permute.xlu0 %1828
      %1830 = vrot.lane.b32.xlu0 %v1755, 32
      %v1831 = vpop.permute.xlu0 %1830
      %1832 = vrot.lane.b32.xlu0 %v1756, 32
      %v1833 = vpop.permute.xlu0 %1832
      %1834 = vrot.lane.b32.xlu0 %v1757, 32
      %v1835 = vpop.permute.xlu0 %1834
      %1836 = vrot.lane.b32.xlu0 %v1758, 32
      %v1837 = vpop.permute.xlu0 %1836
      %1838 = vrot.lane.b32.xlu0 %v1759, 32
      %v1839 = vpop.permute.xlu0 %1838
      %1840 = vrot.lane.b32.xlu0 %v1760, 32
      %v1841 = vpop.permute.xlu0 %1840
      %1842 = vrot.lane.b32.xlu0 %v1761, 32
      %v1843 = vpop.permute.xlu0 %1842
      %1844 = vrot.lane.b32.xlu0 %v1762, 32
      %v1845 = vpop.permute.xlu0 %1844
      %1846 = vrot.lane.b32.xlu0 %v1763, 32
      %v1847 = vpop.permute.xlu0 %1846
      %1848 = vrot.lane.b32.xlu0 %v1764, 32
      %v1849 = vpop.permute.xlu0 %1848
      %1850 = vrot.lane.b32.xlu0 %v1765, 32
      %v1851 = vpop.permute.xlu0 %1850
      %1852 = vrot.lane.b32.xlu0 %v1766, 32
      %v1853 = vpop.permute.xlu0 %1852
      %1854 = vrot.lane.b32.xlu0 %v1767, 32
      %v1855 = vpop.permute.xlu0 %1854
      %1856 = vrot.lane.b32.xlu0 %v1768, 32
      %v1857 = vpop.permute.xlu0 %1856
      %1858 = vrot.lane.b32.xlu0 %v1769, 32
      %v1859 = vpop.permute.xlu0 %1858
      %1860 = vrot.lane.b32.xlu0 %v1770, 32
      %v1861 = vpop.permute.xlu0 %1860
      %1862 = vrot.lane.b32.xlu0 %v1771, 32
      %v1863 = vpop.permute.xlu0 %1862
      %1864 = vrot.lane.b32.xlu0 %v1772, 32
      %v1865 = vpop.permute.xlu0 %1864
      %1866 = vrot.lane.b32.xlu0 %v1773, 32
      %v1867 = vpop.permute.xlu0 %1866
      %1868 = vrot.lane.b32.xlu0 %v1774, 32
      %v1869 = vpop.permute.xlu0 %1868
      %1870 = vrot.lane.b32.xlu0 %v1775, 32
      %v1871 = vpop.permute.xlu0 %1870
      %vm1904 = vcmask 294144
      %1905 = vst.msk [vmem:[#allocation2] sm:$0xff] %vm1904, %v1809
      %1906 = vst.msk [vmem:[#allocation2 + $0x8] sm:$0xff] %vm1904, %v1811
      %1907 = vst.msk [vmem:[#allocation2 + $0x10] sm:$0xff] %vm1904, %v1813
      %1908 = vst.msk [vmem:[#allocation2 + $0x18] sm:$0xff] %vm1904, %v1815
      %1909 = vst.msk [vmem:[#allocation2 + $0x20] sm:$0xff] %vm1904, %v1817
      %1910 = vst.msk [vmem:[#allocation2 + $0x28] sm:$0xff] %vm1904, %v1819
      %1911 = vst.msk [vmem:[#allocation2 + $0x30] sm:$0xff] %vm1904, %v1821
      %1912 = vst.msk [vmem:[#allocation2 + $0x38] sm:$0xff] %vm1904, %v1823
      %1913 = vst.msk [vmem:[#allocation2 + $0x40] sm:$0xff] %vm1904, %v1825
      %1914 = vst.msk [vmem:[#allocation2 + $0x48] sm:$0xff] %vm1904, %v1827
      %1915 = vst.msk [vmem:[#allocation2 + $0x50] sm:$0xff] %vm1904, %v1829
      %1916 = vst.msk [vmem:[#allocation2 + $0x58] sm:$0xff] %vm1904, %v1831
      %1917 = vst.msk [vmem:[#allocation2 + $0x60] sm:$0xff] %vm1904, %v1833
      %1918 = vst.msk [vmem:[#allocation2 + $0x68] sm:$0xff] %vm1904, %v1835
      %1919 = vst.msk [vmem:[#allocation2 + $0x70] sm:$0xff] %vm1904, %v1837
      %1920 = vst.msk [vmem:[#allocation2 + $0x78] sm:$0xff] %vm1904, %v1839
      %1921 = vst.msk [vmem:[#allocation2 + $0x80] sm:$0xff] %vm1904, %v1841
      %1922 = vst.msk [vmem:[#allocation2 + $0x88] sm:$0xff] %vm1904, %v1843
      %1923 = vst.msk [vmem:[#allocation2 + $0x90] sm:$0xff] %vm1904, %v1845
      %1924 = vst.msk [vmem:[#allocation2 + $0x98] sm:$0xff] %vm1904, %v1847
      %1925 = vst.msk [vmem:[#allocation2 + $0xa0] sm:$0xff] %vm1904, %v1849
      %1926 = vst.msk [vmem:[#allocation2 + $0xa8] sm:$0xff] %vm1904, %v1851
      %1927 = vst.msk [vmem:[#allocation2 + $0xb0] sm:$0xff] %vm1904, %v1853
      %1928 = vst.msk [vmem:[#allocation2 + $0xb8] sm:$0xff] %vm1904, %v1855
      %1929 = vst.msk [vmem:[#allocation2 + $0xc0] sm:$0xff] %vm1904, %v1857
      %1930 = vst.msk [vmem:[#allocation2 + $0xc8] sm:$0xff] %vm1904, %v1859
      %1931 = vst.msk [vmem:[#allocation2 + $0xd0] sm:$0xff] %vm1904, %v1861
      %1932 = vst.msk [vmem:[#allocation2 + $0xd8] sm:$0xff] %vm1904, %v1863
      %1933 = vst.msk [vmem:[#allocation2 + $0xe0] sm:$0xff] %vm1904, %v1865
      %1934 = vst.msk [vmem:[#allocation2 + $0xe8] sm:$0xff] %vm1904, %v1867
      %1935 = vst.msk [vmem:[#allocation2 + $0xf0] sm:$0xff] %vm1904, %v1869
      %1936 = vst.msk [vmem:[#allocation2 + $0xf8] sm:$0xff] %vm1904, %v1871
      %v1937 = vld [vmem:[#allocation2] sm:$0xff]
      %v1938 = vld [vmem:[#allocation2 + $0x8] sm:$0xff]
      %v1939 = vld [vmem:[#allocation2 + $0x10] sm:$0xff]
      %v1940 = vld [vmem:[#allocation2 + $0x18] sm:$0xff]
      %v1941 = vld [vmem:[#allocation2 + $0x20] sm:$0xff]
      %v1942 = vld [vmem:[#allocation2 + $0x28] sm:$0xff]
      %v1943 = vld [vmem:[#allocation2 + $0x30] sm:$0xff]
      %v1944 = vld [vmem:[#allocation2 + $0x38] sm:$0xff]
      %v1945 = vld [vmem:[#allocation2 + $0x40] sm:$0xff]
      %v1946 = vld [vmem:[#allocation2 + $0x48] sm:$0xff]
      %v1947 = vld [vmem:[#allocation2 + $0x50] sm:$0xff]
      %v1948 = vld [vmem:[#allocation2 + $0x58] sm:$0xff]
      %v1949 = vld [vmem:[#allocation2 + $0x60] sm:$0xff]
      %v1950 = vld [vmem:[#allocation2 + $0x68] sm:$0xff]
      %v1951 = vld [vmem:[#allocation2 + $0x70] sm:$0xff]
      %v1952 = vld [vmem:[#allocation2 + $0x78] sm:$0xff]
      %v1953 = vld [vmem:[#allocation2 + $0x80] sm:$0xff]
      %v1954 = vld [vmem:[#allocation2 + $0x88] sm:$0xff]
      %v1955 = vld [vmem:[#allocation2 + $0x90] sm:$0xff]
      %v1956 = vld [vmem:[#allocation2 + $0x98] sm:$0xff]
      %v1957 = vld [vmem:[#allocation2 + $0xa0] sm:$0xff]
      %v1958 = vld [vmem:[#allocation2 + $0xa8] sm:$0xff]
      %v1959 = vld [vmem:[#allocation2 + $0xb0] sm:$0xff]
      %v1960 = vld [vmem:[#allocation2 + $0xb8] sm:$0xff]
      %v1961 = vld [vmem:[#allocation2 + $0xc0] sm:$0xff]
      %v1962 = vld [vmem:[#allocation2 + $0xc8] sm:$0xff]
      %v1963 = vld [vmem:[#allocation2 + $0xd0] sm:$0xff]
      %v1964 = vld [vmem:[#allocation2 + $0xd8] sm:$0xff]
      %v1965 = vld [vmem:[#allocation2 + $0xe0] sm:$0xff]
      %v1966 = vld [vmem:[#allocation2 + $0xe8] sm:$0xff]
      %v1967 = vld [vmem:[#allocation2 + $0xf0] sm:$0xff]
      %v1968 = vld [vmem:[#allocation2 + $0xf8] sm:$0xff]
      %v1969 = vld [vmem:[%s2] sm:$0xff]
      %v1970 = vld [vmem:[%s2 + $0x8] sm:$0xff]
      %v1971 = vld [vmem:[%s2 + $0x10] sm:$0xff]
      %v1972 = vld [vmem:[%s2 + $0x18] sm:$0xff]
      %v1973 = vld [vmem:[%s2 + $0x20] sm:$0xff]
      %v1974 = vld [vmem:[%s2 + $0x28] sm:$0xff]
      %v1975 = vld [vmem:[%s2 + $0x30] sm:$0xff]
      %v1976 = vld [vmem:[%s2 + $0x38] sm:$0xff]
      %v1977 = vld [vmem:[%s2 + $0x40] sm:$0xf]
      %v1978 = vld [vmem:[%s2 + $0x48] sm:$0xf]
      %v1979 = vld [vmem:[%s3] sm:$0x3]
      %v1981 = vperm.slane %v1979, 0
      %v1982 = vperm.slane %v1979, 1
      %vm1985 = vcmask 293888
      %v1987 = vsel %vm1985, %v1937, 0
      %v1990 = vsel %vm1985, %v1938, 0
      %v1993 = vsel %vm1985, %v1939, 0
      %v1996 = vsel %vm1985, %v1940, 0
      %v1999 = vsel %vm1985, %v1941, 0
      %v2002 = vsel %vm1985, %v1942, 0
      %v2005 = vsel %vm1985, %v1943, 0
      %v2008 = vsel %vm1985, %v1944, 0
      %v2011 = vsel %vm1985, %v1945, 0
      %v2014 = vsel %vm1985, %v1946, 0
      %v2017 = vsel %vm1985, %v1947, 0
      %v2020 = vsel %vm1985, %v1948, 0
      %v2023 = vsel %vm1985, %v1949, 0
      %v2026 = vsel %vm1985, %v1950, 0
      %v2029 = vsel %vm1985, %v1951, 0
      %v2032 = vsel %vm1985, %v1952, 0
      %v2035 = vsel %vm1985, %v1953, 0
      %v2038 = vsel %vm1985, %v1954, 0
      %v2041 = vsel %vm1985, %v1955, 0
      %v2044 = vsel %vm1985, %v1956, 0
      %v2047 = vsel %vm1985, %v1957, 0
      %v2050 = vsel %vm1985, %v1958, 0
      %v2053 = vsel %vm1985, %v1959, 0
      %v2056 = vsel %vm1985, %v1960, 0
      %v2059 = vsel %vm1985, %v1961, 0
      %v2062 = vsel %vm1985, %v1962, 0
      %v2065 = vsel %vm1985, %v1963, 0
      %v2068 = vsel %vm1985, %v1964, 0
      %v2071 = vsel %vm1985, %v1965, 0
      %v2074 = vsel %vm1985, %v1966, 0
      %v2077 = vsel %vm1985, %v1967, 0
      %v2080 = vsel %vm1985, %v1968, 0
      %vm2082 = vcmask 1043456
      %v2084 = vsel %vm2082, %v1977, 0
      %v2087 = vsel %vm2082, %v1978, 0
      %2089 = vmatpush.msra.mxu0 0.0
      %2090 = vmatpush.msra.mxu0 0.0
      %2091 = vmatpush.msra.mxu0 0.0
      %2092 = vmatpush.msra.mxu0 0.0
      %2093 = vmatpush.msra.mxu0 0.0
      %2094 = vmatpush.msra.mxu0 0.0
      %2095 = vmatpush.msra.mxu0 0.0
      %2096 = vmatpush.msra.mxu0 0.0
      %2097 = vmatpush.msra.mxu0 0.0
      %2098 = vmatpush.msra.mxu0 0.0
      %2099 = vmatpush.msra.mxu0 0.0
      %2100 = vmatpush.msra.mxu0 %v2084
      %2101 = vmatpush.msra.mxu0 %v1975
      %2102 = vmatpush.msra.mxu0 %v1973
      %2103 = vmatpush.msra.mxu0 %v1971
      %2104 = vmatpush.msra.mxu0 %v1969
      %2105 = vmatmul.f32.gmra.mxu0 %v1987
      %v2106 = vpop.f32.mrf.mxu0
      %v2107 = vadd.f32 %v1981, %v2106
      %2108 = vmatmul.f32.gmra.mxu0 %v1990
      %v2109 = vpop.f32.mrf.mxu0
      %v2110 = vadd.f32 %v1981, %v2109
      %2111 = vmatmul.f32.gmra.mxu0 %v1993
      %v2112 = vpop.f32.mrf.mxu0
      %v2113 = vadd.f32 %v1981, %v2112
      %2114 = vmatmul.f32.gmra.mxu0 %v1996
      %v2115 = vpop.f32.mrf.mxu0
      %v2116 = vadd.f32 %v1981, %v2115
      %2117 = vmatmul.f32.gmra.mxu0 %v1999
      %v2118 = vpop.f32.mrf.mxu0
      %v2119 = vadd.f32 %v1981, %v2118
      %2120 = vmatmul.f32.gmra.mxu0 %v2002
      %v2121 = vpop.f32.mrf.mxu0
      %v2122 = vadd.f32 %v1981, %v2121
      %2123 = vmatmul.f32.gmra.mxu0 %v2005
      %v2124 = vpop.f32.mrf.mxu0
      %v2125 = vadd.f32 %v1981, %v2124
      %2126 = vmatmul.f32.gmra.mxu0 %v2008
      %v2127 = vpop.f32.mrf.mxu0
      %v2128 = vadd.f32 %v1981, %v2127
      %2129 = vmatmul.f32.gmra.mxu0 %v2011
      %v2130 = vpop.f32.mrf.mxu0
      %v2131 = vadd.f32 %v1981, %v2130
      %2132 = vmatmul.f32.gmra.mxu0 %v2014
      %v2133 = vpop.f32.mrf.mxu0
      %v2134 = vadd.f32 %v1981, %v2133
      %2135 = vmatmul.f32.gmra.mxu0 %v2017
      %v2136 = vpop.f32.mrf.mxu0
      %v2137 = vadd.f32 %v1981, %v2136
      %2138 = vmatmul.f32.gmra.mxu0 %v2020
      %v2139 = vpop.f32.mrf.mxu0
      %v2140 = vadd.f32 %v1981, %v2139
      %2141 = vmatmul.f32.gmra.mxu0 %v2023
      %v2142 = vpop.f32.mrf.mxu0
      %v2143 = vadd.f32 %v1981, %v2142
      %2144 = vmatmul.f32.gmra.mxu0 %v2026
      %v2145 = vpop.f32.mrf.mxu0
      %v2146 = vadd.f32 %v1981, %v2145
      %2147 = vmatmul.f32.gmra.mxu0 %v2029
      %v2148 = vpop.f32.mrf.mxu0
      %v2149 = vadd.f32 %v1981, %v2148
      %2150 = vmatmul.f32.gmra.mxu0 %v2032
      %v2151 = vpop.f32.mrf.mxu0
      %v2152 = vadd.f32 %v1981, %v2151
      %2153 = vmatmul.f32.gmra.mxu0 %v2035
      %v2154 = vpop.f32.mrf.mxu0
      %v2155 = vadd.f32 %v1981, %v2154
      %2156 = vmatmul.f32.gmra.mxu0 %v2038
      %v2157 = vpop.f32.mrf.mxu0
      %v2158 = vadd.f32 %v1981, %v2157
      %2159 = vmatmul.f32.gmra.mxu0 %v2041
      %v2160 = vpop.f32.mrf.mxu0
      %v2161 = vadd.f32 %v1981, %v2160
      %2162 = vmatmul.f32.gmra.mxu0 %v2044
      %v2163 = vpop.f32.mrf.mxu0
      %v2164 = vadd.f32 %v1981, %v2163
      %2165 = vmatmul.f32.gmra.mxu0 %v2047
      %v2166 = vpop.f32.mrf.mxu0
      %v2167 = vadd.f32 %v1981, %v2166
      %2168 = vmatmul.f32.gmra.mxu0 %v2050
      %v2169 = vpop.f32.mrf.mxu0
      %v2170 = vadd.f32 %v1981, %v2169
      %2171 = vmatmul.f32.gmra.mxu0 %v2053
      %v2172 = vpop.f32.mrf.mxu0
      %v2173 = vadd.f32 %v1981, %v2172
      %2174 = vmatmul.f32.gmra.mxu0 %v2056
      %v2175 = vpop.f32.mrf.mxu0
      %v2176 = vadd.f32 %v1981, %v2175
      %2177 = vmatmul.f32.gmra.mxu0 %v2059
      %v2178 = vpop.f32.mrf.mxu0
      %v2179 = vadd.f32 %v1981, %v2178
      %2180 = vmatmul.f32.gmra.mxu0 %v2062
      %v2181 = vpop.f32.mrf.mxu0
      %v2182 = vadd.f32 %v1981, %v2181
      %2183 = vmatmul.f32.gmra.mxu0 %v2065
      %v2184 = vpop.f32.mrf.mxu0
      %v2185 = vadd.f32 %v1981, %v2184
      %2186 = vmatmul.f32.gmra.mxu0 %v2068
      %v2187 = vpop.f32.mrf.mxu0
      %v2188 = vadd.f32 %v1981, %v2187
      %2189 = vmatmul.f32.gmra.mxu0 %v2071
      %v2190 = vpop.f32.mrf.mxu0
      %v2191 = vadd.f32 %v1981, %v2190
      %2192 = vmatmul.f32.gmra.mxu0 %v2074
      %v2193 = vpop.f32.mrf.mxu0
      %v2194 = vadd.f32 %v1981, %v2193
      %2195 = vmatmul.f32.gmra.mxu0 %v2077
      %v2196 = vpop.f32.mrf.mxu0
      %v2197 = vadd.f32 %v1981, %v2196
      %2198 = vmatmul.f32.gmra.mxu0 %v2080
      %v2199 = vpop.f32.mrf.mxu0
      %v2200 = vadd.f32 %v1981, %v2199
      %2201 = vdwg.mxu0
      %2202 = vmatpush.msra.mxu0 0.0
      %2203 = vmatpush.msra.mxu0 0.0
      %2204 = vmatpush.msra.mxu0 0.0
      %2205 = vmatpush.msra.mxu0 0.0
      %2206 = vmatpush.msra.mxu0 0.0
      %2207 = vmatpush.msra.mxu0 0.0
      %2208 = vmatpush.msra.mxu0 0.0
      %2209 = vmatpush.msra.mxu0 0.0
      %2210 = vmatpush.msra.mxu0 0.0
      %2211 = vmatpush.msra.mxu0 0.0
      %2212 = vmatpush.msra.mxu0 0.0
      %2213 = vmatpush.msra.mxu0 %v2087
      %2214 = vmatpush.msra.mxu0 %v1976
      %2215 = vmatpush.msra.mxu0 %v1974
      %2216 = vmatpush.msra.mxu0 %v1972
      %2217 = vmatpush.msra.mxu0 %v1970
      %2218 = vmatmul.f32.gmra.mxu0 %v1987
      %v2219 = vpop.f32.mrf.mxu0
      %v2220 = vadd.f32 %v1982, %v2219
      %2221 = vmatmul.f32.gmra.mxu0 %v1990
      %v2222 = vpop.f32.mrf.mxu0
      %v2223 = vadd.f32 %v1982, %v2222
      %2224 = vmatmul.f32.gmra.mxu0 %v1993
      %v2225 = vpop.f32.mrf.mxu0
      %v2226 = vadd.f32 %v1982, %v2225
      %2227 = vmatmul.f32.gmra.mxu0 %v1996
      %v2228 = vpop.f32.mrf.mxu0
      %v2229 = vadd.f32 %v1982, %v2228
      %2230 = vmatmul.f32.gmra.mxu0 %v1999
      %v2231 = vpop.f32.mrf.mxu0
      %v2232 = vadd.f32 %v1982, %v2231
      %2233 = vmatmul.f32.gmra.mxu0 %v2002
      %v2234 = vpop.f32.mrf.mxu0
      %v2235 = vadd.f32 %v1982, %v2234
      %2236 = vmatmul.f32.gmra.mxu0 %v2005
      %v2237 = vpop.f32.mrf.mxu0
      %v2238 = vadd.f32 %v1982, %v2237
      %2239 = vmatmul.f32.gmra.mxu0 %v2008
      %v2240 = vpop.f32.mrf.mxu0
      %v2241 = vadd.f32 %v1982, %v2240
      %2242 = vmatmul.f32.gmra.mxu0 %v2011
      %v2243 = vpop.f32.mrf.mxu0
      %v2244 = vadd.f32 %v1982, %v2243
      %2245 = vmatmul.f32.gmra.mxu0 %v2014
      %v2246 = vpop.f32.mrf.mxu0
      %v2247 = vadd.f32 %v1982, %v2246
      %2248 = vmatmul.f32.gmra.mxu0 %v2017
      %v2249 = vpop.f32.mrf.mxu0
      %v2250 = vadd.f32 %v1982, %v2249
      %2251 = vmatmul.f32.gmra.mxu0 %v2020
      %v2252 = vpop.f32.mrf.mxu0
      %v2253 = vadd.f32 %v1982, %v2252
      %2254 = vmatmul.f32.gmra.mxu0 %v2023
      %v2255 = vpop.f32.mrf.mxu0
      %v2256 = vadd.f32 %v1982, %v2255
      %2257 = vmatmul.f32.gmra.mxu0 %v2026
      %v2258 = vpop.f32.mrf.mxu0
      %v2259 = vadd.f32 %v1982, %v2258
      %2260 = vmatmul.f32.gmra.mxu0 %v2029
      %v2261 = vpop.f32.mrf.mxu0
      %v2262 = vadd.f32 %v1982, %v2261
      %2263 = vmatmul.f32.gmra.mxu0 %v2032
      %v2264 = vpop.f32.mrf.mxu0
      %v2265 = vadd.f32 %v1982, %v2264
      %2266 = vmatmul.f32.gmra.mxu0 %v2035
      %v2267 = vpop.f32.mrf.mxu0
      %v2268 = vadd.f32 %v1982, %v2267
      %2269 = vmatmul.f32.gmra.mxu0 %v2038
      %v2270 = vpop.f32.mrf.mxu0
      %v2271 = vadd.f32 %v1982, %v2270
      %2272 = vmatmul.f32.gmra.mxu0 %v2041
      %v2273 = vpop.f32.mrf.mxu0
      %v2274 = vadd.f32 %v1982, %v2273
      %2275 = vmatmul.f32.gmra.mxu0 %v2044
      %v2276 = vpop.f32.mrf.mxu0
      %v2277 = vadd.f32 %v1982, %v2276
      %2278 = vmatmul.f32.gmra.mxu0 %v2047
      %v2279 = vpop.f32.mrf.mxu0
      %v2280 = vadd.f32 %v1982, %v2279
      %2281 = vmatmul.f32.gmra.mxu0 %v2050
      %v2282 = vpop.f32.mrf.mxu0
      %v2283 = vadd.f32 %v1982, %v2282
      %2284 = vmatmul.f32.gmra.mxu0 %v2053
      %v2285 = vpop.f32.mrf.mxu0
      %v2286 = vadd.f32 %v1982, %v2285
      %2287 = vmatmul.f32.gmra.mxu0 %v2056
      %v2288 = vpop.f32.mrf.mxu0
      %v2289 = vadd.f32 %v1982, %v2288
      %2290 = vmatmul.f32.gmra.mxu0 %v2059
      %v2291 = vpop.f32.mrf.mxu0
      %v2292 = vadd.f32 %v1982, %v2291
      %2293 = vmatmul.f32.gmra.mxu0 %v2062
      %v2294 = vpop.f32.mrf.mxu0
      %v2295 = vadd.f32 %v1982, %v2294
      %2296 = vmatmul.f32.gmra.mxu0 %v2065
      %v2297 = vpop.f32.mrf.mxu0
      %v2298 = vadd.f32 %v1982, %v2297
      %2299 = vmatmul.f32.gmra.mxu0 %v2068
      %v2300 = vpop.f32.mrf.mxu0
      %v2301 = vadd.f32 %v1982, %v2300
      %2302 = vmatmul.f32.gmra.mxu0 %v2071
      %v2303 = vpop.f32.mrf.mxu0
      %v2304 = vadd.f32 %v1982, %v2303
      %2305 = vmatmul.f32.gmra.mxu0 %v2074
      %v2306 = vpop.f32.mrf.mxu0
      %v2307 = vadd.f32 %v1982, %v2306
      %2308 = vmatmul.f32.gmra.mxu0 %v2077
      %v2309 = vpop.f32.mrf.mxu0
      %v2310 = vadd.f32 %v1982, %v2309
      %2311 = vmatmul.f32.gmra.mxu0 %v2080
      %v2312 = vpop.f32.mrf.mxu0
      %v2313 = vadd.f32 %v1982, %v2312
      %2314 = vdwg.mxu0
      %vm2315 = vcmp.gt.f32.partialorder %v2107, 0.0
      %vm2316 = vcmp.gt.f32.partialorder %v2220, 0.0
      %vm2317 = vcmp.gt.f32.partialorder %v2110, 0.0
      %vm2318 = vcmp.gt.f32.partialorder %v2223, 0.0
      %vm2319 = vcmp.gt.f32.partialorder %v2113, 0.0
      %vm2320 = vcmp.gt.f32.partialorder %v2226, 0.0
      %vm2321 = vcmp.gt.f32.partialorder %v2116, 0.0
      %vm2322 = vcmp.gt.f32.partialorder %v2229, 0.0
      %vm2323 = vcmp.gt.f32.partialorder %v2119, 0.0
      %vm2324 = vcmp.gt.f32.partialorder %v2232, 0.0
      %vm2325 = vcmp.gt.f32.partialorder %v2122, 0.0
      %vm2326 = vcmp.gt.f32.partialorder %v2235, 0.0
      %vm2327 = vcmp.gt.f32.partialorder %v2125, 0.0
      %vm2328 = vcmp.gt.f32.partialorder %v2238, 0.0
      %vm2329 = vcmp.gt.f32.partialorder %v2128, 0.0
      %vm2330 = vcmp.gt.f32.partialorder %v2241, 0.0
      %vm2331 = vcmp.gt.f32.partialorder %v2131, 0.0
      %vm2332 = vcmp.gt.f32.partialorder %v2244, 0.0
      %vm2333 = vcmp.gt.f32.partialorder %v2134, 0.0
      %vm2334 = vcmp.gt.f32.partialorder %v2247, 0.0
      %vm2335 = vcmp.gt.f32.partialorder %v2137, 0.0
      %vm2336 = vcmp.gt.f32.partialorder %v2250, 0.0
      %vm2337 = vcmp.gt.f32.partialorder %v2140, 0.0
      %vm2338 = vcmp.gt.f32.partialorder %v2253, 0.0
      %vm2339 = vcmp.gt.f32.partialorder %v2143, 0.0
      %vm2340 = vcmp.gt.f32.partialorder %v2256, 0.0
      %vm2341 = vcmp.gt.f32.partialorder %v2146, 0.0
      %vm2342 = vcmp.gt.f32.partialorder %v2259, 0.0
      %vm2343 = vcmp.gt.f32.partialorder %v2149, 0.0
      %vm2344 = vcmp.gt.f32.partialorder %v2262, 0.0
      %vm2345 = vcmp.gt.f32.partialorder %v2152, 0.0
      %vm2346 = vcmp.gt.f32.partialorder %v2265, 0.0
      %vm2347 = vcmp.gt.f32.partialorder %v2155, 0.0
      %vm2348 = vcmp.gt.f32.partialorder %v2268, 0.0
      %vm2349 = vcmp.gt.f32.partialorder %v2158, 0.0
      %vm2350 = vcmp.gt.f32.partialorder %v2271, 0.0
      %vm2351 = vcmp.gt.f32.partialorder %v2161, 0.0
      %vm2352 = vcmp.gt.f32.partialorder %v2274, 0.0
      %vm2353 = vcmp.gt.f32.partialorder %v2164, 0.0
      %vm2354 = vcmp.gt.f32.partialorder %v2277, 0.0
      %vm2355 = vcmp.gt.f32.partialorder %v2167, 0.0
      %vm2356 = vcmp.gt.f32.partialorder %v2280, 0.0
      %vm2357 = vcmp.gt.f32.partialorder %v2170, 0.0
      %vm2358 = vcmp.gt.f32.partialorder %v2283, 0.0
      %vm2359 = vcmp.gt.f32.partialorder %v2173, 0.0
      %vm2360 = vcmp.gt.f32.partialorder %v2286, 0.0
      %vm2361 = vcmp.gt.f32.partialorder %v2176, 0.0
      %vm2362 = vcmp.gt.f32.partialorder %v2289, 0.0
      %vm2363 = vcmp.gt.f32.partialorder %v2179, 0.0
      %vm2364 = vcmp.gt.f32.partialorder %v2292, 0.0
      %vm2365 = vcmp.gt.f32.partialorder %v2182, 0.0
      %vm2366 = vcmp.gt.f32.partialorder %v2295, 0.0
      %vm2367 = vcmp.gt.f32.partialorder %v2185, 0.0
      %vm2368 = vcmp.gt.f32.partialorder %v2298, 0.0
      %vm2369 = vcmp.gt.f32.partialorder %v2188, 0.0
      %vm2370 = vcmp.gt.f32.partialorder %v2301, 0.0
      %vm2371 = vcmp.gt.f32.partialorder %v2191, 0.0
      %vm2372 = vcmp.gt.f32.partialorder %v2304, 0.0
      %vm2373 = vcmp.gt.f32.partialorder %v2194, 0.0
      %vm2374 = vcmp.gt.f32.partialorder %v2307, 0.0
      %vm2375 = vcmp.gt.f32.partialorder %v2197, 0.0
      %vm2376 = vcmp.gt.f32.partialorder %v2310, 0.0
      %vm2377 = vcmp.gt.f32.partialorder %v2200, 0.0
      %vm2378 = vcmp.gt.f32.partialorder %v2313, 0.0
      %v2379 = vmul.f32 %v2107, 0.2
      %v2380 = vmul.f32 %v2220, 0.2
      %v2381 = vmul.f32 %v2110, 0.2
      %v2382 = vmul.f32 %v2223, 0.2
      %v2383 = vmul.f32 %v2113, 0.2
      %v2384 = vmul.f32 %v2226, 0.2
      %v2385 = vmul.f32 %v2116, 0.2
      %v2386 = vmul.f32 %v2229, 0.2
      %v2387 = vmul.f32 %v2119, 0.2
      %v2388 = vmul.f32 %v2232, 0.2
      %v2389 = vmul.f32 %v2122, 0.2
      %v2390 = vmul.f32 %v2235, 0.2
      %v2391 = vmul.f32 %v2125, 0.2
      %v2392 = vmul.f32 %v2238, 0.2
      %v2393 = vmul.f32 %v2128, 0.2
      %v2394 = vmul.f32 %v2241, 0.2
      %v2395 = vmul.f32 %v2131, 0.2
      %v2396 = vmul.f32 %v2244, 0.2
      %v2397 = vmul.f32 %v2134, 0.2
      %v2398 = vmul.f32 %v2247, 0.2
      %v2399 = vmul.f32 %v2137, 0.2
      %v2400 = vmul.f32 %v2250, 0.2
      %v2401 = vmul.f32 %v2140, 0.2
      %v2402 = vmul.f32 %v2253, 0.2
      %v2403 = vmul.f32 %v2143, 0.2
      %v2404 = vmul.f32 %v2256, 0.2
      %v2405 = vmul.f32 %v2146, 0.2
      %v2406 = vmul.f32 %v2259, 0.2
      %v2407 = vmul.f32 %v2149, 0.2
      %v2408 = vmul.f32 %v2262, 0.2
      %v2409 = vmul.f32 %v2152, 0.2
      %v2410 = vmul.f32 %v2265, 0.2
      %v2411 = vmul.f32 %v2155, 0.2
      %v2412 = vmul.f32 %v2268, 0.2
      %v2413 = vmul.f32 %v2158, 0.2
      %v2414 = vmul.f32 %v2271, 0.2
      %v2415 = vmul.f32 %v2161, 0.2
      %v2416 = vmul.f32 %v2274, 0.2
      %v2417 = vmul.f32 %v2164, 0.2
      %v2418 = vmul.f32 %v2277, 0.2
      %v2419 = vmul.f32 %v2167, 0.2
      %v2420 = vmul.f32 %v2280, 0.2
      %v2421 = vmul.f32 %v2170, 0.2
      %v2422 = vmul.f32 %v2283, 0.2
      %v2423 = vmul.f32 %v2173, 0.2
      %v2424 = vmul.f32 %v2286, 0.2
      %v2425 = vmul.f32 %v2176, 0.2
      %v2426 = vmul.f32 %v2289, 0.2
      %v2427 = vmul.f32 %v2179, 0.2
      %v2428 = vmul.f32 %v2292, 0.2
      %v2429 = vmul.f32 %v2182, 0.2
      %v2430 = vmul.f32 %v2295, 0.2
      %v2431 = vmul.f32 %v2185, 0.2
      %v2432 = vmul.f32 %v2298, 0.2
      %v2433 = vmul.f32 %v2188, 0.2
      %v2434 = vmul.f32 %v2301, 0.2
      %v2435 = vmul.f32 %v2191, 0.2
      %v2436 = vmul.f32 %v2304, 0.2
      %v2437 = vmul.f32 %v2194, 0.2
      %v2438 = vmul.f32 %v2307, 0.2
      %v2439 = vmul.f32 %v2197, 0.2
      %v2440 = vmul.f32 %v2310, 0.2
      %v2441 = vmul.f32 %v2200, 0.2
      %v2442 = vmul.f32 %v2313, 0.2
      %v2443 = vsel %vm2315, %v2107, %v2379
      %v2444 = vsel %vm2316, %v2220, %v2380
      %v2445 = vsel %vm2317, %v2110, %v2381
      %v2446 = vsel %vm2318, %v2223, %v2382
      %v2447 = vsel %vm2319, %v2113, %v2383
      %v2448 = vsel %vm2320, %v2226, %v2384
      %v2449 = vsel %vm2321, %v2116, %v2385
      %v2450 = vsel %vm2322, %v2229, %v2386
      %v2451 = vsel %vm2323, %v2119, %v2387
      %v2452 = vsel %vm2324, %v2232, %v2388
      %v2453 = vsel %vm2325, %v2122, %v2389
      %v2454 = vsel %vm2326, %v2235, %v2390
      %v2455 = vsel %vm2327, %v2125, %v2391
      %v2456 = vsel %vm2328, %v2238, %v2392
      %v2457 = vsel %vm2329, %v2128, %v2393
      %v2458 = vsel %vm2330, %v2241, %v2394
      %v2459 = vsel %vm2331, %v2131, %v2395
      %v2460 = vsel %vm2332, %v2244, %v2396
      %v2461 = vsel %vm2333, %v2134, %v2397
      %v2462 = vsel %vm2334, %v2247, %v2398
      %v2463 = vsel %vm2335, %v2137, %v2399
      %v2464 = vsel %vm2336, %v2250, %v2400
      %v2465 = vsel %vm2337, %v2140, %v2401
      %v2466 = vsel %vm2338, %v2253, %v2402
      %v2467 = vsel %vm2339, %v2143, %v2403
      %v2468 = vsel %vm2340, %v2256, %v2404
      %v2469 = vsel %vm2341, %v2146, %v2405
      %v2470 = vsel %vm2342, %v2259, %v2406
      %v2471 = vsel %vm2343, %v2149, %v2407
      %v2472 = vsel %vm2344, %v2262, %v2408
      %v2473 = vsel %vm2345, %v2152, %v2409
      %v2474 = vsel %vm2346, %v2265, %v2410
      %v2475 = vsel %vm2347, %v2155, %v2411
      %v2476 = vsel %vm2348, %v2268, %v2412
      %v2477 = vsel %vm2349, %v2158, %v2413
      %v2478 = vsel %vm2350, %v2271, %v2414
      %v2479 = vsel %vm2351, %v2161, %v2415
      %v2480 = vsel %vm2352, %v2274, %v2416
      %v2481 = vsel %vm2353, %v2164, %v2417
      %v2482 = vsel %vm2354, %v2277, %v2418
      %v2483 = vsel %vm2355, %v2167, %v2419
      %v2484 = vsel %vm2356, %v2280, %v2420
      %v2485 = vsel %vm2357, %v2170, %v2421
      %v2486 = vsel %vm2358, %v2283, %v2422
      %v2487 = vsel %vm2359, %v2173, %v2423
      %v2488 = vsel %vm2360, %v2286, %v2424
      %v2489 = vsel %vm2361, %v2176, %v2425
      %v2490 = vsel %vm2362, %v2289, %v2426
      %v2491 = vsel %vm2363, %v2179, %v2427
      %v2492 = vsel %vm2364, %v2292, %v2428
      %v2493 = vsel %vm2365, %v2182, %v2429
      %v2494 = vsel %vm2366, %v2295, %v2430
      %v2495 = vsel %vm2367, %v2185, %v2431
      %v2496 = vsel %vm2368, %v2298, %v2432
      %v2497 = vsel %vm2369, %v2188, %v2433
      %v2498 = vsel %vm2370, %v2301, %v2434
      %v2499 = vsel %vm2371, %v2191, %v2435
      %v2500 = vsel %vm2372, %v2304, %v2436
      %v2501 = vsel %vm2373, %v2194, %v2437
      %v2502 = vsel %vm2374, %v2307, %v2438
      %v2503 = vsel %vm2375, %v2197, %v2439
      %v2504 = vsel %vm2376, %v2310, %v2440
      %v2505 = vsel %vm2377, %v2200, %v2441
      %v2506 = vsel %vm2378, %v2313, %v2442
      %v2507 = vld [vmem:[%s4] sm:$0xff]
      %v2508 = vld [vmem:[%s4 + $0x8] sm:$0xff]
      %v2509 = vld [vmem:[%s4 + $0x10] sm:$0xff]
      %v2510 = vld [vmem:[%s4 + $0x18] sm:$0xff]
      %v2511 = vld [vmem:[%s4 + $0x20] sm:$0xff]
      %v2512 = vld [vmem:[%s4 + $0x28] sm:$0xff]
      %v2513 = vld [vmem:[%s4 + $0x30] sm:$0xff]
      %v2514 = vld [vmem:[%s4 + $0x38] sm:$0xff]
      %v2515 = vld [vmem:[%s4 + $0x40] sm:$0xff]
      %v2516 = vld [vmem:[%s4 + $0x48] sm:$0xff]
      %v2517 = vld [vmem:[%s4 + $0x50] sm:$0xff]
      %v2518 = vld [vmem:[%s4 + $0x58] sm:$0xff]
      %v2519 = vld [vmem:[%s4 + $0x60] sm:$0xff]
      %v2520 = vld [vmem:[%s4 + $0x68] sm:$0xff]
      %v2521 = vld [vmem:[%s4 + $0x70] sm:$0xff]
      %v2522 = vld [vmem:[%s4 + $0x78] sm:$0xff]
      %2523 = vmatpush.msra.mxu0 %v2522
      %2524 = vmatpush.msra.mxu0 %v2521
      %2525 = vmatpush.msra.mxu0 %v2520
      %2526 = vmatpush.msra.mxu0 %v2519
      %2527 = vmatpush.msra.mxu0 %v2518
      %2528 = vmatpush.msra.mxu0 %v2517
      %2529 = vmatpush.msra.mxu0 %v2516
      %2530 = vmatpush.msra.mxu0 %v2515
      %2531 = vmatpush.msra.mxu0 %v2514
      %2532 = vmatpush.msra.mxu0 %v2513
      %2533 = vmatpush.msra.mxu0 %v2512
      %2534 = vmatpush.msra.mxu0 %v2511
      %2535 = vmatpush.msra.mxu0 %v2510
      %2536 = vmatpush.msra.mxu0 %v2509
      %2537 = vmatpush.msra.mxu0 %v2508
      %2538 = vmatpush.msra.mxu0 %v2507
      %2539 = vmatmul.f32.gmra.mxu0 %v2443
      %v2540 = vpop.f32.mrf.mxu0
      %v2541 = vadd.f32 0.0, %v2540
      %2542 = vmatmul.f32.gmra.mxu0 %v2445
      %v2543 = vpop.f32.mrf.mxu0
      %v2544 = vadd.f32 0.0, %v2543
      %2545 = vmatmul.f32.gmra.mxu0 %v2447
      %v2546 = vpop.f32.mrf.mxu0
      %v2547 = vadd.f32 0.0, %v2546
      %2548 = vmatmul.f32.gmra.mxu0 %v2449
      %v2549 = vpop.f32.mrf.mxu0
      %v2550 = vadd.f32 0.0, %v2549
      %2551 = vmatmul.f32.gmra.mxu0 %v2451
      %v2552 = vpop.f32.mrf.mxu0
      %v2553 = vadd.f32 0.0, %v2552
      %2554 = vmatmul.f32.gmra.mxu0 %v2453
      %v2555 = vpop.f32.mrf.mxu0
      %v2556 = vadd.f32 0.0, %v2555
      %2557 = vmatmul.f32.gmra.mxu0 %v2455
      %v2558 = vpop.f32.mrf.mxu0
      %v2559 = vadd.f32 0.0, %v2558
      %2560 = vmatmul.f32.gmra.mxu0 %v2457
      %v2561 = vpop.f32.mrf.mxu0
      %v2562 = vadd.f32 0.0, %v2561
      %2563 = vmatmul.f32.gmra.mxu0 %v2459
      %v2564 = vpop.f32.mrf.mxu0
      %v2565 = vadd.f32 0.0, %v2564
      %2566 = vmatmul.f32.gmra.mxu0 %v2461
      %v2567 = vpop.f32.mrf.mxu0
      %v2568 = vadd.f32 0.0, %v2567
      %2569 = vmatmul.f32.gmra.mxu0 %v2463
      %v2570 = vpop.f32.mrf.mxu0
      %v2571 = vadd.f32 0.0, %v2570
      %2572 = vmatmul.f32.gmra.mxu0 %v2465
      %v2573 = vpop.f32.mrf.mxu0
      %v2574 = vadd.f32 0.0, %v2573
      %2575 = vmatmul.f32.gmra.mxu0 %v2467
      %v2576 = vpop.f32.mrf.mxu0
      %v2577 = vadd.f32 0.0, %v2576
      %2578 = vmatmul.f32.gmra.mxu0 %v2469
      %v2579 = vpop.f32.mrf.mxu0
      %v2580 = vadd.f32 0.0, %v2579
      %2581 = vmatmul.f32.gmra.mxu0 %v2471
      %v2582 = vpop.f32.mrf.mxu0
      %v2583 = vadd.f32 0.0, %v2582
      %2584 = vmatmul.f32.gmra.mxu0 %v2473
      %v2585 = vpop.f32.mrf.mxu0
      %v2586 = vadd.f32 0.0, %v2585
      %2587 = vmatmul.f32.gmra.mxu0 %v2475
      %v2588 = vpop.f32.mrf.mxu0
      %v2589 = vadd.f32 0.0, %v2588
      %2590 = vmatmul.f32.gmra.mxu0 %v2477
      %v2591 = vpop.f32.mrf.mxu0
      %v2592 = vadd.f32 0.0, %v2591
      %2593 = vmatmul.f32.gmra.mxu0 %v2479
      %v2594 = vpop.f32.mrf.mxu0
      %v2595 = vadd.f32 0.0, %v2594
      %2596 = vmatmul.f32.gmra.mxu0 %v2481
      %v2597 = vpop.f32.mrf.mxu0
      %v2598 = vadd.f32 0.0, %v2597
      %2599 = vmatmul.f32.gmra.mxu0 %v2483
      %v2600 = vpop.f32.mrf.mxu0
      %v2601 = vadd.f32 0.0, %v2600
      %2602 = vmatmul.f32.gmra.mxu0 %v2485
      %v2603 = vpop.f32.mrf.mxu0
      %v2604 = vadd.f32 0.0, %v2603
      %2605 = vmatmul.f32.gmra.mxu0 %v2487
      %v2606 = vpop.f32.mrf.mxu0
      %v2607 = vadd.f32 0.0, %v2606
      %2608 = vmatmul.f32.gmra.mxu0 %v2489
      %v2609 = vpop.f32.mrf.mxu0
      %v2610 = vadd.f32 0.0, %v2609
      %2611 = vmatmul.f32.gmra.mxu0 %v2491
      %v2612 = vpop.f32.mrf.mxu0
      %v2613 = vadd.f32 0.0, %v2612
      %2614 = vmatmul.f32.gmra.mxu0 %v2493
      %v2615 = vpop.f32.mrf.mxu0
      %v2616 = vadd.f32 0.0, %v2615
      %2617 = vmatmul.f32.gmra.mxu0 %v2495
      %v2618 = vpop.f32.mrf.mxu0
      %v2619 = vadd.f32 0.0, %v2618
      %2620 = vmatmul.f32.gmra.mxu0 %v2497
      %v2621 = vpop.f32.mrf.mxu0
      %v2622 = vadd.f32 0.0, %v2621
      %2623 = vmatmul.f32.gmra.mxu0 %v2499
      %v2624 = vpop.f32.mrf.mxu0
      %v2625 = vadd.f32 0.0, %v2624
      %2626 = vmatmul.f32.gmra.mxu0 %v2501
      %v2627 = vpop.f32.mrf.mxu0
      %v2628 = vadd.f32 0.0, %v2627
      %2629 = vmatmul.f32.gmra.mxu0 %v2503
      %v2630 = vpop.f32.mrf.mxu0
      %v2631 = vadd.f32 0.0, %v2630
      %2632 = vmatmul.f32.gmra.mxu0 %v2505
      %v2633 = vpop.f32.mrf.mxu0
      %v2634 = vadd.f32 0.0, %v2633
      %2635 = vdwg.mxu0
      %s2636 = scalar_lea.vmem %s4, 128
      %v2637 = vld [vmem:[%s2636] sm:$0xff]
      %v2638 = vld [vmem:[%s2636 + $0x8] sm:$0xff]
      %v2639 = vld [vmem:[%s2636 + $0x10] sm:$0xff]
      %v2640 = vld [vmem:[%s2636 + $0x18] sm:$0xff]
      %v2641 = vld [vmem:[%s2636 + $0x20] sm:$0xff]
      %v2642 = vld [vmem:[%s2636 + $0x28] sm:$0xff]
      %v2643 = vld [vmem:[%s2636 + $0x30] sm:$0xff]
      %v2644 = vld [vmem:[%s2636 + $0x38] sm:$0xff]
      %v2645 = vld [vmem:[%s2636 + $0x40] sm:$0xff]
      %v2646 = vld [vmem:[%s2636 + $0x48] sm:$0xff]
      %v2647 = vld [vmem:[%s2636 + $0x50] sm:$0xff]
      %v2648 = vld [vmem:[%s2636 + $0x58] sm:$0xff]
      %v2649 = vld [vmem:[%s2636 + $0x60] sm:$0xff]
      %v2650 = vld [vmem:[%s2636 + $0x68] sm:$0xff]
      %v2651 = vld [vmem:[%s2636 + $0x70] sm:$0xff]
      %v2652 = vld [vmem:[%s2636 + $0x78] sm:$0xff]
      %2653 = vmatpush.msra.mxu0 %v2652
      %2654 = vmatpush.msra.mxu0 %v2651
      %2655 = vmatpush.msra.mxu0 %v2650
      %2656 = vmatpush.msra.mxu0 %v2649
      %2657 = vmatpush.msra.mxu0 %v2648
      %2658 = vmatpush.msra.mxu0 %v2647
      %2659 = vmatpush.msra.mxu0 %v2646
      %2660 = vmatpush.msra.mxu0 %v2645
      %2661 = vmatpush.msra.mxu0 %v2644
      %2662 = vmatpush.msra.mxu0 %v2643
      %2663 = vmatpush.msra.mxu0 %v2642
      %2664 = vmatpush.msra.mxu0 %v2641
      %2665 = vmatpush.msra.mxu0 %v2640
      %2666 = vmatpush.msra.mxu0 %v2639
      %2667 = vmatpush.msra.mxu0 %v2638
      %2668 = vmatpush.msra.mxu0 %v2637
      %2669 = vmatmul.f32.gmra.mxu0 %v2444
      %v2670 = vpop.f32.mrf.mxu0
      %v2671 = vadd.f32 0.0, %v2670
      %2672 = vmatmul.f32.gmra.mxu0 %v2446
      %v2673 = vpop.f32.mrf.mxu0
      %v2674 = vadd.f32 0.0, %v2673
      %2675 = vmatmul.f32.gmra.mxu0 %v2448
      %v2676 = vpop.f32.mrf.mxu0
      %v2677 = vadd.f32 0.0, %v2676
      %2678 = vmatmul.f32.gmra.mxu0 %v2450
      %v2679 = vpop.f32.mrf.mxu0
      %v2680 = vadd.f32 0.0, %v2679
      %2681 = vmatmul.f32.gmra.mxu0 %v2452
      %v2682 = vpop.f32.mrf.mxu0
      %v2683 = vadd.f32 0.0, %v2682
      %2684 = vmatmul.f32.gmra.mxu0 %v2454
      %v2685 = vpop.f32.mrf.mxu0
      %v2686 = vadd.f32 0.0, %v2685
      %2687 = vmatmul.f32.gmra.mxu0 %v2456
      %v2688 = vpop.f32.mrf.mxu0
      %v2689 = vadd.f32 0.0, %v2688
      %2690 = vmatmul.f32.gmra.mxu0 %v2458
      %v2691 = vpop.f32.mrf.mxu0
      %v2692 = vadd.f32 0.0, %v2691
      %2693 = vmatmul.f32.gmra.mxu0 %v2460
      %v2694 = vpop.f32.mrf.mxu0
      %v2695 = vadd.f32 0.0, %v2694
      %2696 = vmatmul.f32.gmra.mxu0 %v2462
      %v2697 = vpop.f32.mrf.mxu0
      %v2698 = vadd.f32 0.0, %v2697
      %2699 = vmatmul.f32.gmra.mxu0 %v2464
      %v2700 = vpop.f32.mrf.mxu0
      %v2701 = vadd.f32 0.0, %v2700
      %2702 = vmatmul.f32.gmra.mxu0 %v2466
      %v2703 = vpop.f32.mrf.mxu0
      %v2704 = vadd.f32 0.0, %v2703
      %2705 = vmatmul.f32.gmra.mxu0 %v2468
      %v2706 = vpop.f32.mrf.mxu0
      %v2707 = vadd.f32 0.0, %v2706
      %2708 = vmatmul.f32.gmra.mxu0 %v2470
      %v2709 = vpop.f32.mrf.mxu0
      %v2710 = vadd.f32 0.0, %v2709
      %2711 = vmatmul.f32.gmra.mxu0 %v2472
      %v2712 = vpop.f32.mrf.mxu0
      %v2713 = vadd.f32 0.0, %v2712
      %2714 = vmatmul.f32.gmra.mxu0 %v2474
      %v2715 = vpop.f32.mrf.mxu0
      %v2716 = vadd.f32 0.0, %v2715
      %2717 = vmatmul.f32.gmra.mxu0 %v2476
      %v2718 = vpop.f32.mrf.mxu0
      %v2719 = vadd.f32 0.0, %v2718
      %2720 = vmatmul.f32.gmra.mxu0 %v2478
      %v2721 = vpop.f32.mrf.mxu0
      %v2722 = vadd.f32 0.0, %v2721
      %2723 = vmatmul.f32.gmra.mxu0 %v2480
      %v2724 = vpop.f32.mrf.mxu0
      %v2725 = vadd.f32 0.0, %v2724
      %2726 = vmatmul.f32.gmra.mxu0 %v2482
      %v2727 = vpop.f32.mrf.mxu0
      %v2728 = vadd.f32 0.0, %v2727
      %2729 = vmatmul.f32.gmra.mxu0 %v2484
      %v2730 = vpop.f32.mrf.mxu0
      %v2731 = vadd.f32 0.0, %v2730
      %2732 = vmatmul.f32.gmra.mxu0 %v2486
      %v2733 = vpop.f32.mrf.mxu0
      %v2734 = vadd.f32 0.0, %v2733
      %2735 = vmatmul.f32.gmra.mxu0 %v2488
      %v2736 = vpop.f32.mrf.mxu0
      %v2737 = vadd.f32 0.0, %v2736
      %2738 = vmatmul.f32.gmra.mxu0 %v2490
      %v2739 = vpop.f32.mrf.mxu0
      %v2740 = vadd.f32 0.0, %v2739
      %2741 = vmatmul.f32.gmra.mxu0 %v2492
      %v2742 = vpop.f32.mrf.mxu0
      %v2743 = vadd.f32 0.0, %v2742
      %2744 = vmatmul.f32.gmra.mxu0 %v2494
      %v2745 = vpop.f32.mrf.mxu0
      %v2746 = vadd.f32 0.0, %v2745
      %2747 = vmatmul.f32.gmra.mxu0 %v2496
      %v2748 = vpop.f32.mrf.mxu0
      %v2749 = vadd.f32 0.0, %v2748
      %2750 = vmatmul.f32.gmra.mxu0 %v2498
      %v2751 = vpop.f32.mrf.mxu0
      %v2752 = vadd.f32 0.0, %v2751
      %2753 = vmatmul.f32.gmra.mxu0 %v2500
      %v2754 = vpop.f32.mrf.mxu0
      %v2755 = vadd.f32 0.0, %v2754
      %2756 = vmatmul.f32.gmra.mxu0 %v2502
      %v2757 = vpop.f32.mrf.mxu0
      %v2758 = vadd.f32 0.0, %v2757
      %2759 = vmatmul.f32.gmra.mxu0 %v2504
      %v2760 = vpop.f32.mrf.mxu0
      %v2761 = vadd.f32 0.0, %v2760
      %2762 = vmatmul.f32.gmra.mxu0 %v2506
      %v2763 = vpop.f32.mrf.mxu0
      %v2764 = vadd.f32 0.0, %v2763
      %2765 = vdwg.mxu0
      %vm2766 = vcmask 588800
      %2767 = vst.msk [vmem:[#allocation4] sm:$0xff] %vm2766, 0.0
      %2768 = vst.msk [vmem:[#allocation4 + $0x8] sm:$0xff] %vm2766, 0.0
      %vm2769 = vcmask 582656
      %2770 = vst.msk [vmem:[#allocation4 + $0x10] sm:$0x3] %vm2769, 0.0
      %2771 = vst.msk [vmem:[#allocation4 + $0x18] sm:$0xff] %vm2766, 0.0
      %2772 = vst.msk [vmem:[#allocation4 + $0x20] sm:$0xff] %vm2766, 0.0
      %2773 = vst.msk [vmem:[#allocation4 + $0x28] sm:$0x3] %vm2769, 0.0
      %2774 = vst.msk [vmem:[#allocation4 + $0x30] sm:$0xff] %vm2766, 0.0
      %2775 = vst.msk [vmem:[#allocation4 + $0x38] sm:$0xff] %vm2766, 0.0
      %2776 = vst.msk [vmem:[#allocation4 + $0x40] sm:$0x3] %vm2769, 0.0
      %2777 = vst.msk [vmem:[#allocation4 + $0x48] sm:$0xff] %vm2766, 0.0
      %2778 = vst.msk [vmem:[#allocation4 + $0x50] sm:$0xff] %vm2766, 0.0
      %2779 = vst.msk [vmem:[#allocation4 + $0x58] sm:$0x3] %vm2769, 0.0
      %2780 = vst.msk [vmem:[#allocation4 + $0x60] sm:$0xff] %vm2766, 0.0
      %2781 = vst.msk [vmem:[#allocation4 + $0x68] sm:$0xff] %vm2766, 0.0
      %2782 = vst.msk [vmem:[#allocation4 + $0x70] sm:$0x3] %vm2769, 0.0
      %2783 = vst.msk [vmem:[#allocation4 + $0x78] sm:$0xff] %vm2766, 0.0
      %2784 = vst.msk [vmem:[#allocation4 + $0x80] sm:$0xff] %vm2766, 0.0
      %2785 = vst.msk [vmem:[#allocation4 + $0x88] sm:$0x3] %vm2769, 0.0
      %2786 = vst.msk [vmem:[#allocation4 + $0x90] sm:$0xff] %vm2766, 0.0
      %2787 = vst.msk [vmem:[#allocation4 + $0x98] sm:$0xff] %vm2766, 0.0
      %2788 = vst.msk [vmem:[#allocation4 + $0xa0] sm:$0x3] %vm2769, 0.0
      %2789 = vst.msk [vmem:[#allocation4 + $0xa8] sm:$0xff] %vm2766, 0.0
      %2790 = vst.msk [vmem:[#allocation4 + $0xb0] sm:$0xff] %vm2766, 0.0
      %2791 = vst.msk [vmem:[#allocation4 + $0xb8] sm:$0x3] %vm2769, 0.0
      %2792 = vst.msk [vmem:[#allocation4 + $0xc0] sm:$0xff] %vm2766, 0.0
      %2793 = vst.msk [vmem:[#allocation4 + $0xc8] sm:$0xff] %vm2766, 0.0
      %2794 = vst.msk [vmem:[#allocation4 + $0xd0] sm:$0x3] %vm2769, 0.0
      %2795 = vst.msk [vmem:[#allocation4 + $0xd8] sm:$0xff] %vm2766, 0.0
      %2796 = vst.msk [vmem:[#allocation4 + $0xe0] sm:$0xff] %vm2766, 0.0
      %2797 = vst.msk [vmem:[#allocation4 + $0xe8] sm:$0x3] %vm2769, 0.0
      %2798 = vst.msk [vmem:[#allocation4 + $0xf0] sm:$0xff] %vm2766, 0.0
      %2799 = vst.msk [vmem:[#allocation4 + $0xf8] sm:$0xff] %vm2766, 0.0
      %2800 = vst.msk [vmem:[#allocation4 + $0x100] sm:$0x3] %vm2769, 0.0
      %2801 = vst.msk [vmem:[#allocation4 + $0x108] sm:$0xff] %vm2766, 0.0
      %2802 = vst.msk [vmem:[#allocation4 + $0x110] sm:$0xff] %vm2766, 0.0
      %2803 = vst.msk [vmem:[#allocation4 + $0x118] sm:$0x3] %vm2769, 0.0
      %2804 = vst.msk [vmem:[#allocation4 + $0x120] sm:$0xff] %vm2766, 0.0
      %2805 = vst.msk [vmem:[#allocation4 + $0x128] sm:$0xff] %vm2766, 0.0
      %2806 = vst.msk [vmem:[#allocation4 + $0x130] sm:$0x3] %vm2769, 0.0
      %2807 = vst.msk [vmem:[#allocation4 + $0x138] sm:$0xff] %vm2766, 0.0
      %2808 = vst.msk [vmem:[#allocation4 + $0x140] sm:$0xff] %vm2766, 0.0
      %2809 = vst.msk [vmem:[#allocation4 + $0x148] sm:$0x3] %vm2769, 0.0
      %2810 = vst.msk [vmem:[#allocation4 + $0x150] sm:$0xff] %vm2766, 0.0
      %2811 = vst.msk [vmem:[#allocation4 + $0x158] sm:$0xff] %vm2766, 0.0
      %2812 = vst.msk [vmem:[#allocation4 + $0x160] sm:$0x3] %vm2769, 0.0
      %2813 = vst.msk [vmem:[#allocation4 + $0x168] sm:$0xff] %vm2766, 0.0
      %2814 = vst.msk [vmem:[#allocation4 + $0x170] sm:$0xff] %vm2766, 0.0
      %2815 = vst.msk [vmem:[#allocation4 + $0x178] sm:$0x3] %vm2769, 0.0
      %2816 = vst.msk [vmem:[#allocation4 + $0x180] sm:$0xff] %vm2766, 0.0
      %2817 = vst.msk [vmem:[#allocation4 + $0x188] sm:$0xff] %vm2766, 0.0
      %2818 = vst.msk [vmem:[#allocation4 + $0x190] sm:$0x3] %vm2769, 0.0
      %2819 = vst.msk [vmem:[#allocation4 + $0x198] sm:$0xff] %vm2766, 0.0
      %2820 = vst.msk [vmem:[#allocation4 + $0x1a0] sm:$0xff] %vm2766, 0.0
      %2821 = vst.msk [vmem:[#allocation4 + $0x1a8] sm:$0x3] %vm2769, 0.0
      %2822 = vst.msk [vmem:[#allocation5] sm:$0xff] %vm358, 0.0
      %2823 = vst.msk [vmem:[#allocation5 + $0x8] sm:$0xff] %vm358, 0.0
      %vm2824 = vcmask 25600
      %2825 = vst.msk [vmem:[#allocation5 + $0x10] sm:$0x3] %vm2824, 0.0
      %2826 = vst.msk [vmem:[#allocation5 + $0x18] sm:$0xff] %vm358, 0.0
      %2827 = vst.msk [vmem:[#allocation5 + $0x20] sm:$0xff] %vm358, 0.0
      %2828 = vst.msk [vmem:[#allocation5 + $0x28] sm:$0x3] %vm2824, 0.0
      %2829 = vst.msk [vmem:[#allocation5 + $0x30] sm:$0xff] %vm358, 0.0
      %2830 = vst.msk [vmem:[#allocation5 + $0x38] sm:$0xff] %vm358, 0.0
      %2831 = vst.msk [vmem:[#allocation5 + $0x40] sm:$0x3] %vm2824, 0.0
      %2832 = vst.msk [vmem:[#allocation5 + $0x48] sm:$0xff] %vm358, 0.0
      %2833 = vst.msk [vmem:[#allocation5 + $0x50] sm:$0xff] %vm358, 0.0
      %2834 = vst.msk [vmem:[#allocation5 + $0x58] sm:$0x3] %vm2824, 0.0
      %2835 = vst.msk [vmem:[#allocation5 + $0x60] sm:$0xff] %vm358, 0.0
      %2836 = vst.msk [vmem:[#allocation5 + $0x68] sm:$0xff] %vm358, 0.0
      %2837 = vst.msk [vmem:[#allocation5 + $0x70] sm:$0x3] %vm2824, 0.0
      %2838 = vst.msk [vmem:[#allocation5 + $0x78] sm:$0xff] %vm358, 0.0
      %2839 = vst.msk [vmem:[#allocation5 + $0x80] sm:$0xff] %vm358, 0.0
      %2840 = vst.msk [vmem:[#allocation5 + $0x88] sm:$0x3] %vm2824, 0.0
      %2841 = vst.msk [vmem:[#allocation5 + $0x90] sm:$0xff] %vm358, 0.0
      %2842 = vst.msk [vmem:[#allocation5 + $0x98] sm:$0xff] %vm358, 0.0
      %2843 = vst.msk [vmem:[#allocation5 + $0xa0] sm:$0x3] %vm2824, 0.0
      %2844 = vst.msk [vmem:[#allocation5 + $0xa8] sm:$0xff] %vm358, 0.0
      %2845 = vst.msk [vmem:[#allocation5 + $0xb0] sm:$0xff] %vm358, 0.0
      %2846 = vst.msk [vmem:[#allocation5 + $0xb8] sm:$0x3] %vm2824, 0.0
      %2847 = vst.msk [vmem:[#allocation5 + $0xc0] sm:$0xff] %vm358, 0.0
      %2848 = vst.msk [vmem:[#allocation5 + $0xc8] sm:$0xff] %vm358, 0.0
      %2849 = vst.msk [vmem:[#allocation5 + $0xd0] sm:$0x3] %vm2824, 0.0
      %2850 = vst.msk [vmem:[#allocation5 + $0xd8] sm:$0xff] %vm358, 0.0
      %2851 = vst.msk [vmem:[#allocation5 + $0xe0] sm:$0xff] %vm358, 0.0
      %2852 = vst.msk [vmem:[#allocation5 + $0xe8] sm:$0x3] %vm2824, 0.0
      %2853 = vst.msk [vmem:[#allocation5 + $0xf0] sm:$0xff] %vm358, 0.0
      %2854 = vst.msk [vmem:[#allocation5 + $0xf8] sm:$0xff] %vm358, 0.0
      %2855 = vst.msk [vmem:[#allocation5 + $0x100] sm:$0x3] %vm2824, 0.0
      %2856 = vst.msk [vmem:[#allocation5 + $0x108] sm:$0xff] %vm358, 0.0
      %2857 = vst.msk [vmem:[#allocation5 + $0x110] sm:$0xff] %vm358, 0.0
      %2858 = vst.msk [vmem:[#allocation5 + $0x118] sm:$0x3] %vm2824, 0.0
      %2859 = vst.msk [vmem:[#allocation5 + $0x120] sm:$0xff] %vm358, 0.0
      %2860 = vst.msk [vmem:[#allocation5 + $0x128] sm:$0xff] %vm358, 0.0
      %2861 = vst.msk [vmem:[#allocation5 + $0x130] sm:$0x3] %vm2824, 0.0
      %2862 = vst.msk [vmem:[#allocation5 + $0x138] sm:$0xff] %vm358, 0.0
      %2863 = vst.msk [vmem:[#allocation5 + $0x140] sm:$0xff] %vm358, 0.0
      %2864 = vst.msk [vmem:[#allocation5 + $0x148] sm:$0x3] %vm2824, 0.0
      %2865 = vst.msk [vmem:[#allocation5 + $0x150] sm:$0xff] %vm358, 0.0
      %2866 = vst.msk [vmem:[#allocation5 + $0x158] sm:$0xff] %vm358, 0.0
      %2867 = vst.msk [vmem:[#allocation5 + $0x160] sm:$0x3] %vm2824, 0.0
      %2868 = vst.msk [vmem:[#allocation5 + $0x168] sm:$0xff] %vm358, 0.0
      %2869 = vst.msk [vmem:[#allocation5 + $0x170] sm:$0xff] %vm358, 0.0
      %2870 = vst.msk [vmem:[#allocation5 + $0x178] sm:$0x3] %vm2824, 0.0
      %2871 = vst.msk [vmem:[#allocation5 + $0x180] sm:$0xff] %vm358, 0.0
      %2872 = vst.msk [vmem:[#allocation5 + $0x188] sm:$0xff] %vm358, 0.0
      %2873 = vst.msk [vmem:[#allocation5 + $0x190] sm:$0x3] %vm2824, 0.0
      %2874 = vst.msk [vmem:[#allocation5 + $0x198] sm:$0xff] %vm358, 0.0
      %2875 = vst.msk [vmem:[#allocation5 + $0x1a0] sm:$0xff] %vm358, 0.0
      %2876 = vst.msk [vmem:[#allocation5 + $0x1a8] sm:$0x3] %vm2824, 0.0
      %v2877 = vld [vmem:[%s320] sm:$0xff]
      %v2878 = vld [vmem:[%s320 + $0x8] sm:$0xff]
      %v2879 = vld [vmem:[%s320 + $0x10] sm:$0xff]
      %v2880 = vld [vmem:[%s320 + $0x18] sm:$0xff]
      %v2881 = vld [vmem:[%s320 + $0x20] sm:$0xff]
      %v2882 = vld [vmem:[%s320 + $0x28] sm:$0xff]
      %v2883 = vld [vmem:[%s320 + $0x30] sm:$0xff]
      %v2884 = vld [vmem:[%s320 + $0x38] sm:$0xff]
      %v2885 = vld [vmem:[%s320 + $0x40] sm:$0xff]
      %v2886 = vld [vmem:[%s320 + $0x48] sm:$0xff]
      %v2887 = vld [vmem:[%s320 + $0x50] sm:$0xff]
      %v2888 = vld [vmem:[%s320 + $0x58] sm:$0xff]
      %v2889 = vld [vmem:[%s320 + $0x60] sm:$0xff]
      %v2890 = vld [vmem:[%s320 + $0x68] sm:$0xff]
      %v2891 = vld [vmem:[%s320 + $0x70] sm:$0xff]
      %v2892 = vld [vmem:[%s320 + $0x78] sm:$0xff]
      %v2893 = vld [vmem:[%s320 + $0x80] sm:$0xff]
      %v2894 = vld [vmem:[%s320 + $0x88] sm:$0xff]
      %v2895 = vld [vmem:[%s320 + $0x90] sm:$0xff]
      %v2896 = vld [vmem:[%s320 + $0x98] sm:$0xff]
      %v2897 = vld [vmem:[%s320 + $0xa0] sm:$0xff]
      %v2898 = vld [vmem:[%s320 + $0xa8] sm:$0xff]
      %v2899 = vld [vmem:[%s320 + $0xb0] sm:$0xff]
      %v2900 = vld [vmem:[%s320 + $0xb8] sm:$0xff]
      %v2901 = vld [vmem:[%s320 + $0xc0] sm:$0xff]
      %v2902 = vld [vmem:[%s320 + $0xc8] sm:$0xff]
      %v2903 = vld [vmem:[%s320 + $0xd0] sm:$0xff]
      %v2904 = vld [vmem:[%s320 + $0xd8] sm:$0xff]
      %v2905 = vld [vmem:[%s320 + $0xe0] sm:$0xff]
      %v2906 = vld [vmem:[%s320 + $0xe8] sm:$0xff]
      %v2907 = vld [vmem:[%s320 + $0xf0] sm:$0xff]
      %v2908 = vld [vmem:[%s320 + $0xf8] sm:$0xff]
      %s2909 = scalar_lea.vmem [#allocation4], 24
      %2910 = vst.msk [vmem:[%s2909 + $0x1] sm:$0xff] %vm2766, %v2541
      %2911 = vst.msk [vmem:[%s2909 + $0x9] sm:$0xff] %vm2766, %v2544
      %2912 = vst.msk [vmem:[%s2909 + $0x19] sm:$0xff] %vm2766, %v2547
      %2913 = vst.msk [vmem:[%s2909 + $0x21] sm:$0xff] %vm2766, %v2550
      %2914 = vst.msk [vmem:[%s2909 + $0x31] sm:$0xff] %vm2766, %v2553
      %2915 = vst.msk [vmem:[%s2909 + $0x39] sm:$0xff] %vm2766, %v2556
      %2916 = vst.msk [vmem:[%s2909 + $0x49] sm:$0xff] %vm2766, %v2559
      %2917 = vst.msk [vmem:[%s2909 + $0x51] sm:$0xff] %vm2766, %v2562
      %2918 = vst.msk [vmem:[%s2909 + $0x61] sm:$0xff] %vm2766, %v2565
      %2919 = vst.msk [vmem:[%s2909 + $0x69] sm:$0xff] %vm2766, %v2568
      %2920 = vst.msk [vmem:[%s2909 + $0x79] sm:$0xff] %vm2766, %v2571
      %2921 = vst.msk [vmem:[%s2909 + $0x81] sm:$0xff] %vm2766, %v2574
      %2922 = vst.msk [vmem:[%s2909 + $0x91] sm:$0xff] %vm2766, %v2577
      %2923 = vst.msk [vmem:[%s2909 + $0x99] sm:$0xff] %vm2766, %v2580
      %2924 = vst.msk [vmem:[%s2909 + $0xa9] sm:$0xff] %vm2766, %v2583
      %2925 = vst.msk [vmem:[%s2909 + $0xb1] sm:$0xff] %vm2766, %v2586
      %2926 = vst.msk [vmem:[%s2909 + $0xc1] sm:$0xff] %vm2766, %v2589
      %2927 = vst.msk [vmem:[%s2909 + $0xc9] sm:$0xff] %vm2766, %v2592
      %2928 = vst.msk [vmem:[%s2909 + $0xd9] sm:$0xff] %vm2766, %v2595
      %2929 = vst.msk [vmem:[%s2909 + $0xe1] sm:$0xff] %vm2766, %v2598
      %2930 = vst.msk [vmem:[%s2909 + $0xf1] sm:$0xff] %vm2766, %v2601
      %2931 = vst.msk [vmem:[%s2909 + $0xf9] sm:$0xff] %vm2766, %v2604
      %2932 = vst.msk [vmem:[%s2909 + $0x109] sm:$0xff] %vm2766, %v2607
      %2933 = vst.msk [vmem:[%s2909 + $0x111] sm:$0xff] %vm2766, %v2610
      %2934 = vst.msk [vmem:[%s2909 + $0x121] sm:$0xff] %vm2766, %v2613
      %2935 = vst.msk [vmem:[%s2909 + $0x129] sm:$0xff] %vm2766, %v2616
      %2936 = vst.msk [vmem:[%s2909 + $0x139] sm:$0xff] %vm2766, %v2619
      %2937 = vst.msk [vmem:[%s2909 + $0x141] sm:$0xff] %vm2766, %v2622
      %2938 = vst.msk [vmem:[%s2909 + $0x151] sm:$0xff] %vm2766, %v2625
      %2939 = vst.msk [vmem:[%s2909 + $0x159] sm:$0xff] %vm2766, %v2628
      %2940 = vst.msk [vmem:[%s2909 + $0x169] sm:$0xff] %vm2766, %v2631
      %2941 = vst.msk [vmem:[%s2909 + $0x171] sm:$0xff] %vm2766, %v2634
      %v2942 = vld [vmem:[%s5] sm:$0x1]
      %v2943 = vld [vmem:[#allocation4] sm:$0xff]
      %v2944 = vld [vmem:[#allocation4 + $0x8] sm:$0xff]
      %v2945 = vld [vmem:[#allocation4 + $0x18] sm:$0xff]
      %v2946 = vld [vmem:[#allocation4 + $0x20] sm:$0xff]
      %v2947 = vld [vmem:[#allocation4 + $0x30] sm:$0xff]
      %v2948 = vld [vmem:[#allocation4 + $0x38] sm:$0xff]
      %v2949 = vld [vmem:[#allocation4 + $0x48] sm:$0xff]
      %v2950 = vld [vmem:[#allocation4 + $0x50] sm:$0xff]
      %v2951 = vld [vmem:[#allocation4 + $0x60] sm:$0xff]
      %v2952 = vld [vmem:[#allocation4 + $0x68] sm:$0xff]
      %v2953 = vld [vmem:[#allocation4 + $0x78] sm:$0xff]
      %v2954 = vld [vmem:[#allocation4 + $0x80] sm:$0xff]
      %v2955 = vld [vmem:[#allocation4 + $0x90] sm:$0xff]
      %v2956 = vld [vmem:[#allocation4 + $0x98] sm:$0xff]
      %v2957 = vld [vmem:[#allocation4 + $0xa8] sm:$0xff]
      %v2958 = vld [vmem:[#allocation4 + $0xb0] sm:$0xff]
      %v2959 = vld [vmem:[#allocation4 + $0xc0] sm:$0xff]
      %v2960 = vld [vmem:[#allocation4 + $0xc8] sm:$0xff]
      %v2961 = vld [vmem:[#allocation4 + $0xd8] sm:$0xff]
      %v2962 = vld [vmem:[#allocation4 + $0xe0] sm:$0xff]
      %v2963 = vld [vmem:[#allocation4 + $0xf0] sm:$0xff]
      %v2964 = vld [vmem:[#allocation4 + $0xf8] sm:$0xff]
      %v2965 = vld [vmem:[#allocation4 + $0x108] sm:$0xff]
      %v2966 = vld [vmem:[#allocation4 + $0x110] sm:$0xff]
      %v2967 = vld [vmem:[#allocation4 + $0x120] sm:$0xff]
      %v2968 = vld [vmem:[#allocation4 + $0x128] sm:$0xff]
      %v2969 = vld [vmem:[#allocation4 + $0x138] sm:$0xff]
      %v2970 = vld [vmem:[#allocation4 + $0x140] sm:$0xff]
      %v2971 = vld [vmem:[#allocation4 + $0x150] sm:$0xff]
      %v2972 = vld [vmem:[#allocation4 + $0x158] sm:$0xff]
      %v2973 = vld [vmem:[#allocation4 + $0x168] sm:$0xff]
      %v2974 = vld [vmem:[#allocation4 + $0x170] sm:$0xff]
      %v2976 = vperm.slane %v2942, 0
      %v2978 = vadd.f32 %v2976, %v2943
      %v2979 = vadd.f32 %v2976, %v2944
      %v2980 = vadd.f32 %v2976, %v2945
      %v2981 = vadd.f32 %v2976, %v2946
      %v2982 = vadd.f32 %v2976, %v2947
      %v2983 = vadd.f32 %v2976, %v2948
      %v2984 = vadd.f32 %v2976, %v2949
      %v2985 = vadd.f32 %v2976, %v2950
      %v2986 = vadd.f32 %v2976, %v2951
      %v2987 = vadd.f32 %v2976, %v2952
      %v2988 = vadd.f32 %v2976, %v2953
      %v2989 = vadd.f32 %v2976, %v2954
      %v2990 = vadd.f32 %v2976, %v2955
      %v2991 = vadd.f32 %v2976, %v2956
      %v2992 = vadd.f32 %v2976, %v2957
      %v2993 = vadd.f32 %v2976, %v2958
      %v2994 = vadd.f32 %v2976, %v2959
      %v2995 = vadd.f32 %v2976, %v2960
      %v2996 = vadd.f32 %v2976, %v2961
      %v2997 = vadd.f32 %v2976, %v2962
      %v2998 = vadd.f32 %v2976, %v2963
      %v2999 = vadd.f32 %v2976, %v2964
      %v3000 = vadd.f32 %v2976, %v2965
      %v3001 = vadd.f32 %v2976, %v2966
      %v3002 = vadd.f32 %v2976, %v2967
      %v3003 = vadd.f32 %v2976, %v2968
      %v3004 = vadd.f32 %v2976, %v2969
      %v3005 = vadd.f32 %v2976, %v2970
      %v3006 = vadd.f32 %v2976, %v2971
      %v3007 = vadd.f32 %v2976, %v2972
      %v3008 = vadd.f32 %v2976, %v2973
      %v3009 = vadd.f32 %v2976, %v2974
      %v3010 = vld [vmem:[#allocation4 + $0x1] sm:$0xff]
      %v3011 = vld [vmem:[#allocation4 + $0x9] sm:$0xff]
      %v3012 = vld [vmem:[#allocation4 + $0x19] sm:$0xff]
      %v3013 = vld [vmem:[#allocation4 + $0x21] sm:$0xff]
      %v3014 = vld [vmem:[#allocation4 + $0x31] sm:$0xff]
      %v3015 = vld [vmem:[#allocation4 + $0x39] sm:$0xff]
      %v3016 = vld [vmem:[#allocation4 + $0x49] sm:$0xff]
      %v3017 = vld [vmem:[#allocation4 + $0x51] sm:$0xff]
      %v3018 = vld [vmem:[#allocation4 + $0x61] sm:$0xff]
      %v3019 = vld [vmem:[#allocation4 + $0x69] sm:$0xff]
      %v3020 = vld [vmem:[#allocation4 + $0x79] sm:$0xff]
      %v3021 = vld [vmem:[#allocation4 + $0x81] sm:$0xff]
      %v3022 = vld [vmem:[#allocation4 + $0x91] sm:$0xff]
      %v3023 = vld [vmem:[#allocation4 + $0x99] sm:$0xff]
      %v3024 = vld [vmem:[#allocation4 + $0xa9] sm:$0xff]
      %v3025 = vld [vmem:[#allocation4 + $0xb1] sm:$0xff]
      %v3026 = vld [vmem:[#allocation4 + $0xc1] sm:$0xff]
      %v3027 = vld [vmem:[#allocation4 + $0xc9] sm:$0xff]
      %v3028 = vld [vmem:[#allocation4 + $0xd9] sm:$0xff]
      %v3029 = vld [vmem:[#allocation4 + $0xe1] sm:$0xff]
      %v3030 = vld [vmem:[#allocation4 + $0xf1] sm:$0xff]
      %v3031 = vld [vmem:[#allocation4 + $0xf9] sm:$0xff]
      %v3032 = vld [vmem:[#allocation4 + $0x109] sm:$0xff]
      %v3033 = vld [vmem:[#allocation4 + $0x111] sm:$0xff]
      %v3034 = vld [vmem:[#allocation4 + $0x121] sm:$0xff]
      %v3035 = vld [vmem:[#allocation4 + $0x129] sm:$0xff]
      %v3036 = vld [vmem:[#allocation4 + $0x139] sm:$0xff]
      %v3037 = vld [vmem:[#allocation4 + $0x141] sm:$0xff]
      %v3038 = vld [vmem:[#allocation4 + $0x151] sm:$0xff]
      %v3039 = vld [vmem:[#allocation4 + $0x159] sm:$0xff]
      %v3040 = vld [vmem:[#allocation4 + $0x169] sm:$0xff]
      %v3041 = vld [vmem:[#allocation4 + $0x171] sm:$0xff]
      %3074 = vrot.lane.b32.xlu0 %v3010, 120
      %v3075 = vpop.permute.xlu0 %3074
      %3076 = vrot.lane.b32.xlu0 %v3011, 120
      %v3077 = vpop.permute.xlu0 %3076
      %3078 = vrot.lane.b32.xlu0 %v3012, 120
      %v3079 = vpop.permute.xlu0 %3078
      %3080 = vrot.lane.b32.xlu0 %v3013, 120
      %v3081 = vpop.permute.xlu0 %3080
      %3082 = vrot.lane.b32.xlu0 %v3014, 120
      %v3083 = vpop.permute.xlu0 %3082
      %3084 = vrot.lane.b32.xlu0 %v3015, 120
      %v3085 = vpop.permute.xlu0 %3084
      %3086 = vrot.lane.b32.xlu0 %v3016, 120
      %v3087 = vpop.permute.xlu0 %3086
      %3088 = vrot.lane.b32.xlu0 %v3017, 120
      %v3089 = vpop.permute.xlu0 %3088
      %3090 = vrot.lane.b32.xlu0 %v3018, 120
      %v3091 = vpop.permute.xlu0 %3090
      %3092 = vrot.lane.b32.xlu0 %v3019, 120
      %v3093 = vpop.permute.xlu0 %3092
      %3094 = vrot.lane.b32.xlu0 %v3020, 120
      %v3095 = vpop.permute.xlu0 %3094
      %3096 = vrot.lane.b32.xlu0 %v3021, 120
      %v3097 = vpop.permute.xlu0 %3096
      %3098 = vrot.lane.b32.xlu0 %v3022, 120
      %v3099 = vpop.permute.xlu0 %3098
      %3100 = vrot.lane.b32.xlu0 %v3023, 120
      %v3101 = vpop.permute.xlu0 %3100
      %3102 = vrot.lane.b32.xlu0 %v3024, 120
      %v3103 = vpop.permute.xlu0 %3102
      %3104 = vrot.lane.b32.xlu0 %v3025, 120
      %v3105 = vpop.permute.xlu0 %3104
      %3106 = vrot.lane.b32.xlu0 %v3026, 120
      %v3107 = vpop.permute.xlu0 %3106
      %3108 = vrot.lane.b32.xlu0 %v3027, 120
      %v3109 = vpop.permute.xlu0 %3108
      %3110 = vrot.lane.b32.xlu0 %v3028, 120
      %v3111 = vpop.permute.xlu0 %3110
      %3112 = vrot.lane.b32.xlu0 %v3029, 120
      %v3113 = vpop.permute.xlu0 %3112
      %3114 = vrot.lane.b32.xlu0 %v3030, 120
      %v3115 = vpop.permute.xlu0 %3114
      %3116 = vrot.lane.b32.xlu0 %v3031, 120
      %v3117 = vpop.permute.xlu0 %3116
      %3118 = vrot.lane.b32.xlu0 %v3032, 120
      %v3119 = vpop.permute.xlu0 %3118
      %3120 = vrot.lane.b32.xlu0 %v3033, 120
      %v3121 = vpop.permute.xlu0 %3120
      %3122 = vrot.lane.b32.xlu0 %v3034, 120
      %v3123 = vpop.permute.xlu0 %3122
      %3124 = vrot.lane.b32.xlu0 %v3035, 120
      %v3125 = vpop.permute.xlu0 %3124
      %3126 = vrot.lane.b32.xlu0 %v3036, 120
      %v3127 = vpop.permute.xlu0 %3126
      %3128 = vrot.lane.b32.xlu0 %v3037, 120
      %v3129 = vpop.permute.xlu0 %3128
      %3130 = vrot.lane.b32.xlu0 %v3038, 120
      %v3131 = vpop.permute.xlu0 %3130
      %3132 = vrot.lane.b32.xlu0 %v3039, 120
      %v3133 = vpop.permute.xlu0 %3132
      %3134 = vrot.lane.b32.xlu0 %v3040, 120
      %v3135 = vpop.permute.xlu0 %3134
      %3136 = vrot.lane.b32.xlu0 %v3041, 120
      %v3137 = vpop.permute.xlu0 %3136
      %v3170 = vadd.f32 %v2978, %v3075
      %v3171 = vadd.f32 %v2979, %v3077
      %v3172 = vadd.f32 %v2980, %v3079
      %v3173 = vadd.f32 %v2981, %v3081
      %v3174 = vadd.f32 %v2982, %v3083
      %v3175 = vadd.f32 %v2983, %v3085
      %v3176 = vadd.f32 %v2984, %v3087
      %v3177 = vadd.f32 %v2985, %v3089
      %v3178 = vadd.f32 %v2986, %v3091
      %v3179 = vadd.f32 %v2987, %v3093
      %v3180 = vadd.f32 %v2988, %v3095
      %v3181 = vadd.f32 %v2989, %v3097
      %v3182 = vadd.f32 %v2990, %v3099
      %v3183 = vadd.f32 %v2991, %v3101
      %v3184 = vadd.f32 %v2992, %v3103
      %v3185 = vadd.f32 %v2993, %v3105
      %v3186 = vadd.f32 %v2994, %v3107
      %v3187 = vadd.f32 %v2995, %v3109
      %v3188 = vadd.f32 %v2996, %v3111
      %v3189 = vadd.f32 %v2997, %v3113
      %v3190 = vadd.f32 %v2998, %v3115
      %v3191 = vadd.f32 %v2999, %v3117
      %v3192 = vadd.f32 %v3000, %v3119
      %v3193 = vadd.f32 %v3001, %v3121
      %v3194 = vadd.f32 %v3002, %v3123
      %v3195 = vadd.f32 %v3003, %v3125
      %v3196 = vadd.f32 %v3004, %v3127
      %v3197 = vadd.f32 %v3005, %v3129
      %v3198 = vadd.f32 %v3006, %v3131
      %v3199 = vadd.f32 %v3007, %v3133
      %v3200 = vadd.f32 %v3008, %v3135
      %v3201 = vadd.f32 %v3009, %v3137
      %v3202 = vld [vmem:[#allocation4 + $0x2] sm:$0xff]
      %v3203 = vld [vmem:[#allocation4 + $0xa] sm:$0xff]
      %v3204 = vld [vmem:[#allocation4 + $0x1a] sm:$0xff]
      %v3205 = vld [vmem:[#allocation4 + $0x22] sm:$0xff]
      %v3206 = vld [vmem:[#allocation4 + $0x32] sm:$0xff]
      %v3207 = vld [vmem:[#allocation4 + $0x3a] sm:$0xff]
      %v3208 = vld [vmem:[#allocation4 + $0x4a] sm:$0xff]
      %v3209 = vld [vmem:[#allocation4 + $0x52] sm:$0xff]
      %v3210 = vld [vmem:[#allocation4 + $0x62] sm:$0xff]
      %v3211 = vld [vmem:[#allocation4 + $0x6a] sm:$0xff]
      %v3212 = vld [vmem:[#allocation4 + $0x7a] sm:$0xff]
      %v3213 = vld [vmem:[#allocation4 + $0x82] sm:$0xff]
      %v3214 = vld [vmem:[#allocation4 + $0x92] sm:$0xff]
      %v3215 = vld [vmem:[#allocation4 + $0x9a] sm:$0xff]
      %v3216 = vld [vmem:[#allocation4 + $0xaa] sm:$0xff]
      %v3217 = vld [vmem:[#allocation4 + $0xb2] sm:$0xff]
      %v3218 = vld [vmem:[#allocation4 + $0xc2] sm:$0xff]
      %v3219 = vld [vmem:[#allocation4 + $0xca] sm:$0xff]
      %v3220 = vld [vmem:[#allocation4 + $0xda] sm:$0xff]
      %v3221 = vld [vmem:[#allocation4 + $0xe2] sm:$0xff]
      %v3222 = vld [vmem:[#allocation4 + $0xf2] sm:$0xff]
      %v3223 = vld [vmem:[#allocation4 + $0xfa] sm:$0xff]
      %v3224 = vld [vmem:[#allocation4 + $0x10a] sm:$0xff]
      %v3225 = vld [vmem:[#allocation4 + $0x112] sm:$0xff]
      %v3226 = vld [vmem:[#allocation4 + $0x122] sm:$0xff]
      %v3227 = vld [vmem:[#allocation4 + $0x12a] sm:$0xff]
      %v3228 = vld [vmem:[#allocation4 + $0x13a] sm:$0xff]
      %v3229 = vld [vmem:[#allocation4 + $0x142] sm:$0xff]
      %v3230 = vld [vmem:[#allocation4 + $0x152] sm:$0xff]
      %v3231 = vld [vmem:[#allocation4 + $0x15a] sm:$0xff]
      %v3232 = vld [vmem:[#allocation4 + $0x16a] sm:$0xff]
      %v3233 = vld [vmem:[#allocation4 + $0x172] sm:$0xff]
      %3266 = vrot.lane.b32.xlu0 %v3202, 112
      %v3267 = vpop.permute.xlu0 %3266
      %3268 = vrot.lane.b32.xlu0 %v3203, 112
      %v3269 = vpop.permute.xlu0 %3268
      %3270 = vrot.lane.b32.xlu0 %v3204, 112
      %v3271 = vpop.permute.xlu0 %3270
      %3272 = vrot.lane.b32.xlu0 %v3205, 112
      %v3273 = vpop.permute.xlu0 %3272
      %3274 = vrot.lane.b32.xlu0 %v3206, 112
      %v3275 = vpop.permute.xlu0 %3274
      %3276 = vrot.lane.b32.xlu0 %v3207, 112
      %v3277 = vpop.permute.xlu0 %3276
      %3278 = vrot.lane.b32.xlu0 %v3208, 112
      %v3279 = vpop.permute.xlu0 %3278
      %3280 = vrot.lane.b32.xlu0 %v3209, 112
      %v3281 = vpop.permute.xlu0 %3280
      %3282 = vrot.lane.b32.xlu0 %v3210, 112
      %v3283 = vpop.permute.xlu0 %3282
      %3284 = vrot.lane.b32.xlu0 %v3211, 112
      %v3285 = vpop.permute.xlu0 %3284
      %3286 = vrot.lane.b32.xlu0 %v3212, 112
      %v3287 = vpop.permute.xlu0 %3286
      %3288 = vrot.lane.b32.xlu0 %v3213, 112
      %v3289 = vpop.permute.xlu0 %3288
      %3290 = vrot.lane.b32.xlu0 %v3214, 112
      %v3291 = vpop.permute.xlu0 %3290
      %3292 = vrot.lane.b32.xlu0 %v3215, 112
      %v3293 = vpop.permute.xlu0 %3292
      %3294 = vrot.lane.b32.xlu0 %v3216, 112
      %v3295 = vpop.permute.xlu0 %3294
      %3296 = vrot.lane.b32.xlu0 %v3217, 112
      %v3297 = vpop.permute.xlu0 %3296
      %3298 = vrot.lane.b32.xlu0 %v3218, 112
      %v3299 = vpop.permute.xlu0 %3298
      %3300 = vrot.lane.b32.xlu0 %v3219, 112
      %v3301 = vpop.permute.xlu0 %3300
      %3302 = vrot.lane.b32.xlu0 %v3220, 112
      %v3303 = vpop.permute.xlu0 %3302
      %3304 = vrot.lane.b32.xlu0 %v3221, 112
      %v3305 = vpop.permute.xlu0 %3304
      %3306 = vrot.lane.b32.xlu0 %v3222, 112
      %v3307 = vpop.permute.xlu0 %3306
      %3308 = vrot.lane.b32.xlu0 %v3223, 112
      %v3309 = vpop.permute.xlu0 %3308
      %3310 = vrot.lane.b32.xlu0 %v3224, 112
      %v3311 = vpop.permute.xlu0 %3310
      %3312 = vrot.lane.b32.xlu0 %v3225, 112
      %v3313 = vpop.permute.xlu0 %3312
      %3314 = vrot.lane.b32.xlu0 %v3226, 112
      %v3315 = vpop.permute.xlu0 %3314
      %3316 = vrot.lane.b32.xlu0 %v3227, 112
      %v3317 = vpop.permute.xlu0 %3316
      %3318 = vrot.lane.b32.xlu0 %v3228, 112
      %v3319 = vpop.permute.xlu0 %3318
      %3320 = vrot.lane.b32.xlu0 %v3229, 112
      %v3321 = vpop.permute.xlu0 %3320
      %3322 = vrot.lane.b32.xlu0 %v3230, 112
      %v3323 = vpop.permute.xlu0 %3322
      %3324 = vrot.lane.b32.xlu0 %v3231, 112
      %v3325 = vpop.permute.xlu0 %3324
      %3326 = vrot.lane.b32.xlu0 %v3232, 112
      %v3327 = vpop.permute.xlu0 %3326
      %3328 = vrot.lane.b32.xlu0 %v3233, 112
      %v3329 = vpop.permute.xlu0 %3328
      %v3362 = vadd.f32 %v3170, %v3267
      %v3363 = vadd.f32 %v3171, %v3269
      %v3364 = vadd.f32 %v3172, %v3271
      %v3365 = vadd.f32 %v3173, %v3273
      %v3366 = vadd.f32 %v3174, %v3275
      %v3367 = vadd.f32 %v3175, %v3277
      %v3368 = vadd.f32 %v3176, %v3279
      %v3369 = vadd.f32 %v3177, %v3281
      %v3370 = vadd.f32 %v3178, %v3283
      %v3371 = vadd.f32 %v3179, %v3285
      %v3372 = vadd.f32 %v3180, %v3287
      %v3373 = vadd.f32 %v3181, %v3289
      %v3374 = vadd.f32 %v3182, %v3291
      %v3375 = vadd.f32 %v3183, %v3293
      %v3376 = vadd.f32 %v3184, %v3295
      %v3377 = vadd.f32 %v3185, %v3297
      %v3378 = vadd.f32 %v3186, %v3299
      %v3379 = vadd.f32 %v3187, %v3301
      %v3380 = vadd.f32 %v3188, %v3303
      %v3381 = vadd.f32 %v3189, %v3305
      %v3382 = vadd.f32 %v3190, %v3307
      %v3383 = vadd.f32 %v3191, %v3309
      %v3384 = vadd.f32 %v3192, %v3311
      %v3385 = vadd.f32 %v3193, %v3313
      %v3386 = vadd.f32 %v3194, %v3315
      %v3387 = vadd.f32 %v3195, %v3317
      %v3388 = vadd.f32 %v3196, %v3319
      %v3389 = vadd.f32 %v3197, %v3321
      %v3390 = vadd.f32 %v3198, %v3323
      %v3391 = vadd.f32 %v3199, %v3325
      %v3392 = vadd.f32 %v3200, %v3327
      %v3393 = vadd.f32 %v3201, %v3329
      %v3394 = vld [vmem:[%s2909] sm:$0xff]
      %v3395 = vld [vmem:[%s2909 + $0x8] sm:$0xff]
      %v3396 = vld [vmem:[%s2909 + $0x18] sm:$0xff]
      %v3397 = vld [vmem:[%s2909 + $0x20] sm:$0xff]
      %v3398 = vld [vmem:[%s2909 + $0x30] sm:$0xff]
      %v3399 = vld [vmem:[%s2909 + $0x38] sm:$0xff]
      %v3400 = vld [vmem:[%s2909 + $0x48] sm:$0xff]
      %v3401 = vld [vmem:[%s2909 + $0x50] sm:$0xff]
      %v3402 = vld [vmem:[%s2909 + $0x60] sm:$0xff]
      %v3403 = vld [vmem:[%s2909 + $0x68] sm:$0xff]
      %v3404 = vld [vmem:[%s2909 + $0x78] sm:$0xff]
      %v3405 = vld [vmem:[%s2909 + $0x80] sm:$0xff]
      %v3406 = vld [vmem:[%s2909 + $0x90] sm:$0xff]
      %v3407 = vld [vmem:[%s2909 + $0x98] sm:$0xff]
      %v3408 = vld [vmem:[%s2909 + $0xa8] sm:$0xff]
      %v3409 = vld [vmem:[%s2909 + $0xb0] sm:$0xff]
      %v3410 = vld [vmem:[%s2909 + $0xc0] sm:$0xff]
      %v3411 = vld [vmem:[%s2909 + $0xc8] sm:$0xff]
      %v3412 = vld [vmem:[%s2909 + $0xd8] sm:$0xff]
      %v3413 = vld [vmem:[%s2909 + $0xe0] sm:$0xff]
      %v3414 = vld [vmem:[%s2909 + $0xf0] sm:$0xff]
      %v3415 = vld [vmem:[%s2909 + $0xf8] sm:$0xff]
      %v3416 = vld [vmem:[%s2909 + $0x108] sm:$0xff]
      %v3417 = vld [vmem:[%s2909 + $0x110] sm:$0xff]
      %v3418 = vld [vmem:[%s2909 + $0x120] sm:$0xff]
      %v3419 = vld [vmem:[%s2909 + $0x128] sm:$0xff]
      %v3420 = vld [vmem:[%s2909 + $0x138] sm:$0xff]
      %v3421 = vld [vmem:[%s2909 + $0x140] sm:$0xff]
      %v3422 = vld [vmem:[%s2909 + $0x150] sm:$0xff]
      %v3423 = vld [vmem:[%s2909 + $0x158] sm:$0xff]
      %v3424 = vld [vmem:[%s2909 + $0x168] sm:$0xff]
      %v3425 = vld [vmem:[%s2909 + $0x170] sm:$0xff]
      %3458 = vrot.lane.b32.xlu0 %v3394, 104
      %v3459 = vpop.permute.xlu0 %3458
      %3460 = vrot.lane.b32.xlu0 %v3395, 104
      %v3461 = vpop.permute.xlu0 %3460
      %3462 = vrot.lane.b32.xlu0 %v3396, 104
      %v3463 = vpop.permute.xlu0 %3462
      %3464 = vrot.lane.b32.xlu0 %v3397, 104
      %v3465 = vpop.permute.xlu0 %3464
      %3466 = vrot.lane.b32.xlu0 %v3398, 104
      %v3467 = vpop.permute.xlu0 %3466
      %3468 = vrot.lane.b32.xlu0 %v3399, 104
      %v3469 = vpop.permute.xlu0 %3468
      %3470 = vrot.lane.b32.xlu0 %v3400, 104
      %v3471 = vpop.permute.xlu0 %3470
      %3472 = vrot.lane.b32.xlu0 %v3401, 104
      %v3473 = vpop.permute.xlu0 %3472
      %3474 = vrot.lane.b32.xlu0 %v3402, 104
      %v3475 = vpop.permute.xlu0 %3474
      %3476 = vrot.lane.b32.xlu0 %v3403, 104
      %v3477 = vpop.permute.xlu0 %3476
      %3478 = vrot.lane.b32.xlu0 %v3404, 104
      %v3479 = vpop.permute.xlu0 %3478
      %3480 = vrot.lane.b32.xlu0 %v3405, 104
      %v3481 = vpop.permute.xlu0 %3480
      %3482 = vrot.lane.b32.xlu0 %v3406, 104
      %v3483 = vpop.permute.xlu0 %3482
      %3484 = vrot.lane.b32.xlu0 %v3407, 104
      %v3485 = vpop.permute.xlu0 %3484
      %3486 = vrot.lane.b32.xlu0 %v3408, 104
      %v3487 = vpop.permute.xlu0 %3486
      %3488 = vrot.lane.b32.xlu0 %v3409, 104
      %v3489 = vpop.permute.xlu0 %3488
      %3490 = vrot.lane.b32.xlu0 %v3410, 104
      %v3491 = vpop.permute.xlu0 %3490
      %3492 = vrot.lane.b32.xlu0 %v3411, 104
      %v3493 = vpop.permute.xlu0 %3492
      %3494 = vrot.lane.b32.xlu0 %v3412, 104
      %v3495 = vpop.permute.xlu0 %3494
      %3496 = vrot.lane.b32.xlu0 %v3413, 104
      %v3497 = vpop.permute.xlu0 %3496
      %3498 = vrot.lane.b32.xlu0 %v3414, 104
      %v3499 = vpop.permute.xlu0 %3498
      %3500 = vrot.lane.b32.xlu0 %v3415, 104
      %v3501 = vpop.permute.xlu0 %3500
      %3502 = vrot.lane.b32.xlu0 %v3416, 104
      %v3503 = vpop.permute.xlu0 %3502
      %3504 = vrot.lane.b32.xlu0 %v3417, 104
      %v3505 = vpop.permute.xlu0 %3504
      %3506 = vrot.lane.b32.xlu0 %v3418, 104
      %v3507 = vpop.permute.xlu0 %3506
      %3508 = vrot.lane.b32.xlu0 %v3419, 104
      %v3509 = vpop.permute.xlu0 %3508
      %3510 = vrot.lane.b32.xlu0 %v3420, 104
      %v3511 = vpop.permute.xlu0 %3510
      %3512 = vrot.lane.b32.xlu0 %v3421, 104
      %v3513 = vpop.permute.xlu0 %3512
      %3514 = vrot.lane.b32.xlu0 %v3422, 104
      %v3515 = vpop.permute.xlu0 %3514
      %3516 = vrot.lane.b32.xlu0 %v3423, 104
      %v3517 = vpop.permute.xlu0 %3516
      %3518 = vrot.lane.b32.xlu0 %v3424, 104
      %v3519 = vpop.permute.xlu0 %3518
      %3520 = vrot.lane.b32.xlu0 %v3425, 104
      %v3521 = vpop.permute.xlu0 %3520
      %v3554 = vadd.f32 %v3362, %v3459
      %v3555 = vadd.f32 %v3363, %v3461
      %v3556 = vadd.f32 %v3364, %v3463
      %v3557 = vadd.f32 %v3365, %v3465
      %v3558 = vadd.f32 %v3366, %v3467
      %v3559 = vadd.f32 %v3367, %v3469
      %v3560 = vadd.f32 %v3368, %v3471
      %v3561 = vadd.f32 %v3369, %v3473
      %v3562 = vadd.f32 %v3370, %v3475
      %v3563 = vadd.f32 %v3371, %v3477
      %v3564 = vadd.f32 %v3372, %v3479
      %v3565 = vadd.f32 %v3373, %v3481
      %v3566 = vadd.f32 %v3374, %v3483
      %v3567 = vadd.f32 %v3375, %v3485
      %v3568 = vadd.f32 %v3376, %v3487
      %v3569 = vadd.f32 %v3377, %v3489
      %v3570 = vadd.f32 %v3378, %v3491
      %v3571 = vadd.f32 %v3379, %v3493
      %v3572 = vadd.f32 %v3380, %v3495
      %v3573 = vadd.f32 %v3381, %v3497
      %v3574 = vadd.f32 %v3382, %v3499
      %v3575 = vadd.f32 %v3383, %v3501
      %v3576 = vadd.f32 %v3384, %v3503
      %v3577 = vadd.f32 %v3385, %v3505
      %v3578 = vadd.f32 %v3386, %v3507
      %v3579 = vadd.f32 %v3387, %v3509
      %v3580 = vadd.f32 %v3388, %v3511
      %v3581 = vadd.f32 %v3389, %v3513
      %v3582 = vadd.f32 %v3390, %v3515
      %v3583 = vadd.f32 %v3391, %v3517
      %v3584 = vadd.f32 %v3392, %v3519
      %v3585 = vadd.f32 %v3393, %v3521
      %v3586 = vld [vmem:[%s2909 + $0x1] sm:$0xff]
      %v3587 = vld [vmem:[%s2909 + $0x9] sm:$0xff]
      %v3588 = vld [vmem:[%s2909 + $0x19] sm:$0xff]
      %v3589 = vld [vmem:[%s2909 + $0x21] sm:$0xff]
      %v3590 = vld [vmem:[%s2909 + $0x31] sm:$0xff]
      %v3591 = vld [vmem:[%s2909 + $0x39] sm:$0xff]
      %v3592 = vld [vmem:[%s2909 + $0x49] sm:$0xff]
      %v3593 = vld [vmem:[%s2909 + $0x51] sm:$0xff]
      %v3594 = vld [vmem:[%s2909 + $0x61] sm:$0xff]
      %v3595 = vld [vmem:[%s2909 + $0x69] sm:$0xff]
      %v3596 = vld [vmem:[%s2909 + $0x79] sm:$0xff]
      %v3597 = vld [vmem:[%s2909 + $0x81] sm:$0xff]
      %v3598 = vld [vmem:[%s2909 + $0x91] sm:$0xff]
      %v3599 = vld [vmem:[%s2909 + $0x99] sm:$0xff]
      %v3600 = vld [vmem:[%s2909 + $0xa9] sm:$0xff]
      %v3601 = vld [vmem:[%s2909 + $0xb1] sm:$0xff]
      %v3602 = vld [vmem:[%s2909 + $0xc1] sm:$0xff]
      %v3603 = vld [vmem:[%s2909 + $0xc9] sm:$0xff]
      %v3604 = vld [vmem:[%s2909 + $0xd9] sm:$0xff]
      %v3605 = vld [vmem:[%s2909 + $0xe1] sm:$0xff]
      %v3606 = vld [vmem:[%s2909 + $0xf1] sm:$0xff]
      %v3607 = vld [vmem:[%s2909 + $0xf9] sm:$0xff]
      %v3608 = vld [vmem:[%s2909 + $0x109] sm:$0xff]
      %v3609 = vld [vmem:[%s2909 + $0x111] sm:$0xff]
      %v3610 = vld [vmem:[%s2909 + $0x121] sm:$0xff]
      %v3611 = vld [vmem:[%s2909 + $0x129] sm:$0xff]
      %v3612 = vld [vmem:[%s2909 + $0x139] sm:$0xff]
      %v3613 = vld [vmem:[%s2909 + $0x141] sm:$0xff]
      %v3614 = vld [vmem:[%s2909 + $0x151] sm:$0xff]
      %v3615 = vld [vmem:[%s2909 + $0x159] sm:$0xff]
      %v3616 = vld [vmem:[%s2909 + $0x169] sm:$0xff]
      %v3617 = vld [vmem:[%s2909 + $0x171] sm:$0xff]
      %3650 = vrot.lane.b32.xlu0 %v3586, 96
      %v3651 = vpop.permute.xlu0 %3650
      %3652 = vrot.lane.b32.xlu0 %v3587, 96
      %v3653 = vpop.permute.xlu0 %3652
      %3654 = vrot.lane.b32.xlu0 %v3588, 96
      %v3655 = vpop.permute.xlu0 %3654
      %3656 = vrot.lane.b32.xlu0 %v3589, 96
      %v3657 = vpop.permute.xlu0 %3656
      %3658 = vrot.lane.b32.xlu0 %v3590, 96
      %v3659 = vpop.permute.xlu0 %3658
      %3660 = vrot.lane.b32.xlu0 %v3591, 96
      %v3661 = vpop.permute.xlu0 %3660
      %3662 = vrot.lane.b32.xlu0 %v3592, 96
      %v3663 = vpop.permute.xlu0 %3662
      %3664 = vrot.lane.b32.xlu0 %v3593, 96
      %v3665 = vpop.permute.xlu0 %3664
      %3666 = vrot.lane.b32.xlu0 %v3594, 96
      %v3667 = vpop.permute.xlu0 %3666
      %3668 = vrot.lane.b32.xlu0 %v3595, 96
      %v3669 = vpop.permute.xlu0 %3668
      %3670 = vrot.lane.b32.xlu0 %v3596, 96
      %v3671 = vpop.permute.xlu0 %3670
      %3672 = vrot.lane.b32.xlu0 %v3597, 96
      %v3673 = vpop.permute.xlu0 %3672
      %3674 = vrot.lane.b32.xlu0 %v3598, 96
      %v3675 = vpop.permute.xlu0 %3674
      %3676 = vrot.lane.b32.xlu0 %v3599, 96
      %v3677 = vpop.permute.xlu0 %3676
      %3678 = vrot.lane.b32.xlu0 %v3600, 96
      %v3679 = vpop.permute.xlu0 %3678
      %3680 = vrot.lane.b32.xlu0 %v3601, 96
      %v3681 = vpop.permute.xlu0 %3680
      %3682 = vrot.lane.b32.xlu0 %v3602, 96
      %v3683 = vpop.permute.xlu0 %3682
      %3684 = vrot.lane.b32.xlu0 %v3603, 96
      %v3685 = vpop.permute.xlu0 %3684
      %3686 = vrot.lane.b32.xlu0 %v3604, 96
      %v3687 = vpop.permute.xlu0 %3686
      %3688 = vrot.lane.b32.xlu0 %v3605, 96
      %v3689 = vpop.permute.xlu0 %3688
      %3690 = vrot.lane.b32.xlu0 %v3606, 96
      %v3691 = vpop.permute.xlu0 %3690
      %3692 = vrot.lane.b32.xlu0 %v3607, 96
      %v3693 = vpop.permute.xlu0 %3692
      %3694 = vrot.lane.b32.xlu0 %v3608, 96
      %v3695 = vpop.permute.xlu0 %3694
      %3696 = vrot.lane.b32.xlu0 %v3609, 96
      %v3697 = vpop.permute.xlu0 %3696
      %3698 = vrot.lane.b32.xlu0 %v3610, 96
      %v3699 = vpop.permute.xlu0 %3698
      %3700 = vrot.lane.b32.xlu0 %v3611, 96
      %v3701 = vpop.permute.xlu0 %3700
      %3702 = vrot.lane.b32.xlu0 %v3612, 96
      %v3703 = vpop.permute.xlu0 %3702
      %3704 = vrot.lane.b32.xlu0 %v3613, 96
      %v3705 = vpop.permute.xlu0 %3704
      %3706 = vrot.lane.b32.xlu0 %v3614, 96
      %v3707 = vpop.permute.xlu0 %3706
      %3708 = vrot.lane.b32.xlu0 %v3615, 96
      %v3709 = vpop.permute.xlu0 %3708
      %3710 = vrot.lane.b32.xlu0 %v3616, 96
      %v3711 = vpop.permute.xlu0 %3710
      %3712 = vrot.lane.b32.xlu0 %v3617, 96
      %v3713 = vpop.permute.xlu0 %3712
      %v3746 = vadd.f32 %v3554, %v3651
      %v3747 = vadd.f32 %v3555, %v3653
      %v3748 = vadd.f32 %v3556, %v3655
      %v3749 = vadd.f32 %v3557, %v3657
      %v3750 = vadd.f32 %v3558, %v3659
      %v3751 = vadd.f32 %v3559, %v3661
      %v3752 = vadd.f32 %v3560, %v3663
      %v3753 = vadd.f32 %v3561, %v3665
      %v3754 = vadd.f32 %v3562, %v3667
      %v3755 = vadd.f32 %v3563, %v3669
      %v3756 = vadd.f32 %v3564, %v3671
      %v3757 = vadd.f32 %v3565, %v3673
      %v3758 = vadd.f32 %v3566, %v3675
      %v3759 = vadd.f32 %v3567, %v3677
      %v3760 = vadd.f32 %v3568, %v3679
      %v3761 = vadd.f32 %v3569, %v3681
      %v3762 = vadd.f32 %v3570, %v3683
      %v3763 = vadd.f32 %v3571, %v3685
      %v3764 = vadd.f32 %v3572, %v3687
      %v3765 = vadd.f32 %v3573, %v3689
      %v3766 = vadd.f32 %v3574, %v3691
      %v3767 = vadd.f32 %v3575, %v3693
      %v3768 = vadd.f32 %v3576, %v3695
      %v3769 = vadd.f32 %v3577, %v3697
      %v3770 = vadd.f32 %v3578, %v3699
      %v3771 = vadd.f32 %v3579, %v3701
      %v3772 = vadd.f32 %v3580, %v3703
      %v3773 = vadd.f32 %v3581, %v3705
      %v3774 = vadd.f32 %v3582, %v3707
      %v3775 = vadd.f32 %v3583, %v3709
      %v3776 = vadd.f32 %v3584, %v3711
      %v3777 = vadd.f32 %v3585, %v3713
      %v3778 = vld [vmem:[%s2909 + $0x2] sm:$0xff]
      %v3779 = vld [vmem:[%s2909 + $0xa] sm:$0xff]
      %v3780 = vld [vmem:[%s2909 + $0x1a] sm:$0xff]
      %v3781 = vld [vmem:[%s2909 + $0x22] sm:$0xff]
      %v3782 = vld [vmem:[%s2909 + $0x32] sm:$0xff]
      %v3783 = vld [vmem:[%s2909 + $0x3a] sm:$0xff]
      %v3784 = vld [vmem:[%s2909 + $0x4a] sm:$0xff]
      %v3785 = vld [vmem:[%s2909 + $0x52] sm:$0xff]
      %v3786 = vld [vmem:[%s2909 + $0x62] sm:$0xff]
      %v3787 = vld [vmem:[%s2909 + $0x6a] sm:$0xff]
      %v3788 = vld [vmem:[%s2909 + $0x7a] sm:$0xff]
      %v3789 = vld [vmem:[%s2909 + $0x82] sm:$0xff]
      %v3790 = vld [vmem:[%s2909 + $0x92] sm:$0xff]
      %v3791 = vld [vmem:[%s2909 + $0x9a] sm:$0xff]
      %v3792 = vld [vmem:[%s2909 + $0xaa] sm:$0xff]
      %v3793 = vld [vmem:[%s2909 + $0xb2] sm:$0xff]
      %v3794 = vld [vmem:[%s2909 + $0xc2] sm:$0xff]
      %v3795 = vld [vmem:[%s2909 + $0xca] sm:$0xff]
      %v3796 = vld [vmem:[%s2909 + $0xda] sm:$0xff]
      %v3797 = vld [vmem:[%s2909 + $0xe2] sm:$0xff]
      %v3798 = vld [vmem:[%s2909 + $0xf2] sm:$0xff]
      %v3799 = vld [vmem:[%s2909 + $0xfa] sm:$0xff]
      %v3800 = vld [vmem:[%s2909 + $0x10a] sm:$0xff]
      %v3801 = vld [vmem:[%s2909 + $0x112] sm:$0xff]
      %v3802 = vld [vmem:[%s2909 + $0x122] sm:$0xff]
      %v3803 = vld [vmem:[%s2909 + $0x12a] sm:$0xff]
      %v3804 = vld [vmem:[%s2909 + $0x13a] sm:$0xff]
      %v3805 = vld [vmem:[%s2909 + $0x142] sm:$0xff]
      %v3806 = vld [vmem:[%s2909 + $0x152] sm:$0xff]
      %v3807 = vld [vmem:[%s2909 + $0x15a] sm:$0xff]
      %v3808 = vld [vmem:[%s2909 + $0x16a] sm:$0xff]
      %v3809 = vld [vmem:[%s2909 + $0x172] sm:$0xff]
      %3842 = vrot.lane.b32.xlu0 %v3778, 88
      %v3843 = vpop.permute.xlu0 %3842
      %3844 = vrot.lane.b32.xlu0 %v3779, 88
      %v3845 = vpop.permute.xlu0 %3844
      %3846 = vrot.lane.b32.xlu0 %v3780, 88
      %v3847 = vpop.permute.xlu0 %3846
      %3848 = vrot.lane.b32.xlu0 %v3781, 88
      %v3849 = vpop.permute.xlu0 %3848
      %3850 = vrot.lane.b32.xlu0 %v3782, 88
      %v3851 = vpop.permute.xlu0 %3850
      %3852 = vrot.lane.b32.xlu0 %v3783, 88
      %v3853 = vpop.permute.xlu0 %3852
      %3854 = vrot.lane.b32.xlu0 %v3784, 88
      %v3855 = vpop.permute.xlu0 %3854
      %3856 = vrot.lane.b32.xlu0 %v3785, 88
      %v3857 = vpop.permute.xlu0 %3856
      %3858 = vrot.lane.b32.xlu0 %v3786, 88
      %v3859 = vpop.permute.xlu0 %3858
      %3860 = vrot.lane.b32.xlu0 %v3787, 88
      %v3861 = vpop.permute.xlu0 %3860
      %3862 = vrot.lane.b32.xlu0 %v3788, 88
      %v3863 = vpop.permute.xlu0 %3862
      %3864 = vrot.lane.b32.xlu0 %v3789, 88
      %v3865 = vpop.permute.xlu0 %3864
      %3866 = vrot.lane.b32.xlu0 %v3790, 88
      %v3867 = vpop.permute.xlu0 %3866
      %3868 = vrot.lane.b32.xlu0 %v3791, 88
      %v3869 = vpop.permute.xlu0 %3868
      %3870 = vrot.lane.b32.xlu0 %v3792, 88
      %v3871 = vpop.permute.xlu0 %3870
      %3872 = vrot.lane.b32.xlu0 %v3793, 88
      %v3873 = vpop.permute.xlu0 %3872
      %3874 = vrot.lane.b32.xlu0 %v3794, 88
      %v3875 = vpop.permute.xlu0 %3874
      %3876 = vrot.lane.b32.xlu0 %v3795, 88
      %v3877 = vpop.permute.xlu0 %3876
      %3878 = vrot.lane.b32.xlu0 %v3796, 88
      %v3879 = vpop.permute.xlu0 %3878
      %3880 = vrot.lane.b32.xlu0 %v3797, 88
      %v3881 = vpop.permute.xlu0 %3880
      %3882 = vrot.lane.b32.xlu0 %v3798, 88
      %v3883 = vpop.permute.xlu0 %3882
      %3884 = vrot.lane.b32.xlu0 %v3799, 88
      %v3885 = vpop.permute.xlu0 %3884
      %3886 = vrot.lane.b32.xlu0 %v3800, 88
      %v3887 = vpop.permute.xlu0 %3886
      %3888 = vrot.lane.b32.xlu0 %v3801, 88
      %v3889 = vpop.permute.xlu0 %3888
      %3890 = vrot.lane.b32.xlu0 %v3802, 88
      %v3891 = vpop.permute.xlu0 %3890
      %3892 = vrot.lane.b32.xlu0 %v3803, 88
      %v3893 = vpop.permute.xlu0 %3892
      %3894 = vrot.lane.b32.xlu0 %v3804, 88
      %v3895 = vpop.permute.xlu0 %3894
      %3896 = vrot.lane.b32.xlu0 %v3805, 88
      %v3897 = vpop.permute.xlu0 %3896
      %3898 = vrot.lane.b32.xlu0 %v3806, 88
      %v3899 = vpop.permute.xlu0 %3898
      %3900 = vrot.lane.b32.xlu0 %v3807, 88
      %v3901 = vpop.permute.xlu0 %3900
      %3902 = vrot.lane.b32.xlu0 %v3808, 88
      %v3903 = vpop.permute.xlu0 %3902
      %3904 = vrot.lane.b32.xlu0 %v3809, 88
      %v3905 = vpop.permute.xlu0 %3904
      %v3938 = vadd.f32 %v3746, %v3843
      %v3939 = vadd.f32 %v3747, %v3845
      %v3940 = vadd.f32 %v3748, %v3847
      %v3941 = vadd.f32 %v3749, %v3849
      %v3942 = vadd.f32 %v3750, %v3851
      %v3943 = vadd.f32 %v3751, %v3853
      %v3944 = vadd.f32 %v3752, %v3855
      %v3945 = vadd.f32 %v3753, %v3857
      %v3946 = vadd.f32 %v3754, %v3859
      %v3947 = vadd.f32 %v3755, %v3861
      %v3948 = vadd.f32 %v3756, %v3863
      %v3949 = vadd.f32 %v3757, %v3865
      %v3950 = vadd.f32 %v3758, %v3867
      %v3951 = vadd.f32 %v3759, %v3869
      %v3952 = vadd.f32 %v3760, %v3871
      %v3953 = vadd.f32 %v3761, %v3873
      %v3954 = vadd.f32 %v3762, %v3875
      %v3955 = vadd.f32 %v3763, %v3877
      %v3956 = vadd.f32 %v3764, %v3879
      %v3957 = vadd.f32 %v3765, %v3881
      %v3958 = vadd.f32 %v3766, %v3883
      %v3959 = vadd.f32 %v3767, %v3885
      %v3960 = vadd.f32 %v3768, %v3887
      %v3961 = vadd.f32 %v3769, %v3889
      %v3962 = vadd.f32 %v3770, %v3891
      %v3963 = vadd.f32 %v3771, %v3893
      %v3964 = vadd.f32 %v3772, %v3895
      %v3965 = vadd.f32 %v3773, %v3897
      %v3966 = vadd.f32 %v3774, %v3899
      %v3967 = vadd.f32 %v3775, %v3901
      %v3968 = vadd.f32 %v3776, %v3903
      %v3969 = vadd.f32 %v3777, %v3905
      %s3970 = scalar_lea.vmem [#allocation4], 48
      %v3971 = vld [vmem:[%s3970] sm:$0xff]
      %v3972 = vld [vmem:[%s3970 + $0x8] sm:$0xff]
      %v3973 = vld [vmem:[%s3970 + $0x18] sm:$0xff]
      %v3974 = vld [vmem:[%s3970 + $0x20] sm:$0xff]
      %v3975 = vld [vmem:[%s3970 + $0x30] sm:$0xff]
      %v3976 = vld [vmem:[%s3970 + $0x38] sm:$0xff]
      %v3977 = vld [vmem:[%s3970 + $0x48] sm:$0xff]
      %v3978 = vld [vmem:[%s3970 + $0x50] sm:$0xff]
      %v3979 = vld [vmem:[%s3970 + $0x60] sm:$0xff]
      %v3980 = vld [vmem:[%s3970 + $0x68] sm:$0xff]
      %v3981 = vld [vmem:[%s3970 + $0x78] sm:$0xff]
      %v3982 = vld [vmem:[%s3970 + $0x80] sm:$0xff]
      %v3983 = vld [vmem:[%s3970 + $0x90] sm:$0xff]
      %v3984 = vld [vmem:[%s3970 + $0x98] sm:$0xff]
      %v3985 = vld [vmem:[%s3970 + $0xa8] sm:$0xff]
      %v3986 = vld [vmem:[%s3970 + $0xb0] sm:$0xff]
      %v3987 = vld [vmem:[%s3970 + $0xc0] sm:$0xff]
      %v3988 = vld [vmem:[%s3970 + $0xc8] sm:$0xff]
      %v3989 = vld [vmem:[%s3970 + $0xd8] sm:$0xff]
      %v3990 = vld [vmem:[%s3970 + $0xe0] sm:$0xff]
      %v3991 = vld [vmem:[%s3970 + $0xf0] sm:$0xff]
      %v3992 = vld [vmem:[%s3970 + $0xf8] sm:$0xff]
      %v3993 = vld [vmem:[%s3970 + $0x108] sm:$0xff]
      %v3994 = vld [vmem:[%s3970 + $0x110] sm:$0xff]
      %v3995 = vld [vmem:[%s3970 + $0x120] sm:$0xff]
      %v3996 = vld [vmem:[%s3970 + $0x128] sm:$0xff]
      %v3997 = vld [vmem:[%s3970 + $0x138] sm:$0xff]
      %v3998 = vld [vmem:[%s3970 + $0x140] sm:$0xff]
      %v3999 = vld [vmem:[%s3970 + $0x150] sm:$0xff]
      %v4000 = vld [vmem:[%s3970 + $0x158] sm:$0xff]
      %v4001 = vld [vmem:[%s3970 + $0x168] sm:$0xff]
      %v4002 = vld [vmem:[%s3970 + $0x170] sm:$0xff]
      %4035 = vrot.lane.b32.xlu0 %v3971, 80
      %v4036 = vpop.permute.xlu0 %4035
      %4037 = vrot.lane.b32.xlu0 %v3972, 80
      %v4038 = vpop.permute.xlu0 %4037
      %4039 = vrot.lane.b32.xlu0 %v3973, 80
      %v4040 = vpop.permute.xlu0 %4039
      %4041 = vrot.lane.b32.xlu0 %v3974, 80
      %v4042 = vpop.permute.xlu0 %4041
      %4043 = vrot.lane.b32.xlu0 %v3975, 80
      %v4044 = vpop.permute.xlu0 %4043
      %4045 = vrot.lane.b32.xlu0 %v3976, 80
      %v4046 = vpop.permute.xlu0 %4045
      %4047 = vrot.lane.b32.xlu0 %v3977, 80
      %v4048 = vpop.permute.xlu0 %4047
      %4049 = vrot.lane.b32.xlu0 %v3978, 80
      %v4050 = vpop.permute.xlu0 %4049
      %4051 = vrot.lane.b32.xlu0 %v3979, 80
      %v4052 = vpop.permute.xlu0 %4051
      %4053 = vrot.lane.b32.xlu0 %v3980, 80
      %v4054 = vpop.permute.xlu0 %4053
      %4055 = vrot.lane.b32.xlu0 %v3981, 80
      %v4056 = vpop.permute.xlu0 %4055
      %4057 = vrot.lane.b32.xlu0 %v3982, 80
      %v4058 = vpop.permute.xlu0 %4057
      %4059 = vrot.lane.b32.xlu0 %v3983, 80
      %v4060 = vpop.permute.xlu0 %4059
      %4061 = vrot.lane.b32.xlu0 %v3984, 80
      %v4062 = vpop.permute.xlu0 %4061
      %4063 = vrot.lane.b32.xlu0 %v3985, 80
      %v4064 = vpop.permute.xlu0 %4063
      %4065 = vrot.lane.b32.xlu0 %v3986, 80
      %v4066 = vpop.permute.xlu0 %4065
      %4067 = vrot.lane.b32.xlu0 %v3987, 80
      %v4068 = vpop.permute.xlu0 %4067
      %4069 = vrot.lane.b32.xlu0 %v3988, 80
      %v4070 = vpop.permute.xlu0 %4069
      %4071 = vrot.lane.b32.xlu0 %v3989, 80
      %v4072 = vpop.permute.xlu0 %4071
      %4073 = vrot.lane.b32.xlu0 %v3990, 80
      %v4074 = vpop.permute.xlu0 %4073
      %4075 = vrot.lane.b32.xlu0 %v3991, 80
      %v4076 = vpop.permute.xlu0 %4075
      %4077 = vrot.lane.b32.xlu0 %v3992, 80
      %v4078 = vpop.permute.xlu0 %4077
      %4079 = vrot.lane.b32.xlu0 %v3993, 80
      %v4080 = vpop.permute.xlu0 %4079
      %4081 = vrot.lane.b32.xlu0 %v3994, 80
      %v4082 = vpop.permute.xlu0 %4081
      %4083 = vrot.lane.b32.xlu0 %v3995, 80
      %v4084 = vpop.permute.xlu0 %4083
      %4085 = vrot.lane.b32.xlu0 %v3996, 80
      %v4086 = vpop.permute.xlu0 %4085
      %4087 = vrot.lane.b32.xlu0 %v3997, 80
      %v4088 = vpop.permute.xlu0 %4087
      %4089 = vrot.lane.b32.xlu0 %v3998, 80
      %v4090 = vpop.permute.xlu0 %4089
      %4091 = vrot.lane.b32.xlu0 %v3999, 80
      %v4092 = vpop.permute.xlu0 %4091
      %4093 = vrot.lane.b32.xlu0 %v4000, 80
      %v4094 = vpop.permute.xlu0 %4093
      %4095 = vrot.lane.b32.xlu0 %v4001, 80
      %v4096 = vpop.permute.xlu0 %4095
      %4097 = vrot.lane.b32.xlu0 %v4002, 80
      %v4098 = vpop.permute.xlu0 %4097
      %v4131 = vadd.f32 %v3938, %v4036
      %v4132 = vadd.f32 %v3939, %v4038
      %v4133 = vadd.f32 %v3940, %v4040
      %v4134 = vadd.f32 %v3941, %v4042
      %v4135 = vadd.f32 %v3942, %v4044
      %v4136 = vadd.f32 %v3943, %v4046
      %v4137 = vadd.f32 %v3944, %v4048
      %v4138 = vadd.f32 %v3945, %v4050
      %v4139 = vadd.f32 %v3946, %v4052
      %v4140 = vadd.f32 %v3947, %v4054
      %v4141 = vadd.f32 %v3948, %v4056
      %v4142 = vadd.f32 %v3949, %v4058
      %v4143 = vadd.f32 %v3950, %v4060
      %v4144 = vadd.f32 %v3951, %v4062
      %v4145 = vadd.f32 %v3952, %v4064
      %v4146 = vadd.f32 %v3953, %v4066
      %v4147 = vadd.f32 %v3954, %v4068
      %v4148 = vadd.f32 %v3955, %v4070
      %v4149 = vadd.f32 %v3956, %v4072
      %v4150 = vadd.f32 %v3957, %v4074
      %v4151 = vadd.f32 %v3958, %v4076
      %v4152 = vadd.f32 %v3959, %v4078
      %v4153 = vadd.f32 %v3960, %v4080
      %v4154 = vadd.f32 %v3961, %v4082
      %v4155 = vadd.f32 %v3962, %v4084
      %v4156 = vadd.f32 %v3963, %v4086
      %v4157 = vadd.f32 %v3964, %v4088
      %v4158 = vadd.f32 %v3965, %v4090
      %v4159 = vadd.f32 %v3966, %v4092
      %v4160 = vadd.f32 %v3967, %v4094
      %v4161 = vadd.f32 %v3968, %v4096
      %v4162 = vadd.f32 %v3969, %v4098
      %v4163 = vld [vmem:[%s3970 + $0x1] sm:$0xff]
      %v4164 = vld [vmem:[%s3970 + $0x9] sm:$0xff]
      %v4165 = vld [vmem:[%s3970 + $0x19] sm:$0xff]
      %v4166 = vld [vmem:[%s3970 + $0x21] sm:$0xff]
      %v4167 = vld [vmem:[%s3970 + $0x31] sm:$0xff]
      %v4168 = vld [vmem:[%s3970 + $0x39] sm:$0xff]
      %v4169 = vld [vmem:[%s3970 + $0x49] sm:$0xff]
      %v4170 = vld [vmem:[%s3970 + $0x51] sm:$0xff]
      %v4171 = vld [vmem:[%s3970 + $0x61] sm:$0xff]
      %v4172 = vld [vmem:[%s3970 + $0x69] sm:$0xff]
      %v4173 = vld [vmem:[%s3970 + $0x79] sm:$0xff]
      %v4174 = vld [vmem:[%s3970 + $0x81] sm:$0xff]
      %v4175 = vld [vmem:[%s3970 + $0x91] sm:$0xff]
      %v4176 = vld [vmem:[%s3970 + $0x99] sm:$0xff]
      %v4177 = vld [vmem:[%s3970 + $0xa9] sm:$0xff]
      %v4178 = vld [vmem:[%s3970 + $0xb1] sm:$0xff]
      %v4179 = vld [vmem:[%s3970 + $0xc1] sm:$0xff]
      %v4180 = vld [vmem:[%s3970 + $0xc9] sm:$0xff]
      %v4181 = vld [vmem:[%s3970 + $0xd9] sm:$0xff]
      %v4182 = vld [vmem:[%s3970 + $0xe1] sm:$0xff]
      %v4183 = vld [vmem:[%s3970 + $0xf1] sm:$0xff]
      %v4184 = vld [vmem:[%s3970 + $0xf9] sm:$0xff]
      %v4185 = vld [vmem:[%s3970 + $0x109] sm:$0xff]
      %v4186 = vld [vmem:[%s3970 + $0x111] sm:$0xff]
      %v4187 = vld [vmem:[%s3970 + $0x121] sm:$0xff]
      %v4188 = vld [vmem:[%s3970 + $0x129] sm:$0xff]
      %v4189 = vld [vmem:[%s3970 + $0x139] sm:$0xff]
      %v4190 = vld [vmem:[%s3970 + $0x141] sm:$0xff]
      %v4191 = vld [vmem:[%s3970 + $0x151] sm:$0xff]
      %v4192 = vld [vmem:[%s3970 + $0x159] sm:$0xff]
      %v4193 = vld [vmem:[%s3970 + $0x169] sm:$0xff]
      %v4194 = vld [vmem:[%s3970 + $0x171] sm:$0xff]
      %4227 = vrot.lane.b32.xlu0 %v4163, 72
      %v4228 = vpop.permute.xlu0 %4227
      %4229 = vrot.lane.b32.xlu0 %v4164, 72
      %v4230 = vpop.permute.xlu0 %4229
      %4231 = vrot.lane.b32.xlu0 %v4165, 72
      %v4232 = vpop.permute.xlu0 %4231
      %4233 = vrot.lane.b32.xlu0 %v4166, 72
      %v4234 = vpop.permute.xlu0 %4233
      %4235 = vrot.lane.b32.xlu0 %v4167, 72
      %v4236 = vpop.permute.xlu0 %4235
      %4237 = vrot.lane.b32.xlu0 %v4168, 72
      %v4238 = vpop.permute.xlu0 %4237
      %4239 = vrot.lane.b32.xlu0 %v4169, 72
      %v4240 = vpop.permute.xlu0 %4239
      %4241 = vrot.lane.b32.xlu0 %v4170, 72
      %v4242 = vpop.permute.xlu0 %4241
      %4243 = vrot.lane.b32.xlu0 %v4171, 72
      %v4244 = vpop.permute.xlu0 %4243
      %4245 = vrot.lane.b32.xlu0 %v4172, 72
      %v4246 = vpop.permute.xlu0 %4245
      %4247 = vrot.lane.b32.xlu0 %v4173, 72
      %v4248 = vpop.permute.xlu0 %4247
      %4249 = vrot.lane.b32.xlu0 %v4174, 72
      %v4250 = vpop.permute.xlu0 %4249
      %4251 = vrot.lane.b32.xlu0 %v4175, 72
      %v4252 = vpop.permute.xlu0 %4251
      %4253 = vrot.lane.b32.xlu0 %v4176, 72
      %v4254 = vpop.permute.xlu0 %4253
      %4255 = vrot.lane.b32.xlu0 %v4177, 72
      %v4256 = vpop.permute.xlu0 %4255
      %4257 = vrot.lane.b32.xlu0 %v4178, 72
      %v4258 = vpop.permute.xlu0 %4257
      %4259 = vrot.lane.b32.xlu0 %v4179, 72
      %v4260 = vpop.permute.xlu0 %4259
      %4261 = vrot.lane.b32.xlu0 %v4180, 72
      %v4262 = vpop.permute.xlu0 %4261
      %4263 = vrot.lane.b32.xlu0 %v4181, 72
      %v4264 = vpop.permute.xlu0 %4263
      %4265 = vrot.lane.b32.xlu0 %v4182, 72
      %v4266 = vpop.permute.xlu0 %4265
      %4267 = vrot.lane.b32.xlu0 %v4183, 72
      %v4268 = vpop.permute.xlu0 %4267
      %4269 = vrot.lane.b32.xlu0 %v4184, 72
      %v4270 = vpop.permute.xlu0 %4269
      %4271 = vrot.lane.b32.xlu0 %v4185, 72
      %v4272 = vpop.permute.xlu0 %4271
      %4273 = vrot.lane.b32.xlu0 %v4186, 72
      %v4274 = vpop.permute.xlu0 %4273
      %4275 = vrot.lane.b32.xlu0 %v4187, 72
      %v4276 = vpop.permute.xlu0 %4275
      %4277 = vrot.lane.b32.xlu0 %v4188, 72
      %v4278 = vpop.permute.xlu0 %4277
      %4279 = vrot.lane.b32.xlu0 %v4189, 72
      %v4280 = vpop.permute.xlu0 %4279
      %4281 = vrot.lane.b32.xlu0 %v4190, 72
      %v4282 = vpop.permute.xlu0 %4281
      %4283 = vrot.lane.b32.xlu0 %v4191, 72
      %v4284 = vpop.permute.xlu0 %4283
      %4285 = vrot.lane.b32.xlu0 %v4192, 72
      %v4286 = vpop.permute.xlu0 %4285
      %4287 = vrot.lane.b32.xlu0 %v4193, 72
      %v4288 = vpop.permute.xlu0 %4287
      %4289 = vrot.lane.b32.xlu0 %v4194, 72
      %v4290 = vpop.permute.xlu0 %4289
      %v4323 = vadd.f32 %v4131, %v4228
      %v4324 = vadd.f32 %v4132, %v4230
      %v4325 = vadd.f32 %v4133, %v4232
      %v4326 = vadd.f32 %v4134, %v4234
      %v4327 = vadd.f32 %v4135, %v4236
      %v4328 = vadd.f32 %v4136, %v4238
      %v4329 = vadd.f32 %v4137, %v4240
      %v4330 = vadd.f32 %v4138, %v4242
      %v4331 = vadd.f32 %v4139, %v4244
      %v4332 = vadd.f32 %v4140, %v4246
      %v4333 = vadd.f32 %v4141, %v4248
      %v4334 = vadd.f32 %v4142, %v4250
      %v4335 = vadd.f32 %v4143, %v4252
      %v4336 = vadd.f32 %v4144, %v4254
      %v4337 = vadd.f32 %v4145, %v4256
      %v4338 = vadd.f32 %v4146, %v4258
      %v4339 = vadd.f32 %v4147, %v4260
      %v4340 = vadd.f32 %v4148, %v4262
      %v4341 = vadd.f32 %v4149, %v4264
      %v4342 = vadd.f32 %v4150, %v4266
      %v4343 = vadd.f32 %v4151, %v4268
      %v4344 = vadd.f32 %v4152, %v4270
      %v4345 = vadd.f32 %v4153, %v4272
      %v4346 = vadd.f32 %v4154, %v4274
      %v4347 = vadd.f32 %v4155, %v4276
      %v4348 = vadd.f32 %v4156, %v4278
      %v4349 = vadd.f32 %v4157, %v4280
      %v4350 = vadd.f32 %v4158, %v4282
      %v4351 = vadd.f32 %v4159, %v4284
      %v4352 = vadd.f32 %v4160, %v4286
      %v4353 = vadd.f32 %v4161, %v4288
      %v4354 = vadd.f32 %v4162, %v4290
      %v4355 = vld [vmem:[%s3970 + $0x2] sm:$0xff]
      %v4356 = vld [vmem:[%s3970 + $0xa] sm:$0xff]
      %v4357 = vld [vmem:[%s3970 + $0x1a] sm:$0xff]
      %v4358 = vld [vmem:[%s3970 + $0x22] sm:$0xff]
      %v4359 = vld [vmem:[%s3970 + $0x32] sm:$0xff]
      %v4360 = vld [vmem:[%s3970 + $0x3a] sm:$0xff]
      %v4361 = vld [vmem:[%s3970 + $0x4a] sm:$0xff]
      %v4362 = vld [vmem:[%s3970 + $0x52] sm:$0xff]
      %v4363 = vld [vmem:[%s3970 + $0x62] sm:$0xff]
      %v4364 = vld [vmem:[%s3970 + $0x6a] sm:$0xff]
      %v4365 = vld [vmem:[%s3970 + $0x7a] sm:$0xff]
      %v4366 = vld [vmem:[%s3970 + $0x82] sm:$0xff]
      %v4367 = vld [vmem:[%s3970 + $0x92] sm:$0xff]
      %v4368 = vld [vmem:[%s3970 + $0x9a] sm:$0xff]
      %v4369 = vld [vmem:[%s3970 + $0xaa] sm:$0xff]
      %v4370 = vld [vmem:[%s3970 + $0xb2] sm:$0xff]
      %v4371 = vld [vmem:[%s3970 + $0xc2] sm:$0xff]
      %v4372 = vld [vmem:[%s3970 + $0xca] sm:$0xff]
      %v4373 = vld [vmem:[%s3970 + $0xda] sm:$0xff]
      %v4374 = vld [vmem:[%s3970 + $0xe2] sm:$0xff]
      %v4375 = vld [vmem:[%s3970 + $0xf2] sm:$0xff]
      %v4376 = vld [vmem:[%s3970 + $0xfa] sm:$0xff]
      %v4377 = vld [vmem:[%s3970 + $0x10a] sm:$0xff]
      %v4378 = vld [vmem:[%s3970 + $0x112] sm:$0xff]
      %v4379 = vld [vmem:[%s3970 + $0x122] sm:$0xff]
      %v4380 = vld [vmem:[%s3970 + $0x12a] sm:$0xff]
      %v4381 = vld [vmem:[%s3970 + $0x13a] sm:$0xff]
      %v4382 = vld [vmem:[%s3970 + $0x142] sm:$0xff]
      %v4383 = vld [vmem:[%s3970 + $0x152] sm:$0xff]
      %v4384 = vld [vmem:[%s3970 + $0x15a] sm:$0xff]
      %v4385 = vld [vmem:[%s3970 + $0x16a] sm:$0xff]
      %v4386 = vld [vmem:[%s3970 + $0x172] sm:$0xff]
      %4419 = vrot.lane.b32.xlu0 %v4355, 64
      %v4420 = vpop.permute.xlu0 %4419
      %4421 = vrot.lane.b32.xlu0 %v4356, 64
      %v4422 = vpop.permute.xlu0 %4421
      %4423 = vrot.lane.b32.xlu0 %v4357, 64
      %v4424 = vpop.permute.xlu0 %4423
      %4425 = vrot.lane.b32.xlu0 %v4358, 64
      %v4426 = vpop.permute.xlu0 %4425
      %4427 = vrot.lane.b32.xlu0 %v4359, 64
      %v4428 = vpop.permute.xlu0 %4427
      %4429 = vrot.lane.b32.xlu0 %v4360, 64
      %v4430 = vpop.permute.xlu0 %4429
      %4431 = vrot.lane.b32.xlu0 %v4361, 64
      %v4432 = vpop.permute.xlu0 %4431
      %4433 = vrot.lane.b32.xlu0 %v4362, 64
      %v4434 = vpop.permute.xlu0 %4433
      %4435 = vrot.lane.b32.xlu0 %v4363, 64
      %v4436 = vpop.permute.xlu0 %4435
      %4437 = vrot.lane.b32.xlu0 %v4364, 64
      %v4438 = vpop.permute.xlu0 %4437
      %4439 = vrot.lane.b32.xlu0 %v4365, 64
      %v4440 = vpop.permute.xlu0 %4439
      %4441 = vrot.lane.b32.xlu0 %v4366, 64
      %v4442 = vpop.permute.xlu0 %4441
      %4443 = vrot.lane.b32.xlu0 %v4367, 64
      %v4444 = vpop.permute.xlu0 %4443
      %4445 = vrot.lane.b32.xlu0 %v4368, 64
      %v4446 = vpop.permute.xlu0 %4445
      %4447 = vrot.lane.b32.xlu0 %v4369, 64
      %v4448 = vpop.permute.xlu0 %4447
      %4449 = vrot.lane.b32.xlu0 %v4370, 64
      %v4450 = vpop.permute.xlu0 %4449
      %4451 = vrot.lane.b32.xlu0 %v4371, 64
      %v4452 = vpop.permute.xlu0 %4451
      %4453 = vrot.lane.b32.xlu0 %v4372, 64
      %v4454 = vpop.permute.xlu0 %4453
      %4455 = vrot.lane.b32.xlu0 %v4373, 64
      %v4456 = vpop.permute.xlu0 %4455
      %4457 = vrot.lane.b32.xlu0 %v4374, 64
      %v4458 = vpop.permute.xlu0 %4457
      %4459 = vrot.lane.b32.xlu0 %v4375, 64
      %v4460 = vpop.permute.xlu0 %4459
      %4461 = vrot.lane.b32.xlu0 %v4376, 64
      %v4462 = vpop.permute.xlu0 %4461
      %4463 = vrot.lane.b32.xlu0 %v4377, 64
      %v4464 = vpop.permute.xlu0 %4463
      %4465 = vrot.lane.b32.xlu0 %v4378, 64
      %v4466 = vpop.permute.xlu0 %4465
      %4467 = vrot.lane.b32.xlu0 %v4379, 64
      %v4468 = vpop.permute.xlu0 %4467
      %4469 = vrot.lane.b32.xlu0 %v4380, 64
      %v4470 = vpop.permute.xlu0 %4469
      %4471 = vrot.lane.b32.xlu0 %v4381, 64
      %v4472 = vpop.permute.xlu0 %4471
      %4473 = vrot.lane.b32.xlu0 %v4382, 64
      %v4474 = vpop.permute.xlu0 %4473
      %4475 = vrot.lane.b32.xlu0 %v4383, 64
      %v4476 = vpop.permute.xlu0 %4475
      %4477 = vrot.lane.b32.xlu0 %v4384, 64
      %v4478 = vpop.permute.xlu0 %4477
      %4479 = vrot.lane.b32.xlu0 %v4385, 64
      %v4480 = vpop.permute.xlu0 %4479
      %4481 = vrot.lane.b32.xlu0 %v4386, 64
      %v4482 = vpop.permute.xlu0 %4481
      %v4515 = vadd.f32 %v4323, %v4420
      %v4516 = vadd.f32 %v4324, %v4422
      %v4517 = vadd.f32 %v4325, %v4424
      %v4518 = vadd.f32 %v4326, %v4426
      %v4519 = vadd.f32 %v4327, %v4428
      %v4520 = vadd.f32 %v4328, %v4430
      %v4521 = vadd.f32 %v4329, %v4432
      %v4522 = vadd.f32 %v4330, %v4434
      %v4523 = vadd.f32 %v4331, %v4436
      %v4524 = vadd.f32 %v4332, %v4438
      %v4525 = vadd.f32 %v4333, %v4440
      %v4526 = vadd.f32 %v4334, %v4442
      %v4527 = vadd.f32 %v4335, %v4444
      %v4528 = vadd.f32 %v4336, %v4446
      %v4529 = vadd.f32 %v4337, %v4448
      %v4530 = vadd.f32 %v4338, %v4450
      %v4531 = vadd.f32 %v4339, %v4452
      %v4532 = vadd.f32 %v4340, %v4454
      %v4533 = vadd.f32 %v4341, %v4456
      %v4534 = vadd.f32 %v4342, %v4458
      %v4535 = vadd.f32 %v4343, %v4460
      %v4536 = vadd.f32 %v4344, %v4462
      %v4537 = vadd.f32 %v4345, %v4464
      %v4538 = vadd.f32 %v4346, %v4466
      %v4539 = vadd.f32 %v4347, %v4468
      %v4540 = vadd.f32 %v4348, %v4470
      %v4541 = vadd.f32 %v4349, %v4472
      %v4542 = vadd.f32 %v4350, %v4474
      %v4543 = vadd.f32 %v4351, %v4476
      %v4544 = vadd.f32 %v4352, %v4478
      %v4545 = vadd.f32 %v4353, %v4480
      %v4546 = vadd.f32 %v4354, %v4482
      %v4547 = vadd.f32 %v4515, 1.0
      %v4548 = vadd.f32 %v4516, 1.0
      %v4549 = vadd.f32 %v4517, 1.0
      %v4550 = vadd.f32 %v4518, 1.0
      %v4551 = vadd.f32 %v4519, 1.0
      %v4552 = vadd.f32 %v4520, 1.0
      %v4553 = vadd.f32 %v4521, 1.0
      %v4554 = vadd.f32 %v4522, 1.0
      %v4555 = vadd.f32 %v4523, 1.0
      %v4556 = vadd.f32 %v4524, 1.0
      %v4557 = vadd.f32 %v4525, 1.0
      %v4558 = vadd.f32 %v4526, 1.0
      %v4559 = vadd.f32 %v4527, 1.0
      %v4560 = vadd.f32 %v4528, 1.0
      %v4561 = vadd.f32 %v4529, 1.0
      %v4562 = vadd.f32 %v4530, 1.0
      %v4563 = vadd.f32 %v4531, 1.0
      %v4564 = vadd.f32 %v4532, 1.0
      %v4565 = vadd.f32 %v4533, 1.0
      %v4566 = vadd.f32 %v4534, 1.0
      %v4567 = vadd.f32 %v4535, 1.0
      %v4568 = vadd.f32 %v4536, 1.0
      %v4569 = vadd.f32 %v4537, 1.0
      %v4570 = vadd.f32 %v4538, 1.0
      %v4571 = vadd.f32 %v4539, 1.0
      %v4572 = vadd.f32 %v4540, 1.0
      %v4573 = vadd.f32 %v4541, 1.0
      %v4574 = vadd.f32 %v4542, 1.0
      %v4575 = vadd.f32 %v4543, 1.0
      %v4576 = vadd.f32 %v4544, 1.0
      %v4577 = vadd.f32 %v4545, 1.0
      %v4578 = vadd.f32 %v4546, 1.0
      %v4579 = vmul.f32 %v2877, %v4547
      %v4580 = vmul.f32 %v2878, %v4548
      %v4581 = vmul.f32 %v2879, %v4549
      %v4582 = vmul.f32 %v2880, %v4550
      %v4583 = vmul.f32 %v2881, %v4551
      %v4584 = vmul.f32 %v2882, %v4552
      %v4585 = vmul.f32 %v2883, %v4553
      %v4586 = vmul.f32 %v2884, %v4554
      %v4587 = vmul.f32 %v2885, %v4555
      %v4588 = vmul.f32 %v2886, %v4556
      %v4589 = vmul.f32 %v2887, %v4557
      %v4590 = vmul.f32 %v2888, %v4558
      %v4591 = vmul.f32 %v2889, %v4559
      %v4592 = vmul.f32 %v2890, %v4560
      %v4593 = vmul.f32 %v2891, %v4561
      %v4594 = vmul.f32 %v2892, %v4562
      %v4595 = vmul.f32 %v2893, %v4563
      %v4596 = vmul.f32 %v2894, %v4564
      %v4597 = vmul.f32 %v2895, %v4565
      %v4598 = vmul.f32 %v2896, %v4566
      %v4599 = vmul.f32 %v2897, %v4567
      %v4600 = vmul.f32 %v2898, %v4568
      %v4601 = vmul.f32 %v2899, %v4569
      %v4602 = vmul.f32 %v2900, %v4570
      %v4603 = vmul.f32 %v2901, %v4571
      %v4604 = vmul.f32 %v2902, %v4572
      %v4605 = vmul.f32 %v2903, %v4573
      %v4606 = vmul.f32 %v2904, %v4574
      %v4607 = vmul.f32 %v2905, %v4575
      %v4608 = vmul.f32 %v2906, %v4576
      %v4609 = vmul.f32 %v2907, %v4577
      %v4610 = vmul.f32 %v2908, %v4578
      %4643 = vrot.lane.b32.xlu0 %v4515, 124
      %v4644 = vpop.permute.xlu0 %4643
      %4645 = vrot.lane.b32.xlu0 %v4516, 124
      %v4646 = vpop.permute.xlu0 %4645
      %4647 = vrot.lane.b32.xlu0 %v4517, 124
      %v4648 = vpop.permute.xlu0 %4647
      %4649 = vrot.lane.b32.xlu0 %v4518, 124
      %v4650 = vpop.permute.xlu0 %4649
      %4651 = vrot.lane.b32.xlu0 %v4519, 124
      %v4652 = vpop.permute.xlu0 %4651
      %4653 = vrot.lane.b32.xlu0 %v4520, 124
      %v4654 = vpop.permute.xlu0 %4653
      %4655 = vrot.lane.b32.xlu0 %v4521, 124
      %v4656 = vpop.permute.xlu0 %4655
      %4657 = vrot.lane.b32.xlu0 %v4522, 124
      %v4658 = vpop.permute.xlu0 %4657
      %4659 = vrot.lane.b32.xlu0 %v4523, 124
      %v4660 = vpop.permute.xlu0 %4659
      %4661 = vrot.lane.b32.xlu0 %v4524, 124
      %v4662 = vpop.permute.xlu0 %4661
      %4663 = vrot.lane.b32.xlu0 %v4525, 124
      %v4664 = vpop.permute.xlu0 %4663
      %4665 = vrot.lane.b32.xlu0 %v4526, 124
      %v4666 = vpop.permute.xlu0 %4665
      %4667 = vrot.lane.b32.xlu0 %v4527, 124
      %v4668 = vpop.permute.xlu0 %4667
      %4669 = vrot.lane.b32.xlu0 %v4528, 124
      %v4670 = vpop.permute.xlu0 %4669
      %4671 = vrot.lane.b32.xlu0 %v4529, 124
      %v4672 = vpop.permute.xlu0 %4671
      %4673 = vrot.lane.b32.xlu0 %v4530, 124
      %v4674 = vpop.permute.xlu0 %4673
      %4675 = vrot.lane.b32.xlu0 %v4531, 124
      %v4676 = vpop.permute.xlu0 %4675
      %4677 = vrot.lane.b32.xlu0 %v4532, 124
      %v4678 = vpop.permute.xlu0 %4677
      %4679 = vrot.lane.b32.xlu0 %v4533, 124
      %v4680 = vpop.permute.xlu0 %4679
      %4681 = vrot.lane.b32.xlu0 %v4534, 124
      %v4682 = vpop.permute.xlu0 %4681
      %4683 = vrot.lane.b32.xlu0 %v4535, 124
      %v4684 = vpop.permute.xlu0 %4683
      %4685 = vrot.lane.b32.xlu0 %v4536, 124
      %v4686 = vpop.permute.xlu0 %4685
      %4687 = vrot.lane.b32.xlu0 %v4537, 124
      %v4688 = vpop.permute.xlu0 %4687
      %4689 = vrot.lane.b32.xlu0 %v4538, 124
      %v4690 = vpop.permute.xlu0 %4689
      %4691 = vrot.lane.b32.xlu0 %v4539, 124
      %v4692 = vpop.permute.xlu0 %4691
      %4693 = vrot.lane.b32.xlu0 %v4540, 124
      %v4694 = vpop.permute.xlu0 %4693
      %4695 = vrot.lane.b32.xlu0 %v4541, 124
      %v4696 = vpop.permute.xlu0 %4695
      %4697 = vrot.lane.b32.xlu0 %v4542, 124
      %v4698 = vpop.permute.xlu0 %4697
      %4699 = vrot.lane.b32.xlu0 %v4543, 124
      %v4700 = vpop.permute.xlu0 %4699
      %4701 = vrot.lane.b32.xlu0 %v4544, 124
      %v4702 = vpop.permute.xlu0 %4701
      %4703 = vrot.lane.b32.xlu0 %v4545, 124
      %v4704 = vpop.permute.xlu0 %4703
      %4705 = vrot.lane.b32.xlu0 %v4546, 124
      %v4706 = vpop.permute.xlu0 %4705
      %v4739 = vadd.f32 %v4579, %v4644
      %v4740 = vadd.f32 %v4580, %v4646
      %v4741 = vadd.f32 %v4581, %v4648
      %v4742 = vadd.f32 %v4582, %v4650
      %v4743 = vadd.f32 %v4583, %v4652
      %v4744 = vadd.f32 %v4584, %v4654
      %v4745 = vadd.f32 %v4585, %v4656
      %v4746 = vadd.f32 %v4586, %v4658
      %v4747 = vadd.f32 %v4587, %v4660
      %v4748 = vadd.f32 %v4588, %v4662
      %v4749 = vadd.f32 %v4589, %v4664
      %v4750 = vadd.f32 %v4590, %v4666
      %v4751 = vadd.f32 %v4591, %v4668
      %v4752 = vadd.f32 %v4592, %v4670
      %v4753 = vadd.f32 %v4593, %v4672
      %v4754 = vadd.f32 %v4594, %v4674
      %v4755 = vadd.f32 %v4595, %v4676
      %v4756 = vadd.f32 %v4596, %v4678
      %v4757 = vadd.f32 %v4597, %v4680
      %v4758 = vadd.f32 %v4598, %v4682
      %v4759 = vadd.f32 %v4599, %v4684
      %v4760 = vadd.f32 %v4600, %v4686
      %v4761 = vadd.f32 %v4601, %v4688
      %v4762 = vadd.f32 %v4602, %v4690
      %v4763 = vadd.f32 %v4603, %v4692
      %v4764 = vadd.f32 %v4604, %v4694
      %v4765 = vadd.f32 %v4605, %v4696
      %v4766 = vadd.f32 %v4606, %v4698
      %v4767 = vadd.f32 %v4607, %v4700
      %v4768 = vadd.f32 %v4608, %v4702
      %v4769 = vadd.f32 %v4609, %v4704
      %v4770 = vadd.f32 %v4610, %v4706
      %vm4771 = vcmp.gt.f32.partialorder %v4739, 0.0
      %vm4772 = vcmp.gt.f32.partialorder %v4740, 0.0
      %vm4773 = vcmp.gt.f32.partialorder %v4741, 0.0
      %vm4774 = vcmp.gt.f32.partialorder %v4742, 0.0
      %vm4775 = vcmp.gt.f32.partialorder %v4743, 0.0
      %vm4776 = vcmp.gt.f32.partialorder %v4744, 0.0
      %vm4777 = vcmp.gt.f32.partialorder %v4745, 0.0
      %vm4778 = vcmp.gt.f32.partialorder %v4746, 0.0
      %vm4779 = vcmp.gt.f32.partialorder %v4747, 0.0
      %vm4780 = vcmp.gt.f32.partialorder %v4748, 0.0
      %vm4781 = vcmp.gt.f32.partialorder %v4749, 0.0
      %vm4782 = vcmp.gt.f32.partialorder %v4750, 0.0
      %vm4783 = vcmp.gt.f32.partialorder %v4751, 0.0
      %vm4784 = vcmp.gt.f32.partialorder %v4752, 0.0
      %vm4785 = vcmp.gt.f32.partialorder %v4753, 0.0
      %vm4786 = vcmp.gt.f32.partialorder %v4754, 0.0
      %vm4787 = vcmp.gt.f32.partialorder %v4755, 0.0
      %vm4788 = vcmp.gt.f32.partialorder %v4756, 0.0
      %vm4789 = vcmp.gt.f32.partialorder %v4757, 0.0
      %vm4790 = vcmp.gt.f32.partialorder %v4758, 0.0
      %vm4791 = vcmp.gt.f32.partialorder %v4759, 0.0
      %vm4792 = vcmp.gt.f32.partialorder %v4760, 0.0
      %vm4793 = vcmp.gt.f32.partialorder %v4761, 0.0
      %vm4794 = vcmp.gt.f32.partialorder %v4762, 0.0
      %vm4795 = vcmp.gt.f32.partialorder %v4763, 0.0
      %vm4796 = vcmp.gt.f32.partialorder %v4764, 0.0
      %vm4797 = vcmp.gt.f32.partialorder %v4765, 0.0
      %vm4798 = vcmp.gt.f32.partialorder %v4766, 0.0
      %vm4799 = vcmp.gt.f32.partialorder %v4767, 0.0
      %vm4800 = vcmp.gt.f32.partialorder %v4768, 0.0
      %vm4801 = vcmp.gt.f32.partialorder %v4769, 0.0
      %vm4802 = vcmp.gt.f32.partialorder %v4770, 0.0
      %v4803 = vmul.f32 %v4739, 0.2
      %v4804 = vmul.f32 %v4740, 0.2
      %v4805 = vmul.f32 %v4741, 0.2
      %v4806 = vmul.f32 %v4742, 0.2
      %v4807 = vmul.f32 %v4743, 0.2
      %v4808 = vmul.f32 %v4744, 0.2
      %v4809 = vmul.f32 %v4745, 0.2
      %v4810 = vmul.f32 %v4746, 0.2
      %v4811 = vmul.f32 %v4747, 0.2
      %v4812 = vmul.f32 %v4748, 0.2
      %v4813 = vmul.f32 %v4749, 0.2
      %v4814 = vmul.f32 %v4750, 0.2
      %v4815 = vmul.f32 %v4751, 0.2
      %v4816 = vmul.f32 %v4752, 0.2
      %v4817 = vmul.f32 %v4753, 0.2
      %v4818 = vmul.f32 %v4754, 0.2
      %v4819 = vmul.f32 %v4755, 0.2
      %v4820 = vmul.f32 %v4756, 0.2
      %v4821 = vmul.f32 %v4757, 0.2
      %v4822 = vmul.f32 %v4758, 0.2
      %v4823 = vmul.f32 %v4759, 0.2
      %v4824 = vmul.f32 %v4760, 0.2
      %v4825 = vmul.f32 %v4761, 0.2
      %v4826 = vmul.f32 %v4762, 0.2
      %v4827 = vmul.f32 %v4763, 0.2
      %v4828 = vmul.f32 %v4764, 0.2
      %v4829 = vmul.f32 %v4765, 0.2
      %v4830 = vmul.f32 %v4766, 0.2
      %v4831 = vmul.f32 %v4767, 0.2
      %v4832 = vmul.f32 %v4768, 0.2
      %v4833 = vmul.f32 %v4769, 0.2
      %v4834 = vmul.f32 %v4770, 0.2
      %v4835 = vsel %vm4771, %v4739, %v4803
      %v4836 = vsel %vm4772, %v4740, %v4804
      %v4837 = vsel %vm4773, %v4741, %v4805
      %v4838 = vsel %vm4774, %v4742, %v4806
      %v4839 = vsel %vm4775, %v4743, %v4807
      %v4840 = vsel %vm4776, %v4744, %v4808
      %v4841 = vsel %vm4777, %v4745, %v4809
      %v4842 = vsel %vm4778, %v4746, %v4810
      %v4843 = vsel %vm4779, %v4747, %v4811
      %v4844 = vsel %vm4780, %v4748, %v4812
      %v4845 = vsel %vm4781, %v4749, %v4813
      %v4846 = vsel %vm4782, %v4750, %v4814
      %v4847 = vsel %vm4783, %v4751, %v4815
      %v4848 = vsel %vm4784, %v4752, %v4816
      %v4849 = vsel %vm4785, %v4753, %v4817
      %v4850 = vsel %vm4786, %v4754, %v4818
      %v4851 = vsel %vm4787, %v4755, %v4819
      %v4852 = vsel %vm4788, %v4756, %v4820
      %v4853 = vsel %vm4789, %v4757, %v4821
      %v4854 = vsel %vm4790, %v4758, %v4822
      %v4855 = vsel %vm4791, %v4759, %v4823
      %v4856 = vsel %vm4792, %v4760, %v4824
      %v4857 = vsel %vm4793, %v4761, %v4825
      %v4858 = vsel %vm4794, %v4762, %v4826
      %v4859 = vsel %vm4795, %v4763, %v4827
      %v4860 = vsel %vm4796, %v4764, %v4828
      %v4861 = vsel %vm4797, %v4765, %v4829
      %v4862 = vsel %vm4798, %v4766, %v4830
      %v4863 = vsel %vm4799, %v4767, %v4831
      %v4864 = vsel %vm4800, %v4768, %v4832
      %v4865 = vsel %vm4801, %v4769, %v4833
      %v4866 = vsel %vm4802, %v4770, %v4834
      %s4867 = scalar_lea.vmem [#allocation5], 24
      %4868 = vst.msk [vmem:[%s4867 + $0x1] sm:$0xff] %vm358, %v4835
      %4869 = vst.msk [vmem:[%s4867 + $0x9] sm:$0xff] %vm358, %v4836
      %4870 = vst.msk [vmem:[%s4867 + $0x19] sm:$0xff] %vm358, %v4837
      %4871 = vst.msk [vmem:[%s4867 + $0x21] sm:$0xff] %vm358, %v4838
      %4872 = vst.msk [vmem:[%s4867 + $0x31] sm:$0xff] %vm358, %v4839
      %4873 = vst.msk [vmem:[%s4867 + $0x39] sm:$0xff] %vm358, %v4840
      %4874 = vst.msk [vmem:[%s4867 + $0x49] sm:$0xff] %vm358, %v4841
      %4875 = vst.msk [vmem:[%s4867 + $0x51] sm:$0xff] %vm358, %v4842
      %4876 = vst.msk [vmem:[%s4867 + $0x61] sm:$0xff] %vm358, %v4843
      %4877 = vst.msk [vmem:[%s4867 + $0x69] sm:$0xff] %vm358, %v4844
      %4878 = vst.msk [vmem:[%s4867 + $0x79] sm:$0xff] %vm358, %v4845
      %4879 = vst.msk [vmem:[%s4867 + $0x81] sm:$0xff] %vm358, %v4846
      %4880 = vst.msk [vmem:[%s4867 + $0x91] sm:$0xff] %vm358, %v4847
      %4881 = vst.msk [vmem:[%s4867 + $0x99] sm:$0xff] %vm358, %v4848
      %4882 = vst.msk [vmem:[%s4867 + $0xa9] sm:$0xff] %vm358, %v4849
      %4883 = vst.msk [vmem:[%s4867 + $0xb1] sm:$0xff] %vm358, %v4850
      %4884 = vst.msk [vmem:[%s4867 + $0xc1] sm:$0xff] %vm358, %v4851
      %4885 = vst.msk [vmem:[%s4867 + $0xc9] sm:$0xff] %vm358, %v4852
      %4886 = vst.msk [vmem:[%s4867 + $0xd9] sm:$0xff] %vm358, %v4853
      %4887 = vst.msk [vmem:[%s4867 + $0xe1] sm:$0xff] %vm358, %v4854
      %4888 = vst.msk [vmem:[%s4867 + $0xf1] sm:$0xff] %vm358, %v4855
      %4889 = vst.msk [vmem:[%s4867 + $0xf9] sm:$0xff] %vm358, %v4856
      %4890 = vst.msk [vmem:[%s4867 + $0x109] sm:$0xff] %vm358, %v4857
      %4891 = vst.msk [vmem:[%s4867 + $0x111] sm:$0xff] %vm358, %v4858
      %4892 = vst.msk [vmem:[%s4867 + $0x121] sm:$0xff] %vm358, %v4859
      %4893 = vst.msk [vmem:[%s4867 + $0x129] sm:$0xff] %vm358, %v4860
      %4894 = vst.msk [vmem:[%s4867 + $0x139] sm:$0xff] %vm358, %v4861
      %4895 = vst.msk [vmem:[%s4867 + $0x141] sm:$0xff] %vm358, %v4862
      %4896 = vst.msk [vmem:[%s4867 + $0x151] sm:$0xff] %vm358, %v4863
      %4897 = vst.msk [vmem:[%s4867 + $0x159] sm:$0xff] %vm358, %v4864
      %4898 = vst.msk [vmem:[%s4867 + $0x169] sm:$0xff] %vm358, %v4865
      %4899 = vst.msk [vmem:[%s4867 + $0x171] sm:$0xff] %vm358, %v4866
      %v4900 = vld [vmem:[#allocation5] sm:$0xff]
      %v4901 = vld [vmem:[#allocation5 + $0x8] sm:$0xff]
      %v4902 = vld [vmem:[#allocation5 + $0x18] sm:$0xff]
      %v4903 = vld [vmem:[#allocation5 + $0x20] sm:$0xff]
      %v4904 = vld [vmem:[#allocation5 + $0x30] sm:$0xff]
      %v4905 = vld [vmem:[#allocation5 + $0x38] sm:$0xff]
      %v4906 = vld [vmem:[#allocation5 + $0x48] sm:$0xff]
      %v4907 = vld [vmem:[#allocation5 + $0x50] sm:$0xff]
      %v4908 = vld [vmem:[#allocation5 + $0x60] sm:$0xff]
      %v4909 = vld [vmem:[#allocation5 + $0x68] sm:$0xff]
      %v4910 = vld [vmem:[#allocation5 + $0x78] sm:$0xff]
      %v4911 = vld [vmem:[#allocation5 + $0x80] sm:$0xff]
      %v4912 = vld [vmem:[#allocation5 + $0x90] sm:$0xff]
      %v4913 = vld [vmem:[#allocation5 + $0x98] sm:$0xff]
      %v4914 = vld [vmem:[#allocation5 + $0xa8] sm:$0xff]
      %v4915 = vld [vmem:[#allocation5 + $0xb0] sm:$0xff]
      %v4916 = vld [vmem:[#allocation5 + $0xc0] sm:$0xff]
      %v4917 = vld [vmem:[#allocation5 + $0xc8] sm:$0xff]
      %v4918 = vld [vmem:[#allocation5 + $0xd8] sm:$0xff]
      %v4919 = vld [vmem:[#allocation5 + $0xe0] sm:$0xff]
      %v4920 = vld [vmem:[#allocation5 + $0xf0] sm:$0xff]
      %v4921 = vld [vmem:[#allocation5 + $0xf8] sm:$0xff]
      %v4922 = vld [vmem:[#allocation5 + $0x108] sm:$0xff]
      %v4923 = vld [vmem:[#allocation5 + $0x110] sm:$0xff]
      %v4924 = vld [vmem:[#allocation5 + $0x120] sm:$0xff]
      %v4925 = vld [vmem:[#allocation5 + $0x128] sm:$0xff]
      %v4926 = vld [vmem:[#allocation5 + $0x138] sm:$0xff]
      %v4927 = vld [vmem:[#allocation5 + $0x140] sm:$0xff]
      %v4928 = vld [vmem:[#allocation5 + $0x150] sm:$0xff]
      %v4929 = vld [vmem:[#allocation5 + $0x158] sm:$0xff]
      %v4930 = vld [vmem:[#allocation5 + $0x168] sm:$0xff]
      %v4931 = vld [vmem:[#allocation5 + $0x170] sm:$0xff]
      %4932 = vst.msk [vmem:[#allocation3] sm:$0xff] %vm358, %v4900
      %4933 = vst.msk [vmem:[#allocation3 + $0x8] sm:$0xff] %vm358, %v4901
      %4934 = vst.msk [vmem:[#allocation3 + $0x10] sm:$0xff] %vm358, %v4902
      %4935 = vst.msk [vmem:[#allocation3 + $0x18] sm:$0xff] %vm358, %v4903
      %4936 = vst.msk [vmem:[#allocation3 + $0x20] sm:$0xff] %vm358, %v4904
      %4937 = vst.msk [vmem:[#allocation3 + $0x28] sm:$0xff] %vm358, %v4905
      %4938 = vst.msk [vmem:[#allocation3 + $0x30] sm:$0xff] %vm358, %v4906
      %4939 = vst.msk [vmem:[#allocation3 + $0x38] sm:$0xff] %vm358, %v4907
      %4940 = vst.msk [vmem:[#allocation3 + $0x40] sm:$0xff] %vm358, %v4908
      %4941 = vst.msk [vmem:[#allocation3 + $0x48] sm:$0xff] %vm358, %v4909
      %4942 = vst.msk [vmem:[#allocation3 + $0x50] sm:$0xff] %vm358, %v4910
      %4943 = vst.msk [vmem:[#allocation3 + $0x58] sm:$0xff] %vm358, %v4911
      %4944 = vst.msk [vmem:[#allocation3 + $0x60] sm:$0xff] %vm358, %v4912
      %4945 = vst.msk [vmem:[#allocation3 + $0x68] sm:$0xff] %vm358, %v4913
      %4946 = vst.msk [vmem:[#allocation3 + $0x70] sm:$0xff] %vm358, %v4914
      %4947 = vst.msk [vmem:[#allocation3 + $0x78] sm:$0xff] %vm358, %v4915
      %4948 = vst.msk [vmem:[#allocation3 + $0x80] sm:$0xff] %vm358, %v4916
      %4949 = vst.msk [vmem:[#allocation3 + $0x88] sm:$0xff] %vm358, %v4917
      %4950 = vst.msk [vmem:[#allocation3 + $0x90] sm:$0xff] %vm358, %v4918
      %4951 = vst.msk [vmem:[#allocation3 + $0x98] sm:$0xff] %vm358, %v4919
      %4952 = vst.msk [vmem:[#allocation3 + $0xa0] sm:$0xff] %vm358, %v4920
      %4953 = vst.msk [vmem:[#allocation3 + $0xa8] sm:$0xff] %vm358, %v4921
      %4954 = vst.msk [vmem:[#allocation3 + $0xb0] sm:$0xff] %vm358, %v4922
      %4955 = vst.msk [vmem:[#allocation3 + $0xb8] sm:$0xff] %vm358, %v4923
      %4956 = vst.msk [vmem:[#allocation3 + $0xc0] sm:$0xff] %vm358, %v4924
      %4957 = vst.msk [vmem:[#allocation3 + $0xc8] sm:$0xff] %vm358, %v4925
      %4958 = vst.msk [vmem:[#allocation3 + $0xd0] sm:$0xff] %vm358, %v4926
      %4959 = vst.msk [vmem:[#allocation3 + $0xd8] sm:$0xff] %vm358, %v4927
      %4960 = vst.msk [vmem:[#allocation3 + $0xe0] sm:$0xff] %vm358, %v4928
      %4961 = vst.msk [vmem:[#allocation3 + $0xe8] sm:$0xff] %vm358, %v4929
      %4962 = vst.msk [vmem:[#allocation3 + $0xf0] sm:$0xff] %vm358, %v4930
      %4963 = vst.msk [vmem:[#allocation3 + $0xf8] sm:$0xff] %vm358, %v4931
      %v4964 = vld [vmem:[#allocation5 + $0x1] sm:$0xff]
      %v4965 = vld [vmem:[#allocation5 + $0x9] sm:$0xff]
      %v4966 = vld [vmem:[#allocation5 + $0x19] sm:$0xff]
      %v4967 = vld [vmem:[#allocation5 + $0x21] sm:$0xff]
      %v4968 = vld [vmem:[#allocation5 + $0x31] sm:$0xff]
      %v4969 = vld [vmem:[#allocation5 + $0x39] sm:$0xff]
      %v4970 = vld [vmem:[#allocation5 + $0x49] sm:$0xff]
      %v4971 = vld [vmem:[#allocation5 + $0x51] sm:$0xff]
      %v4972 = vld [vmem:[#allocation5 + $0x61] sm:$0xff]
      %v4973 = vld [vmem:[#allocation5 + $0x69] sm:$0xff]
      %v4974 = vld [vmem:[#allocation5 + $0x79] sm:$0xff]
      %v4975 = vld [vmem:[#allocation5 + $0x81] sm:$0xff]
      %v4976 = vld [vmem:[#allocation5 + $0x91] sm:$0xff]
      %v4977 = vld [vmem:[#allocation5 + $0x99] sm:$0xff]
      %v4978 = vld [vmem:[#allocation5 + $0xa9] sm:$0xff]
      %v4979 = vld [vmem:[#allocation5 + $0xb1] sm:$0xff]
      %v4980 = vld [vmem:[#allocation5 + $0xc1] sm:$0xff]
      %v4981 = vld [vmem:[#allocation5 + $0xc9] sm:$0xff]
      %v4982 = vld [vmem:[#allocation5 + $0xd9] sm:$0xff]
      %v4983 = vld [vmem:[#allocation5 + $0xe1] sm:$0xff]
      %v4984 = vld [vmem:[#allocation5 + $0xf1] sm:$0xff]
      %v4985 = vld [vmem:[#allocation5 + $0xf9] sm:$0xff]
      %v4986 = vld [vmem:[#allocation5 + $0x109] sm:$0xff]
      %v4987 = vld [vmem:[#allocation5 + $0x111] sm:$0xff]
      %v4988 = vld [vmem:[#allocation5 + $0x121] sm:$0xff]
      %v4989 = vld [vmem:[#allocation5 + $0x129] sm:$0xff]
      %v4990 = vld [vmem:[#allocation5 + $0x139] sm:$0xff]
      %v4991 = vld [vmem:[#allocation5 + $0x141] sm:$0xff]
      %v4992 = vld [vmem:[#allocation5 + $0x151] sm:$0xff]
      %v4993 = vld [vmem:[#allocation5 + $0x159] sm:$0xff]
      %v4994 = vld [vmem:[#allocation5 + $0x169] sm:$0xff]
      %v4995 = vld [vmem:[#allocation5 + $0x171] sm:$0xff]
      %5028 = vrot.lane.b32.xlu0 %v4964, 4
      %v5029 = vpop.permute.xlu0 %5028
      %5030 = vrot.lane.b32.xlu0 %v4965, 4
      %v5031 = vpop.permute.xlu0 %5030
      %5032 = vrot.lane.b32.xlu0 %v4966, 4
      %v5033 = vpop.permute.xlu0 %5032
      %5034 = vrot.lane.b32.xlu0 %v4967, 4
      %v5035 = vpop.permute.xlu0 %5034
      %5036 = vrot.lane.b32.xlu0 %v4968, 4
      %v5037 = vpop.permute.xlu0 %5036
      %5038 = vrot.lane.b32.xlu0 %v4969, 4
      %v5039 = vpop.permute.xlu0 %5038
      %5040 = vrot.lane.b32.xlu0 %v4970, 4
      %v5041 = vpop.permute.xlu0 %5040
      %5042 = vrot.lane.b32.xlu0 %v4971, 4
      %v5043 = vpop.permute.xlu0 %5042
      %5044 = vrot.lane.b32.xlu0 %v4972, 4
      %v5045 = vpop.permute.xlu0 %5044
      %5046 = vrot.lane.b32.xlu0 %v4973, 4
      %v5047 = vpop.permute.xlu0 %5046
      %5048 = vrot.lane.b32.xlu0 %v4974, 4
      %v5049 = vpop.permute.xlu0 %5048
      %5050 = vrot.lane.b32.xlu0 %v4975, 4
      %v5051 = vpop.permute.xlu0 %5050
      %5052 = vrot.lane.b32.xlu0 %v4976, 4
      %v5053 = vpop.permute.xlu0 %5052
      %5054 = vrot.lane.b32.xlu0 %v4977, 4
      %v5055 = vpop.permute.xlu0 %5054
      %5056 = vrot.lane.b32.xlu0 %v4978, 4
      %v5057 = vpop.permute.xlu0 %5056
      %5058 = vrot.lane.b32.xlu0 %v4979, 4
      %v5059 = vpop.permute.xlu0 %5058
      %5060 = vrot.lane.b32.xlu0 %v4980, 4
      %v5061 = vpop.permute.xlu0 %5060
      %5062 = vrot.lane.b32.xlu0 %v4981, 4
      %v5063 = vpop.permute.xlu0 %5062
      %5064 = vrot.lane.b32.xlu0 %v4982, 4
      %v5065 = vpop.permute.xlu0 %5064
      %5066 = vrot.lane.b32.xlu0 %v4983, 4
      %v5067 = vpop.permute.xlu0 %5066
      %5068 = vrot.lane.b32.xlu0 %v4984, 4
      %v5069 = vpop.permute.xlu0 %5068
      %5070 = vrot.lane.b32.xlu0 %v4985, 4
      %v5071 = vpop.permute.xlu0 %5070
      %5072 = vrot.lane.b32.xlu0 %v4986, 4
      %v5073 = vpop.permute.xlu0 %5072
      %5074 = vrot.lane.b32.xlu0 %v4987, 4
      %v5075 = vpop.permute.xlu0 %5074
      %5076 = vrot.lane.b32.xlu0 %v4988, 4
      %v5077 = vpop.permute.xlu0 %5076
      %5078 = vrot.lane.b32.xlu0 %v4989, 4
      %v5079 = vpop.permute.xlu0 %5078
      %5080 = vrot.lane.b32.xlu0 %v4990, 4
      %v5081 = vpop.permute.xlu0 %5080
      %5082 = vrot.lane.b32.xlu0 %v4991, 4
      %v5083 = vpop.permute.xlu0 %5082
      %5084 = vrot.lane.b32.xlu0 %v4992, 4
      %v5085 = vpop.permute.xlu0 %5084
      %5086 = vrot.lane.b32.xlu0 %v4993, 4
      %v5087 = vpop.permute.xlu0 %5086
      %5088 = vrot.lane.b32.xlu0 %v4994, 4
      %v5089 = vpop.permute.xlu0 %5088
      %5090 = vrot.lane.b32.xlu0 %v4995, 4
      %v5091 = vpop.permute.xlu0 %5090
      %5124 = vst.msk [vmem:[#allocation3] sm:$0xff] %vm551, %v5029
      %5125 = vst.msk [vmem:[#allocation3 + $0x8] sm:$0xff] %vm551, %v5031
      %5126 = vst.msk [vmem:[#allocation3 + $0x10] sm:$0xff] %vm551, %v5033
      %5127 = vst.msk [vmem:[#allocation3 + $0x18] sm:$0xff] %vm551, %v5035
      %5128 = vst.msk [vmem:[#allocation3 + $0x20] sm:$0xff] %vm551, %v5037
      %5129 = vst.msk [vmem:[#allocation3 + $0x28] sm:$0xff] %vm551, %v5039
      %5130 = vst.msk [vmem:[#allocation3 + $0x30] sm:$0xff] %vm551, %v5041
      %5131 = vst.msk [vmem:[#allocation3 + $0x38] sm:$0xff] %vm551, %v5043
      %5132 = vst.msk [vmem:[#allocation3 + $0x40] sm:$0xff] %vm551, %v5045
      %5133 = vst.msk [vmem:[#allocation3 + $0x48] sm:$0xff] %vm551, %v5047
      %5134 = vst.msk [vmem:[#allocation3 + $0x50] sm:$0xff] %vm551, %v5049
      %5135 = vst.msk [vmem:[#allocation3 + $0x58] sm:$0xff] %vm551, %v5051
      %5136 = vst.msk [vmem:[#allocation3 + $0x60] sm:$0xff] %vm551, %v5053
      %5137 = vst.msk [vmem:[#allocation3 + $0x68] sm:$0xff] %vm551, %v5055
      %5138 = vst.msk [vmem:[#allocation3 + $0x70] sm:$0xff] %vm551, %v5057
      %5139 = vst.msk [vmem:[#allocation3 + $0x78] sm:$0xff] %vm551, %v5059
      %5140 = vst.msk [vmem:[#allocation3 + $0x80] sm:$0xff] %vm551, %v5061
      %5141 = vst.msk [vmem:[#allocation3 + $0x88] sm:$0xff] %vm551, %v5063
      %5142 = vst.msk [vmem:[#allocation3 + $0x90] sm:$0xff] %vm551, %v5065
      %5143 = vst.msk [vmem:[#allocation3 + $0x98] sm:$0xff] %vm551, %v5067
      %5144 = vst.msk [vmem:[#allocation3 + $0xa0] sm:$0xff] %vm551, %v5069
      %5145 = vst.msk [vmem:[#allocation3 + $0xa8] sm:$0xff] %vm551, %v5071
      %5146 = vst.msk [vmem:[#allocation3 + $0xb0] sm:$0xff] %vm551, %v5073
      %5147 = vst.msk [vmem:[#allocation3 + $0xb8] sm:$0xff] %vm551, %v5075
      %5148 = vst.msk [vmem:[#allocation3 + $0xc0] sm:$0xff] %vm551, %v5077
      %5149 = vst.msk [vmem:[#allocation3 + $0xc8] sm:$0xff] %vm551, %v5079
      %5150 = vst.msk [vmem:[#allocation3 + $0xd0] sm:$0xff] %vm551, %v5081
      %5151 = vst.msk [vmem:[#allocation3 + $0xd8] sm:$0xff] %vm551, %v5083
      %5152 = vst.msk [vmem:[#allocation3 + $0xe0] sm:$0xff] %vm551, %v5085
      %5153 = vst.msk [vmem:[#allocation3 + $0xe8] sm:$0xff] %vm551, %v5087
      %5154 = vst.msk [vmem:[#allocation3 + $0xf0] sm:$0xff] %vm551, %v5089
      %5155 = vst.msk [vmem:[#allocation3 + $0xf8] sm:$0xff] %vm551, %v5091
      %v5156 = vld [vmem:[#allocation5 + $0x2] sm:$0xff]
      %v5157 = vld [vmem:[#allocation5 + $0xa] sm:$0xff]
      %v5158 = vld [vmem:[#allocation5 + $0x1a] sm:$0xff]
      %v5159 = vld [vmem:[#allocation5 + $0x22] sm:$0xff]
      %v5160 = vld [vmem:[#allocation5 + $0x32] sm:$0xff]
      %v5161 = vld [vmem:[#allocation5 + $0x3a] sm:$0xff]
      %v5162 = vld [vmem:[#allocation5 + $0x4a] sm:$0xff]
      %v5163 = vld [vmem:[#allocation5 + $0x52] sm:$0xff]
      %v5164 = vld [vmem:[#allocation5 + $0x62] sm:$0xff]
      %v5165 = vld [vmem:[#allocation5 + $0x6a] sm:$0xff]
      %v5166 = vld [vmem:[#allocation5 + $0x7a] sm:$0xff]
      %v5167 = vld [vmem:[#allocation5 + $0x82] sm:$0xff]
      %v5168 = vld [vmem:[#allocation5 + $0x92] sm:$0xff]
      %v5169 = vld [vmem:[#allocation5 + $0x9a] sm:$0xff]
      %v5170 = vld [vmem:[#allocation5 + $0xaa] sm:$0xff]
      %v5171 = vld [vmem:[#allocation5 + $0xb2] sm:$0xff]
      %v5172 = vld [vmem:[#allocation5 + $0xc2] sm:$0xff]
      %v5173 = vld [vmem:[#allocation5 + $0xca] sm:$0xff]
      %v5174 = vld [vmem:[#allocation5 + $0xda] sm:$0xff]
      %v5175 = vld [vmem:[#allocation5 + $0xe2] sm:$0xff]
      %v5176 = vld [vmem:[#allocation5 + $0xf2] sm:$0xff]
      %v5177 = vld [vmem:[#allocation5 + $0xfa] sm:$0xff]
      %v5178 = vld [vmem:[#allocation5 + $0x10a] sm:$0xff]
      %v5179 = vld [vmem:[#allocation5 + $0x112] sm:$0xff]
      %v5180 = vld [vmem:[#allocation5 + $0x122] sm:$0xff]
      %v5181 = vld [vmem:[#allocation5 + $0x12a] sm:$0xff]
      %v5182 = vld [vmem:[#allocation5 + $0x13a] sm:$0xff]
      %v5183 = vld [vmem:[#allocation5 + $0x142] sm:$0xff]
      %v5184 = vld [vmem:[#allocation5 + $0x152] sm:$0xff]
      %v5185 = vld [vmem:[#allocation5 + $0x15a] sm:$0xff]
      %v5186 = vld [vmem:[#allocation5 + $0x16a] sm:$0xff]
      %v5187 = vld [vmem:[#allocation5 + $0x172] sm:$0xff]
      %5220 = vrot.lane.b32.xlu0 %v5156, 8
      %v5221 = vpop.permute.xlu0 %5220
      %5222 = vrot.lane.b32.xlu0 %v5157, 8
      %v5223 = vpop.permute.xlu0 %5222
      %5224 = vrot.lane.b32.xlu0 %v5158, 8
      %v5225 = vpop.permute.xlu0 %5224
      %5226 = vrot.lane.b32.xlu0 %v5159, 8
      %v5227 = vpop.permute.xlu0 %5226
      %5228 = vrot.lane.b32.xlu0 %v5160, 8
      %v5229 = vpop.permute.xlu0 %5228
      %5230 = vrot.lane.b32.xlu0 %v5161, 8
      %v5231 = vpop.permute.xlu0 %5230
      %5232 = vrot.lane.b32.xlu0 %v5162, 8
      %v5233 = vpop.permute.xlu0 %5232
      %5234 = vrot.lane.b32.xlu0 %v5163, 8
      %v5235 = vpop.permute.xlu0 %5234
      %5236 = vrot.lane.b32.xlu0 %v5164, 8
      %v5237 = vpop.permute.xlu0 %5236
      %5238 = vrot.lane.b32.xlu0 %v5165, 8
      %v5239 = vpop.permute.xlu0 %5238
      %5240 = vrot.lane.b32.xlu0 %v5166, 8
      %v5241 = vpop.permute.xlu0 %5240
      %5242 = vrot.lane.b32.xlu0 %v5167, 8
      %v5243 = vpop.permute.xlu0 %5242
      %5244 = vrot.lane.b32.xlu0 %v5168, 8
      %v5245 = vpop.permute.xlu0 %5244
      %5246 = vrot.lane.b32.xlu0 %v5169, 8
      %v5247 = vpop.permute.xlu0 %5246
      %5248 = vrot.lane.b32.xlu0 %v5170, 8
      %v5249 = vpop.permute.xlu0 %5248
      %5250 = vrot.lane.b32.xlu0 %v5171, 8
      %v5251 = vpop.permute.xlu0 %5250
      %5252 = vrot.lane.b32.xlu0 %v5172, 8
      %v5253 = vpop.permute.xlu0 %5252
      %5254 = vrot.lane.b32.xlu0 %v5173, 8
      %v5255 = vpop.permute.xlu0 %5254
      %5256 = vrot.lane.b32.xlu0 %v5174, 8
      %v5257 = vpop.permute.xlu0 %5256
      %5258 = vrot.lane.b32.xlu0 %v5175, 8
      %v5259 = vpop.permute.xlu0 %5258
      %5260 = vrot.lane.b32.xlu0 %v5176, 8
      %v5261 = vpop.permute.xlu0 %5260
      %5262 = vrot.lane.b32.xlu0 %v5177, 8
      %v5263 = vpop.permute.xlu0 %5262
      %5264 = vrot.lane.b32.xlu0 %v5178, 8
      %v5265 = vpop.permute.xlu0 %5264
      %5266 = vrot.lane.b32.xlu0 %v5179, 8
      %v5267 = vpop.permute.xlu0 %5266
      %5268 = vrot.lane.b32.xlu0 %v5180, 8
      %v5269 = vpop.permute.xlu0 %5268
      %5270 = vrot.lane.b32.xlu0 %v5181, 8
      %v5271 = vpop.permute.xlu0 %5270
      %5272 = vrot.lane.b32.xlu0 %v5182, 8
      %v5273 = vpop.permute.xlu0 %5272
      %5274 = vrot.lane.b32.xlu0 %v5183, 8
      %v5275 = vpop.permute.xlu0 %5274
      %5276 = vrot.lane.b32.xlu0 %v5184, 8
      %v5277 = vpop.permute.xlu0 %5276
      %5278 = vrot.lane.b32.xlu0 %v5185, 8
      %v5279 = vpop.permute.xlu0 %5278
      %5280 = vrot.lane.b32.xlu0 %v5186, 8
      %v5281 = vpop.permute.xlu0 %5280
      %5282 = vrot.lane.b32.xlu0 %v5187, 8
      %v5283 = vpop.permute.xlu0 %5282
      %5316 = vst.msk [vmem:[#allocation3] sm:$0xff] %vm744, %v5221
      %5317 = vst.msk [vmem:[#allocation3 + $0x8] sm:$0xff] %vm744, %v5223
      %5318 = vst.msk [vmem:[#allocation3 + $0x10] sm:$0xff] %vm744, %v5225
      %5319 = vst.msk [vmem:[#allocation3 + $0x18] sm:$0xff] %vm744, %v5227
      %5320 = vst.msk [vmem:[#allocation3 + $0x20] sm:$0xff] %vm744, %v5229
      %5321 = vst.msk [vmem:[#allocation3 + $0x28] sm:$0xff] %vm744, %v5231
      %5322 = vst.msk [vmem:[#allocation3 + $0x30] sm:$0xff] %vm744, %v5233
      %5323 = vst.msk [vmem:[#allocation3 + $0x38] sm:$0xff] %vm744, %v5235
      %5324 = vst.msk [vmem:[#allocation3 + $0x40] sm:$0xff] %vm744, %v5237
      %5325 = vst.msk [vmem:[#allocation3 + $0x48] sm:$0xff] %vm744, %v5239
      %5326 = vst.msk [vmem:[#allocation3 + $0x50] sm:$0xff] %vm744, %v5241
      %5327 = vst.msk [vmem:[#allocation3 + $0x58] sm:$0xff] %vm744, %v5243
      %5328 = vst.msk [vmem:[#allocation3 + $0x60] sm:$0xff] %vm744, %v5245
      %5329 = vst.msk [vmem:[#allocation3 + $0x68] sm:$0xff] %vm744, %v5247
      %5330 = vst.msk [vmem:[#allocation3 + $0x70] sm:$0xff] %vm744, %v5249
      %5331 = vst.msk [vmem:[#allocation3 + $0x78] sm:$0xff] %vm744, %v5251
      %5332 = vst.msk [vmem:[#allocation3 + $0x80] sm:$0xff] %vm744, %v5253
      %5333 = vst.msk [vmem:[#allocation3 + $0x88] sm:$0xff] %vm744, %v5255
      %5334 = vst.msk [vmem:[#allocation3 + $0x90] sm:$0xff] %vm744, %v5257
      %5335 = vst.msk [vmem:[#allocation3 + $0x98] sm:$0xff] %vm744, %v5259
      %5336 = vst.msk [vmem:[#allocation3 + $0xa0] sm:$0xff] %vm744, %v5261
      %5337 = vst.msk [vmem:[#allocation3 + $0xa8] sm:$0xff] %vm744, %v5263
      %5338 = vst.msk [vmem:[#allocation3 + $0xb0] sm:$0xff] %vm744, %v5265
      %5339 = vst.msk [vmem:[#allocation3 + $0xb8] sm:$0xff] %vm744, %v5267
      %5340 = vst.msk [vmem:[#allocation3 + $0xc0] sm:$0xff] %vm744, %v5269
      %5341 = vst.msk [vmem:[#allocation3 + $0xc8] sm:$0xff] %vm744, %v5271
      %5342 = vst.msk [vmem:[#allocation3 + $0xd0] sm:$0xff] %vm744, %v5273
      %5343 = vst.msk [vmem:[#allocation3 + $0xd8] sm:$0xff] %vm744, %v5275
      %5344 = vst.msk [vmem:[#allocation3 + $0xe0] sm:$0xff] %vm744, %v5277
      %5345 = vst.msk [vmem:[#allocation3 + $0xe8] sm:$0xff] %vm744, %v5279
      %5346 = vst.msk [vmem:[#allocation3 + $0xf0] sm:$0xff] %vm744, %v5281
      %5347 = vst.msk [vmem:[#allocation3 + $0xf8] sm:$0xff] %vm744, %v5283
      %v5348 = vld [vmem:[%s4867] sm:$0xff]
      %v5349 = vld [vmem:[%s4867 + $0x8] sm:$0xff]
      %v5350 = vld [vmem:[%s4867 + $0x18] sm:$0xff]
      %v5351 = vld [vmem:[%s4867 + $0x20] sm:$0xff]
      %v5352 = vld [vmem:[%s4867 + $0x30] sm:$0xff]
      %v5353 = vld [vmem:[%s4867 + $0x38] sm:$0xff]
      %v5354 = vld [vmem:[%s4867 + $0x48] sm:$0xff]
      %v5355 = vld [vmem:[%s4867 + $0x50] sm:$0xff]
      %v5356 = vld [vmem:[%s4867 + $0x60] sm:$0xff]
      %v5357 = vld [vmem:[%s4867 + $0x68] sm:$0xff]
      %v5358 = vld [vmem:[%s4867 + $0x78] sm:$0xff]
      %v5359 = vld [vmem:[%s4867 + $0x80] sm:$0xff]
      %v5360 = vld [vmem:[%s4867 + $0x90] sm:$0xff]
      %v5361 = vld [vmem:[%s4867 + $0x98] sm:$0xff]
      %v5362 = vld [vmem:[%s4867 + $0xa8] sm:$0xff]
      %v5363 = vld [vmem:[%s4867 + $0xb0] sm:$0xff]
      %v5364 = vld [vmem:[%s4867 + $0xc0] sm:$0xff]
      %v5365 = vld [vmem:[%s4867 + $0xc8] sm:$0xff]
      %v5366 = vld [vmem:[%s4867 + $0xd8] sm:$0xff]
      %v5367 = vld [vmem:[%s4867 + $0xe0] sm:$0xff]
      %v5368 = vld [vmem:[%s4867 + $0xf0] sm:$0xff]
      %v5369 = vld [vmem:[%s4867 + $0xf8] sm:$0xff]
      %v5370 = vld [vmem:[%s4867 + $0x108] sm:$0xff]
      %v5371 = vld [vmem:[%s4867 + $0x110] sm:$0xff]
      %v5372 = vld [vmem:[%s4867 + $0x120] sm:$0xff]
      %v5373 = vld [vmem:[%s4867 + $0x128] sm:$0xff]
      %v5374 = vld [vmem:[%s4867 + $0x138] sm:$0xff]
      %v5375 = vld [vmem:[%s4867 + $0x140] sm:$0xff]
      %v5376 = vld [vmem:[%s4867 + $0x150] sm:$0xff]
      %v5377 = vld [vmem:[%s4867 + $0x158] sm:$0xff]
      %v5378 = vld [vmem:[%s4867 + $0x168] sm:$0xff]
      %v5379 = vld [vmem:[%s4867 + $0x170] sm:$0xff]
      %5412 = vrot.lane.b32.xlu0 %v5348, 12
      %v5413 = vpop.permute.xlu0 %5412
      %5414 = vrot.lane.b32.xlu0 %v5349, 12
      %v5415 = vpop.permute.xlu0 %5414
      %5416 = vrot.lane.b32.xlu0 %v5350, 12
      %v5417 = vpop.permute.xlu0 %5416
      %5418 = vrot.lane.b32.xlu0 %v5351, 12
      %v5419 = vpop.permute.xlu0 %5418
      %5420 = vrot.lane.b32.xlu0 %v5352, 12
      %v5421 = vpop.permute.xlu0 %5420
      %5422 = vrot.lane.b32.xlu0 %v5353, 12
      %v5423 = vpop.permute.xlu0 %5422
      %5424 = vrot.lane.b32.xlu0 %v5354, 12
      %v5425 = vpop.permute.xlu0 %5424
      %5426 = vrot.lane.b32.xlu0 %v5355, 12
      %v5427 = vpop.permute.xlu0 %5426
      %5428 = vrot.lane.b32.xlu0 %v5356, 12
      %v5429 = vpop.permute.xlu0 %5428
      %5430 = vrot.lane.b32.xlu0 %v5357, 12
      %v5431 = vpop.permute.xlu0 %5430
      %5432 = vrot.lane.b32.xlu0 %v5358, 12
      %v5433 = vpop.permute.xlu0 %5432
      %5434 = vrot.lane.b32.xlu0 %v5359, 12
      %v5435 = vpop.permute.xlu0 %5434
      %5436 = vrot.lane.b32.xlu0 %v5360, 12
      %v5437 = vpop.permute.xlu0 %5436
      %5438 = vrot.lane.b32.xlu0 %v5361, 12
      %v5439 = vpop.permute.xlu0 %5438
      %5440 = vrot.lane.b32.xlu0 %v5362, 12
      %v5441 = vpop.permute.xlu0 %5440
      %5442 = vrot.lane.b32.xlu0 %v5363, 12
      %v5443 = vpop.permute.xlu0 %5442
      %5444 = vrot.lane.b32.xlu0 %v5364, 12
      %v5445 = vpop.permute.xlu0 %5444
      %5446 = vrot.lane.b32.xlu0 %v5365, 12
      %v5447 = vpop.permute.xlu0 %5446
      %5448 = vrot.lane.b32.xlu0 %v5366, 12
      %v5449 = vpop.permute.xlu0 %5448
      %5450 = vrot.lane.b32.xlu0 %v5367, 12
      %v5451 = vpop.permute.xlu0 %5450
      %5452 = vrot.lane.b32.xlu0 %v5368, 12
      %v5453 = vpop.permute.xlu0 %5452
      %5454 = vrot.lane.b32.xlu0 %v5369, 12
      %v5455 = vpop.permute.xlu0 %5454
      %5456 = vrot.lane.b32.xlu0 %v5370, 12
      %v5457 = vpop.permute.xlu0 %5456
      %5458 = vrot.lane.b32.xlu0 %v5371, 12
      %v5459 = vpop.permute.xlu0 %5458
      %5460 = vrot.lane.b32.xlu0 %v5372, 12
      %v5461 = vpop.permute.xlu0 %5460
      %5462 = vrot.lane.b32.xlu0 %v5373, 12
      %v5463 = vpop.permute.xlu0 %5462
      %5464 = vrot.lane.b32.xlu0 %v5374, 12
      %v5465 = vpop.permute.xlu0 %5464
      %5466 = vrot.lane.b32.xlu0 %v5375, 12
      %v5467 = vpop.permute.xlu0 %5466
      %5468 = vrot.lane.b32.xlu0 %v5376, 12
      %v5469 = vpop.permute.xlu0 %5468
      %5470 = vrot.lane.b32.xlu0 %v5377, 12
      %v5471 = vpop.permute.xlu0 %5470
      %5472 = vrot.lane.b32.xlu0 %v5378, 12
      %v5473 = vpop.permute.xlu0 %5472
      %5474 = vrot.lane.b32.xlu0 %v5379, 12
      %v5475 = vpop.permute.xlu0 %5474
      %5508 = vst.msk [vmem:[#allocation3] sm:$0xff] %vm938, %v5413
      %5509 = vst.msk [vmem:[#allocation3 + $0x8] sm:$0xff] %vm938, %v5415
      %5510 = vst.msk [vmem:[#allocation3 + $0x10] sm:$0xff] %vm938, %v5417
      %5511 = vst.msk [vmem:[#allocation3 + $0x18] sm:$0xff] %vm938, %v5419
      %5512 = vst.msk [vmem:[#allocation3 + $0x20] sm:$0xff] %vm938, %v5421
      %5513 = vst.msk [vmem:[#allocation3 + $0x28] sm:$0xff] %vm938, %v5423
      %5514 = vst.msk [vmem:[#allocation3 + $0x30] sm:$0xff] %vm938, %v5425
      %5515 = vst.msk [vmem:[#allocation3 + $0x38] sm:$0xff] %vm938, %v5427
      %5516 = vst.msk [vmem:[#allocation3 + $0x40] sm:$0xff] %vm938, %v5429
      %5517 = vst.msk [vmem:[#allocation3 + $0x48] sm:$0xff] %vm938, %v5431
      %5518 = vst.msk [vmem:[#allocation3 + $0x50] sm:$0xff] %vm938, %v5433
      %5519 = vst.msk [vmem:[#allocation3 + $0x58] sm:$0xff] %vm938, %v5435
      %5520 = vst.msk [vmem:[#allocation3 + $0x60] sm:$0xff] %vm938, %v5437
      %5521 = vst.msk [vmem:[#allocation3 + $0x68] sm:$0xff] %vm938, %v5439
      %5522 = vst.msk [vmem:[#allocation3 + $0x70] sm:$0xff] %vm938, %v5441
      %5523 = vst.msk [vmem:[#allocation3 + $0x78] sm:$0xff] %vm938, %v5443
      %5524 = vst.msk [vmem:[#allocation3 + $0x80] sm:$0xff] %vm938, %v5445
      %5525 = vst.msk [vmem:[#allocation3 + $0x88] sm:$0xff] %vm938, %v5447
      %5526 = vst.msk [vmem:[#allocation3 + $0x90] sm:$0xff] %vm938, %v5449
      %5527 = vst.msk [vmem:[#allocation3 + $0x98] sm:$0xff] %vm938, %v5451
      %5528 = vst.msk [vmem:[#allocation3 + $0xa0] sm:$0xff] %vm938, %v5453
      %5529 = vst.msk [vmem:[#allocation3 + $0xa8] sm:$0xff] %vm938, %v5455
      %5530 = vst.msk [vmem:[#allocation3 + $0xb0] sm:$0xff] %vm938, %v5457
      %5531 = vst.msk [vmem:[#allocation3 + $0xb8] sm:$0xff] %vm938, %v5459
      %5532 = vst.msk [vmem:[#allocation3 + $0xc0] sm:$0xff] %vm938, %v5461
      %5533 = vst.msk [vmem:[#allocation3 + $0xc8] sm:$0xff] %vm938, %v5463
      %5534 = vst.msk [vmem:[#allocation3 + $0xd0] sm:$0xff] %vm938, %v5465
      %5535 = vst.msk [vmem:[#allocation3 + $0xd8] sm:$0xff] %vm938, %v5467
      %5536 = vst.msk [vmem:[#allocation3 + $0xe0] sm:$0xff] %vm938, %v5469
      %5537 = vst.msk [vmem:[#allocation3 + $0xe8] sm:$0xff] %vm938, %v5471
      %5538 = vst.msk [vmem:[#allocation3 + $0xf0] sm:$0xff] %vm938, %v5473
      %5539 = vst.msk [vmem:[#allocation3 + $0xf8] sm:$0xff] %vm938, %v5475
      %v5540 = vld [vmem:[%s4867 + $0x1] sm:$0xff]
      %v5541 = vld [vmem:[%s4867 + $0x9] sm:$0xff]
      %v5542 = vld [vmem:[%s4867 + $0x19] sm:$0xff]
      %v5543 = vld [vmem:[%s4867 + $0x21] sm:$0xff]
      %v5544 = vld [vmem:[%s4867 + $0x31] sm:$0xff]
      %v5545 = vld [vmem:[%s4867 + $0x39] sm:$0xff]
      %v5546 = vld [vmem:[%s4867 + $0x49] sm:$0xff]
      %v5547 = vld [vmem:[%s4867 + $0x51] sm:$0xff]
      %v5548 = vld [vmem:[%s4867 + $0x61] sm:$0xff]
      %v5549 = vld [vmem:[%s4867 + $0x69] sm:$0xff]
      %v5550 = vld [vmem:[%s4867 + $0x79] sm:$0xff]
      %v5551 = vld [vmem:[%s4867 + $0x81] sm:$0xff]
      %v5552 = vld [vmem:[%s4867 + $0x91] sm:$0xff]
      %v5553 = vld [vmem:[%s4867 + $0x99] sm:$0xff]
      %v5554 = vld [vmem:[%s4867 + $0xa9] sm:$0xff]
      %v5555 = vld [vmem:[%s4867 + $0xb1] sm:$0xff]
      %v5556 = vld [vmem:[%s4867 + $0xc1] sm:$0xff]
      %v5557 = vld [vmem:[%s4867 + $0xc9] sm:$0xff]
      %v5558 = vld [vmem:[%s4867 + $0xd9] sm:$0xff]
      %v5559 = vld [vmem:[%s4867 + $0xe1] sm:$0xff]
      %v5560 = vld [vmem:[%s4867 + $0xf1] sm:$0xff]
      %v5561 = vld [vmem:[%s4867 + $0xf9] sm:$0xff]
      %v5562 = vld [vmem:[%s4867 + $0x109] sm:$0xff]
      %v5563 = vld [vmem:[%s4867 + $0x111] sm:$0xff]
      %v5564 = vld [vmem:[%s4867 + $0x121] sm:$0xff]
      %v5565 = vld [vmem:[%s4867 + $0x129] sm:$0xff]
      %v5566 = vld [vmem:[%s4867 + $0x139] sm:$0xff]
      %v5567 = vld [vmem:[%s4867 + $0x141] sm:$0xff]
      %v5568 = vld [vmem:[%s4867 + $0x151] sm:$0xff]
      %v5569 = vld [vmem:[%s4867 + $0x159] sm:$0xff]
      %v5570 = vld [vmem:[%s4867 + $0x169] sm:$0xff]
      %v5571 = vld [vmem:[%s4867 + $0x171] sm:$0xff]
      %5604 = vrot.lane.b32.xlu0 %v5540, 16
      %v5605 = vpop.permute.xlu0 %5604
      %5606 = vrot.lane.b32.xlu0 %v5541, 16
      %v5607 = vpop.permute.xlu0 %5606
      %5608 = vrot.lane.b32.xlu0 %v5542, 16
      %v5609 = vpop.permute.xlu0 %5608
      %5610 = vrot.lane.b32.xlu0 %v5543, 16
      %v5611 = vpop.permute.xlu0 %5610
      %5612 = vrot.lane.b32.xlu0 %v5544, 16
      %v5613 = vpop.permute.xlu0 %5612
      %5614 = vrot.lane.b32.xlu0 %v5545, 16
      %v5615 = vpop.permute.xlu0 %5614
      %5616 = vrot.lane.b32.xlu0 %v5546, 16
      %v5617 = vpop.permute.xlu0 %5616
      %5618 = vrot.lane.b32.xlu0 %v5547, 16
      %v5619 = vpop.permute.xlu0 %5618
      %5620 = vrot.lane.b32.xlu0 %v5548, 16
      %v5621 = vpop.permute.xlu0 %5620
      %5622 = vrot.lane.b32.xlu0 %v5549, 16
      %v5623 = vpop.permute.xlu0 %5622
      %5624 = vrot.lane.b32.xlu0 %v5550, 16
      %v5625 = vpop.permute.xlu0 %5624
      %5626 = vrot.lane.b32.xlu0 %v5551, 16
      %v5627 = vpop.permute.xlu0 %5626
      %5628 = vrot.lane.b32.xlu0 %v5552, 16
      %v5629 = vpop.permute.xlu0 %5628
      %5630 = vrot.lane.b32.xlu0 %v5553, 16
      %v5631 = vpop.permute.xlu0 %5630
      %5632 = vrot.lane.b32.xlu0 %v5554, 16
      %v5633 = vpop.permute.xlu0 %5632
      %5634 = vrot.lane.b32.xlu0 %v5555, 16
      %v5635 = vpop.permute.xlu0 %5634
      %5636 = vrot.lane.b32.xlu0 %v5556, 16
      %v5637 = vpop.permute.xlu0 %5636
      %5638 = vrot.lane.b32.xlu0 %v5557, 16
      %v5639 = vpop.permute.xlu0 %5638
      %5640 = vrot.lane.b32.xlu0 %v5558, 16
      %v5641 = vpop.permute.xlu0 %5640
      %5642 = vrot.lane.b32.xlu0 %v5559, 16
      %v5643 = vpop.permute.xlu0 %5642
      %5644 = vrot.lane.b32.xlu0 %v5560, 16
      %v5645 = vpop.permute.xlu0 %5644
      %5646 = vrot.lane.b32.xlu0 %v5561, 16
      %v5647 = vpop.permute.xlu0 %5646
      %5648 = vrot.lane.b32.xlu0 %v5562, 16
      %v5649 = vpop.permute.xlu0 %5648
      %5650 = vrot.lane.b32.xlu0 %v5563, 16
      %v5651 = vpop.permute.xlu0 %5650
      %5652 = vrot.lane.b32.xlu0 %v5564, 16
      %v5653 = vpop.permute.xlu0 %5652
      %5654 = vrot.lane.b32.xlu0 %v5565, 16
      %v5655 = vpop.permute.xlu0 %5654
      %5656 = vrot.lane.b32.xlu0 %v5566, 16
      %v5657 = vpop.permute.xlu0 %5656
      %5658 = vrot.lane.b32.xlu0 %v5567, 16
      %v5659 = vpop.permute.xlu0 %5658
      %5660 = vrot.lane.b32.xlu0 %v5568, 16
      %v5661 = vpop.permute.xlu0 %5660
      %5662 = vrot.lane.b32.xlu0 %v5569, 16
      %v5663 = vpop.permute.xlu0 %5662
      %5664 = vrot.lane.b32.xlu0 %v5570, 16
      %v5665 = vpop.permute.xlu0 %5664
      %5666 = vrot.lane.b32.xlu0 %v5571, 16
      %v5667 = vpop.permute.xlu0 %5666
      %5700 = vst.msk [vmem:[#allocation3] sm:$0xff] %vm1131, %v5605
      %5701 = vst.msk [vmem:[#allocation3 + $0x8] sm:$0xff] %vm1131, %v5607
      %5702 = vst.msk [vmem:[#allocation3 + $0x10] sm:$0xff] %vm1131, %v5609
      %5703 = vst.msk [vmem:[#allocation3 + $0x18] sm:$0xff] %vm1131, %v5611
      %5704 = vst.msk [vmem:[#allocation3 + $0x20] sm:$0xff] %vm1131, %v5613
      %5705 = vst.msk [vmem:[#allocation3 + $0x28] sm:$0xff] %vm1131, %v5615
      %5706 = vst.msk [vmem:[#allocation3 + $0x30] sm:$0xff] %vm1131, %v5617
      %5707 = vst.msk [vmem:[#allocation3 + $0x38] sm:$0xff] %vm1131, %v5619
      %5708 = vst.msk [vmem:[#allocation3 + $0x40] sm:$0xff] %vm1131, %v5621
      %5709 = vst.msk [vmem:[#allocation3 + $0x48] sm:$0xff] %vm1131, %v5623
      %5710 = vst.msk [vmem:[#allocation3 + $0x50] sm:$0xff] %vm1131, %v5625
      %5711 = vst.msk [vmem:[#allocation3 + $0x58] sm:$0xff] %vm1131, %v5627
      %5712 = vst.msk [vmem:[#allocation3 + $0x60] sm:$0xff] %vm1131, %v5629
      %5713 = vst.msk [vmem:[#allocation3 + $0x68] sm:$0xff] %vm1131, %v5631
      %5714 = vst.msk [vmem:[#allocation3 + $0x70] sm:$0xff] %vm1131, %v5633
      %5715 = vst.msk [vmem:[#allocation3 + $0x78] sm:$0xff] %vm1131, %v5635
      %5716 = vst.msk [vmem:[#allocation3 + $0x80] sm:$0xff] %vm1131, %v5637
      %5717 = vst.msk [vmem:[#allocation3 + $0x88] sm:$0xff] %vm1131, %v5639
      %5718 = vst.msk [vmem:[#allocation3 + $0x90] sm:$0xff] %vm1131, %v5641
      %5719 = vst.msk [vmem:[#allocation3 + $0x98] sm:$0xff] %vm1131, %v5643
      %5720 = vst.msk [vmem:[#allocation3 + $0xa0] sm:$0xff] %vm1131, %v5645
      %5721 = vst.msk [vmem:[#allocation3 + $0xa8] sm:$0xff] %vm1131, %v5647
      %5722 = vst.msk [vmem:[#allocation3 + $0xb0] sm:$0xff] %vm1131, %v5649
      %5723 = vst.msk [vmem:[#allocation3 + $0xb8] sm:$0xff] %vm1131, %v5651
      %5724 = vst.msk [vmem:[#allocation3 + $0xc0] sm:$0xff] %vm1131, %v5653
      %5725 = vst.msk [vmem:[#allocation3 + $0xc8] sm:$0xff] %vm1131, %v5655
      %5726 = vst.msk [vmem:[#allocation3 + $0xd0] sm:$0xff] %vm1131, %v5657
      %5727 = vst.msk [vmem:[#allocation3 + $0xd8] sm:$0xff] %vm1131, %v5659
      %5728 = vst.msk [vmem:[#allocation3 + $0xe0] sm:$0xff] %vm1131, %v5661
      %5729 = vst.msk [vmem:[#allocation3 + $0xe8] sm:$0xff] %vm1131, %v5663
      %5730 = vst.msk [vmem:[#allocation3 + $0xf0] sm:$0xff] %vm1131, %v5665
      %5731 = vst.msk [vmem:[#allocation3 + $0xf8] sm:$0xff] %vm1131, %v5667
      %v5732 = vld [vmem:[%s4867 + $0x2] sm:$0xff]
      %v5733 = vld [vmem:[%s4867 + $0xa] sm:$0xff]
      %v5734 = vld [vmem:[%s4867 + $0x1a] sm:$0xff]
      %v5735 = vld [vmem:[%s4867 + $0x22] sm:$0xff]
      %v5736 = vld [vmem:[%s4867 + $0x32] sm:$0xff]
      %v5737 = vld [vmem:[%s4867 + $0x3a] sm:$0xff]
      %v5738 = vld [vmem:[%s4867 + $0x4a] sm:$0xff]
      %v5739 = vld [vmem:[%s4867 + $0x52] sm:$0xff]
      %v5740 = vld [vmem:[%s4867 + $0x62] sm:$0xff]
      %v5741 = vld [vmem:[%s4867 + $0x6a] sm:$0xff]
      %v5742 = vld [vmem:[%s4867 + $0x7a] sm:$0xff]
      %v5743 = vld [vmem:[%s4867 + $0x82] sm:$0xff]
      %v5744 = vld [vmem:[%s4867 + $0x92] sm:$0xff]
      %v5745 = vld [vmem:[%s4867 + $0x9a] sm:$0xff]
      %v5746 = vld [vmem:[%s4867 + $0xaa] sm:$0xff]
      %v5747 = vld [vmem:[%s4867 + $0xb2] sm:$0xff]
      %v5748 = vld [vmem:[%s4867 + $0xc2] sm:$0xff]
      %v5749 = vld [vmem:[%s4867 + $0xca] sm:$0xff]
      %v5750 = vld [vmem:[%s4867 + $0xda] sm:$0xff]
      %v5751 = vld [vmem:[%s4867 + $0xe2] sm:$0xff]
      %v5752 = vld [vmem:[%s4867 + $0xf2] sm:$0xff]
      %v5753 = vld [vmem:[%s4867 + $0xfa] sm:$0xff]
      %v5754 = vld [vmem:[%s4867 + $0x10a] sm:$0xff]
      %v5755 = vld [vmem:[%s4867 + $0x112] sm:$0xff]
      %v5756 = vld [vmem:[%s4867 + $0x122] sm:$0xff]
      %v5757 = vld [vmem:[%s4867 + $0x12a] sm:$0xff]
      %v5758 = vld [vmem:[%s4867 + $0x13a] sm:$0xff]
      %v5759 = vld [vmem:[%s4867 + $0x142] sm:$0xff]
      %v5760 = vld [vmem:[%s4867 + $0x152] sm:$0xff]
      %v5761 = vld [vmem:[%s4867 + $0x15a] sm:$0xff]
      %v5762 = vld [vmem:[%s4867 + $0x16a] sm:$0xff]
      %v5763 = vld [vmem:[%s4867 + $0x172] sm:$0xff]
      %5796 = vrot.lane.b32.xlu0 %v5732, 20
      %v5797 = vpop.permute.xlu0 %5796
      %5798 = vrot.lane.b32.xlu0 %v5733, 20
      %v5799 = vpop.permute.xlu0 %5798
      %5800 = vrot.lane.b32.xlu0 %v5734, 20
      %v5801 = vpop.permute.xlu0 %5800
      %5802 = vrot.lane.b32.xlu0 %v5735, 20
      %v5803 = vpop.permute.xlu0 %5802
      %5804 = vrot.lane.b32.xlu0 %v5736, 20
      %v5805 = vpop.permute.xlu0 %5804
      %5806 = vrot.lane.b32.xlu0 %v5737, 20
      %v5807 = vpop.permute.xlu0 %5806
      %5808 = vrot.lane.b32.xlu0 %v5738, 20
      %v5809 = vpop.permute.xlu0 %5808
      %5810 = vrot.lane.b32.xlu0 %v5739, 20
      %v5811 = vpop.permute.xlu0 %5810
      %5812 = vrot.lane.b32.xlu0 %v5740, 20
      %v5813 = vpop.permute.xlu0 %5812
      %5814 = vrot.lane.b32.xlu0 %v5741, 20
      %v5815 = vpop.permute.xlu0 %5814
      %5816 = vrot.lane.b32.xlu0 %v5742, 20
      %v5817 = vpop.permute.xlu0 %5816
      %5818 = vrot.lane.b32.xlu0 %v5743, 20
      %v5819 = vpop.permute.xlu0 %5818
      %5820 = vrot.lane.b32.xlu0 %v5744, 20
      %v5821 = vpop.permute.xlu0 %5820
      %5822 = vrot.lane.b32.xlu0 %v5745, 20
      %v5823 = vpop.permute.xlu0 %5822
      %5824 = vrot.lane.b32.xlu0 %v5746, 20
      %v5825 = vpop.permute.xlu0 %5824
      %5826 = vrot.lane.b32.xlu0 %v5747, 20
      %v5827 = vpop.permute.xlu0 %5826
      %5828 = vrot.lane.b32.xlu0 %v5748, 20
      %v5829 = vpop.permute.xlu0 %5828
      %5830 = vrot.lane.b32.xlu0 %v5749, 20
      %v5831 = vpop.permute.xlu0 %5830
      %5832 = vrot.lane.b32.xlu0 %v5750, 20
      %v5833 = vpop.permute.xlu0 %5832
      %5834 = vrot.lane.b32.xlu0 %v5751, 20
      %v5835 = vpop.permute.xlu0 %5834
      %5836 = vrot.lane.b32.xlu0 %v5752, 20
      %v5837 = vpop.permute.xlu0 %5836
      %5838 = vrot.lane.b32.xlu0 %v5753, 20
      %v5839 = vpop.permute.xlu0 %5838
      %5840 = vrot.lane.b32.xlu0 %v5754, 20
      %v5841 = vpop.permute.xlu0 %5840
      %5842 = vrot.lane.b32.xlu0 %v5755, 20
      %v5843 = vpop.permute.xlu0 %5842
      %5844 = vrot.lane.b32.xlu0 %v5756, 20
      %v5845 = vpop.permute.xlu0 %5844
      %5846 = vrot.lane.b32.xlu0 %v5757, 20
      %v5847 = vpop.permute.xlu0 %5846
      %5848 = vrot.lane.b32.xlu0 %v5758, 20
      %v5849 = vpop.permute.xlu0 %5848
      %5850 = vrot.lane.b32.xlu0 %v5759, 20
      %v5851 = vpop.permute.xlu0 %5850
      %5852 = vrot.lane.b32.xlu0 %v5760, 20
      %v5853 = vpop.permute.xlu0 %5852
      %5854 = vrot.lane.b32.xlu0 %v5761, 20
      %v5855 = vpop.permute.xlu0 %5854
      %5856 = vrot.lane.b32.xlu0 %v5762, 20
      %v5857 = vpop.permute.xlu0 %5856
      %5858 = vrot.lane.b32.xlu0 %v5763, 20
      %v5859 = vpop.permute.xlu0 %5858
      %5892 = vst.msk [vmem:[#allocation3] sm:$0xff] %vm1324, %v5797
      %5893 = vst.msk [vmem:[#allocation3 + $0x8] sm:$0xff] %vm1324, %v5799
      %5894 = vst.msk [vmem:[#allocation3 + $0x10] sm:$0xff] %vm1324, %v5801
      %5895 = vst.msk [vmem:[#allocation3 + $0x18] sm:$0xff] %vm1324, %v5803
      %5896 = vst.msk [vmem:[#allocation3 + $0x20] sm:$0xff] %vm1324, %v5805
      %5897 = vst.msk [vmem:[#allocation3 + $0x28] sm:$0xff] %vm1324, %v5807
      %5898 = vst.msk [vmem:[#allocation3 + $0x30] sm:$0xff] %vm1324, %v5809
      %5899 = vst.msk [vmem:[#allocation3 + $0x38] sm:$0xff] %vm1324, %v5811
      %5900 = vst.msk [vmem:[#allocation3 + $0x40] sm:$0xff] %vm1324, %v5813
      %5901 = vst.msk [vmem:[#allocation3 + $0x48] sm:$0xff] %vm1324, %v5815
      %5902 = vst.msk [vmem:[#allocation3 + $0x50] sm:$0xff] %vm1324, %v5817
      %5903 = vst.msk [vmem:[#allocation3 + $0x58] sm:$0xff] %vm1324, %v5819
      %5904 = vst.msk [vmem:[#allocation3 + $0x60] sm:$0xff] %vm1324, %v5821
      %5905 = vst.msk [vmem:[#allocation3 + $0x68] sm:$0xff] %vm1324, %v5823
      %5906 = vst.msk [vmem:[#allocation3 + $0x70] sm:$0xff] %vm1324, %v5825
      %5907 = vst.msk [vmem:[#allocation3 + $0x78] sm:$0xff] %vm1324, %v5827
      %5908 = vst.msk [vmem:[#allocation3 + $0x80] sm:$0xff] %vm1324, %v5829
      %5909 = vst.msk [vmem:[#allocation3 + $0x88] sm:$0xff] %vm1324, %v5831
      %5910 = vst.msk [vmem:[#allocation3 + $0x90] sm:$0xff] %vm1324, %v5833
      %5911 = vst.msk [vmem:[#allocation3 + $0x98] sm:$0xff] %vm1324, %v5835
      %5912 = vst.msk [vmem:[#allocation3 + $0xa0] sm:$0xff] %vm1324, %v5837
      %5913 = vst.msk [vmem:[#allocation3 + $0xa8] sm:$0xff] %vm1324, %v5839
      %5914 = vst.msk [vmem:[#allocation3 + $0xb0] sm:$0xff] %vm1324, %v5841
      %5915 = vst.msk [vmem:[#allocation3 + $0xb8] sm:$0xff] %vm1324, %v5843
      %5916 = vst.msk [vmem:[#allocation3 + $0xc0] sm:$0xff] %vm1324, %v5845
      %5917 = vst.msk [vmem:[#allocation3 + $0xc8] sm:$0xff] %vm1324, %v5847
      %5918 = vst.msk [vmem:[#allocation3 + $0xd0] sm:$0xff] %vm1324, %v5849
      %5919 = vst.msk [vmem:[#allocation3 + $0xd8] sm:$0xff] %vm1324, %v5851
      %5920 = vst.msk [vmem:[#allocation3 + $0xe0] sm:$0xff] %vm1324, %v5853
      %5921 = vst.msk [vmem:[#allocation3 + $0xe8] sm:$0xff] %vm1324, %v5855
      %5922 = vst.msk [vmem:[#allocation3 + $0xf0] sm:$0xff] %vm1324, %v5857
      %5923 = vst.msk [vmem:[#allocation3 + $0xf8] sm:$0xff] %vm1324, %v5859
      %s5924 = scalar_lea.vmem [#allocation5], 48
      %v5925 = vld [vmem:[%s5924] sm:$0xff]
      %v5926 = vld [vmem:[%s5924 + $0x8] sm:$0xff]
      %v5927 = vld [vmem:[%s5924 + $0x18] sm:$0xff]
      %v5928 = vld [vmem:[%s5924 + $0x20] sm:$0xff]
      %v5929 = vld [vmem:[%s5924 + $0x30] sm:$0xff]
      %v5930 = vld [vmem:[%s5924 + $0x38] sm:$0xff]
      %v5931 = vld [vmem:[%s5924 + $0x48] sm:$0xff]
      %v5932 = vld [vmem:[%s5924 + $0x50] sm:$0xff]
      %v5933 = vld [vmem:[%s5924 + $0x60] sm:$0xff]
      %v5934 = vld [vmem:[%s5924 + $0x68] sm:$0xff]
      %v5935 = vld [vmem:[%s5924 + $0x78] sm:$0xff]
      %v5936 = vld [vmem:[%s5924 + $0x80] sm:$0xff]
      %v5937 = vld [vmem:[%s5924 + $0x90] sm:$0xff]
      %v5938 = vld [vmem:[%s5924 + $0x98] sm:$0xff]
      %v5939 = vld [vmem:[%s5924 + $0xa8] sm:$0xff]
      %v5940 = vld [vmem:[%s5924 + $0xb0] sm:$0xff]
      %v5941 = vld [vmem:[%s5924 + $0xc0] sm:$0xff]
      %v5942 = vld [vmem:[%s5924 + $0xc8] sm:$0xff]
      %v5943 = vld [vmem:[%s5924 + $0xd8] sm:$0xff]
      %v5944 = vld [vmem:[%s5924 + $0xe0] sm:$0xff]
      %v5945 = vld [vmem:[%s5924 + $0xf0] sm:$0xff]
      %v5946 = vld [vmem:[%s5924 + $0xf8] sm:$0xff]
      %v5947 = vld [vmem:[%s5924 + $0x108] sm:$0xff]
      %v5948 = vld [vmem:[%s5924 + $0x110] sm:$0xff]
      %v5949 = vld [vmem:[%s5924 + $0x120] sm:$0xff]
      %v5950 = vld [vmem:[%s5924 + $0x128] sm:$0xff]
      %v5951 = vld [vmem:[%s5924 + $0x138] sm:$0xff]
      %v5952 = vld [vmem:[%s5924 + $0x140] sm:$0xff]
      %v5953 = vld [vmem:[%s5924 + $0x150] sm:$0xff]
      %v5954 = vld [vmem:[%s5924 + $0x158] sm:$0xff]
      %v5955 = vld [vmem:[%s5924 + $0x168] sm:$0xff]
      %v5956 = vld [vmem:[%s5924 + $0x170] sm:$0xff]
      %5989 = vrot.lane.b32.xlu0 %v5925, 24
      %v5990 = vpop.permute.xlu0 %5989
      %5991 = vrot.lane.b32.xlu0 %v5926, 24
      %v5992 = vpop.permute.xlu0 %5991
      %5993 = vrot.lane.b32.xlu0 %v5927, 24
      %v5994 = vpop.permute.xlu0 %5993
      %5995 = vrot.lane.b32.xlu0 %v5928, 24
      %v5996 = vpop.permute.xlu0 %5995
      %5997 = vrot.lane.b32.xlu0 %v5929, 24
      %v5998 = vpop.permute.xlu0 %5997
      %5999 = vrot.lane.b32.xlu0 %v5930, 24
      %v6000 = vpop.permute.xlu0 %5999
      %6001 = vrot.lane.b32.xlu0 %v5931, 24
      %v6002 = vpop.permute.xlu0 %6001
      %6003 = vrot.lane.b32.xlu0 %v5932, 24
      %v6004 = vpop.permute.xlu0 %6003
      %6005 = vrot.lane.b32.xlu0 %v5933, 24
      %v6006 = vpop.permute.xlu0 %6005
      %6007 = vrot.lane.b32.xlu0 %v5934, 24
      %v6008 = vpop.permute.xlu0 %6007
      %6009 = vrot.lane.b32.xlu0 %v5935, 24
      %v6010 = vpop.permute.xlu0 %6009
      %6011 = vrot.lane.b32.xlu0 %v5936, 24
      %v6012 = vpop.permute.xlu0 %6011
      %6013 = vrot.lane.b32.xlu0 %v5937, 24
      %v6014 = vpop.permute.xlu0 %6013
      %6015 = vrot.lane.b32.xlu0 %v5938, 24
      %v6016 = vpop.permute.xlu0 %6015
      %6017 = vrot.lane.b32.xlu0 %v5939, 24
      %v6018 = vpop.permute.xlu0 %6017
      %6019 = vrot.lane.b32.xlu0 %v5940, 24
      %v6020 = vpop.permute.xlu0 %6019
      %6021 = vrot.lane.b32.xlu0 %v5941, 24
      %v6022 = vpop.permute.xlu0 %6021
      %6023 = vrot.lane.b32.xlu0 %v5942, 24
      %v6024 = vpop.permute.xlu0 %6023
      %6025 = vrot.lane.b32.xlu0 %v5943, 24
      %v6026 = vpop.permute.xlu0 %6025
      %6027 = vrot.lane.b32.xlu0 %v5944, 24
      %v6028 = vpop.permute.xlu0 %6027
      %6029 = vrot.lane.b32.xlu0 %v5945, 24
      %v6030 = vpop.permute.xlu0 %6029
      %6031 = vrot.lane.b32.xlu0 %v5946, 24
      %v6032 = vpop.permute.xlu0 %6031
      %6033 = vrot.lane.b32.xlu0 %v5947, 24
      %v6034 = vpop.permute.xlu0 %6033
      %6035 = vrot.lane.b32.xlu0 %v5948, 24
      %v6036 = vpop.permute.xlu0 %6035
      %6037 = vrot.lane.b32.xlu0 %v5949, 24
      %v6038 = vpop.permute.xlu0 %6037
      %6039 = vrot.lane.b32.xlu0 %v5950, 24
      %v6040 = vpop.permute.xlu0 %6039
      %6041 = vrot.lane.b32.xlu0 %v5951, 24
      %v6042 = vpop.permute.xlu0 %6041
      %6043 = vrot.lane.b32.xlu0 %v5952, 24
      %v6044 = vpop.permute.xlu0 %6043
      %6045 = vrot.lane.b32.xlu0 %v5953, 24
      %v6046 = vpop.permute.xlu0 %6045
      %6047 = vrot.lane.b32.xlu0 %v5954, 24
      %v6048 = vpop.permute.xlu0 %6047
      %6049 = vrot.lane.b32.xlu0 %v5955, 24
      %v6050 = vpop.permute.xlu0 %6049
      %6051 = vrot.lane.b32.xlu0 %v5956, 24
      %v6052 = vpop.permute.xlu0 %6051
      %6085 = vst.msk [vmem:[#allocation3] sm:$0xff] %vm1518, %v5990
      %6086 = vst.msk [vmem:[#allocation3 + $0x8] sm:$0xff] %vm1518, %v5992
      %6087 = vst.msk [vmem:[#allocation3 + $0x10] sm:$0xff] %vm1518, %v5994
      %6088 = vst.msk [vmem:[#allocation3 + $0x18] sm:$0xff] %vm1518, %v5996
      %6089 = vst.msk [vmem:[#allocation3 + $0x20] sm:$0xff] %vm1518, %v5998
      %6090 = vst.msk [vmem:[#allocation3 + $0x28] sm:$0xff] %vm1518, %v6000
      %6091 = vst.msk [vmem:[#allocation3 + $0x30] sm:$0xff] %vm1518, %v6002
      %6092 = vst.msk [vmem:[#allocation3 + $0x38] sm:$0xff] %vm1518, %v6004
      %6093 = vst.msk [vmem:[#allocation3 + $0x40] sm:$0xff] %vm1518, %v6006
      %6094 = vst.msk [vmem:[#allocation3 + $0x48] sm:$0xff] %vm1518, %v6008
      %6095 = vst.msk [vmem:[#allocation3 + $0x50] sm:$0xff] %vm1518, %v6010
      %6096 = vst.msk [vmem:[#allocation3 + $0x58] sm:$0xff] %vm1518, %v6012
      %6097 = vst.msk [vmem:[#allocation3 + $0x60] sm:$0xff] %vm1518, %v6014
      %6098 = vst.msk [vmem:[#allocation3 + $0x68] sm:$0xff] %vm1518, %v6016
      %6099 = vst.msk [vmem:[#allocation3 + $0x70] sm:$0xff] %vm1518, %v6018
      %6100 = vst.msk [vmem:[#allocation3 + $0x78] sm:$0xff] %vm1518, %v6020
      %6101 = vst.msk [vmem:[#allocation3 + $0x80] sm:$0xff] %vm1518, %v6022
      %6102 = vst.msk [vmem:[#allocation3 + $0x88] sm:$0xff] %vm1518, %v6024
      %6103 = vst.msk [vmem:[#allocation3 + $0x90] sm:$0xff] %vm1518, %v6026
      %6104 = vst.msk [vmem:[#allocation3 + $0x98] sm:$0xff] %vm1518, %v6028
      %6105 = vst.msk [vmem:[#allocation3 + $0xa0] sm:$0xff] %vm1518, %v6030
      %6106 = vst.msk [vmem:[#allocation3 + $0xa8] sm:$0xff] %vm1518, %v6032
      %6107 = vst.msk [vmem:[#allocation3 + $0xb0] sm:$0xff] %vm1518, %v6034
      %6108 = vst.msk [vmem:[#allocation3 + $0xb8] sm:$0xff] %vm1518, %v6036
      %6109 = vst.msk [vmem:[#allocation3 + $0xc0] sm:$0xff] %vm1518, %v6038
      %6110 = vst.msk [vmem:[#allocation3 + $0xc8] sm:$0xff] %vm1518, %v6040
      %6111 = vst.msk [vmem:[#allocation3 + $0xd0] sm:$0xff] %vm1518, %v6042
      %6112 = vst.msk [vmem:[#allocation3 + $0xd8] sm:$0xff] %vm1518, %v6044
      %6113 = vst.msk [vmem:[#allocation3 + $0xe0] sm:$0xff] %vm1518, %v6046
      %6114 = vst.msk [vmem:[#allocation3 + $0xe8] sm:$0xff] %vm1518, %v6048
      %6115 = vst.msk [vmem:[#allocation3 + $0xf0] sm:$0xff] %vm1518, %v6050
      %6116 = vst.msk [vmem:[#allocation3 + $0xf8] sm:$0xff] %vm1518, %v6052
      %v6117 = vld [vmem:[%s5924 + $0x1] sm:$0xff]
      %v6118 = vld [vmem:[%s5924 + $0x9] sm:$0xff]
      %v6119 = vld [vmem:[%s5924 + $0x19] sm:$0xff]
      %v6120 = vld [vmem:[%s5924 + $0x21] sm:$0xff]
      %v6121 = vld [vmem:[%s5924 + $0x31] sm:$0xff]
      %v6122 = vld [vmem:[%s5924 + $0x39] sm:$0xff]
      %v6123 = vld [vmem:[%s5924 + $0x49] sm:$0xff]
      %v6124 = vld [vmem:[%s5924 + $0x51] sm:$0xff]
      %v6125 = vld [vmem:[%s5924 + $0x61] sm:$0xff]
      %v6126 = vld [vmem:[%s5924 + $0x69] sm:$0xff]
      %v6127 = vld [vmem:[%s5924 + $0x79] sm:$0xff]
      %v6128 = vld [vmem:[%s5924 + $0x81] sm:$0xff]
      %v6129 = vld [vmem:[%s5924 + $0x91] sm:$0xff]
      %v6130 = vld [vmem:[%s5924 + $0x99] sm:$0xff]
      %v6131 = vld [vmem:[%s5924 + $0xa9] sm:$0xff]
      %v6132 = vld [vmem:[%s5924 + $0xb1] sm:$0xff]
      %v6133 = vld [vmem:[%s5924 + $0xc1] sm:$0xff]
      %v6134 = vld [vmem:[%s5924 + $0xc9] sm:$0xff]
      %v6135 = vld [vmem:[%s5924 + $0xd9] sm:$0xff]
      %v6136 = vld [vmem:[%s5924 + $0xe1] sm:$0xff]
      %v6137 = vld [vmem:[%s5924 + $0xf1] sm:$0xff]
      %v6138 = vld [vmem:[%s5924 + $0xf9] sm:$0xff]
      %v6139 = vld [vmem:[%s5924 + $0x109] sm:$0xff]
      %v6140 = vld [vmem:[%s5924 + $0x111] sm:$0xff]
      %v6141 = vld [vmem:[%s5924 + $0x121] sm:$0xff]
      %v6142 = vld [vmem:[%s5924 + $0x129] sm:$0xff]
      %v6143 = vld [vmem:[%s5924 + $0x139] sm:$0xff]
      %v6144 = vld [vmem:[%s5924 + $0x141] sm:$0xff]
      %v6145 = vld [vmem:[%s5924 + $0x151] sm:$0xff]
      %v6146 = vld [vmem:[%s5924 + $0x159] sm:$0xff]
      %v6147 = vld [vmem:[%s5924 + $0x169] sm:$0xff]
      %v6148 = vld [vmem:[%s5924 + $0x171] sm:$0xff]
      %6181 = vrot.lane.b32.xlu0 %v6117, 28
      %v6182 = vpop.permute.xlu0 %6181
      %6183 = vrot.lane.b32.xlu0 %v6118, 28
      %v6184 = vpop.permute.xlu0 %6183
      %6185 = vrot.lane.b32.xlu0 %v6119, 28
      %v6186 = vpop.permute.xlu0 %6185
      %6187 = vrot.lane.b32.xlu0 %v6120, 28
      %v6188 = vpop.permute.xlu0 %6187
      %6189 = vrot.lane.b32.xlu0 %v6121, 28
      %v6190 = vpop.permute.xlu0 %6189
      %6191 = vrot.lane.b32.xlu0 %v6122, 28
      %v6192 = vpop.permute.xlu0 %6191
      %6193 = vrot.lane.b32.xlu0 %v6123, 28
      %v6194 = vpop.permute.xlu0 %6193
      %6195 = vrot.lane.b32.xlu0 %v6124, 28
      %v6196 = vpop.permute.xlu0 %6195
      %6197 = vrot.lane.b32.xlu0 %v6125, 28
      %v6198 = vpop.permute.xlu0 %6197
      %6199 = vrot.lane.b32.xlu0 %v6126, 28
      %v6200 = vpop.permute.xlu0 %6199
      %6201 = vrot.lane.b32.xlu0 %v6127, 28
      %v6202 = vpop.permute.xlu0 %6201
      %6203 = vrot.lane.b32.xlu0 %v6128, 28
      %v6204 = vpop.permute.xlu0 %6203
      %6205 = vrot.lane.b32.xlu0 %v6129, 28
      %v6206 = vpop.permute.xlu0 %6205
      %6207 = vrot.lane.b32.xlu0 %v6130, 28
      %v6208 = vpop.permute.xlu0 %6207
      %6209 = vrot.lane.b32.xlu0 %v6131, 28
      %v6210 = vpop.permute.xlu0 %6209
      %6211 = vrot.lane.b32.xlu0 %v6132, 28
      %v6212 = vpop.permute.xlu0 %6211
      %6213 = vrot.lane.b32.xlu0 %v6133, 28
      %v6214 = vpop.permute.xlu0 %6213
      %6215 = vrot.lane.b32.xlu0 %v6134, 28
      %v6216 = vpop.permute.xlu0 %6215
      %6217 = vrot.lane.b32.xlu0 %v6135, 28
      %v6218 = vpop.permute.xlu0 %6217
      %6219 = vrot.lane.b32.xlu0 %v6136, 28
      %v6220 = vpop.permute.xlu0 %6219
      %6221 = vrot.lane.b32.xlu0 %v6137, 28
      %v6222 = vpop.permute.xlu0 %6221
      %6223 = vrot.lane.b32.xlu0 %v6138, 28
      %v6224 = vpop.permute.xlu0 %6223
      %6225 = vrot.lane.b32.xlu0 %v6139, 28
      %v6226 = vpop.permute.xlu0 %6225
      %6227 = vrot.lane.b32.xlu0 %v6140, 28
      %v6228 = vpop.permute.xlu0 %6227
      %6229 = vrot.lane.b32.xlu0 %v6141, 28
      %v6230 = vpop.permute.xlu0 %6229
      %6231 = vrot.lane.b32.xlu0 %v6142, 28
      %v6232 = vpop.permute.xlu0 %6231
      %6233 = vrot.lane.b32.xlu0 %v6143, 28
      %v6234 = vpop.permute.xlu0 %6233
      %6235 = vrot.lane.b32.xlu0 %v6144, 28
      %v6236 = vpop.permute.xlu0 %6235
      %6237 = vrot.lane.b32.xlu0 %v6145, 28
      %v6238 = vpop.permute.xlu0 %6237
      %6239 = vrot.lane.b32.xlu0 %v6146, 28
      %v6240 = vpop.permute.xlu0 %6239
      %6241 = vrot.lane.b32.xlu0 %v6147, 28
      %v6242 = vpop.permute.xlu0 %6241
      %6243 = vrot.lane.b32.xlu0 %v6148, 28
      %v6244 = vpop.permute.xlu0 %6243
      %6277 = vst.msk [vmem:[#allocation3] sm:$0xff] %vm1711, %v6182
      %6278 = vst.msk [vmem:[#allocation3 + $0x8] sm:$0xff] %vm1711, %v6184
      %6279 = vst.msk [vmem:[#allocation3 + $0x10] sm:$0xff] %vm1711, %v6186
      %6280 = vst.msk [vmem:[#allocation3 + $0x18] sm:$0xff] %vm1711, %v6188
      %6281 = vst.msk [vmem:[#allocation3 + $0x20] sm:$0xff] %vm1711, %v6190
      %6282 = vst.msk [vmem:[#allocation3 + $0x28] sm:$0xff] %vm1711, %v6192
      %6283 = vst.msk [vmem:[#allocation3 + $0x30] sm:$0xff] %vm1711, %v6194
      %6284 = vst.msk [vmem:[#allocation3 + $0x38] sm:$0xff] %vm1711, %v6196
      %6285 = vst.msk [vmem:[#allocation3 + $0x40] sm:$0xff] %vm1711, %v6198
      %6286 = vst.msk [vmem:[#allocation3 + $0x48] sm:$0xff] %vm1711, %v6200
      %6287 = vst.msk [vmem:[#allocation3 + $0x50] sm:$0xff] %vm1711, %v6202
      %6288 = vst.msk [vmem:[#allocation3 + $0x58] sm:$0xff] %vm1711, %v6204
      %6289 = vst.msk [vmem:[#allocation3 + $0x60] sm:$0xff] %vm1711, %v6206
      %6290 = vst.msk [vmem:[#allocation3 + $0x68] sm:$0xff] %vm1711, %v6208
      %6291 = vst.msk [vmem:[#allocation3 + $0x70] sm:$0xff] %vm1711, %v6210
      %6292 = vst.msk [vmem:[#allocation3 + $0x78] sm:$0xff] %vm1711, %v6212
      %6293 = vst.msk [vmem:[#allocation3 + $0x80] sm:$0xff] %vm1711, %v6214
      %6294 = vst.msk [vmem:[#allocation3 + $0x88] sm:$0xff] %vm1711, %v6216
      %6295 = vst.msk [vmem:[#allocation3 + $0x90] sm:$0xff] %vm1711, %v6218
      %6296 = vst.msk [vmem:[#allocation3 + $0x98] sm:$0xff] %vm1711, %v6220
      %6297 = vst.msk [vmem:[#allocation3 + $0xa0] sm:$0xff] %vm1711, %v6222
      %6298 = vst.msk [vmem:[#allocation3 + $0xa8] sm:$0xff] %vm1711, %v6224
      %6299 = vst.msk [vmem:[#allocation3 + $0xb0] sm:$0xff] %vm1711, %v6226
      %6300 = vst.msk [vmem:[#allocation3 + $0xb8] sm:$0xff] %vm1711, %v6228
      %6301 = vst.msk [vmem:[#allocation3 + $0xc0] sm:$0xff] %vm1711, %v6230
      %6302 = vst.msk [vmem:[#allocation3 + $0xc8] sm:$0xff] %vm1711, %v6232
      %6303 = vst.msk [vmem:[#allocation3 + $0xd0] sm:$0xff] %vm1711, %v6234
      %6304 = vst.msk [vmem:[#allocation3 + $0xd8] sm:$0xff] %vm1711, %v6236
      %6305 = vst.msk [vmem:[#allocation3 + $0xe0] sm:$0xff] %vm1711, %v6238
      %6306 = vst.msk [vmem:[#allocation3 + $0xe8] sm:$0xff] %vm1711, %v6240
      %6307 = vst.msk [vmem:[#allocation3 + $0xf0] sm:$0xff] %vm1711, %v6242
      %6308 = vst.msk [vmem:[#allocation3 + $0xf8] sm:$0xff] %vm1711, %v6244
      %v6309 = vld [vmem:[%s5924 + $0x2] sm:$0xff]
      %v6310 = vld [vmem:[%s5924 + $0xa] sm:$0xff]
      %v6311 = vld [vmem:[%s5924 + $0x1a] sm:$0xff]
      %v6312 = vld [vmem:[%s5924 + $0x22] sm:$0xff]
      %v6313 = vld [vmem:[%s5924 + $0x32] sm:$0xff]
      %v6314 = vld [vmem:[%s5924 + $0x3a] sm:$0xff]
      %v6315 = vld [vmem:[%s5924 + $0x4a] sm:$0xff]
      %v6316 = vld [vmem:[%s5924 + $0x52] sm:$0xff]
      %v6317 = vld [vmem:[%s5924 + $0x62] sm:$0xff]
      %v6318 = vld [vmem:[%s5924 + $0x6a] sm:$0xff]
      %v6319 = vld [vmem:[%s5924 + $0x7a] sm:$0xff]
      %v6320 = vld [vmem:[%s5924 + $0x82] sm:$0xff]
      %v6321 = vld [vmem:[%s5924 + $0x92] sm:$0xff]
      %v6322 = vld [vmem:[%s5924 + $0x9a] sm:$0xff]
      %v6323 = vld [vmem:[%s5924 + $0xaa] sm:$0xff]
      %v6324 = vld [vmem:[%s5924 + $0xb2] sm:$0xff]
      %v6325 = vld [vmem:[%s5924 + $0xc2] sm:$0xff]
      %v6326 = vld [vmem:[%s5924 + $0xca] sm:$0xff]
      %v6327 = vld [vmem:[%s5924 + $0xda] sm:$0xff]
      %v6328 = vld [vmem:[%s5924 + $0xe2] sm:$0xff]
      %v6329 = vld [vmem:[%s5924 + $0xf2] sm:$0xff]
      %v6330 = vld [vmem:[%s5924 + $0xfa] sm:$0xff]
      %v6331 = vld [vmem:[%s5924 + $0x10a] sm:$0xff]
      %v6332 = vld [vmem:[%s5924 + $0x112] sm:$0xff]
      %v6333 = vld [vmem:[%s5924 + $0x122] sm:$0xff]
      %v6334 = vld [vmem:[%s5924 + $0x12a] sm:$0xff]
      %v6335 = vld [vmem:[%s5924 + $0x13a] sm:$0xff]
      %v6336 = vld [vmem:[%s5924 + $0x142] sm:$0xff]
      %v6337 = vld [vmem:[%s5924 + $0x152] sm:$0xff]
      %v6338 = vld [vmem:[%s5924 + $0x15a] sm:$0xff]
      %v6339 = vld [vmem:[%s5924 + $0x16a] sm:$0xff]
      %v6340 = vld [vmem:[%s5924 + $0x172] sm:$0xff]
      %6373 = vrot.lane.b32.xlu0 %v6309, 32
      %v6374 = vpop.permute.xlu0 %6373
      %6375 = vrot.lane.b32.xlu0 %v6310, 32
      %v6376 = vpop.permute.xlu0 %6375
      %6377 = vrot.lane.b32.xlu0 %v6311, 32
      %v6378 = vpop.permute.xlu0 %6377
      %6379 = vrot.lane.b32.xlu0 %v6312, 32
      %v6380 = vpop.permute.xlu0 %6379
      %6381 = vrot.lane.b32.xlu0 %v6313, 32
      %v6382 = vpop.permute.xlu0 %6381
      %6383 = vrot.lane.b32.xlu0 %v6314, 32
      %v6384 = vpop.permute.xlu0 %6383
      %6385 = vrot.lane.b32.xlu0 %v6315, 32
      %v6386 = vpop.permute.xlu0 %6385
      %6387 = vrot.lane.b32.xlu0 %v6316, 32
      %v6388 = vpop.permute.xlu0 %6387
      %6389 = vrot.lane.b32.xlu0 %v6317, 32
      %v6390 = vpop.permute.xlu0 %6389
      %6391 = vrot.lane.b32.xlu0 %v6318, 32
      %v6392 = vpop.permute.xlu0 %6391
      %6393 = vrot.lane.b32.xlu0 %v6319, 32
      %v6394 = vpop.permute.xlu0 %6393
      %6395 = vrot.lane.b32.xlu0 %v6320, 32
      %v6396 = vpop.permute.xlu0 %6395
      %6397 = vrot.lane.b32.xlu0 %v6321, 32
      %v6398 = vpop.permute.xlu0 %6397
      %6399 = vrot.lane.b32.xlu0 %v6322, 32
      %v6400 = vpop.permute.xlu0 %6399
      %6401 = vrot.lane.b32.xlu0 %v6323, 32
      %v6402 = vpop.permute.xlu0 %6401
      %6403 = vrot.lane.b32.xlu0 %v6324, 32
      %v6404 = vpop.permute.xlu0 %6403
      %6405 = vrot.lane.b32.xlu0 %v6325, 32
      %v6406 = vpop.permute.xlu0 %6405
      %6407 = vrot.lane.b32.xlu0 %v6326, 32
      %v6408 = vpop.permute.xlu0 %6407
      %6409 = vrot.lane.b32.xlu0 %v6327, 32
      %v6410 = vpop.permute.xlu0 %6409
      %6411 = vrot.lane.b32.xlu0 %v6328, 32
      %v6412 = vpop.permute.xlu0 %6411
      %6413 = vrot.lane.b32.xlu0 %v6329, 32
      %v6414 = vpop.permute.xlu0 %6413
      %6415 = vrot.lane.b32.xlu0 %v6330, 32
      %v6416 = vpop.permute.xlu0 %6415
      %6417 = vrot.lane.b32.xlu0 %v6331, 32
      %v6418 = vpop.permute.xlu0 %6417
      %6419 = vrot.lane.b32.xlu0 %v6332, 32
      %v6420 = vpop.permute.xlu0 %6419
      %6421 = vrot.lane.b32.xlu0 %v6333, 32
      %v6422 = vpop.permute.xlu0 %6421
      %6423 = vrot.lane.b32.xlu0 %v6334, 32
      %v6424 = vpop.permute.xlu0 %6423
      %6425 = vrot.lane.b32.xlu0 %v6335, 32
      %v6426 = vpop.permute.xlu0 %6425
      %6427 = vrot.lane.b32.xlu0 %v6336, 32
      %v6428 = vpop.permute.xlu0 %6427
      %6429 = vrot.lane.b32.xlu0 %v6337, 32
      %v6430 = vpop.permute.xlu0 %6429
      %6431 = vrot.lane.b32.xlu0 %v6338, 32
      %v6432 = vpop.permute.xlu0 %6431
      %6433 = vrot.lane.b32.xlu0 %v6339, 32
      %v6434 = vpop.permute.xlu0 %6433
      %6435 = vrot.lane.b32.xlu0 %v6340, 32
      %v6436 = vpop.permute.xlu0 %6435
      %6469 = vst.msk [vmem:[#allocation3] sm:$0xff] %vm1904, %v6374
      %6470 = vst.msk [vmem:[#allocation3 + $0x8] sm:$0xff] %vm1904, %v6376
      %6471 = vst.msk [vmem:[#allocation3 + $0x10] sm:$0xff] %vm1904, %v6378
      %6472 = vst.msk [vmem:[#allocation3 + $0x18] sm:$0xff] %vm1904, %v6380
      %6473 = vst.msk [vmem:[#allocation3 + $0x20] sm:$0xff] %vm1904, %v6382
      %6474 = vst.msk [vmem:[#allocation3 + $0x28] sm:$0xff] %vm1904, %v6384
      %6475 = vst.msk [vmem:[#allocation3 + $0x30] sm:$0xff] %vm1904, %v6386
      %6476 = vst.msk [vmem:[#allocation3 + $0x38] sm:$0xff] %vm1904, %v6388
      %6477 = vst.msk [vmem:[#allocation3 + $0x40] sm:$0xff] %vm1904, %v6390
      %6478 = vst.msk [vmem:[#allocation3 + $0x48] sm:$0xff] %vm1904, %v6392
      %6479 = vst.msk [vmem:[#allocation3 + $0x50] sm:$0xff] %vm1904, %v6394
      %6480 = vst.msk [vmem:[#allocation3 + $0x58] sm:$0xff] %vm1904, %v6396
      %6481 = vst.msk [vmem:[#allocation3 + $0x60] sm:$0xff] %vm1904, %v6398
      %6482 = vst.msk [vmem:[#allocation3 + $0x68] sm:$0xff] %vm1904, %v6400
      %6483 = vst.msk [vmem:[#allocation3 + $0x70] sm:$0xff] %vm1904, %v6402
      %6484 = vst.msk [vmem:[#allocation3 + $0x78] sm:$0xff] %vm1904, %v6404
      %6485 = vst.msk [vmem:[#allocation3 + $0x80] sm:$0xff] %vm1904, %v6406
      %6486 = vst.msk [vmem:[#allocation3 + $0x88] sm:$0xff] %vm1904, %v6408
      %6487 = vst.msk [vmem:[#allocation3 + $0x90] sm:$0xff] %vm1904, %v6410
      %6488 = vst.msk [vmem:[#allocation3 + $0x98] sm:$0xff] %vm1904, %v6412
      %6489 = vst.msk [vmem:[#allocation3 + $0xa0] sm:$0xff] %vm1904, %v6414
      %6490 = vst.msk [vmem:[#allocation3 + $0xa8] sm:$0xff] %vm1904, %v6416
      %6491 = vst.msk [vmem:[#allocation3 + $0xb0] sm:$0xff] %vm1904, %v6418
      %6492 = vst.msk [vmem:[#allocation3 + $0xb8] sm:$0xff] %vm1904, %v6420
      %6493 = vst.msk [vmem:[#allocation3 + $0xc0] sm:$0xff] %vm1904, %v6422
      %6494 = vst.msk [vmem:[#allocation3 + $0xc8] sm:$0xff] %vm1904, %v6424
      %6495 = vst.msk [vmem:[#allocation3 + $0xd0] sm:$0xff] %vm1904, %v6426
      %6496 = vst.msk [vmem:[#allocation3 + $0xd8] sm:$0xff] %vm1904, %v6428
      %6497 = vst.msk [vmem:[#allocation3 + $0xe0] sm:$0xff] %vm1904, %v6430
      %6498 = vst.msk [vmem:[#allocation3 + $0xe8] sm:$0xff] %vm1904, %v6432
      %6499 = vst.msk [vmem:[#allocation3 + $0xf0] sm:$0xff] %vm1904, %v6434
      %6500 = vst.msk [vmem:[#allocation3 + $0xf8] sm:$0xff] %vm1904, %v6436
      %v6501 = vld [vmem:[#allocation3] sm:$0xff]
      %v6502 = vld [vmem:[#allocation3 + $0x8] sm:$0xff]
      %v6503 = vld [vmem:[#allocation3 + $0x10] sm:$0xff]
      %v6504 = vld [vmem:[#allocation3 + $0x18] sm:$0xff]
      %v6505 = vld [vmem:[#allocation3 + $0x20] sm:$0xff]
      %v6506 = vld [vmem:[#allocation3 + $0x28] sm:$0xff]
      %v6507 = vld [vmem:[#allocation3 + $0x30] sm:$0xff]
      %v6508 = vld [vmem:[#allocation3 + $0x38] sm:$0xff]
      %v6509 = vld [vmem:[#allocation3 + $0x40] sm:$0xff]
      %v6510 = vld [vmem:[#allocation3 + $0x48] sm:$0xff]
      %v6511 = vld [vmem:[#allocation3 + $0x50] sm:$0xff]
      %v6512 = vld [vmem:[#allocation3 + $0x58] sm:$0xff]
      %v6513 = vld [vmem:[#allocation3 + $0x60] sm:$0xff]
      %v6514 = vld [vmem:[#allocation3 + $0x68] sm:$0xff]
      %v6515 = vld [vmem:[#allocation3 + $0x70] sm:$0xff]
      %v6516 = vld [vmem:[#allocation3 + $0x78] sm:$0xff]
      %v6517 = vld [vmem:[#allocation3 + $0x80] sm:$0xff]
      %v6518 = vld [vmem:[#allocation3 + $0x88] sm:$0xff]
      %v6519 = vld [vmem:[#allocation3 + $0x90] sm:$0xff]
      %v6520 = vld [vmem:[#allocation3 + $0x98] sm:$0xff]
      %v6521 = vld [vmem:[#allocation3 + $0xa0] sm:$0xff]
      %v6522 = vld [vmem:[#allocation3 + $0xa8] sm:$0xff]
      %v6523 = vld [vmem:[#allocation3 + $0xb0] sm:$0xff]
      %v6524 = vld [vmem:[#allocation3 + $0xb8] sm:$0xff]
      %v6525 = vld [vmem:[#allocation3 + $0xc0] sm:$0xff]
      %v6526 = vld [vmem:[#allocation3 + $0xc8] sm:$0xff]
      %v6527 = vld [vmem:[#allocation3 + $0xd0] sm:$0xff]
      %v6528 = vld [vmem:[#allocation3 + $0xd8] sm:$0xff]
      %v6529 = vld [vmem:[#allocation3 + $0xe0] sm:$0xff]
      %v6530 = vld [vmem:[#allocation3 + $0xe8] sm:$0xff]
      %v6531 = vld [vmem:[#allocation3 + $0xf0] sm:$0xff]
      %v6532 = vld [vmem:[#allocation3 + $0xf8] sm:$0xff]
      %v6533 = vld [vmem:[%s6] sm:$0xff]
      %v6534 = vld [vmem:[%s6 + $0x8] sm:$0xff]
      %v6535 = vld [vmem:[%s6 + $0x10] sm:$0xff]
      %v6536 = vld [vmem:[%s6 + $0x18] sm:$0xff]
      %v6537 = vld [vmem:[%s6 + $0x20] sm:$0xf]
      %v6538 = vld [vmem:[%s7] sm:$0x1]
      %v6540 = vperm.slane %v6538, 0
      %v6543 = vsel %vm1985, %v6501, 0
      %v6546 = vsel %vm1985, %v6502, 0
      %v6549 = vsel %vm1985, %v6503, 0
      %v6552 = vsel %vm1985, %v6504, 0
      %v6555 = vsel %vm1985, %v6505, 0
      %v6558 = vsel %vm1985, %v6506, 0
      %v6561 = vsel %vm1985, %v6507, 0
      %v6564 = vsel %vm1985, %v6508, 0
      %v6567 = vsel %vm1985, %v6509, 0
      %v6570 = vsel %vm1985, %v6510, 0
      %v6573 = vsel %vm1985, %v6511, 0
      %v6576 = vsel %vm1985, %v6512, 0
      %v6579 = vsel %vm1985, %v6513, 0
      %v6582 = vsel %vm1985, %v6514, 0
      %v6585 = vsel %vm1985, %v6515, 0
      %v6588 = vsel %vm1985, %v6516, 0
      %v6591 = vsel %vm1985, %v6517, 0
      %v6594 = vsel %vm1985, %v6518, 0
      %v6597 = vsel %vm1985, %v6519, 0
      %v6600 = vsel %vm1985, %v6520, 0
      %v6603 = vsel %vm1985, %v6521, 0
      %v6606 = vsel %vm1985, %v6522, 0
      %v6609 = vsel %vm1985, %v6523, 0
      %v6612 = vsel %vm1985, %v6524, 0
      %v6615 = vsel %vm1985, %v6525, 0
      %v6618 = vsel %vm1985, %v6526, 0
      %v6621 = vsel %vm1985, %v6527, 0
      %v6624 = vsel %vm1985, %v6528, 0
      %v6627 = vsel %vm1985, %v6529, 0
      %v6630 = vsel %vm1985, %v6530, 0
      %v6633 = vsel %vm1985, %v6531, 0
      %v6636 = vsel %vm1985, %v6532, 0
      %v6639 = vsel %vm2082, %v6537, 0
      %6641 = vmatpush.msra.mxu0 0.0
      %6642 = vmatpush.msra.mxu0 0.0
      %6643 = vmatpush.msra.mxu0 0.0
      %6644 = vmatpush.msra.mxu0 0.0
      %6645 = vmatpush.msra.mxu0 0.0
      %6646 = vmatpush.msra.mxu0 0.0
      %6647 = vmatpush.msra.mxu0 0.0
      %6648 = vmatpush.msra.mxu0 0.0
      %6649 = vmatpush.msra.mxu0 0.0
      %6650 = vmatpush.msra.mxu0 0.0
      %6651 = vmatpush.msra.mxu0 0.0
      %6652 = vmatpush.msra.mxu0 %v6639
      %6653 = vmatpush.msra.mxu0 %v6536
      %6654 = vmatpush.msra.mxu0 %v6535
      %6655 = vmatpush.msra.mxu0 %v6534
      %6656 = vmatpush.msra.mxu0 %v6533
      %6657 = vmatmul.f32.gmra.mxu0 %v6543
      %v6658 = vpop.f32.mrf.mxu0
      %v6659 = vadd.f32 %v6540, %v6658
      %6660 = vmatmul.f32.gmra.mxu0 %v6546
      %v6661 = vpop.f32.mrf.mxu0
      %v6662 = vadd.f32 %v6540, %v6661
      %6663 = vmatmul.f32.gmra.mxu0 %v6549
      %v6664 = vpop.f32.mrf.mxu0
      %v6665 = vadd.f32 %v6540, %v6664
      %6666 = vmatmul.f32.gmra.mxu0 %v6552
      %v6667 = vpop.f32.mrf.mxu0
      %v6668 = vadd.f32 %v6540, %v6667
      %6669 = vmatmul.f32.gmra.mxu0 %v6555
      %v6670 = vpop.f32.mrf.mxu0
      %v6671 = vadd.f32 %v6540, %v6670
      %6672 = vmatmul.f32.gmra.mxu0 %v6558
      %v6673 = vpop.f32.mrf.mxu0
      %v6674 = vadd.f32 %v6540, %v6673
      %6675 = vmatmul.f32.gmra.mxu0 %v6561
      %v6676 = vpop.f32.mrf.mxu0
      %v6677 = vadd.f32 %v6540, %v6676
      %6678 = vmatmul.f32.gmra.mxu0 %v6564
      %v6679 = vpop.f32.mrf.mxu0
      %v6680 = vadd.f32 %v6540, %v6679
      %6681 = vmatmul.f32.gmra.mxu0 %v6567
      %v6682 = vpop.f32.mrf.mxu0
      %v6683 = vadd.f32 %v6540, %v6682
      %6684 = vmatmul.f32.gmra.mxu0 %v6570
      %v6685 = vpop.f32.mrf.mxu0
      %v6686 = vadd.f32 %v6540, %v6685
      %6687 = vmatmul.f32.gmra.mxu0 %v6573
      %v6688 = vpop.f32.mrf.mxu0
      %v6689 = vadd.f32 %v6540, %v6688
      %6690 = vmatmul.f32.gmra.mxu0 %v6576
      %v6691 = vpop.f32.mrf.mxu0
      %v6692 = vadd.f32 %v6540, %v6691
      %6693 = vmatmul.f32.gmra.mxu0 %v6579
      %v6694 = vpop.f32.mrf.mxu0
      %v6695 = vadd.f32 %v6540, %v6694
      %6696 = vmatmul.f32.gmra.mxu0 %v6582
      %v6697 = vpop.f32.mrf.mxu0
      %v6698 = vadd.f32 %v6540, %v6697
      %6699 = vmatmul.f32.gmra.mxu0 %v6585
      %v6700 = vpop.f32.mrf.mxu0
      %v6701 = vadd.f32 %v6540, %v6700
      %6702 = vmatmul.f32.gmra.mxu0 %v6588
      %v6703 = vpop.f32.mrf.mxu0
      %v6704 = vadd.f32 %v6540, %v6703
      %6705 = vmatmul.f32.gmra.mxu0 %v6591
      %v6706 = vpop.f32.mrf.mxu0
      %v6707 = vadd.f32 %v6540, %v6706
      %6708 = vmatmul.f32.gmra.mxu0 %v6594
      %v6709 = vpop.f32.mrf.mxu0
      %v6710 = vadd.f32 %v6540, %v6709
      %6711 = vmatmul.f32.gmra.mxu0 %v6597
      %v6712 = vpop.f32.mrf.mxu0
      %v6713 = vadd.f32 %v6540, %v6712
      %6714 = vmatmul.f32.gmra.mxu0 %v6600
      %v6715 = vpop.f32.mrf.mxu0
      %v6716 = vadd.f32 %v6540, %v6715
      %6717 = vmatmul.f32.gmra.mxu0 %v6603
      %v6718 = vpop.f32.mrf.mxu0
      %v6719 = vadd.f32 %v6540, %v6718
      %6720 = vmatmul.f32.gmra.mxu0 %v6606
      %v6721 = vpop.f32.mrf.mxu0
      %v6722 = vadd.f32 %v6540, %v6721
      %6723 = vmatmul.f32.gmra.mxu0 %v6609
      %v6724 = vpop.f32.mrf.mxu0
      %v6725 = vadd.f32 %v6540, %v6724
      %6726 = vmatmul.f32.gmra.mxu0 %v6612
      %v6727 = vpop.f32.mrf.mxu0
      %v6728 = vadd.f32 %v6540, %v6727
      %6729 = vmatmul.f32.gmra.mxu0 %v6615
      %v6730 = vpop.f32.mrf.mxu0
      %v6731 = vadd.f32 %v6540, %v6730
      %6732 = vmatmul.f32.gmra.mxu0 %v6618
      %v6733 = vpop.f32.mrf.mxu0
      %v6734 = vadd.f32 %v6540, %v6733
      %6735 = vmatmul.f32.gmra.mxu0 %v6621
      %v6736 = vpop.f32.mrf.mxu0
      %v6737 = vadd.f32 %v6540, %v6736
      %6738 = vmatmul.f32.gmra.mxu0 %v6624
      %v6739 = vpop.f32.mrf.mxu0
      %v6740 = vadd.f32 %v6540, %v6739
      %6741 = vmatmul.f32.gmra.mxu0 %v6627
      %v6742 = vpop.f32.mrf.mxu0
      %v6743 = vadd.f32 %v6540, %v6742
      %6744 = vmatmul.f32.gmra.mxu0 %v6630
      %v6745 = vpop.f32.mrf.mxu0
      %v6746 = vadd.f32 %v6540, %v6745
      %6747 = vmatmul.f32.gmra.mxu0 %v6633
      %v6748 = vpop.f32.mrf.mxu0
      %v6749 = vadd.f32 %v6540, %v6748
      %6750 = vmatmul.f32.gmra.mxu0 %v6636
      %v6751 = vpop.f32.mrf.mxu0
      %v6752 = vadd.f32 %v6540, %v6751
      %6753 = vdwg.mxu0
      %6754 = vst.msk [vmem:[%s2909 + $0x1] sm:$0xff] %vm2766, %v2671
      %6755 = vst.msk [vmem:[%s2909 + $0x9] sm:$0xff] %vm2766, %v2674
      %6756 = vst.msk [vmem:[%s2909 + $0x19] sm:$0xff] %vm2766, %v2677
      %6757 = vst.msk [vmem:[%s2909 + $0x21] sm:$0xff] %vm2766, %v2680
      %6758 = vst.msk [vmem:[%s2909 + $0x31] sm:$0xff] %vm2766, %v2683
      %6759 = vst.msk [vmem:[%s2909 + $0x39] sm:$0xff] %vm2766, %v2686
      %6760 = vst.msk [vmem:[%s2909 + $0x49] sm:$0xff] %vm2766, %v2689
      %6761 = vst.msk [vmem:[%s2909 + $0x51] sm:$0xff] %vm2766, %v2692
      %6762 = vst.msk [vmem:[%s2909 + $0x61] sm:$0xff] %vm2766, %v2695
      %6763 = vst.msk [vmem:[%s2909 + $0x69] sm:$0xff] %vm2766, %v2698
      %6764 = vst.msk [vmem:[%s2909 + $0x79] sm:$0xff] %vm2766, %v2701
      %6765 = vst.msk [vmem:[%s2909 + $0x81] sm:$0xff] %vm2766, %v2704
      %6766 = vst.msk [vmem:[%s2909 + $0x91] sm:$0xff] %vm2766, %v2707
      %6767 = vst.msk [vmem:[%s2909 + $0x99] sm:$0xff] %vm2766, %v2710
      %6768 = vst.msk [vmem:[%s2909 + $0xa9] sm:$0xff] %vm2766, %v2713
      %6769 = vst.msk [vmem:[%s2909 + $0xb1] sm:$0xff] %vm2766, %v2716
      %6770 = vst.msk [vmem:[%s2909 + $0xc1] sm:$0xff] %vm2766, %v2719
      %6771 = vst.msk [vmem:[%s2909 + $0xc9] sm:$0xff] %vm2766, %v2722
      %6772 = vst.msk [vmem:[%s2909 + $0xd9] sm:$0xff] %vm2766, %v2725
      %6773 = vst.msk [vmem:[%s2909 + $0xe1] sm:$0xff] %vm2766, %v2728
      %6774 = vst.msk [vmem:[%s2909 + $0xf1] sm:$0xff] %vm2766, %v2731
      %6775 = vst.msk [vmem:[%s2909 + $0xf9] sm:$0xff] %vm2766, %v2734
      %6776 = vst.msk [vmem:[%s2909 + $0x109] sm:$0xff] %vm2766, %v2737
      %6777 = vst.msk [vmem:[%s2909 + $0x111] sm:$0xff] %vm2766, %v2740
      %6778 = vst.msk [vmem:[%s2909 + $0x121] sm:$0xff] %vm2766, %v2743
      %6779 = vst.msk [vmem:[%s2909 + $0x129] sm:$0xff] %vm2766, %v2746
      %6780 = vst.msk [vmem:[%s2909 + $0x139] sm:$0xff] %vm2766, %v2749
      %6781 = vst.msk [vmem:[%s2909 + $0x141] sm:$0xff] %vm2766, %v2752
      %6782 = vst.msk [vmem:[%s2909 + $0x151] sm:$0xff] %vm2766, %v2755
      %6783 = vst.msk [vmem:[%s2909 + $0x159] sm:$0xff] %vm2766, %v2758
      %6784 = vst.msk [vmem:[%s2909 + $0x169] sm:$0xff] %vm2766, %v2761
      %6785 = vst.msk [vmem:[%s2909 + $0x171] sm:$0xff] %vm2766, %v2764
      %s6786 = scalar_lea.vmem %s5, 1
      %v6787 = vld [vmem:[%s6786] sm:$0x1]
      %v6788 = vld [vmem:[#allocation4] sm:$0xff]
      %v6789 = vld [vmem:[#allocation4 + $0x8] sm:$0xff]
      %v6790 = vld [vmem:[#allocation4 + $0x18] sm:$0xff]
      %v6791 = vld [vmem:[#allocation4 + $0x20] sm:$0xff]
      %v6792 = vld [vmem:[#allocation4 + $0x30] sm:$0xff]
      %v6793 = vld [vmem:[#allocation4 + $0x38] sm:$0xff]
      %v6794 = vld [vmem:[#allocation4 + $0x48] sm:$0xff]
      %v6795 = vld [vmem:[#allocation4 + $0x50] sm:$0xff]
      %v6796 = vld [vmem:[#allocation4 + $0x60] sm:$0xff]
      %v6797 = vld [vmem:[#allocation4 + $0x68] sm:$0xff]
      %v6798 = vld [vmem:[#allocation4 + $0x78] sm:$0xff]
      %v6799 = vld [vmem:[#allocation4 + $0x80] sm:$0xff]
      %v6800 = vld [vmem:[#allocation4 + $0x90] sm:$0xff]
      %v6801 = vld [vmem:[#allocation4 + $0x98] sm:$0xff]
      %v6802 = vld [vmem:[#allocation4 + $0xa8] sm:$0xff]
      %v6803 = vld [vmem:[#allocation4 + $0xb0] sm:$0xff]
      %v6804 = vld [vmem:[#allocation4 + $0xc0] sm:$0xff]
      %v6805 = vld [vmem:[#allocation4 + $0xc8] sm:$0xff]
      %v6806 = vld [vmem:[#allocation4 + $0xd8] sm:$0xff]
      %v6807 = vld [vmem:[#allocation4 + $0xe0] sm:$0xff]
      %v6808 = vld [vmem:[#allocation4 + $0xf0] sm:$0xff]
      %v6809 = vld [vmem:[#allocation4 + $0xf8] sm:$0xff]
      %v6810 = vld [vmem:[#allocation4 + $0x108] sm:$0xff]
      %v6811 = vld [vmem:[#allocation4 + $0x110] sm:$0xff]
      %v6812 = vld [vmem:[#allocation4 + $0x120] sm:$0xff]
      %v6813 = vld [vmem:[#allocation4 + $0x128] sm:$0xff]
      %v6814 = vld [vmem:[#allocation4 + $0x138] sm:$0xff]
      %v6815 = vld [vmem:[#allocation4 + $0x140] sm:$0xff]
      %v6816 = vld [vmem:[#allocation4 + $0x150] sm:$0xff]
      %v6817 = vld [vmem:[#allocation4 + $0x158] sm:$0xff]
      %v6818 = vld [vmem:[#allocation4 + $0x168] sm:$0xff]
      %v6819 = vld [vmem:[#allocation4 + $0x170] sm:$0xff]
      %v6821 = vperm.slane %v6787, 0
      %v6823 = vadd.f32 %v6821, %v6788
      %v6824 = vadd.f32 %v6821, %v6789
      %v6825 = vadd.f32 %v6821, %v6790
      %v6826 = vadd.f32 %v6821, %v6791
      %v6827 = vadd.f32 %v6821, %v6792
      %v6828 = vadd.f32 %v6821, %v6793
      %v6829 = vadd.f32 %v6821, %v6794
      %v6830 = vadd.f32 %v6821, %v6795
      %v6831 = vadd.f32 %v6821, %v6796
      %v6832 = vadd.f32 %v6821, %v6797
      %v6833 = vadd.f32 %v6821, %v6798
      %v6834 = vadd.f32 %v6821, %v6799
      %v6835 = vadd.f32 %v6821, %v6800
      %v6836 = vadd.f32 %v6821, %v6801
      %v6837 = vadd.f32 %v6821, %v6802
      %v6838 = vadd.f32 %v6821, %v6803
      %v6839 = vadd.f32 %v6821, %v6804
      %v6840 = vadd.f32 %v6821, %v6805
      %v6841 = vadd.f32 %v6821, %v6806
      %v6842 = vadd.f32 %v6821, %v6807
      %v6843 = vadd.f32 %v6821, %v6808
      %v6844 = vadd.f32 %v6821, %v6809
      %v6845 = vadd.f32 %v6821, %v6810
      %v6846 = vadd.f32 %v6821, %v6811
      %v6847 = vadd.f32 %v6821, %v6812
      %v6848 = vadd.f32 %v6821, %v6813
      %v6849 = vadd.f32 %v6821, %v6814
      %v6850 = vadd.f32 %v6821, %v6815
      %v6851 = vadd.f32 %v6821, %v6816
      %v6852 = vadd.f32 %v6821, %v6817
      %v6853 = vadd.f32 %v6821, %v6818
      %v6854 = vadd.f32 %v6821, %v6819
      %v6855 = vld [vmem:[#allocation4 + $0x1] sm:$0xff]
      %v6856 = vld [vmem:[#allocation4 + $0x9] sm:$0xff]
      %v6857 = vld [vmem:[#allocation4 + $0x19] sm:$0xff]
      %v6858 = vld [vmem:[#allocation4 + $0x21] sm:$0xff]
      %v6859 = vld [vmem:[#allocation4 + $0x31] sm:$0xff]
      %v6860 = vld [vmem:[#allocation4 + $0x39] sm:$0xff]
      %v6861 = vld [vmem:[#allocation4 + $0x49] sm:$0xff]
      %v6862 = vld [vmem:[#allocation4 + $0x51] sm:$0xff]
      %v6863 = vld [vmem:[#allocation4 + $0x61] sm:$0xff]
      %v6864 = vld [vmem:[#allocation4 + $0x69] sm:$0xff]
      %v6865 = vld [vmem:[#allocation4 + $0x79] sm:$0xff]
      %v6866 = vld [vmem:[#allocation4 + $0x81] sm:$0xff]
      %v6867 = vld [vmem:[#allocation4 + $0x91] sm:$0xff]
      %v6868 = vld [vmem:[#allocation4 + $0x99] sm:$0xff]
      %v6869 = vld [vmem:[#allocation4 + $0xa9] sm:$0xff]
      %v6870 = vld [vmem:[#allocation4 + $0xb1] sm:$0xff]
      %v6871 = vld [vmem:[#allocation4 + $0xc1] sm:$0xff]
      %v6872 = vld [vmem:[#allocation4 + $0xc9] sm:$0xff]
      %v6873 = vld [vmem:[#allocation4 + $0xd9] sm:$0xff]
      %v6874 = vld [vmem:[#allocation4 + $0xe1] sm:$0xff]
      %v6875 = vld [vmem:[#allocation4 + $0xf1] sm:$0xff]
      %v6876 = vld [vmem:[#allocation4 + $0xf9] sm:$0xff]
      %v6877 = vld [vmem:[#allocation4 + $0x109] sm:$0xff]
      %v6878 = vld [vmem:[#allocation4 + $0x111] sm:$0xff]
      %v6879 = vld [vmem:[#allocation4 + $0x121] sm:$0xff]
      %v6880 = vld [vmem:[#allocation4 + $0x129] sm:$0xff]
      %v6881 = vld [vmem:[#allocation4 + $0x139] sm:$0xff]
      %v6882 = vld [vmem:[#allocation4 + $0x141] sm:$0xff]
      %v6883 = vld [vmem:[#allocation4 + $0x151] sm:$0xff]
      %v6884 = vld [vmem:[#allocation4 + $0x159] sm:$0xff]
      %v6885 = vld [vmem:[#allocation4 + $0x169] sm:$0xff]
      %v6886 = vld [vmem:[#allocation4 + $0x171] sm:$0xff]
      %6919 = vrot.lane.b32.xlu0 %v6855, 120
      %v6920 = vpop.permute.xlu0 %6919
      %6921 = vrot.lane.b32.xlu0 %v6856, 120
      %v6922 = vpop.permute.xlu0 %6921
      %6923 = vrot.lane.b32.xlu0 %v6857, 120
      %v6924 = vpop.permute.xlu0 %6923
      %6925 = vrot.lane.b32.xlu0 %v6858, 120
      %v6926 = vpop.permute.xlu0 %6925
      %6927 = vrot.lane.b32.xlu0 %v6859, 120
      %v6928 = vpop.permute.xlu0 %6927
      %6929 = vrot.lane.b32.xlu0 %v6860, 120
      %v6930 = vpop.permute.xlu0 %6929
      %6931 = vrot.lane.b32.xlu0 %v6861, 120
      %v6932 = vpop.permute.xlu0 %6931
      %6933 = vrot.lane.b32.xlu0 %v6862, 120
      %v6934 = vpop.permute.xlu0 %6933
      %6935 = vrot.lane.b32.xlu0 %v6863, 120
      %v6936 = vpop.permute.xlu0 %6935
      %6937 = vrot.lane.b32.xlu0 %v6864, 120
      %v6938 = vpop.permute.xlu0 %6937
      %6939 = vrot.lane.b32.xlu0 %v6865, 120
      %v6940 = vpop.permute.xlu0 %6939
      %6941 = vrot.lane.b32.xlu0 %v6866, 120
      %v6942 = vpop.permute.xlu0 %6941
      %6943 = vrot.lane.b32.xlu0 %v6867, 120
      %v6944 = vpop.permute.xlu0 %6943
      %6945 = vrot.lane.b32.xlu0 %v6868, 120
      %v6946 = vpop.permute.xlu0 %6945
      %6947 = vrot.lane.b32.xlu0 %v6869, 120
      %v6948 = vpop.permute.xlu0 %6947
      %6949 = vrot.lane.b32.xlu0 %v6870, 120
      %v6950 = vpop.permute.xlu0 %6949
      %6951 = vrot.lane.b32.xlu0 %v6871, 120
      %v6952 = vpop.permute.xlu0 %6951
      %6953 = vrot.lane.b32.xlu0 %v6872, 120
      %v6954 = vpop.permute.xlu0 %6953
      %6955 = vrot.lane.b32.xlu0 %v6873, 120
      %v6956 = vpop.permute.xlu0 %6955
      %6957 = vrot.lane.b32.xlu0 %v6874, 120
      %v6958 = vpop.permute.xlu0 %6957
      %6959 = vrot.lane.b32.xlu0 %v6875, 120
      %v6960 = vpop.permute.xlu0 %6959
      %6961 = vrot.lane.b32.xlu0 %v6876, 120
      %v6962 = vpop.permute.xlu0 %6961
      %6963 = vrot.lane.b32.xlu0 %v6877, 120
      %v6964 = vpop.permute.xlu0 %6963
      %6965 = vrot.lane.b32.xlu0 %v6878, 120
      %v6966 = vpop.permute.xlu0 %6965
      %6967 = vrot.lane.b32.xlu0 %v6879, 120
      %v6968 = vpop.permute.xlu0 %6967
      %6969 = vrot.lane.b32.xlu0 %v6880, 120
      %v6970 = vpop.permute.xlu0 %6969
      %6971 = vrot.lane.b32.xlu0 %v6881, 120
      %v6972 = vpop.permute.xlu0 %6971
      %6973 = vrot.lane.b32.xlu0 %v6882, 120
      %v6974 = vpop.permute.xlu0 %6973
      %6975 = vrot.lane.b32.xlu0 %v6883, 120
      %v6976 = vpop.permute.xlu0 %6975
      %6977 = vrot.lane.b32.xlu0 %v6884, 120
      %v6978 = vpop.permute.xlu0 %6977
      %6979 = vrot.lane.b32.xlu0 %v6885, 120
      %v6980 = vpop.permute.xlu0 %6979
      %6981 = vrot.lane.b32.xlu0 %v6886, 120
      %v6982 = vpop.permute.xlu0 %6981
      %v7015 = vadd.f32 %v6823, %v6920
      %v7016 = vadd.f32 %v6824, %v6922
      %v7017 = vadd.f32 %v6825, %v6924
      %v7018 = vadd.f32 %v6826, %v6926
      %v7019 = vadd.f32 %v6827, %v6928
      %v7020 = vadd.f32 %v6828, %v6930
      %v7021 = vadd.f32 %v6829, %v6932
      %v7022 = vadd.f32 %v6830, %v6934
      %v7023 = vadd.f32 %v6831, %v6936
      %v7024 = vadd.f32 %v6832, %v6938
      %v7025 = vadd.f32 %v6833, %v6940
      %v7026 = vadd.f32 %v6834, %v6942
      %v7027 = vadd.f32 %v6835, %v6944
      %v7028 = vadd.f32 %v6836, %v6946
      %v7029 = vadd.f32 %v6837, %v6948
      %v7030 = vadd.f32 %v6838, %v6950
      %v7031 = vadd.f32 %v6839, %v6952
      %v7032 = vadd.f32 %v6840, %v6954
      %v7033 = vadd.f32 %v6841, %v6956
      %v7034 = vadd.f32 %v6842, %v6958
      %v7035 = vadd.f32 %v6843, %v6960
      %v7036 = vadd.f32 %v6844, %v6962
      %v7037 = vadd.f32 %v6845, %v6964
      %v7038 = vadd.f32 %v6846, %v6966
      %v7039 = vadd.f32 %v6847, %v6968
      %v7040 = vadd.f32 %v6848, %v6970
      %v7041 = vadd.f32 %v6849, %v6972
      %v7042 = vadd.f32 %v6850, %v6974
      %v7043 = vadd.f32 %v6851, %v6976
      %v7044 = vadd.f32 %v6852, %v6978
      %v7045 = vadd.f32 %v6853, %v6980
      %v7046 = vadd.f32 %v6854, %v6982
      %v7047 = vld [vmem:[#allocation4 + $0x2] sm:$0xff]
      %v7048 = vld [vmem:[#allocation4 + $0xa] sm:$0xff]
      %v7049 = vld [vmem:[#allocation4 + $0x1a] sm:$0xff]
      %v7050 = vld [vmem:[#allocation4 + $0x22] sm:$0xff]
      %v7051 = vld [vmem:[#allocation4 + $0x32] sm:$0xff]
      %v7052 = vld [vmem:[#allocation4 + $0x3a] sm:$0xff]
      %v7053 = vld [vmem:[#allocation4 + $0x4a] sm:$0xff]
      %v7054 = vld [vmem:[#allocation4 + $0x52] sm:$0xff]
      %v7055 = vld [vmem:[#allocation4 + $0x62] sm:$0xff]
      %v7056 = vld [vmem:[#allocation4 + $0x6a] sm:$0xff]
      %v7057 = vld [vmem:[#allocation4 + $0x7a] sm:$0xff]
      %v7058 = vld [vmem:[#allocation4 + $0x82] sm:$0xff]
      %v7059 = vld [vmem:[#allocation4 + $0x92] sm:$0xff]
      %v7060 = vld [vmem:[#allocation4 + $0x9a] sm:$0xff]
      %v7061 = vld [vmem:[#allocation4 + $0xaa] sm:$0xff]
      %v7062 = vld [vmem:[#allocation4 + $0xb2] sm:$0xff]
      %v7063 = vld [vmem:[#allocation4 + $0xc2] sm:$0xff]
      %v7064 = vld [vmem:[#allocation4 + $0xca] sm:$0xff]
      %v7065 = vld [vmem:[#allocation4 + $0xda] sm:$0xff]
      %v7066 = vld [vmem:[#allocation4 + $0xe2] sm:$0xff]
      %v7067 = vld [vmem:[#allocation4 + $0xf2] sm:$0xff]
      %v7068 = vld [vmem:[#allocation4 + $0xfa] sm:$0xff]
      %v7069 = vld [vmem:[#allocation4 + $0x10a] sm:$0xff]
      %v7070 = vld [vmem:[#allocation4 + $0x112] sm:$0xff]
      %v7071 = vld [vmem:[#allocation4 + $0x122] sm:$0xff]
      %v7072 = vld [vmem:[#allocation4 + $0x12a] sm:$0xff]
      %v7073 = vld [vmem:[#allocation4 + $0x13a] sm:$0xff]
      %v7074 = vld [vmem:[#allocation4 + $0x142] sm:$0xff]
      %v7075 = vld [vmem:[#allocation4 + $0x152] sm:$0xff]
      %v7076 = vld [vmem:[#allocation4 + $0x15a] sm:$0xff]
      %v7077 = vld [vmem:[#allocation4 + $0x16a] sm:$0xff]
      %v7078 = vld [vmem:[#allocation4 + $0x172] sm:$0xff]
      %7111 = vrot.lane.b32.xlu0 %v7047, 112
      %v7112 = vpop.permute.xlu0 %7111
      %7113 = vrot.lane.b32.xlu0 %v7048, 112
      %v7114 = vpop.permute.xlu0 %7113
      %7115 = vrot.lane.b32.xlu0 %v7049, 112
      %v7116 = vpop.permute.xlu0 %7115
      %7117 = vrot.lane.b32.xlu0 %v7050, 112
      %v7118 = vpop.permute.xlu0 %7117
      %7119 = vrot.lane.b32.xlu0 %v7051, 112
      %v7120 = vpop.permute.xlu0 %7119
      %7121 = vrot.lane.b32.xlu0 %v7052, 112
      %v7122 = vpop.permute.xlu0 %7121
      %7123 = vrot.lane.b32.xlu0 %v7053, 112
      %v7124 = vpop.permute.xlu0 %7123
      %7125 = vrot.lane.b32.xlu0 %v7054, 112
      %v7126 = vpop.permute.xlu0 %7125
      %7127 = vrot.lane.b32.xlu0 %v7055, 112
      %v7128 = vpop.permute.xlu0 %7127
      %7129 = vrot.lane.b32.xlu0 %v7056, 112
      %v7130 = vpop.permute.xlu0 %7129
      %7131 = vrot.lane.b32.xlu0 %v7057, 112
      %v7132 = vpop.permute.xlu0 %7131
      %7133 = vrot.lane.b32.xlu0 %v7058, 112
      %v7134 = vpop.permute.xlu0 %7133
      %7135 = vrot.lane.b32.xlu0 %v7059, 112
      %v7136 = vpop.permute.xlu0 %7135
      %7137 = vrot.lane.b32.xlu0 %v7060, 112
      %v7138 = vpop.permute.xlu0 %7137
      %7139 = vrot.lane.b32.xlu0 %v7061, 112
      %v7140 = vpop.permute.xlu0 %7139
      %7141 = vrot.lane.b32.xlu0 %v7062, 112
      %v7142 = vpop.permute.xlu0 %7141
      %7143 = vrot.lane.b32.xlu0 %v7063, 112
      %v7144 = vpop.permute.xlu0 %7143
      %7145 = vrot.lane.b32.xlu0 %v7064, 112
      %v7146 = vpop.permute.xlu0 %7145
      %7147 = vrot.lane.b32.xlu0 %v7065, 112
      %v7148 = vpop.permute.xlu0 %7147
      %7149 = vrot.lane.b32.xlu0 %v7066, 112
      %v7150 = vpop.permute.xlu0 %7149
      %7151 = vrot.lane.b32.xlu0 %v7067, 112
      %v7152 = vpop.permute.xlu0 %7151
      %7153 = vrot.lane.b32.xlu0 %v7068, 112
      %v7154 = vpop.permute.xlu0 %7153
      %7155 = vrot.lane.b32.xlu0 %v7069, 112
      %v7156 = vpop.permute.xlu0 %7155
      %7157 = vrot.lane.b32.xlu0 %v7070, 112
      %v7158 = vpop.permute.xlu0 %7157
      %7159 = vrot.lane.b32.xlu0 %v7071, 112
      %v7160 = vpop.permute.xlu0 %7159
      %7161 = vrot.lane.b32.xlu0 %v7072, 112
      %v7162 = vpop.permute.xlu0 %7161
      %7163 = vrot.lane.b32.xlu0 %v7073, 112
      %v7164 = vpop.permute.xlu0 %7163
      %7165 = vrot.lane.b32.xlu0 %v7074, 112
      %v7166 = vpop.permute.xlu0 %7165
      %7167 = vrot.lane.b32.xlu0 %v7075, 112
      %v7168 = vpop.permute.xlu0 %7167
      %7169 = vrot.lane.b32.xlu0 %v7076, 112
      %v7170 = vpop.permute.xlu0 %7169
      %7171 = vrot.lane.b32.xlu0 %v7077, 112
      %v7172 = vpop.permute.xlu0 %7171
      %7173 = vrot.lane.b32.xlu0 %v7078, 112
      %v7174 = vpop.permute.xlu0 %7173
      %v7207 = vadd.f32 %v7015, %v7112
      %v7208 = vadd.f32 %v7016, %v7114
      %v7209 = vadd.f32 %v7017, %v7116
      %v7210 = vadd.f32 %v7018, %v7118
      %v7211 = vadd.f32 %v7019, %v7120
      %v7212 = vadd.f32 %v7020, %v7122
      %v7213 = vadd.f32 %v7021, %v7124
      %v7214 = vadd.f32 %v7022, %v7126
      %v7215 = vadd.f32 %v7023, %v7128
      %v7216 = vadd.f32 %v7024, %v7130
      %v7217 = vadd.f32 %v7025, %v7132
      %v7218 = vadd.f32 %v7026, %v7134
      %v7219 = vadd.f32 %v7027, %v7136
      %v7220 = vadd.f32 %v7028, %v7138
      %v7221 = vadd.f32 %v7029, %v7140
      %v7222 = vadd.f32 %v7030, %v7142
      %v7223 = vadd.f32 %v7031, %v7144
      %v7224 = vadd.f32 %v7032, %v7146
      %v7225 = vadd.f32 %v7033, %v7148
      %v7226 = vadd.f32 %v7034, %v7150
      %v7227 = vadd.f32 %v7035, %v7152
      %v7228 = vadd.f32 %v7036, %v7154
      %v7229 = vadd.f32 %v7037, %v7156
      %v7230 = vadd.f32 %v7038, %v7158
      %v7231 = vadd.f32 %v7039, %v7160
      %v7232 = vadd.f32 %v7040, %v7162
      %v7233 = vadd.f32 %v7041, %v7164
      %v7234 = vadd.f32 %v7042, %v7166
      %v7235 = vadd.f32 %v7043, %v7168
      %v7236 = vadd.f32 %v7044, %v7170
      %v7237 = vadd.f32 %v7045, %v7172
      %v7238 = vadd.f32 %v7046, %v7174
      %v7239 = vld [vmem:[%s2909] sm:$0xff]
      %v7240 = vld [vmem:[%s2909 + $0x8] sm:$0xff]
      %v7241 = vld [vmem:[%s2909 + $0x18] sm:$0xff]
      %v7242 = vld [vmem:[%s2909 + $0x20] sm:$0xff]
      %v7243 = vld [vmem:[%s2909 + $0x30] sm:$0xff]
      %v7244 = vld [vmem:[%s2909 + $0x38] sm:$0xff]
      %v7245 = vld [vmem:[%s2909 + $0x48] sm:$0xff]
      %v7246 = vld [vmem:[%s2909 + $0x50] sm:$0xff]
      %v7247 = vld [vmem:[%s2909 + $0x60] sm:$0xff]
      %v7248 = vld [vmem:[%s2909 + $0x68] sm:$0xff]
      %v7249 = vld [vmem:[%s2909 + $0x78] sm:$0xff]
      %v7250 = vld [vmem:[%s2909 + $0x80] sm:$0xff]
      %v7251 = vld [vmem:[%s2909 + $0x90] sm:$0xff]
      %v7252 = vld [vmem:[%s2909 + $0x98] sm:$0xff]
      %v7253 = vld [vmem:[%s2909 + $0xa8] sm:$0xff]
      %v7254 = vld [vmem:[%s2909 + $0xb0] sm:$0xff]
      %v7255 = vld [vmem:[%s2909 + $0xc0] sm:$0xff]
      %v7256 = vld [vmem:[%s2909 + $0xc8] sm:$0xff]
      %v7257 = vld [vmem:[%s2909 + $0xd8] sm:$0xff]
      %v7258 = vld [vmem:[%s2909 + $0xe0] sm:$0xff]
      %v7259 = vld [vmem:[%s2909 + $0xf0] sm:$0xff]
      %v7260 = vld [vmem:[%s2909 + $0xf8] sm:$0xff]
      %v7261 = vld [vmem:[%s2909 + $0x108] sm:$0xff]
      %v7262 = vld [vmem:[%s2909 + $0x110] sm:$0xff]
      %v7263 = vld [vmem:[%s2909 + $0x120] sm:$0xff]
      %v7264 = vld [vmem:[%s2909 + $0x128] sm:$0xff]
      %v7265 = vld [vmem:[%s2909 + $0x138] sm:$0xff]
      %v7266 = vld [vmem:[%s2909 + $0x140] sm:$0xff]
      %v7267 = vld [vmem:[%s2909 + $0x150] sm:$0xff]
      %v7268 = vld [vmem:[%s2909 + $0x158] sm:$0xff]
      %v7269 = vld [vmem:[%s2909 + $0x168] sm:$0xff]
      %v7270 = vld [vmem:[%s2909 + $0x170] sm:$0xff]
      %7303 = vrot.lane.b32.xlu0 %v7239, 104
      %v7304 = vpop.permute.xlu0 %7303
      %7305 = vrot.lane.b32.xlu0 %v7240, 104
      %v7306 = vpop.permute.xlu0 %7305
      %7307 = vrot.lane.b32.xlu0 %v7241, 104
      %v7308 = vpop.permute.xlu0 %7307
      %7309 = vrot.lane.b32.xlu0 %v7242, 104
      %v7310 = vpop.permute.xlu0 %7309
      %7311 = vrot.lane.b32.xlu0 %v7243, 104
      %v7312 = vpop.permute.xlu0 %7311
      %7313 = vrot.lane.b32.xlu0 %v7244, 104
      %v7314 = vpop.permute.xlu0 %7313
      %7315 = vrot.lane.b32.xlu0 %v7245, 104
      %v7316 = vpop.permute.xlu0 %7315
      %7317 = vrot.lane.b32.xlu0 %v7246, 104
      %v7318 = vpop.permute.xlu0 %7317
      %7319 = vrot.lane.b32.xlu0 %v7247, 104
      %v7320 = vpop.permute.xlu0 %7319
      %7321 = vrot.lane.b32.xlu0 %v7248, 104
      %v7322 = vpop.permute.xlu0 %7321
      %7323 = vrot.lane.b32.xlu0 %v7249, 104
      %v7324 = vpop.permute.xlu0 %7323
      %7325 = vrot.lane.b32.xlu0 %v7250, 104
      %v7326 = vpop.permute.xlu0 %7325
      %7327 = vrot.lane.b32.xlu0 %v7251, 104
      %v7328 = vpop.permute.xlu0 %7327
      %7329 = vrot.lane.b32.xlu0 %v7252, 104
      %v7330 = vpop.permute.xlu0 %7329
      %7331 = vrot.lane.b32.xlu0 %v7253, 104
      %v7332 = vpop.permute.xlu0 %7331
      %7333 = vrot.lane.b32.xlu0 %v7254, 104
      %v7334 = vpop.permute.xlu0 %7333
      %7335 = vrot.lane.b32.xlu0 %v7255, 104
      %v7336 = vpop.permute.xlu0 %7335
      %7337 = vrot.lane.b32.xlu0 %v7256, 104
      %v7338 = vpop.permute.xlu0 %7337
      %7339 = vrot.lane.b32.xlu0 %v7257, 104
      %v7340 = vpop.permute.xlu0 %7339
      %7341 = vrot.lane.b32.xlu0 %v7258, 104
      %v7342 = vpop.permute.xlu0 %7341
      %7343 = vrot.lane.b32.xlu0 %v7259, 104
      %v7344 = vpop.permute.xlu0 %7343
      %7345 = vrot.lane.b32.xlu0 %v7260, 104
      %v7346 = vpop.permute.xlu0 %7345
      %7347 = vrot.lane.b32.xlu0 %v7261, 104
      %v7348 = vpop.permute.xlu0 %7347
      %7349 = vrot.lane.b32.xlu0 %v7262, 104
      %v7350 = vpop.permute.xlu0 %7349
      %7351 = vrot.lane.b32.xlu0 %v7263, 104
      %v7352 = vpop.permute.xlu0 %7351
      %7353 = vrot.lane.b32.xlu0 %v7264, 104
      %v7354 = vpop.permute.xlu0 %7353
      %7355 = vrot.lane.b32.xlu0 %v7265, 104
      %v7356 = vpop.permute.xlu0 %7355
      %7357 = vrot.lane.b32.xlu0 %v7266, 104
      %v7358 = vpop.permute.xlu0 %7357
      %7359 = vrot.lane.b32.xlu0 %v7267, 104
      %v7360 = vpop.permute.xlu0 %7359
      %7361 = vrot.lane.b32.xlu0 %v7268, 104
      %v7362 = vpop.permute.xlu0 %7361
      %7363 = vrot.lane.b32.xlu0 %v7269, 104
      %v7364 = vpop.permute.xlu0 %7363
      %7365 = vrot.lane.b32.xlu0 %v7270, 104
      %v7366 = vpop.permute.xlu0 %7365
      %v7399 = vadd.f32 %v7207, %v7304
      %v7400 = vadd.f32 %v7208, %v7306
      %v7401 = vadd.f32 %v7209, %v7308
      %v7402 = vadd.f32 %v7210, %v7310
      %v7403 = vadd.f32 %v7211, %v7312
      %v7404 = vadd.f32 %v7212, %v7314
      %v7405 = vadd.f32 %v7213, %v7316
      %v7406 = vadd.f32 %v7214, %v7318
      %v7407 = vadd.f32 %v7215, %v7320
      %v7408 = vadd.f32 %v7216, %v7322
      %v7409 = vadd.f32 %v7217, %v7324
      %v7410 = vadd.f32 %v7218, %v7326
      %v7411 = vadd.f32 %v7219, %v7328
      %v7412 = vadd.f32 %v7220, %v7330
      %v7413 = vadd.f32 %v7221, %v7332
      %v7414 = vadd.f32 %v7222, %v7334
      %v7415 = vadd.f32 %v7223, %v7336
      %v7416 = vadd.f32 %v7224, %v7338
      %v7417 = vadd.f32 %v7225, %v7340
      %v7418 = vadd.f32 %v7226, %v7342
      %v7419 = vadd.f32 %v7227, %v7344
      %v7420 = vadd.f32 %v7228, %v7346
      %v7421 = vadd.f32 %v7229, %v7348
      %v7422 = vadd.f32 %v7230, %v7350
      %v7423 = vadd.f32 %v7231, %v7352
      %v7424 = vadd.f32 %v7232, %v7354
      %v7425 = vadd.f32 %v7233, %v7356
      %v7426 = vadd.f32 %v7234, %v7358
      %v7427 = vadd.f32 %v7235, %v7360
      %v7428 = vadd.f32 %v7236, %v7362
      %v7429 = vadd.f32 %v7237, %v7364
      %v7430 = vadd.f32 %v7238, %v7366
      %v7431 = vld [vmem:[%s2909 + $0x1] sm:$0xff]
      %v7432 = vld [vmem:[%s2909 + $0x9] sm:$0xff]
      %v7433 = vld [vmem:[%s2909 + $0x19] sm:$0xff]
      %v7434 = vld [vmem:[%s2909 + $0x21] sm:$0xff]
      %v7435 = vld [vmem:[%s2909 + $0x31] sm:$0xff]
      %v7436 = vld [vmem:[%s2909 + $0x39] sm:$0xff]
      %v7437 = vld [vmem:[%s2909 + $0x49] sm:$0xff]
      %v7438 = vld [vmem:[%s2909 + $0x51] sm:$0xff]
      %v7439 = vld [vmem:[%s2909 + $0x61] sm:$0xff]
      %v7440 = vld [vmem:[%s2909 + $0x69] sm:$0xff]
      %v7441 = vld [vmem:[%s2909 + $0x79] sm:$0xff]
      %v7442 = vld [vmem:[%s2909 + $0x81] sm:$0xff]
      %v7443 = vld [vmem:[%s2909 + $0x91] sm:$0xff]
      %v7444 = vld [vmem:[%s2909 + $0x99] sm:$0xff]
      %v7445 = vld [vmem:[%s2909 + $0xa9] sm:$0xff]
      %v7446 = vld [vmem:[%s2909 + $0xb1] sm:$0xff]
      %v7447 = vld [vmem:[%s2909 + $0xc1] sm:$0xff]
      %v7448 = vld [vmem:[%s2909 + $0xc9] sm:$0xff]
      %v7449 = vld [vmem:[%s2909 + $0xd9] sm:$0xff]
      %v7450 = vld [vmem:[%s2909 + $0xe1] sm:$0xff]
      %v7451 = vld [vmem:[%s2909 + $0xf1] sm:$0xff]
      %v7452 = vld [vmem:[%s2909 + $0xf9] sm:$0xff]
      %v7453 = vld [vmem:[%s2909 + $0x109] sm:$0xff]
      %v7454 = vld [vmem:[%s2909 + $0x111] sm:$0xff]
      %v7455 = vld [vmem:[%s2909 + $0x121] sm:$0xff]
      %v7456 = vld [vmem:[%s2909 + $0x129] sm:$0xff]
      %v7457 = vld [vmem:[%s2909 + $0x139] sm:$0xff]
      %v7458 = vld [vmem:[%s2909 + $0x141] sm:$0xff]
      %v7459 = vld [vmem:[%s2909 + $0x151] sm:$0xff]
      %v7460 = vld [vmem:[%s2909 + $0x159] sm:$0xff]
      %v7461 = vld [vmem:[%s2909 + $0x169] sm:$0xff]
      %v7462 = vld [vmem:[%s2909 + $0x171] sm:$0xff]
      %7495 = vrot.lane.b32.xlu0 %v7431, 96
      %v7496 = vpop.permute.xlu0 %7495
      %7497 = vrot.lane.b32.xlu0 %v7432, 96
      %v7498 = vpop.permute.xlu0 %7497
      %7499 = vrot.lane.b32.xlu0 %v7433, 96
      %v7500 = vpop.permute.xlu0 %7499
      %7501 = vrot.lane.b32.xlu0 %v7434, 96
      %v7502 = vpop.permute.xlu0 %7501
      %7503 = vrot.lane.b32.xlu0 %v7435, 96
      %v7504 = vpop.permute.xlu0 %7503
      %7505 = vrot.lane.b32.xlu0 %v7436, 96
      %v7506 = vpop.permute.xlu0 %7505
      %7507 = vrot.lane.b32.xlu0 %v7437, 96
      %v7508 = vpop.permute.xlu0 %7507
      %7509 = vrot.lane.b32.xlu0 %v7438, 96
      %v7510 = vpop.permute.xlu0 %7509
      %7511 = vrot.lane.b32.xlu0 %v7439, 96
      %v7512 = vpop.permute.xlu0 %7511
      %7513 = vrot.lane.b32.xlu0 %v7440, 96
      %v7514 = vpop.permute.xlu0 %7513
      %7515 = vrot.lane.b32.xlu0 %v7441, 96
      %v7516 = vpop.permute.xlu0 %7515
      %7517 = vrot.lane.b32.xlu0 %v7442, 96
      %v7518 = vpop.permute.xlu0 %7517
      %7519 = vrot.lane.b32.xlu0 %v7443, 96
      %v7520 = vpop.permute.xlu0 %7519
      %7521 = vrot.lane.b32.xlu0 %v7444, 96
      %v7522 = vpop.permute.xlu0 %7521
      %7523 = vrot.lane.b32.xlu0 %v7445, 96
      %v7524 = vpop.permute.xlu0 %7523
      %7525 = vrot.lane.b32.xlu0 %v7446, 96
      %v7526 = vpop.permute.xlu0 %7525
      %7527 = vrot.lane.b32.xlu0 %v7447, 96
      %v7528 = vpop.permute.xlu0 %7527
      %7529 = vrot.lane.b32.xlu0 %v7448, 96
      %v7530 = vpop.permute.xlu0 %7529
      %7531 = vrot.lane.b32.xlu0 %v7449, 96
      %v7532 = vpop.permute.xlu0 %7531
      %7533 = vrot.lane.b32.xlu0 %v7450, 96
      %v7534 = vpop.permute.xlu0 %7533
      %7535 = vrot.lane.b32.xlu0 %v7451, 96
      %v7536 = vpop.permute.xlu0 %7535
      %7537 = vrot.lane.b32.xlu0 %v7452, 96
      %v7538 = vpop.permute.xlu0 %7537
      %7539 = vrot.lane.b32.xlu0 %v7453, 96
      %v7540 = vpop.permute.xlu0 %7539
      %7541 = vrot.lane.b32.xlu0 %v7454, 96
      %v7542 = vpop.permute.xlu0 %7541
      %7543 = vrot.lane.b32.xlu0 %v7455, 96
      %v7544 = vpop.permute.xlu0 %7543
      %7545 = vrot.lane.b32.xlu0 %v7456, 96
      %v7546 = vpop.permute.xlu0 %7545
      %7547 = vrot.lane.b32.xlu0 %v7457, 96
      %v7548 = vpop.permute.xlu0 %7547
      %7549 = vrot.lane.b32.xlu0 %v7458, 96
      %v7550 = vpop.permute.xlu0 %7549
      %7551 = vrot.lane.b32.xlu0 %v7459, 96
      %v7552 = vpop.permute.xlu0 %7551
      %7553 = vrot.lane.b32.xlu0 %v7460, 96
      %v7554 = vpop.permute.xlu0 %7553
      %7555 = vrot.lane.b32.xlu0 %v7461, 96
      %v7556 = vpop.permute.xlu0 %7555
      %7557 = vrot.lane.b32.xlu0 %v7462, 96
      %v7558 = vpop.permute.xlu0 %7557
      %v7591 = vadd.f32 %v7399, %v7496
      %v7592 = vadd.f32 %v7400, %v7498
      %v7593 = vadd.f32 %v7401, %v7500
      %v7594 = vadd.f32 %v7402, %v7502
      %v7595 = vadd.f32 %v7403, %v7504
      %v7596 = vadd.f32 %v7404, %v7506
      %v7597 = vadd.f32 %v7405, %v7508
      %v7598 = vadd.f32 %v7406, %v7510
      %v7599 = vadd.f32 %v7407, %v7512
      %v7600 = vadd.f32 %v7408, %v7514
      %v7601 = vadd.f32 %v7409, %v7516
      %v7602 = vadd.f32 %v7410, %v7518
      %v7603 = vadd.f32 %v7411, %v7520
      %v7604 = vadd.f32 %v7412, %v7522
      %v7605 = vadd.f32 %v7413, %v7524
      %v7606 = vadd.f32 %v7414, %v7526
      %v7607 = vadd.f32 %v7415, %v7528
      %v7608 = vadd.f32 %v7416, %v7530
      %v7609 = vadd.f32 %v7417, %v7532
      %v7610 = vadd.f32 %v7418, %v7534
      %v7611 = vadd.f32 %v7419, %v7536
      %v7612 = vadd.f32 %v7420, %v7538
      %v7613 = vadd.f32 %v7421, %v7540
      %v7614 = vadd.f32 %v7422, %v7542
      %v7615 = vadd.f32 %v7423, %v7544
      %v7616 = vadd.f32 %v7424, %v7546
      %v7617 = vadd.f32 %v7425, %v7548
      %v7618 = vadd.f32 %v7426, %v7550
      %v7619 = vadd.f32 %v7427, %v7552
      %v7620 = vadd.f32 %v7428, %v7554
      %v7621 = vadd.f32 %v7429, %v7556
      %v7622 = vadd.f32 %v7430, %v7558
      %v7623 = vld [vmem:[%s2909 + $0x2] sm:$0xff]
      %v7624 = vld [vmem:[%s2909 + $0xa] sm:$0xff]
      %v7625 = vld [vmem:[%s2909 + $0x1a] sm:$0xff]
      %v7626 = vld [vmem:[%s2909 + $0x22] sm:$0xff]
      %v7627 = vld [vmem:[%s2909 + $0x32] sm:$0xff]
      %v7628 = vld [vmem:[%s2909 + $0x3a] sm:$0xff]
      %v7629 = vld [vmem:[%s2909 + $0x4a] sm:$0xff]
      %v7630 = vld [vmem:[%s2909 + $0x52] sm:$0xff]
      %v7631 = vld [vmem:[%s2909 + $0x62] sm:$0xff]
      %v7632 = vld [vmem:[%s2909 + $0x6a] sm:$0xff]
      %v7633 = vld [vmem:[%s2909 + $0x7a] sm:$0xff]
      %v7634 = vld [vmem:[%s2909 + $0x82] sm:$0xff]
      %v7635 = vld [vmem:[%s2909 + $0x92] sm:$0xff]
      %v7636 = vld [vmem:[%s2909 + $0x9a] sm:$0xff]
      %v7637 = vld [vmem:[%s2909 + $0xaa] sm:$0xff]
      %v7638 = vld [vmem:[%s2909 + $0xb2] sm:$0xff]
      %v7639 = vld [vmem:[%s2909 + $0xc2] sm:$0xff]
      %v7640 = vld [vmem:[%s2909 + $0xca] sm:$0xff]
      %v7641 = vld [vmem:[%s2909 + $0xda] sm:$0xff]
      %v7642 = vld [vmem:[%s2909 + $0xe2] sm:$0xff]
      %v7643 = vld [vmem:[%s2909 + $0xf2] sm:$0xff]
      %v7644 = vld [vmem:[%s2909 + $0xfa] sm:$0xff]
      %v7645 = vld [vmem:[%s2909 + $0x10a] sm:$0xff]
      %v7646 = vld [vmem:[%s2909 + $0x112] sm:$0xff]
      %v7647 = vld [vmem:[%s2909 + $0x122] sm:$0xff]
      %v7648 = vld [vmem:[%s2909 + $0x12a] sm:$0xff]
      %v7649 = vld [vmem:[%s2909 + $0x13a] sm:$0xff]
      %v7650 = vld [vmem:[%s2909 + $0x142] sm:$0xff]
      %v7651 = vld [vmem:[%s2909 + $0x152] sm:$0xff]
      %v7652 = vld [vmem:[%s2909 + $0x15a] sm:$0xff]
      %v7653 = vld [vmem:[%s2909 + $0x16a] sm:$0xff]
      %v7654 = vld [vmem:[%s2909 + $0x172] sm:$0xff]
      %7687 = vrot.lane.b32.xlu0 %v7623, 88
      %v7688 = vpop.permute.xlu0 %7687
      %7689 = vrot.lane.b32.xlu0 %v7624, 88
      %v7690 = vpop.permute.xlu0 %7689
      %7691 = vrot.lane.b32.xlu0 %v7625, 88
      %v7692 = vpop.permute.xlu0 %7691
      %7693 = vrot.lane.b32.xlu0 %v7626, 88
      %v7694 = vpop.permute.xlu0 %7693
      %7695 = vrot.lane.b32.xlu0 %v7627, 88
      %v7696 = vpop.permute.xlu0 %7695
      %7697 = vrot.lane.b32.xlu0 %v7628, 88
      %v7698 = vpop.permute.xlu0 %7697
      %7699 = vrot.lane.b32.xlu0 %v7629, 88
      %v7700 = vpop.permute.xlu0 %7699
      %7701 = vrot.lane.b32.xlu0 %v7630, 88
      %v7702 = vpop.permute.xlu0 %7701
      %7703 = vrot.lane.b32.xlu0 %v7631, 88
      %v7704 = vpop.permute.xlu0 %7703
      %7705 = vrot.lane.b32.xlu0 %v7632, 88
      %v7706 = vpop.permute.xlu0 %7705
      %7707 = vrot.lane.b32.xlu0 %v7633, 88
      %v7708 = vpop.permute.xlu0 %7707
      %7709 = vrot.lane.b32.xlu0 %v7634, 88
      %v7710 = vpop.permute.xlu0 %7709
      %7711 = vrot.lane.b32.xlu0 %v7635, 88
      %v7712 = vpop.permute.xlu0 %7711
      %7713 = vrot.lane.b32.xlu0 %v7636, 88
      %v7714 = vpop.permute.xlu0 %7713
      %7715 = vrot.lane.b32.xlu0 %v7637, 88
      %v7716 = vpop.permute.xlu0 %7715
      %7717 = vrot.lane.b32.xlu0 %v7638, 88
      %v7718 = vpop.permute.xlu0 %7717
      %7719 = vrot.lane.b32.xlu0 %v7639, 88
      %v7720 = vpop.permute.xlu0 %7719
      %7721 = vrot.lane.b32.xlu0 %v7640, 88
      %v7722 = vpop.permute.xlu0 %7721
      %7723 = vrot.lane.b32.xlu0 %v7641, 88
      %v7724 = vpop.permute.xlu0 %7723
      %7725 = vrot.lane.b32.xlu0 %v7642, 88
      %v7726 = vpop.permute.xlu0 %7725
      %7727 = vrot.lane.b32.xlu0 %v7643, 88
      %v7728 = vpop.permute.xlu0 %7727
      %7729 = vrot.lane.b32.xlu0 %v7644, 88
      %v7730 = vpop.permute.xlu0 %7729
      %7731 = vrot.lane.b32.xlu0 %v7645, 88
      %v7732 = vpop.permute.xlu0 %7731
      %7733 = vrot.lane.b32.xlu0 %v7646, 88
      %v7734 = vpop.permute.xlu0 %7733
      %7735 = vrot.lane.b32.xlu0 %v7647, 88
      %v7736 = vpop.permute.xlu0 %7735
      %7737 = vrot.lane.b32.xlu0 %v7648, 88
      %v7738 = vpop.permute.xlu0 %7737
      %7739 = vrot.lane.b32.xlu0 %v7649, 88
      %v7740 = vpop.permute.xlu0 %7739
      %7741 = vrot.lane.b32.xlu0 %v7650, 88
      %v7742 = vpop.permute.xlu0 %7741
      %7743 = vrot.lane.b32.xlu0 %v7651, 88
      %v7744 = vpop.permute.xlu0 %7743
      %7745 = vrot.lane.b32.xlu0 %v7652, 88
      %v7746 = vpop.permute.xlu0 %7745
      %7747 = vrot.lane.b32.xlu0 %v7653, 88
      %v7748 = vpop.permute.xlu0 %7747
      %7749 = vrot.lane.b32.xlu0 %v7654, 88
      %v7750 = vpop.permute.xlu0 %7749
      %v7783 = vadd.f32 %v7591, %v7688
      %v7784 = vadd.f32 %v7592, %v7690
      %v7785 = vadd.f32 %v7593, %v7692
      %v7786 = vadd.f32 %v7594, %v7694
      %v7787 = vadd.f32 %v7595, %v7696
      %v7788 = vadd.f32 %v7596, %v7698
      %v7789 = vadd.f32 %v7597, %v7700
      %v7790 = vadd.f32 %v7598, %v7702
      %v7791 = vadd.f32 %v7599, %v7704
      %v7792 = vadd.f32 %v7600, %v7706
      %v7793 = vadd.f32 %v7601, %v7708
      %v7794 = vadd.f32 %v7602, %v7710
      %v7795 = vadd.f32 %v7603, %v7712
      %v7796 = vadd.f32 %v7604, %v7714
      %v7797 = vadd.f32 %v7605, %v7716
      %v7798 = vadd.f32 %v7606, %v7718
      %v7799 = vadd.f32 %v7607, %v7720
      %v7800 = vadd.f32 %v7608, %v7722
      %v7801 = vadd.f32 %v7609, %v7724
      %v7802 = vadd.f32 %v7610, %v7726
      %v7803 = vadd.f32 %v7611, %v7728
      %v7804 = vadd.f32 %v7612, %v7730
      %v7805 = vadd.f32 %v7613, %v7732
      %v7806 = vadd.f32 %v7614, %v7734
      %v7807 = vadd.f32 %v7615, %v7736
      %v7808 = vadd.f32 %v7616, %v7738
      %v7809 = vadd.f32 %v7617, %v7740
      %v7810 = vadd.f32 %v7618, %v7742
      %v7811 = vadd.f32 %v7619, %v7744
      %v7812 = vadd.f32 %v7620, %v7746
      %v7813 = vadd.f32 %v7621, %v7748
      %v7814 = vadd.f32 %v7622, %v7750
      %v7815 = vld [vmem:[%s3970] sm:$0xff]
      %v7816 = vld [vmem:[%s3970 + $0x8] sm:$0xff]
      %v7817 = vld [vmem:[%s3970 + $0x18] sm:$0xff]
      %v7818 = vld [vmem:[%s3970 + $0x20] sm:$0xff]
      %v7819 = vld [vmem:[%s3970 + $0x30] sm:$0xff]
      %v7820 = vld [vmem:[%s3970 + $0x38] sm:$0xff]
      %v7821 = vld [vmem:[%s3970 + $0x48] sm:$0xff]
      %v7822 = vld [vmem:[%s3970 + $0x50] sm:$0xff]
      %v7823 = vld [vmem:[%s3970 + $0x60] sm:$0xff]
      %v7824 = vld [vmem:[%s3970 + $0x68] sm:$0xff]
      %v7825 = vld [vmem:[%s3970 + $0x78] sm:$0xff]
      %v7826 = vld [vmem:[%s3970 + $0x80] sm:$0xff]
      %v7827 = vld [vmem:[%s3970 + $0x90] sm:$0xff]
      %v7828 = vld [vmem:[%s3970 + $0x98] sm:$0xff]
      %v7829 = vld [vmem:[%s3970 + $0xa8] sm:$0xff]
      %v7830 = vld [vmem:[%s3970 + $0xb0] sm:$0xff]
      %v7831 = vld [vmem:[%s3970 + $0xc0] sm:$0xff]
      %v7832 = vld [vmem:[%s3970 + $0xc8] sm:$0xff]
      %v7833 = vld [vmem:[%s3970 + $0xd8] sm:$0xff]
      %v7834 = vld [vmem:[%s3970 + $0xe0] sm:$0xff]
      %v7835 = vld [vmem:[%s3970 + $0xf0] sm:$0xff]
      %v7836 = vld [vmem:[%s3970 + $0xf8] sm:$0xff]
      %v7837 = vld [vmem:[%s3970 + $0x108] sm:$0xff]
      %v7838 = vld [vmem:[%s3970 + $0x110] sm:$0xff]
      %v7839 = vld [vmem:[%s3970 + $0x120] sm:$0xff]
      %v7840 = vld [vmem:[%s3970 + $0x128] sm:$0xff]
      %v7841 = vld [vmem:[%s3970 + $0x138] sm:$0xff]
      %v7842 = vld [vmem:[%s3970 + $0x140] sm:$0xff]
      %v7843 = vld [vmem:[%s3970 + $0x150] sm:$0xff]
      %v7844 = vld [vmem:[%s3970 + $0x158] sm:$0xff]
      %v7845 = vld [vmem:[%s3970 + $0x168] sm:$0xff]
      %v7846 = vld [vmem:[%s3970 + $0x170] sm:$0xff]
      %7879 = vrot.lane.b32.xlu0 %v7815, 80
      %v7880 = vpop.permute.xlu0 %7879
      %7881 = vrot.lane.b32.xlu0 %v7816, 80
      %v7882 = vpop.permute.xlu0 %7881
      %7883 = vrot.lane.b32.xlu0 %v7817, 80
      %v7884 = vpop.permute.xlu0 %7883
      %7885 = vrot.lane.b32.xlu0 %v7818, 80
      %v7886 = vpop.permute.xlu0 %7885
      %7887 = vrot.lane.b32.xlu0 %v7819, 80
      %v7888 = vpop.permute.xlu0 %7887
      %7889 = vrot.lane.b32.xlu0 %v7820, 80
      %v7890 = vpop.permute.xlu0 %7889
      %7891 = vrot.lane.b32.xlu0 %v7821, 80
      %v7892 = vpop.permute.xlu0 %7891
      %7893 = vrot.lane.b32.xlu0 %v7822, 80
      %v7894 = vpop.permute.xlu0 %7893
      %7895 = vrot.lane.b32.xlu0 %v7823, 80
      %v7896 = vpop.permute.xlu0 %7895
      %7897 = vrot.lane.b32.xlu0 %v7824, 80
      %v7898 = vpop.permute.xlu0 %7897
      %7899 = vrot.lane.b32.xlu0 %v7825, 80
      %v7900 = vpop.permute.xlu0 %7899
      %7901 = vrot.lane.b32.xlu0 %v7826, 80
      %v7902 = vpop.permute.xlu0 %7901
      %7903 = vrot.lane.b32.xlu0 %v7827, 80
      %v7904 = vpop.permute.xlu0 %7903
      %7905 = vrot.lane.b32.xlu0 %v7828, 80
      %v7906 = vpop.permute.xlu0 %7905
      %7907 = vrot.lane.b32.xlu0 %v7829, 80
      %v7908 = vpop.permute.xlu0 %7907
      %7909 = vrot.lane.b32.xlu0 %v7830, 80
      %v7910 = vpop.permute.xlu0 %7909
      %7911 = vrot.lane.b32.xlu0 %v7831, 80
      %v7912 = vpop.permute.xlu0 %7911
      %7913 = vrot.lane.b32.xlu0 %v7832, 80
      %v7914 = vpop.permute.xlu0 %7913
      %7915 = vrot.lane.b32.xlu0 %v7833, 80
      %v7916 = vpop.permute.xlu0 %7915
      %7917 = vrot.lane.b32.xlu0 %v7834, 80
      %v7918 = vpop.permute.xlu0 %7917
      %7919 = vrot.lane.b32.xlu0 %v7835, 80
      %v7920 = vpop.permute.xlu0 %7919
      %7921 = vrot.lane.b32.xlu0 %v7836, 80
      %v7922 = vpop.permute.xlu0 %7921
      %7923 = vrot.lane.b32.xlu0 %v7837, 80
      %v7924 = vpop.permute.xlu0 %7923
      %7925 = vrot.lane.b32.xlu0 %v7838, 80
      %v7926 = vpop.permute.xlu0 %7925
      %7927 = vrot.lane.b32.xlu0 %v7839, 80
      %v7928 = vpop.permute.xlu0 %7927
      %7929 = vrot.lane.b32.xlu0 %v7840, 80
      %v7930 = vpop.permute.xlu0 %7929
      %7931 = vrot.lane.b32.xlu0 %v7841, 80
      %v7932 = vpop.permute.xlu0 %7931
      %7933 = vrot.lane.b32.xlu0 %v7842, 80
      %v7934 = vpop.permute.xlu0 %7933
      %7935 = vrot.lane.b32.xlu0 %v7843, 80
      %v7936 = vpop.permute.xlu0 %7935
      %7937 = vrot.lane.b32.xlu0 %v7844, 80
      %v7938 = vpop.permute.xlu0 %7937
      %7939 = vrot.lane.b32.xlu0 %v7845, 80
      %v7940 = vpop.permute.xlu0 %7939
      %7941 = vrot.lane.b32.xlu0 %v7846, 80
      %v7942 = vpop.permute.xlu0 %7941
      %v7975 = vadd.f32 %v7783, %v7880
      %v7976 = vadd.f32 %v7784, %v7882
      %v7977 = vadd.f32 %v7785, %v7884
      %v7978 = vadd.f32 %v7786, %v7886
      %v7979 = vadd.f32 %v7787, %v7888
      %v7980 = vadd.f32 %v7788, %v7890
      %v7981 = vadd.f32 %v7789, %v7892
      %v7982 = vadd.f32 %v7790, %v7894
      %v7983 = vadd.f32 %v7791, %v7896
      %v7984 = vadd.f32 %v7792, %v7898
      %v7985 = vadd.f32 %v7793, %v7900
      %v7986 = vadd.f32 %v7794, %v7902
      %v7987 = vadd.f32 %v7795, %v7904
      %v7988 = vadd.f32 %v7796, %v7906
      %v7989 = vadd.f32 %v7797, %v7908
      %v7990 = vadd.f32 %v7798, %v7910
      %v7991 = vadd.f32 %v7799, %v7912
      %v7992 = vadd.f32 %v7800, %v7914
      %v7993 = vadd.f32 %v7801, %v7916
      %v7994 = vadd.f32 %v7802, %v7918
      %v7995 = vadd.f32 %v7803, %v7920
      %v7996 = vadd.f32 %v7804, %v7922
      %v7997 = vadd.f32 %v7805, %v7924
      %v7998 = vadd.f32 %v7806, %v7926
      %v7999 = vadd.f32 %v7807, %v7928
      %v8000 = vadd.f32 %v7808, %v7930
      %v8001 = vadd.f32 %v7809, %v7932
      %v8002 = vadd.f32 %v7810, %v7934
      %v8003 = vadd.f32 %v7811, %v7936
      %v8004 = vadd.f32 %v7812, %v7938
      %v8005 = vadd.f32 %v7813, %v7940
      %v8006 = vadd.f32 %v7814, %v7942
      %v8007 = vld [vmem:[%s3970 + $0x1] sm:$0xff]
      %v8008 = vld [vmem:[%s3970 + $0x9] sm:$0xff]
      %v8009 = vld [vmem:[%s3970 + $0x19] sm:$0xff]
      %v8010 = vld [vmem:[%s3970 + $0x21] sm:$0xff]
      %v8011 = vld [vmem:[%s3970 + $0x31] sm:$0xff]
      %v8012 = vld [vmem:[%s3970 + $0x39] sm:$0xff]
      %v8013 = vld [vmem:[%s3970 + $0x49] sm:$0xff]
      %v8014 = vld [vmem:[%s3970 + $0x51] sm:$0xff]
      %v8015 = vld [vmem:[%s3970 + $0x61] sm:$0xff]
      %v8016 = vld [vmem:[%s3970 + $0x69] sm:$0xff]
      %v8017 = vld [vmem:[%s3970 + $0x79] sm:$0xff]
      %v8018 = vld [vmem:[%s3970 + $0x81] sm:$0xff]
      %v8019 = vld [vmem:[%s3970 + $0x91] sm:$0xff]
      %v8020 = vld [vmem:[%s3970 + $0x99] sm:$0xff]
      %v8021 = vld [vmem:[%s3970 + $0xa9] sm:$0xff]
      %v8022 = vld [vmem:[%s3970 + $0xb1] sm:$0xff]
      %v8023 = vld [vmem:[%s3970 + $0xc1] sm:$0xff]
      %v8024 = vld [vmem:[%s3970 + $0xc9] sm:$0xff]
      %v8025 = vld [vmem:[%s3970 + $0xd9] sm:$0xff]
      %v8026 = vld [vmem:[%s3970 + $0xe1] sm:$0xff]
      %v8027 = vld [vmem:[%s3970 + $0xf1] sm:$0xff]
      %v8028 = vld [vmem:[%s3970 + $0xf9] sm:$0xff]
      %v8029 = vld [vmem:[%s3970 + $0x109] sm:$0xff]
      %v8030 = vld [vmem:[%s3970 + $0x111] sm:$0xff]
      %v8031 = vld [vmem:[%s3970 + $0x121] sm:$0xff]
      %v8032 = vld [vmem:[%s3970 + $0x129] sm:$0xff]
      %v8033 = vld [vmem:[%s3970 + $0x139] sm:$0xff]
      %v8034 = vld [vmem:[%s3970 + $0x141] sm:$0xff]
      %v8035 = vld [vmem:[%s3970 + $0x151] sm:$0xff]
      %v8036 = vld [vmem:[%s3970 + $0x159] sm:$0xff]
      %v8037 = vld [vmem:[%s3970 + $0x169] sm:$0xff]
      %v8038 = vld [vmem:[%s3970 + $0x171] sm:$0xff]
      %8071 = vrot.lane.b32.xlu0 %v8007, 72
      %v8072 = vpop.permute.xlu0 %8071
      %8073 = vrot.lane.b32.xlu0 %v8008, 72
      %v8074 = vpop.permute.xlu0 %8073
      %8075 = vrot.lane.b32.xlu0 %v8009, 72
      %v8076 = vpop.permute.xlu0 %8075
      %8077 = vrot.lane.b32.xlu0 %v8010, 72
      %v8078 = vpop.permute.xlu0 %8077
      %8079 = vrot.lane.b32.xlu0 %v8011, 72
      %v8080 = vpop.permute.xlu0 %8079
      %8081 = vrot.lane.b32.xlu0 %v8012, 72
      %v8082 = vpop.permute.xlu0 %8081
      %8083 = vrot.lane.b32.xlu0 %v8013, 72
      %v8084 = vpop.permute.xlu0 %8083
      %8085 = vrot.lane.b32.xlu0 %v8014, 72
      %v8086 = vpop.permute.xlu0 %8085
      %8087 = vrot.lane.b32.xlu0 %v8015, 72
      %v8088 = vpop.permute.xlu0 %8087
      %8089 = vrot.lane.b32.xlu0 %v8016, 72
      %v8090 = vpop.permute.xlu0 %8089
      %8091 = vrot.lane.b32.xlu0 %v8017, 72
      %v8092 = vpop.permute.xlu0 %8091
      %8093 = vrot.lane.b32.xlu0 %v8018, 72
      %v8094 = vpop.permute.xlu0 %8093
      %8095 = vrot.lane.b32.xlu0 %v8019, 72
      %v8096 = vpop.permute.xlu0 %8095
      %8097 = vrot.lane.b32.xlu0 %v8020, 72
      %v8098 = vpop.permute.xlu0 %8097
      %8099 = vrot.lane.b32.xlu0 %v8021, 72
      %v8100 = vpop.permute.xlu0 %8099
      %8101 = vrot.lane.b32.xlu0 %v8022, 72
      %v8102 = vpop.permute.xlu0 %8101
      %8103 = vrot.lane.b32.xlu0 %v8023, 72
      %v8104 = vpop.permute.xlu0 %8103
      %8105 = vrot.lane.b32.xlu0 %v8024, 72
      %v8106 = vpop.permute.xlu0 %8105
      %8107 = vrot.lane.b32.xlu0 %v8025, 72
      %v8108 = vpop.permute.xlu0 %8107
      %8109 = vrot.lane.b32.xlu0 %v8026, 72
      %v8110 = vpop.permute.xlu0 %8109
      %8111 = vrot.lane.b32.xlu0 %v8027, 72
      %v8112 = vpop.permute.xlu0 %8111
      %8113 = vrot.lane.b32.xlu0 %v8028, 72
      %v8114 = vpop.permute.xlu0 %8113
      %8115 = vrot.lane.b32.xlu0 %v8029, 72
      %v8116 = vpop.permute.xlu0 %8115
      %8117 = vrot.lane.b32.xlu0 %v8030, 72
      %v8118 = vpop.permute.xlu0 %8117
      %8119 = vrot.lane.b32.xlu0 %v8031, 72
      %v8120 = vpop.permute.xlu0 %8119
      %8121 = vrot.lane.b32.xlu0 %v8032, 72
      %v8122 = vpop.permute.xlu0 %8121
      %8123 = vrot.lane.b32.xlu0 %v8033, 72
      %v8124 = vpop.permute.xlu0 %8123
      %8125 = vrot.lane.b32.xlu0 %v8034, 72
      %v8126 = vpop.permute.xlu0 %8125
      %8127 = vrot.lane.b32.xlu0 %v8035, 72
      %v8128 = vpop.permute.xlu0 %8127
      %8129 = vrot.lane.b32.xlu0 %v8036, 72
      %v8130 = vpop.permute.xlu0 %8129
      %8131 = vrot.lane.b32.xlu0 %v8037, 72
      %v8132 = vpop.permute.xlu0 %8131
      %8133 = vrot.lane.b32.xlu0 %v8038, 72
      %v8134 = vpop.permute.xlu0 %8133
      %v8167 = vadd.f32 %v7975, %v8072
      %v8168 = vadd.f32 %v7976, %v8074
      %v8169 = vadd.f32 %v7977, %v8076
      %v8170 = vadd.f32 %v7978, %v8078
      %v8171 = vadd.f32 %v7979, %v8080
      %v8172 = vadd.f32 %v7980, %v8082
      %v8173 = vadd.f32 %v7981, %v8084
      %v8174 = vadd.f32 %v7982, %v8086
      %v8175 = vadd.f32 %v7983, %v8088
      %v8176 = vadd.f32 %v7984, %v8090
      %v8177 = vadd.f32 %v7985, %v8092
      %v8178 = vadd.f32 %v7986, %v8094
      %v8179 = vadd.f32 %v7987, %v8096
      %v8180 = vadd.f32 %v7988, %v8098
      %v8181 = vadd.f32 %v7989, %v8100
      %v8182 = vadd.f32 %v7990, %v8102
      %v8183 = vadd.f32 %v7991, %v8104
      %v8184 = vadd.f32 %v7992, %v8106
      %v8185 = vadd.f32 %v7993, %v8108
      %v8186 = vadd.f32 %v7994, %v8110
      %v8187 = vadd.f32 %v7995, %v8112
      %v8188 = vadd.f32 %v7996, %v8114
      %v8189 = vadd.f32 %v7997, %v8116
      %v8190 = vadd.f32 %v7998, %v8118
      %v8191 = vadd.f32 %v7999, %v8120
      %v8192 = vadd.f32 %v8000, %v8122
      %v8193 = vadd.f32 %v8001, %v8124
      %v8194 = vadd.f32 %v8002, %v8126
      %v8195 = vadd.f32 %v8003, %v8128
      %v8196 = vadd.f32 %v8004, %v8130
      %v8197 = vadd.f32 %v8005, %v8132
      %v8198 = vadd.f32 %v8006, %v8134
      %v8199 = vld [vmem:[%s3970 + $0x2] sm:$0xff]
      %v8200 = vld [vmem:[%s3970 + $0xa] sm:$0xff]
      %v8201 = vld [vmem:[%s3970 + $0x1a] sm:$0xff]
      %v8202 = vld [vmem:[%s3970 + $0x22] sm:$0xff]
      %v8203 = vld [vmem:[%s3970 + $0x32] sm:$0xff]
      %v8204 = vld [vmem:[%s3970 + $0x3a] sm:$0xff]
      %v8205 = vld [vmem:[%s3970 + $0x4a] sm:$0xff]
      %v8206 = vld [vmem:[%s3970 + $0x52] sm:$0xff]
      %v8207 = vld [vmem:[%s3970 + $0x62] sm:$0xff]
      %v8208 = vld [vmem:[%s3970 + $0x6a] sm:$0xff]
      %v8209 = vld [vmem:[%s3970 + $0x7a] sm:$0xff]
      %v8210 = vld [vmem:[%s3970 + $0x82] sm:$0xff]
      %v8211 = vld [vmem:[%s3970 + $0x92] sm:$0xff]
      %v8212 = vld [vmem:[%s3970 + $0x9a] sm:$0xff]
      %v8213 = vld [vmem:[%s3970 + $0xaa] sm:$0xff]
      %v8214 = vld [vmem:[%s3970 + $0xb2] sm:$0xff]
      %v8215 = vld [vmem:[%s3970 + $0xc2] sm:$0xff]
      %v8216 = vld [vmem:[%s3970 + $0xca] sm:$0xff]
      %v8217 = vld [vmem:[%s3970 + $0xda] sm:$0xff]
      %v8218 = vld [vmem:[%s3970 + $0xe2] sm:$0xff]
      %v8219 = vld [vmem:[%s3970 + $0xf2] sm:$0xff]
      %v8220 = vld [vmem:[%s3970 + $0xfa] sm:$0xff]
      %v8221 = vld [vmem:[%s3970 + $0x10a] sm:$0xff]
      %v8222 = vld [vmem:[%s3970 + $0x112] sm:$0xff]
      %v8223 = vld [vmem:[%s3970 + $0x122] sm:$0xff]
      %v8224 = vld [vmem:[%s3970 + $0x12a] sm:$0xff]
      %v8225 = vld [vmem:[%s3970 + $0x13a] sm:$0xff]
      %v8226 = vld [vmem:[%s3970 + $0x142] sm:$0xff]
      %v8227 = vld [vmem:[%s3970 + $0x152] sm:$0xff]
      %v8228 = vld [vmem:[%s3970 + $0x15a] sm:$0xff]
      %v8229 = vld [vmem:[%s3970 + $0x16a] sm:$0xff]
      %v8230 = vld [vmem:[%s3970 + $0x172] sm:$0xff]
      %8263 = vrot.lane.b32.xlu0 %v8199, 64
      %v8264 = vpop.permute.xlu0 %8263
      %8265 = vrot.lane.b32.xlu0 %v8200, 64
      %v8266 = vpop.permute.xlu0 %8265
      %8267 = vrot.lane.b32.xlu0 %v8201, 64
      %v8268 = vpop.permute.xlu0 %8267
      %8269 = vrot.lane.b32.xlu0 %v8202, 64
      %v8270 = vpop.permute.xlu0 %8269
      %8271 = vrot.lane.b32.xlu0 %v8203, 64
      %v8272 = vpop.permute.xlu0 %8271
      %8273 = vrot.lane.b32.xlu0 %v8204, 64
      %v8274 = vpop.permute.xlu0 %8273
      %8275 = vrot.lane.b32.xlu0 %v8205, 64
      %v8276 = vpop.permute.xlu0 %8275
      %8277 = vrot.lane.b32.xlu0 %v8206, 64
      %v8278 = vpop.permute.xlu0 %8277
      %8279 = vrot.lane.b32.xlu0 %v8207, 64
      %v8280 = vpop.permute.xlu0 %8279
      %8281 = vrot.lane.b32.xlu0 %v8208, 64
      %v8282 = vpop.permute.xlu0 %8281
      %8283 = vrot.lane.b32.xlu0 %v8209, 64
      %v8284 = vpop.permute.xlu0 %8283
      %8285 = vrot.lane.b32.xlu0 %v8210, 64
      %v8286 = vpop.permute.xlu0 %8285
      %8287 = vrot.lane.b32.xlu0 %v8211, 64
      %v8288 = vpop.permute.xlu0 %8287
      %8289 = vrot.lane.b32.xlu0 %v8212, 64
      %v8290 = vpop.permute.xlu0 %8289
      %8291 = vrot.lane.b32.xlu0 %v8213, 64
      %v8292 = vpop.permute.xlu0 %8291
      %8293 = vrot.lane.b32.xlu0 %v8214, 64
      %v8294 = vpop.permute.xlu0 %8293
      %8295 = vrot.lane.b32.xlu0 %v8215, 64
      %v8296 = vpop.permute.xlu0 %8295
      %8297 = vrot.lane.b32.xlu0 %v8216, 64
      %v8298 = vpop.permute.xlu0 %8297
      %8299 = vrot.lane.b32.xlu0 %v8217, 64
      %v8300 = vpop.permute.xlu0 %8299
      %8301 = vrot.lane.b32.xlu0 %v8218, 64
      %v8302 = vpop.permute.xlu0 %8301
      %8303 = vrot.lane.b32.xlu0 %v8219, 64
      %v8304 = vpop.permute.xlu0 %8303
      %8305 = vrot.lane.b32.xlu0 %v8220, 64
      %v8306 = vpop.permute.xlu0 %8305
      %8307 = vrot.lane.b32.xlu0 %v8221, 64
      %v8308 = vpop.permute.xlu0 %8307
      %8309 = vrot.lane.b32.xlu0 %v8222, 64
      %v8310 = vpop.permute.xlu0 %8309
      %8311 = vrot.lane.b32.xlu0 %v8223, 64
      %v8312 = vpop.permute.xlu0 %8311
      %8313 = vrot.lane.b32.xlu0 %v8224, 64
      %v8314 = vpop.permute.xlu0 %8313
      %8315 = vrot.lane.b32.xlu0 %v8225, 64
      %v8316 = vpop.permute.xlu0 %8315
      %8317 = vrot.lane.b32.xlu0 %v8226, 64
      %v8318 = vpop.permute.xlu0 %8317
      %8319 = vrot.lane.b32.xlu0 %v8227, 64
      %v8320 = vpop.permute.xlu0 %8319
      %8321 = vrot.lane.b32.xlu0 %v8228, 64
      %v8322 = vpop.permute.xlu0 %8321
      %8323 = vrot.lane.b32.xlu0 %v8229, 64
      %v8324 = vpop.permute.xlu0 %8323
      %8325 = vrot.lane.b32.xlu0 %v8230, 64
      %v8326 = vpop.permute.xlu0 %8325
      %v8359 = vadd.f32 %v8167, %v8264
      %v8360 = vadd.f32 %v8168, %v8266
      %v8361 = vadd.f32 %v8169, %v8268
      %v8362 = vadd.f32 %v8170, %v8270
      %v8363 = vadd.f32 %v8171, %v8272
      %v8364 = vadd.f32 %v8172, %v8274
      %v8365 = vadd.f32 %v8173, %v8276
      %v8366 = vadd.f32 %v8174, %v8278
      %v8367 = vadd.f32 %v8175, %v8280
      %v8368 = vadd.f32 %v8176, %v8282
      %v8369 = vadd.f32 %v8177, %v8284
      %v8370 = vadd.f32 %v8178, %v8286
      %v8371 = vadd.f32 %v8179, %v8288
      %v8372 = vadd.f32 %v8180, %v8290
      %v8373 = vadd.f32 %v8181, %v8292
      %v8374 = vadd.f32 %v8182, %v8294
      %v8375 = vadd.f32 %v8183, %v8296
      %v8376 = vadd.f32 %v8184, %v8298
      %v8377 = vadd.f32 %v8185, %v8300
      %v8378 = vadd.f32 %v8186, %v8302
      %v8379 = vadd.f32 %v8187, %v8304
      %v8380 = vadd.f32 %v8188, %v8306
      %v8381 = vadd.f32 %v8189, %v8308
      %v8382 = vadd.f32 %v8190, %v8310
      %v8383 = vadd.f32 %v8191, %v8312
      %v8384 = vadd.f32 %v8192, %v8314
      %v8385 = vadd.f32 %v8193, %v8316
      %v8386 = vadd.f32 %v8194, %v8318
      %v8387 = vadd.f32 %v8195, %v8320
      %v8388 = vadd.f32 %v8196, %v8322
      %v8389 = vadd.f32 %v8197, %v8324
      %v8390 = vadd.f32 %v8198, %v8326
      %v8391 = vadd.f32 %v8359, 1.0
      %v8392 = vadd.f32 %v8360, 1.0
      %v8393 = vadd.f32 %v8361, 1.0
      %v8394 = vadd.f32 %v8362, 1.0
      %v8395 = vadd.f32 %v8363, 1.0
      %v8396 = vadd.f32 %v8364, 1.0
      %v8397 = vadd.f32 %v8365, 1.0
      %v8398 = vadd.f32 %v8366, 1.0
      %v8399 = vadd.f32 %v8367, 1.0
      %v8400 = vadd.f32 %v8368, 1.0
      %v8401 = vadd.f32 %v8369, 1.0
      %v8402 = vadd.f32 %v8370, 1.0
      %v8403 = vadd.f32 %v8371, 1.0
      %v8404 = vadd.f32 %v8372, 1.0
      %v8405 = vadd.f32 %v8373, 1.0
      %v8406 = vadd.f32 %v8374, 1.0
      %v8407 = vadd.f32 %v8375, 1.0
      %v8408 = vadd.f32 %v8376, 1.0
      %v8409 = vadd.f32 %v8377, 1.0
      %v8410 = vadd.f32 %v8378, 1.0
      %v8411 = vadd.f32 %v8379, 1.0
      %v8412 = vadd.f32 %v8380, 1.0
      %v8413 = vadd.f32 %v8381, 1.0
      %v8414 = vadd.f32 %v8382, 1.0
      %v8415 = vadd.f32 %v8383, 1.0
      %v8416 = vadd.f32 %v8384, 1.0
      %v8417 = vadd.f32 %v8385, 1.0
      %v8418 = vadd.f32 %v8386, 1.0
      %v8419 = vadd.f32 %v8387, 1.0
      %v8420 = vadd.f32 %v8388, 1.0
      %v8421 = vadd.f32 %v8389, 1.0
      %v8422 = vadd.f32 %v8390, 1.0
      %v8423 = vmul.f32 %v6659, %v8391
      %v8424 = vmul.f32 %v6662, %v8392
      %v8425 = vmul.f32 %v6665, %v8393
      %v8426 = vmul.f32 %v6668, %v8394
      %v8427 = vmul.f32 %v6671, %v8395
      %v8428 = vmul.f32 %v6674, %v8396
      %v8429 = vmul.f32 %v6677, %v8397
      %v8430 = vmul.f32 %v6680, %v8398
      %v8431 = vmul.f32 %v6683, %v8399
      %v8432 = vmul.f32 %v6686, %v8400
      %v8433 = vmul.f32 %v6689, %v8401
      %v8434 = vmul.f32 %v6692, %v8402
      %v8435 = vmul.f32 %v6695, %v8403
      %v8436 = vmul.f32 %v6698, %v8404
      %v8437 = vmul.f32 %v6701, %v8405
      %v8438 = vmul.f32 %v6704, %v8406
      %v8439 = vmul.f32 %v6707, %v8407
      %v8440 = vmul.f32 %v6710, %v8408
      %v8441 = vmul.f32 %v6713, %v8409
      %v8442 = vmul.f32 %v6716, %v8410
      %v8443 = vmul.f32 %v6719, %v8411
      %v8444 = vmul.f32 %v6722, %v8412
      %v8445 = vmul.f32 %v6725, %v8413
      %v8446 = vmul.f32 %v6728, %v8414
      %v8447 = vmul.f32 %v6731, %v8415
      %v8448 = vmul.f32 %v6734, %v8416
      %v8449 = vmul.f32 %v6737, %v8417
      %v8450 = vmul.f32 %v6740, %v8418
      %v8451 = vmul.f32 %v6743, %v8419
      %v8452 = vmul.f32 %v6746, %v8420
      %v8453 = vmul.f32 %v6749, %v8421
      %v8454 = vmul.f32 %v6752, %v8422
      %8487 = vrot.lane.b32.xlu0 %v8359, 124
      %v8488 = vpop.permute.xlu0 %8487
      %8489 = vrot.lane.b32.xlu0 %v8360, 124
      %v8490 = vpop.permute.xlu0 %8489
      %8491 = vrot.lane.b32.xlu0 %v8361, 124
      %v8492 = vpop.permute.xlu0 %8491
      %8493 = vrot.lane.b32.xlu0 %v8362, 124
      %v8494 = vpop.permute.xlu0 %8493
      %8495 = vrot.lane.b32.xlu0 %v8363, 124
      %v8496 = vpop.permute.xlu0 %8495
      %8497 = vrot.lane.b32.xlu0 %v8364, 124
      %v8498 = vpop.permute.xlu0 %8497
      %8499 = vrot.lane.b32.xlu0 %v8365, 124
      %v8500 = vpop.permute.xlu0 %8499
      %8501 = vrot.lane.b32.xlu0 %v8366, 124
      %v8502 = vpop.permute.xlu0 %8501
      %8503 = vrot.lane.b32.xlu0 %v8367, 124
      %v8504 = vpop.permute.xlu0 %8503
      %8505 = vrot.lane.b32.xlu0 %v8368, 124
      %v8506 = vpop.permute.xlu0 %8505
      %8507 = vrot.lane.b32.xlu0 %v8369, 124
      %v8508 = vpop.permute.xlu0 %8507
      %8509 = vrot.lane.b32.xlu0 %v8370, 124
      %v8510 = vpop.permute.xlu0 %8509
      %8511 = vrot.lane.b32.xlu0 %v8371, 124
      %v8512 = vpop.permute.xlu0 %8511
      %8513 = vrot.lane.b32.xlu0 %v8372, 124
      %v8514 = vpop.permute.xlu0 %8513
      %8515 = vrot.lane.b32.xlu0 %v8373, 124
      %v8516 = vpop.permute.xlu0 %8515
      %8517 = vrot.lane.b32.xlu0 %v8374, 124
      %v8518 = vpop.permute.xlu0 %8517
      %8519 = vrot.lane.b32.xlu0 %v8375, 124
      %v8520 = vpop.permute.xlu0 %8519
      %8521 = vrot.lane.b32.xlu0 %v8376, 124
      %v8522 = vpop.permute.xlu0 %8521
      %8523 = vrot.lane.b32.xlu0 %v8377, 124
      %v8524 = vpop.permute.xlu0 %8523
      %8525 = vrot.lane.b32.xlu0 %v8378, 124
      %v8526 = vpop.permute.xlu0 %8525
      %8527 = vrot.lane.b32.xlu0 %v8379, 124
      %v8528 = vpop.permute.xlu0 %8527
      %8529 = vrot.lane.b32.xlu0 %v8380, 124
      %v8530 = vpop.permute.xlu0 %8529
      %8531 = vrot.lane.b32.xlu0 %v8381, 124
      %v8532 = vpop.permute.xlu0 %8531
      %8533 = vrot.lane.b32.xlu0 %v8382, 124
      %v8534 = vpop.permute.xlu0 %8533
      %8535 = vrot.lane.b32.xlu0 %v8383, 124
      %v8536 = vpop.permute.xlu0 %8535
      %8537 = vrot.lane.b32.xlu0 %v8384, 124
      %v8538 = vpop.permute.xlu0 %8537
      %8539 = vrot.lane.b32.xlu0 %v8385, 124
      %v8540 = vpop.permute.xlu0 %8539
      %8541 = vrot.lane.b32.xlu0 %v8386, 124
      %v8542 = vpop.permute.xlu0 %8541
      %8543 = vrot.lane.b32.xlu0 %v8387, 124
      %v8544 = vpop.permute.xlu0 %8543
      %8545 = vrot.lane.b32.xlu0 %v8388, 124
      %v8546 = vpop.permute.xlu0 %8545
      %8547 = vrot.lane.b32.xlu0 %v8389, 124
      %v8548 = vpop.permute.xlu0 %8547
      %8549 = vrot.lane.b32.xlu0 %v8390, 124
      %v8550 = vpop.permute.xlu0 %8549
      %v8583 = vadd.f32 %v8423, %v8488
      %v8584 = vadd.f32 %v8424, %v8490
      %v8585 = vadd.f32 %v8425, %v8492
      %v8586 = vadd.f32 %v8426, %v8494
      %v8587 = vadd.f32 %v8427, %v8496
      %v8588 = vadd.f32 %v8428, %v8498
      %v8589 = vadd.f32 %v8429, %v8500
      %v8590 = vadd.f32 %v8430, %v8502
      %v8591 = vadd.f32 %v8431, %v8504
      %v8592 = vadd.f32 %v8432, %v8506
      %v8593 = vadd.f32 %v8433, %v8508
      %v8594 = vadd.f32 %v8434, %v8510
      %v8595 = vadd.f32 %v8435, %v8512
      %v8596 = vadd.f32 %v8436, %v8514
      %v8597 = vadd.f32 %v8437, %v8516
      %v8598 = vadd.f32 %v8438, %v8518
      %v8599 = vadd.f32 %v8439, %v8520
      %v8600 = vadd.f32 %v8440, %v8522
      %v8601 = vadd.f32 %v8441, %v8524
      %v8602 = vadd.f32 %v8442, %v8526
      %v8603 = vadd.f32 %v8443, %v8528
      %v8604 = vadd.f32 %v8444, %v8530
      %v8605 = vadd.f32 %v8445, %v8532
      %v8606 = vadd.f32 %v8446, %v8534
      %v8607 = vadd.f32 %v8447, %v8536
      %v8608 = vadd.f32 %v8448, %v8538
      %v8609 = vadd.f32 %v8449, %v8540
      %v8610 = vadd.f32 %v8450, %v8542
      %v8611 = vadd.f32 %v8451, %v8544
      %v8612 = vadd.f32 %v8452, %v8546
      %v8613 = vadd.f32 %v8453, %v8548
      %v8614 = vadd.f32 %v8454, %v8550
      %vm8615 = vcmp.gt.f32.partialorder %v8583, 0.0
      %vm8616 = vcmp.gt.f32.partialorder %v8584, 0.0
      %vm8617 = vcmp.gt.f32.partialorder %v8585, 0.0
      %vm8618 = vcmp.gt.f32.partialorder %v8586, 0.0
      %vm8619 = vcmp.gt.f32.partialorder %v8587, 0.0
      %vm8620 = vcmp.gt.f32.partialorder %v8588, 0.0
      %vm8621 = vcmp.gt.f32.partialorder %v8589, 0.0
      %vm8622 = vcmp.gt.f32.partialorder %v8590, 0.0
      %vm8623 = vcmp.gt.f32.partialorder %v8591, 0.0
      %vm8624 = vcmp.gt.f32.partialorder %v8592, 0.0
      %vm8625 = vcmp.gt.f32.partialorder %v8593, 0.0
      %vm8626 = vcmp.gt.f32.partialorder %v8594, 0.0
      %vm8627 = vcmp.gt.f32.partialorder %v8595, 0.0
      %vm8628 = vcmp.gt.f32.partialorder %v8596, 0.0
      %vm8629 = vcmp.gt.f32.partialorder %v8597, 0.0
      %vm8630 = vcmp.gt.f32.partialorder %v8598, 0.0
      %vm8631 = vcmp.gt.f32.partialorder %v8599, 0.0
      %vm8632 = vcmp.gt.f32.partialorder %v8600, 0.0
      %vm8633 = vcmp.gt.f32.partialorder %v8601, 0.0
      %vm8634 = vcmp.gt.f32.partialorder %v8602, 0.0
      %vm8635 = vcmp.gt.f32.partialorder %v8603, 0.0
      %vm8636 = vcmp.gt.f32.partialorder %v8604, 0.0
      %vm8637 = vcmp.gt.f32.partialorder %v8605, 0.0
      %vm8638 = vcmp.gt.f32.partialorder %v8606, 0.0
      %vm8639 = vcmp.gt.f32.partialorder %v8607, 0.0
      %vm8640 = vcmp.gt.f32.partialorder %v8608, 0.0
      %vm8641 = vcmp.gt.f32.partialorder %v8609, 0.0
      %vm8642 = vcmp.gt.f32.partialorder %v8610, 0.0
      %vm8643 = vcmp.gt.f32.partialorder %v8611, 0.0
      %vm8644 = vcmp.gt.f32.partialorder %v8612, 0.0
      %vm8645 = vcmp.gt.f32.partialorder %v8613, 0.0
      %vm8646 = vcmp.gt.f32.partialorder %v8614, 0.0
      %v8647 = vmul.f32 %v8583, 0.2
      %v8648 = vmul.f32 %v8584, 0.2
      %v8649 = vmul.f32 %v8585, 0.2
      %v8650 = vmul.f32 %v8586, 0.2
      %v8651 = vmul.f32 %v8587, 0.2
      %v8652 = vmul.f32 %v8588, 0.2
      %v8653 = vmul.f32 %v8589, 0.2
      %v8654 = vmul.f32 %v8590, 0.2
      %v8655 = vmul.f32 %v8591, 0.2
      %v8656 = vmul.f32 %v8592, 0.2
      %v8657 = vmul.f32 %v8593, 0.2
      %v8658 = vmul.f32 %v8594, 0.2
      %v8659 = vmul.f32 %v8595, 0.2
      %v8660 = vmul.f32 %v8596, 0.2
      %v8661 = vmul.f32 %v8597, 0.2
      %v8662 = vmul.f32 %v8598, 0.2
      %v8663 = vmul.f32 %v8599, 0.2
      %v8664 = vmul.f32 %v8600, 0.2
      %v8665 = vmul.f32 %v8601, 0.2
      %v8666 = vmul.f32 %v8602, 0.2
      %v8667 = vmul.f32 %v8603, 0.2
      %v8668 = vmul.f32 %v8604, 0.2
      %v8669 = vmul.f32 %v8605, 0.2
      %v8670 = vmul.f32 %v8606, 0.2
      %v8671 = vmul.f32 %v8607, 0.2
      %v8672 = vmul.f32 %v8608, 0.2
      %v8673 = vmul.f32 %v8609, 0.2
      %v8674 = vmul.f32 %v8610, 0.2
      %v8675 = vmul.f32 %v8611, 0.2
      %v8676 = vmul.f32 %v8612, 0.2
      %v8677 = vmul.f32 %v8613, 0.2
      %v8678 = vmul.f32 %v8614, 0.2
      %v8679 = vsel %vm8615, %v8583, %v8647
      %v8680 = vsel %vm8616, %v8584, %v8648
      %v8681 = vsel %vm8617, %v8585, %v8649
      %v8682 = vsel %vm8618, %v8586, %v8650
      %v8683 = vsel %vm8619, %v8587, %v8651
      %v8684 = vsel %vm8620, %v8588, %v8652
      %v8685 = vsel %vm8621, %v8589, %v8653
      %v8686 = vsel %vm8622, %v8590, %v8654
      %v8687 = vsel %vm8623, %v8591, %v8655
      %v8688 = vsel %vm8624, %v8592, %v8656
      %v8689 = vsel %vm8625, %v8593, %v8657
      %v8690 = vsel %vm8626, %v8594, %v8658
      %v8691 = vsel %vm8627, %v8595, %v8659
      %v8692 = vsel %vm8628, %v8596, %v8660
      %v8693 = vsel %vm8629, %v8597, %v8661
      %v8694 = vsel %vm8630, %v8598, %v8662
      %v8695 = vsel %vm8631, %v8599, %v8663
      %v8696 = vsel %vm8632, %v8600, %v8664
      %v8697 = vsel %vm8633, %v8601, %v8665
      %v8698 = vsel %vm8634, %v8602, %v8666
      %v8699 = vsel %vm8635, %v8603, %v8667
      %v8700 = vsel %vm8636, %v8604, %v8668
      %v8701 = vsel %vm8637, %v8605, %v8669
      %v8702 = vsel %vm8638, %v8606, %v8670
      %v8703 = vsel %vm8639, %v8607, %v8671
      %v8704 = vsel %vm8640, %v8608, %v8672
      %v8705 = vsel %vm8641, %v8609, %v8673
      %v8706 = vsel %vm8642, %v8610, %v8674
      %v8707 = vsel %vm8643, %v8611, %v8675
      %v8708 = vsel %vm8644, %v8612, %v8676
      %v8709 = vsel %vm8645, %v8613, %v8677
      %v8710 = vsel %vm8646, %v8614, %v8678
      %8711 = vst.msk [vmem:[%s4867 + $0x1] sm:$0xff] %vm358, %v8679
      %8712 = vst.msk [vmem:[%s4867 + $0x9] sm:$0xff] %vm358, %v8680
      %8713 = vst.msk [vmem:[%s4867 + $0x19] sm:$0xff] %vm358, %v8681
      %8714 = vst.msk [vmem:[%s4867 + $0x21] sm:$0xff] %vm358, %v8682
      %8715 = vst.msk [vmem:[%s4867 + $0x31] sm:$0xff] %vm358, %v8683
      %8716 = vst.msk [vmem:[%s4867 + $0x39] sm:$0xff] %vm358, %v8684
      %8717 = vst.msk [vmem:[%s4867 + $0x49] sm:$0xff] %vm358, %v8685
      %8718 = vst.msk [vmem:[%s4867 + $0x51] sm:$0xff] %vm358, %v8686
      %8719 = vst.msk [vmem:[%s4867 + $0x61] sm:$0xff] %vm358, %v8687
      %8720 = vst.msk [vmem:[%s4867 + $0x69] sm:$0xff] %vm358, %v8688
      %8721 = vst.msk [vmem:[%s4867 + $0x79] sm:$0xff] %vm358, %v8689
      %8722 = vst.msk [vmem:[%s4867 + $0x81] sm:$0xff] %vm358, %v8690
      %8723 = vst.msk [vmem:[%s4867 + $0x91] sm:$0xff] %vm358, %v8691
      %8724 = vst.msk [vmem:[%s4867 + $0x99] sm:$0xff] %vm358, %v8692
      %8725 = vst.msk [vmem:[%s4867 + $0xa9] sm:$0xff] %vm358, %v8693
      %8726 = vst.msk [vmem:[%s4867 + $0xb1] sm:$0xff] %vm358, %v8694
      %8727 = vst.msk [vmem:[%s4867 + $0xc1] sm:$0xff] %vm358, %v8695
      %8728 = vst.msk [vmem:[%s4867 + $0xc9] sm:$0xff] %vm358, %v8696
      %8729 = vst.msk [vmem:[%s4867 + $0xd9] sm:$0xff] %vm358, %v8697
      %8730 = vst.msk [vmem:[%s4867 + $0xe1] sm:$0xff] %vm358, %v8698
      %8731 = vst.msk [vmem:[%s4867 + $0xf1] sm:$0xff] %vm358, %v8699
      %8732 = vst.msk [vmem:[%s4867 + $0xf9] sm:$0xff] %vm358, %v8700
      %8733 = vst.msk [vmem:[%s4867 + $0x109] sm:$0xff] %vm358, %v8701
      %8734 = vst.msk [vmem:[%s4867 + $0x111] sm:$0xff] %vm358, %v8702
      %8735 = vst.msk [vmem:[%s4867 + $0x121] sm:$0xff] %vm358, %v8703
      %8736 = vst.msk [vmem:[%s4867 + $0x129] sm:$0xff] %vm358, %v8704
      %8737 = vst.msk [vmem:[%s4867 + $0x139] sm:$0xff] %vm358, %v8705
      %8738 = vst.msk [vmem:[%s4867 + $0x141] sm:$0xff] %vm358, %v8706
      %8739 = vst.msk [vmem:[%s4867 + $0x151] sm:$0xff] %vm358, %v8707
      %8740 = vst.msk [vmem:[%s4867 + $0x159] sm:$0xff] %vm358, %v8708
      %8741 = vst.msk [vmem:[%s4867 + $0x169] sm:$0xff] %vm358, %v8709
      %8742 = vst.msk [vmem:[%s4867 + $0x171] sm:$0xff] %vm358, %v8710
      %v8743 = vld [vmem:[#allocation5] sm:$0xff]
      %v8744 = vld [vmem:[#allocation5 + $0x8] sm:$0xff]
      %v8745 = vld [vmem:[#allocation5 + $0x18] sm:$0xff]
      %v8746 = vld [vmem:[#allocation5 + $0x20] sm:$0xff]
      %v8747 = vld [vmem:[#allocation5 + $0x30] sm:$0xff]
      %v8748 = vld [vmem:[#allocation5 + $0x38] sm:$0xff]
      %v8749 = vld [vmem:[#allocation5 + $0x48] sm:$0xff]
      %v8750 = vld [vmem:[#allocation5 + $0x50] sm:$0xff]
      %v8751 = vld [vmem:[#allocation5 + $0x60] sm:$0xff]
      %v8752 = vld [vmem:[#allocation5 + $0x68] sm:$0xff]
      %v8753 = vld [vmem:[#allocation5 + $0x78] sm:$0xff]
      %v8754 = vld [vmem:[#allocation5 + $0x80] sm:$0xff]
      %v8755 = vld [vmem:[#allocation5 + $0x90] sm:$0xff]
      %v8756 = vld [vmem:[#allocation5 + $0x98] sm:$0xff]
      %v8757 = vld [vmem:[#allocation5 + $0xa8] sm:$0xff]
      %v8758 = vld [vmem:[#allocation5 + $0xb0] sm:$0xff]
      %v8759 = vld [vmem:[#allocation5 + $0xc0] sm:$0xff]
      %v8760 = vld [vmem:[#allocation5 + $0xc8] sm:$0xff]
      %v8761 = vld [vmem:[#allocation5 + $0xd8] sm:$0xff]
      %v8762 = vld [vmem:[#allocation5 + $0xe0] sm:$0xff]
      %v8763 = vld [vmem:[#allocation5 + $0xf0] sm:$0xff]
      %v8764 = vld [vmem:[#allocation5 + $0xf8] sm:$0xff]
      %v8765 = vld [vmem:[#allocation5 + $0x108] sm:$0xff]
      %v8766 = vld [vmem:[#allocation5 + $0x110] sm:$0xff]
      %v8767 = vld [vmem:[#allocation5 + $0x120] sm:$0xff]
      %v8768 = vld [vmem:[#allocation5 + $0x128] sm:$0xff]
      %v8769 = vld [vmem:[#allocation5 + $0x138] sm:$0xff]
      %v8770 = vld [vmem:[#allocation5 + $0x140] sm:$0xff]
      %v8771 = vld [vmem:[#allocation5 + $0x150] sm:$0xff]
      %v8772 = vld [vmem:[#allocation5 + $0x158] sm:$0xff]
      %v8773 = vld [vmem:[#allocation5 + $0x168] sm:$0xff]
      %v8774 = vld [vmem:[#allocation5 + $0x170] sm:$0xff]
      %8775 = vst.msk [vmem:[#allocation3] sm:$0xff] %vm358, %v8743
      %8776 = vst.msk [vmem:[#allocation3 + $0x8] sm:$0xff] %vm358, %v8744
      %8777 = vst.msk [vmem:[#allocation3 + $0x10] sm:$0xff] %vm358, %v8745
      %8778 = vst.msk [vmem:[#allocation3 + $0x18] sm:$0xff] %vm358, %v8746
      %8779 = vst.msk [vmem:[#allocation3 + $0x20] sm:$0xff] %vm358, %v8747
      %8780 = vst.msk [vmem:[#allocation3 + $0x28] sm:$0xff] %vm358, %v8748
      %8781 = vst.msk [vmem:[#allocation3 + $0x30] sm:$0xff] %vm358, %v8749
      %8782 = vst.msk [vmem:[#allocation3 + $0x38] sm:$0xff] %vm358, %v8750
      %8783 = vst.msk [vmem:[#allocation3 + $0x40] sm:$0xff] %vm358, %v8751
      %8784 = vst.msk [vmem:[#allocation3 + $0x48] sm:$0xff] %vm358, %v8752
      %8785 = vst.msk [vmem:[#allocation3 + $0x50] sm:$0xff] %vm358, %v8753
      %8786 = vst.msk [vmem:[#allocation3 + $0x58] sm:$0xff] %vm358, %v8754
      %8787 = vst.msk [vmem:[#allocation3 + $0x60] sm:$0xff] %vm358, %v8755
      %8788 = vst.msk [vmem:[#allocation3 + $0x68] sm:$0xff] %vm358, %v8756
      %8789 = vst.msk [vmem:[#allocation3 + $0x70] sm:$0xff] %vm358, %v8757
      %8790 = vst.msk [vmem:[#allocation3 + $0x78] sm:$0xff] %vm358, %v8758
      %8791 = vst.msk [vmem:[#allocation3 + $0x80] sm:$0xff] %vm358, %v8759
      %8792 = vst.msk [vmem:[#allocation3 + $0x88] sm:$0xff] %vm358, %v8760
      %8793 = vst.msk [vmem:[#allocation3 + $0x90] sm:$0xff] %vm358, %v8761
      %8794 = vst.msk [vmem:[#allocation3 + $0x98] sm:$0xff] %vm358, %v8762
      %8795 = vst.msk [vmem:[#allocation3 + $0xa0] sm:$0xff] %vm358, %v8763
      %8796 = vst.msk [vmem:[#allocation3 + $0xa8] sm:$0xff] %vm358, %v8764
      %8797 = vst.msk [vmem:[#allocation3 + $0xb0] sm:$0xff] %vm358, %v8765
      %8798 = vst.msk [vmem:[#allocation3 + $0xb8] sm:$0xff] %vm358, %v8766
      %8799 = vst.msk [vmem:[#allocation3 + $0xc0] sm:$0xff] %vm358, %v8767
      %8800 = vst.msk [vmem:[#allocation3 + $0xc8] sm:$0xff] %vm358, %v8768
      %8801 = vst.msk [vmem:[#allocation3 + $0xd0] sm:$0xff] %vm358, %v8769
      %8802 = vst.msk [vmem:[#allocation3 + $0xd8] sm:$0xff] %vm358, %v8770
      %8803 = vst.msk [vmem:[#allocation3 + $0xe0] sm:$0xff] %vm358, %v8771
      %8804 = vst.msk [vmem:[#allocation3 + $0xe8] sm:$0xff] %vm358, %v8772
      %8805 = vst.msk [vmem:[#allocation3 + $0xf0] sm:$0xff] %vm358, %v8773
      %8806 = vst.msk [vmem:[#allocation3 + $0xf8] sm:$0xff] %vm358, %v8774
      %v8807 = vld [vmem:[#allocation5 + $0x1] sm:$0xff]
      %v8808 = vld [vmem:[#allocation5 + $0x9] sm:$0xff]
      %v8809 = vld [vmem:[#allocation5 + $0x19] sm:$0xff]
      %v8810 = vld [vmem:[#allocation5 + $0x21] sm:$0xff]
      %v8811 = vld [vmem:[#allocation5 + $0x31] sm:$0xff]
      %v8812 = vld [vmem:[#allocation5 + $0x39] sm:$0xff]
      %v8813 = vld [vmem:[#allocation5 + $0x49] sm:$0xff]
      %v8814 = vld [vmem:[#allocation5 + $0x51] sm:$0xff]
      %v8815 = vld [vmem:[#allocation5 + $0x61] sm:$0xff]
      %v8816 = vld [vmem:[#allocation5 + $0x69] sm:$0xff]
      %v8817 = vld [vmem:[#allocation5 + $0x79] sm:$0xff]
      %v8818 = vld [vmem:[#allocation5 + $0x81] sm:$0xff]
      %v8819 = vld [vmem:[#allocation5 + $0x91] sm:$0xff]
      %v8820 = vld [vmem:[#allocation5 + $0x99] sm:$0xff]
      %v8821 = vld [vmem:[#allocation5 + $0xa9] sm:$0xff]
      %v8822 = vld [vmem:[#allocation5 + $0xb1] sm:$0xff]
      %v8823 = vld [vmem:[#allocation5 + $0xc1] sm:$0xff]
      %v8824 = vld [vmem:[#allocation5 + $0xc9] sm:$0xff]
      %v8825 = vld [vmem:[#allocation5 + $0xd9] sm:$0xff]
      %v8826 = vld [vmem:[#allocation5 + $0xe1] sm:$0xff]
      %v8827 = vld [vmem:[#allocation5 + $0xf1] sm:$0xff]
      %v8828 = vld [vmem:[#allocation5 + $0xf9] sm:$0xff]
      %v8829 = vld [vmem:[#allocation5 + $0x109] sm:$0xff]
      %v8830 = vld [vmem:[#allocation5 + $0x111] sm:$0xff]
      %v8831 = vld [vmem:[#allocation5 + $0x121] sm:$0xff]
      %v8832 = vld [vmem:[#allocation5 + $0x129] sm:$0xff]
      %v8833 = vld [vmem:[#allocation5 + $0x139] sm:$0xff]
      %v8834 = vld [vmem:[#allocation5 + $0x141] sm:$0xff]
      %v8835 = vld [vmem:[#allocation5 + $0x151] sm:$0xff]
      %v8836 = vld [vmem:[#allocation5 + $0x159] sm:$0xff]
      %v8837 = vld [vmem:[#allocation5 + $0x169] sm:$0xff]
      %v8838 = vld [vmem:[#allocation5 + $0x171] sm:$0xff]
      %8871 = vrot.lane.b32.xlu0 %v8807, 4
      %v8872 = vpop.permute.xlu0 %8871
      %8873 = vrot.lane.b32.xlu0 %v8808, 4
      %v8874 = vpop.permute.xlu0 %8873
      %8875 = vrot.lane.b32.xlu0 %v8809, 4
      %v8876 = vpop.permute.xlu0 %8875
      %8877 = vrot.lane.b32.xlu0 %v8810, 4
      %v8878 = vpop.permute.xlu0 %8877
      %8879 = vrot.lane.b32.xlu0 %v8811, 4
      %v8880 = vpop.permute.xlu0 %8879
      %8881 = vrot.lane.b32.xlu0 %v8812, 4
      %v8882 = vpop.permute.xlu0 %8881
      %8883 = vrot.lane.b32.xlu0 %v8813, 4
      %v8884 = vpop.permute.xlu0 %8883
      %8885 = vrot.lane.b32.xlu0 %v8814, 4
      %v8886 = vpop.permute.xlu0 %8885
      %8887 = vrot.lane.b32.xlu0 %v8815, 4
      %v8888 = vpop.permute.xlu0 %8887
      %8889 = vrot.lane.b32.xlu0 %v8816, 4
      %v8890 = vpop.permute.xlu0 %8889
      %8891 = vrot.lane.b32.xlu0 %v8817, 4
      %v8892 = vpop.permute.xlu0 %8891
      %8893 = vrot.lane.b32.xlu0 %v8818, 4
      %v8894 = vpop.permute.xlu0 %8893
      %8895 = vrot.lane.b32.xlu0 %v8819, 4
      %v8896 = vpop.permute.xlu0 %8895
      %8897 = vrot.lane.b32.xlu0 %v8820, 4
      %v8898 = vpop.permute.xlu0 %8897
      %8899 = vrot.lane.b32.xlu0 %v8821, 4
      %v8900 = vpop.permute.xlu0 %8899
      %8901 = vrot.lane.b32.xlu0 %v8822, 4
      %v8902 = vpop.permute.xlu0 %8901
      %8903 = vrot.lane.b32.xlu0 %v8823, 4
      %v8904 = vpop.permute.xlu0 %8903
      %8905 = vrot.lane.b32.xlu0 %v8824, 4
      %v8906 = vpop.permute.xlu0 %8905
      %8907 = vrot.lane.b32.xlu0 %v8825, 4
      %v8908 = vpop.permute.xlu0 %8907
      %8909 = vrot.lane.b32.xlu0 %v8826, 4
      %v8910 = vpop.permute.xlu0 %8909
      %8911 = vrot.lane.b32.xlu0 %v8827, 4
      %v8912 = vpop.permute.xlu0 %8911
      %8913 = vrot.lane.b32.xlu0 %v8828, 4
      %v8914 = vpop.permute.xlu0 %8913
      %8915 = vrot.lane.b32.xlu0 %v8829, 4
      %v8916 = vpop.permute.xlu0 %8915
      %8917 = vrot.lane.b32.xlu0 %v8830, 4
      %v8918 = vpop.permute.xlu0 %8917
      %8919 = vrot.lane.b32.xlu0 %v8831, 4
      %v8920 = vpop.permute.xlu0 %8919
      %8921 = vrot.lane.b32.xlu0 %v8832, 4
      %v8922 = vpop.permute.xlu0 %8921
      %8923 = vrot.lane.b32.xlu0 %v8833, 4
      %v8924 = vpop.permute.xlu0 %8923
      %8925 = vrot.lane.b32.xlu0 %v8834, 4
      %v8926 = vpop.permute.xlu0 %8925
      %8927 = vrot.lane.b32.xlu0 %v8835, 4
      %v8928 = vpop.permute.xlu0 %8927
      %8929 = vrot.lane.b32.xlu0 %v8836, 4
      %v8930 = vpop.permute.xlu0 %8929
      %8931 = vrot.lane.b32.xlu0 %v8837, 4
      %v8932 = vpop.permute.xlu0 %8931
      %8933 = vrot.lane.b32.xlu0 %v8838, 4
      %v8934 = vpop.permute.xlu0 %8933
      %8967 = vst.msk [vmem:[#allocation3] sm:$0xff] %vm551, %v8872
      %8968 = vst.msk [vmem:[#allocation3 + $0x8] sm:$0xff] %vm551, %v8874
      %8969 = vst.msk [vmem:[#allocation3 + $0x10] sm:$0xff] %vm551, %v8876
      %8970 = vst.msk [vmem:[#allocation3 + $0x18] sm:$0xff] %vm551, %v8878
      %8971 = vst.msk [vmem:[#allocation3 + $0x20] sm:$0xff] %vm551, %v8880
      %8972 = vst.msk [vmem:[#allocation3 + $0x28] sm:$0xff] %vm551, %v8882
      %8973 = vst.msk [vmem:[#allocation3 + $0x30] sm:$0xff] %vm551, %v8884
      %8974 = vst.msk [vmem:[#allocation3 + $0x38] sm:$0xff] %vm551, %v8886
      %8975 = vst.msk [vmem:[#allocation3 + $0x40] sm:$0xff] %vm551, %v8888
      %8976 = vst.msk [vmem:[#allocation3 + $0x48] sm:$0xff] %vm551, %v8890
      %8977 = vst.msk [vmem:[#allocation3 + $0x50] sm:$0xff] %vm551, %v8892
      %8978 = vst.msk [vmem:[#allocation3 + $0x58] sm:$0xff] %vm551, %v8894
      %8979 = vst.msk [vmem:[#allocation3 + $0x60] sm:$0xff] %vm551, %v8896
      %8980 = vst.msk [vmem:[#allocation3 + $0x68] sm:$0xff] %vm551, %v8898
      %8981 = vst.msk [vmem:[#allocation3 + $0x70] sm:$0xff] %vm551, %v8900
      %8982 = vst.msk [vmem:[#allocation3 + $0x78] sm:$0xff] %vm551, %v8902
      %8983 = vst.msk [vmem:[#allocation3 + $0x80] sm:$0xff] %vm551, %v8904
      %8984 = vst.msk [vmem:[#allocation3 + $0x88] sm:$0xff] %vm551, %v8906
      %8985 = vst.msk [vmem:[#allocation3 + $0x90] sm:$0xff] %vm551, %v8908
      %8986 = vst.msk [vmem:[#allocation3 + $0x98] sm:$0xff] %vm551, %v8910
      %8987 = vst.msk [vmem:[#allocation3 + $0xa0] sm:$0xff] %vm551, %v8912
      %8988 = vst.msk [vmem:[#allocation3 + $0xa8] sm:$0xff] %vm551, %v8914
      %8989 = vst.msk [vmem:[#allocation3 + $0xb0] sm:$0xff] %vm551, %v8916
      %8990 = vst.msk [vmem:[#allocation3 + $0xb8] sm:$0xff] %vm551, %v8918
      %8991 = vst.msk [vmem:[#allocation3 + $0xc0] sm:$0xff] %vm551, %v8920
      %8992 = vst.msk [vmem:[#allocation3 + $0xc8] sm:$0xff] %vm551, %v8922
      %8993 = vst.msk [vmem:[#allocation3 + $0xd0] sm:$0xff] %vm551, %v8924
      %8994 = vst.msk [vmem:[#allocation3 + $0xd8] sm:$0xff] %vm551, %v8926
      %8995 = vst.msk [vmem:[#allocation3 + $0xe0] sm:$0xff] %vm551, %v8928
      %8996 = vst.msk [vmem:[#allocation3 + $0xe8] sm:$0xff] %vm551, %v8930
      %8997 = vst.msk [vmem:[#allocation3 + $0xf0] sm:$0xff] %vm551, %v8932
      %8998 = vst.msk [vmem:[#allocation3 + $0xf8] sm:$0xff] %vm551, %v8934
      %v8999 = vld [vmem:[#allocation5 + $0x2] sm:$0xff]
      %v9000 = vld [vmem:[#allocation5 + $0xa] sm:$0xff]
      %v9001 = vld [vmem:[#allocation5 + $0x1a] sm:$0xff]
      %v9002 = vld [vmem:[#allocation5 + $0x22] sm:$0xff]
      %v9003 = vld [vmem:[#allocation5 + $0x32] sm:$0xff]
      %v9004 = vld [vmem:[#allocation5 + $0x3a] sm:$0xff]
      %v9005 = vld [vmem:[#allocation5 + $0x4a] sm:$0xff]
      %v9006 = vld [vmem:[#allocation5 + $0x52] sm:$0xff]
      %v9007 = vld [vmem:[#allocation5 + $0x62] sm:$0xff]
      %v9008 = vld [vmem:[#allocation5 + $0x6a] sm:$0xff]
      %v9009 = vld [vmem:[#allocation5 + $0x7a] sm:$0xff]
      %v9010 = vld [vmem:[#allocation5 + $0x82] sm:$0xff]
      %v9011 = vld [vmem:[#allocation5 + $0x92] sm:$0xff]
      %v9012 = vld [vmem:[#allocation5 + $0x9a] sm:$0xff]
      %v9013 = vld [vmem:[#allocation5 + $0xaa] sm:$0xff]
      %v9014 = vld [vmem:[#allocation5 + $0xb2] sm:$0xff]
      %v9015 = vld [vmem:[#allocation5 + $0xc2] sm:$0xff]
      %v9016 = vld [vmem:[#allocation5 + $0xca] sm:$0xff]
      %v9017 = vld [vmem:[#allocation5 + $0xda] sm:$0xff]
      %v9018 = vld [vmem:[#allocation5 + $0xe2] sm:$0xff]
      %v9019 = vld [vmem:[#allocation5 + $0xf2] sm:$0xff]
      %v9020 = vld [vmem:[#allocation5 + $0xfa] sm:$0xff]
      %v9021 = vld [vmem:[#allocation5 + $0x10a] sm:$0xff]
      %v9022 = vld [vmem:[#allocation5 + $0x112] sm:$0xff]
      %v9023 = vld [vmem:[#allocation5 + $0x122] sm:$0xff]
      %v9024 = vld [vmem:[#allocation5 + $0x12a] sm:$0xff]
      %v9025 = vld [vmem:[#allocation5 + $0x13a] sm:$0xff]
      %v9026 = vld [vmem:[#allocation5 + $0x142] sm:$0xff]
      %v9027 = vld [vmem:[#allocation5 + $0x152] sm:$0xff]
      %v9028 = vld [vmem:[#allocation5 + $0x15a] sm:$0xff]
      %v9029 = vld [vmem:[#allocation5 + $0x16a] sm:$0xff]
      %v9030 = vld [vmem:[#allocation5 + $0x172] sm:$0xff]
      %9063 = vrot.lane.b32.xlu0 %v8999, 8
      %v9064 = vpop.permute.xlu0 %9063
      %9065 = vrot.lane.b32.xlu0 %v9000, 8
      %v9066 = vpop.permute.xlu0 %9065
      %9067 = vrot.lane.b32.xlu0 %v9001, 8
      %v9068 = vpop.permute.xlu0 %9067
      %9069 = vrot.lane.b32.xlu0 %v9002, 8
      %v9070 = vpop.permute.xlu0 %9069
      %9071 = vrot.lane.b32.xlu0 %v9003, 8
      %v9072 = vpop.permute.xlu0 %9071
      %9073 = vrot.lane.b32.xlu0 %v9004, 8
      %v9074 = vpop.permute.xlu0 %9073
      %9075 = vrot.lane.b32.xlu0 %v9005, 8
      %v9076 = vpop.permute.xlu0 %9075
      %9077 = vrot.lane.b32.xlu0 %v9006, 8
      %v9078 = vpop.permute.xlu0 %9077
      %9079 = vrot.lane.b32.xlu0 %v9007, 8
      %v9080 = vpop.permute.xlu0 %9079
      %9081 = vrot.lane.b32.xlu0 %v9008, 8
      %v9082 = vpop.permute.xlu0 %9081
      %9083 = vrot.lane.b32.xlu0 %v9009, 8
      %v9084 = vpop.permute.xlu0 %9083
      %9085 = vrot.lane.b32.xlu0 %v9010, 8
      %v9086 = vpop.permute.xlu0 %9085
      %9087 = vrot.lane.b32.xlu0 %v9011, 8
      %v9088 = vpop.permute.xlu0 %9087
      %9089 = vrot.lane.b32.xlu0 %v9012, 8
      %v9090 = vpop.permute.xlu0 %9089
      %9091 = vrot.lane.b32.xlu0 %v9013, 8
      %v9092 = vpop.permute.xlu0 %9091
      %9093 = vrot.lane.b32.xlu0 %v9014, 8
      %v9094 = vpop.permute.xlu0 %9093
      %9095 = vrot.lane.b32.xlu0 %v9015, 8
      %v9096 = vpop.permute.xlu0 %9095
      %9097 = vrot.lane.b32.xlu0 %v9016, 8
      %v9098 = vpop.permute.xlu0 %9097
      %9099 = vrot.lane.b32.xlu0 %v9017, 8
      %v9100 = vpop.permute.xlu0 %9099
      %9101 = vrot.lane.b32.xlu0 %v9018, 8
      %v9102 = vpop.permute.xlu0 %9101
      %9103 = vrot.lane.b32.xlu0 %v9019, 8
      %v9104 = vpop.permute.xlu0 %9103
      %9105 = vrot.lane.b32.xlu0 %v9020, 8
      %v9106 = vpop.permute.xlu0 %9105
      %9107 = vrot.lane.b32.xlu0 %v9021, 8
      %v9108 = vpop.permute.xlu0 %9107
      %9109 = vrot.lane.b32.xlu0 %v9022, 8
      %v9110 = vpop.permute.xlu0 %9109
      %9111 = vrot.lane.b32.xlu0 %v9023, 8
      %v9112 = vpop.permute.xlu0 %9111
      %9113 = vrot.lane.b32.xlu0 %v9024, 8
      %v9114 = vpop.permute.xlu0 %9113
      %9115 = vrot.lane.b32.xlu0 %v9025, 8
      %v9116 = vpop.permute.xlu0 %9115
      %9117 = vrot.lane.b32.xlu0 %v9026, 8
      %v9118 = vpop.permute.xlu0 %9117
      %9119 = vrot.lane.b32.xlu0 %v9027, 8
      %v9120 = vpop.permute.xlu0 %9119
      %9121 = vrot.lane.b32.xlu0 %v9028, 8
      %v9122 = vpop.permute.xlu0 %9121
      %9123 = vrot.lane.b32.xlu0 %v9029, 8
      %v9124 = vpop.permute.xlu0 %9123
      %9125 = vrot.lane.b32.xlu0 %v9030, 8
      %v9126 = vpop.permute.xlu0 %9125
      %9159 = vst.msk [vmem:[#allocation3] sm:$0xff] %vm744, %v9064
      %9160 = vst.msk [vmem:[#allocation3 + $0x8] sm:$0xff] %vm744, %v9066
      %9161 = vst.msk [vmem:[#allocation3 + $0x10] sm:$0xff] %vm744, %v9068
      %9162 = vst.msk [vmem:[#allocation3 + $0x18] sm:$0xff] %vm744, %v9070
      %9163 = vst.msk [vmem:[#allocation3 + $0x20] sm:$0xff] %vm744, %v9072
      %9164 = vst.msk [vmem:[#allocation3 + $0x28] sm:$0xff] %vm744, %v9074
      %9165 = vst.msk [vmem:[#allocation3 + $0x30] sm:$0xff] %vm744, %v9076
      %9166 = vst.msk [vmem:[#allocation3 + $0x38] sm:$0xff] %vm744, %v9078
      %9167 = vst.msk [vmem:[#allocation3 + $0x40] sm:$0xff] %vm744, %v9080
      %9168 = vst.msk [vmem:[#allocation3 + $0x48] sm:$0xff] %vm744, %v9082
      %9169 = vst.msk [vmem:[#allocation3 + $0x50] sm:$0xff] %vm744, %v9084
      %9170 = vst.msk [vmem:[#allocation3 + $0x58] sm:$0xff] %vm744, %v9086
      %9171 = vst.msk [vmem:[#allocation3 + $0x60] sm:$0xff] %vm744, %v9088
      %9172 = vst.msk [vmem:[#allocation3 + $0x68] sm:$0xff] %vm744, %v9090
      %9173 = vst.msk [vmem:[#allocation3 + $0x70] sm:$0xff] %vm744, %v9092
      %9174 = vst.msk [vmem:[#allocation3 + $0x78] sm:$0xff] %vm744, %v9094
      %9175 = vst.msk [vmem:[#allocation3 + $0x80] sm:$0xff] %vm744, %v9096
      %9176 = vst.msk [vmem:[#allocation3 + $0x88] sm:$0xff] %vm744, %v9098
      %9177 = vst.msk [vmem:[#allocation3 + $0x90] sm:$0xff] %vm744, %v9100
      %9178 = vst.msk [vmem:[#allocation3 + $0x98] sm:$0xff] %vm744, %v9102
      %9179 = vst.msk [vmem:[#allocation3 + $0xa0] sm:$0xff] %vm744, %v9104
      %9180 = vst.msk [vmem:[#allocation3 + $0xa8] sm:$0xff] %vm744, %v9106
      %9181 = vst.msk [vmem:[#allocation3 + $0xb0] sm:$0xff] %vm744, %v9108
      %9182 = vst.msk [vmem:[#allocation3 + $0xb8] sm:$0xff] %vm744, %v9110
      %9183 = vst.msk [vmem:[#allocation3 + $0xc0] sm:$0xff] %vm744, %v9112
      %9184 = vst.msk [vmem:[#allocation3 + $0xc8] sm:$0xff] %vm744, %v9114
      %9185 = vst.msk [vmem:[#allocation3 + $0xd0] sm:$0xff] %vm744, %v9116
      %9186 = vst.msk [vmem:[#allocation3 + $0xd8] sm:$0xff] %vm744, %v9118
      %9187 = vst.msk [vmem:[#allocation3 + $0xe0] sm:$0xff] %vm744, %v9120
      %9188 = vst.msk [vmem:[#allocation3 + $0xe8] sm:$0xff] %vm744, %v9122
      %9189 = vst.msk [vmem:[#allocation3 + $0xf0] sm:$0xff] %vm744, %v9124
      %9190 = vst.msk [vmem:[#allocation3 + $0xf8] sm:$0xff] %vm744, %v9126
      %v9191 = vld [vmem:[%s4867] sm:$0xff]
      %v9192 = vld [vmem:[%s4867 + $0x8] sm:$0xff]
      %v9193 = vld [vmem:[%s4867 + $0x18] sm:$0xff]
      %v9194 = vld [vmem:[%s4867 + $0x20] sm:$0xff]
      %v9195 = vld [vmem:[%s4867 + $0x30] sm:$0xff]
      %v9196 = vld [vmem:[%s4867 + $0x38] sm:$0xff]
      %v9197 = vld [vmem:[%s4867 + $0x48] sm:$0xff]
      %v9198 = vld [vmem:[%s4867 + $0x50] sm:$0xff]
      %v9199 = vld [vmem:[%s4867 + $0x60] sm:$0xff]
      %v9200 = vld [vmem:[%s4867 + $0x68] sm:$0xff]
      %v9201 = vld [vmem:[%s4867 + $0x78] sm:$0xff]
      %v9202 = vld [vmem:[%s4867 + $0x80] sm:$0xff]
      %v9203 = vld [vmem:[%s4867 + $0x90] sm:$0xff]
      %v9204 = vld [vmem:[%s4867 + $0x98] sm:$0xff]
      %v9205 = vld [vmem:[%s4867 + $0xa8] sm:$0xff]
      %v9206 = vld [vmem:[%s4867 + $0xb0] sm:$0xff]
      %v9207 = vld [vmem:[%s4867 + $0xc0] sm:$0xff]
      %v9208 = vld [vmem:[%s4867 + $0xc8] sm:$0xff]
      %v9209 = vld [vmem:[%s4867 + $0xd8] sm:$0xff]
      %v9210 = vld [vmem:[%s4867 + $0xe0] sm:$0xff]
      %v9211 = vld [vmem:[%s4867 + $0xf0] sm:$0xff]
      %v9212 = vld [vmem:[%s4867 + $0xf8] sm:$0xff]
      %v9213 = vld [vmem:[%s4867 + $0x108] sm:$0xff]
      %v9214 = vld [vmem:[%s4867 + $0x110] sm:$0xff]
      %v9215 = vld [vmem:[%s4867 + $0x120] sm:$0xff]
      %v9216 = vld [vmem:[%s4867 + $0x128] sm:$0xff]
      %v9217 = vld [vmem:[%s4867 + $0x138] sm:$0xff]
      %v9218 = vld [vmem:[%s4867 + $0x140] sm:$0xff]
      %v9219 = vld [vmem:[%s4867 + $0x150] sm:$0xff]
      %v9220 = vld [vmem:[%s4867 + $0x158] sm:$0xff]
      %v9221 = vld [vmem:[%s4867 + $0x168] sm:$0xff]
      %v9222 = vld [vmem:[%s4867 + $0x170] sm:$0xff]
      %9255 = vrot.lane.b32.xlu0 %v9191, 12
      %v9256 = vpop.permute.xlu0 %9255
      %9257 = vrot.lane.b32.xlu0 %v9192, 12
      %v9258 = vpop.permute.xlu0 %9257
      %9259 = vrot.lane.b32.xlu0 %v9193, 12
      %v9260 = vpop.permute.xlu0 %9259
      %9261 = vrot.lane.b32.xlu0 %v9194, 12
      %v9262 = vpop.permute.xlu0 %9261
      %9263 = vrot.lane.b32.xlu0 %v9195, 12
      %v9264 = vpop.permute.xlu0 %9263
      %9265 = vrot.lane.b32.xlu0 %v9196, 12
      %v9266 = vpop.permute.xlu0 %9265
      %9267 = vrot.lane.b32.xlu0 %v9197, 12
      %v9268 = vpop.permute.xlu0 %9267
      %9269 = vrot.lane.b32.xlu0 %v9198, 12
      %v9270 = vpop.permute.xlu0 %9269
      %9271 = vrot.lane.b32.xlu0 %v9199, 12
      %v9272 = vpop.permute.xlu0 %9271
      %9273 = vrot.lane.b32.xlu0 %v9200, 12
      %v9274 = vpop.permute.xlu0 %9273
      %9275 = vrot.lane.b32.xlu0 %v9201, 12
      %v9276 = vpop.permute.xlu0 %9275
      %9277 = vrot.lane.b32.xlu0 %v9202, 12
      %v9278 = vpop.permute.xlu0 %9277
      %9279 = vrot.lane.b32.xlu0 %v9203, 12
      %v9280 = vpop.permute.xlu0 %9279
      %9281 = vrot.lane.b32.xlu0 %v9204, 12
      %v9282 = vpop.permute.xlu0 %9281
      %9283 = vrot.lane.b32.xlu0 %v9205, 12
      %v9284 = vpop.permute.xlu0 %9283
      %9285 = vrot.lane.b32.xlu0 %v9206, 12
      %v9286 = vpop.permute.xlu0 %9285
      %9287 = vrot.lane.b32.xlu0 %v9207, 12
      %v9288 = vpop.permute.xlu0 %9287
      %9289 = vrot.lane.b32.xlu0 %v9208, 12
      %v9290 = vpop.permute.xlu0 %9289
      %9291 = vrot.lane.b32.xlu0 %v9209, 12
      %v9292 = vpop.permute.xlu0 %9291
      %9293 = vrot.lane.b32.xlu0 %v9210, 12
      %v9294 = vpop.permute.xlu0 %9293
      %9295 = vrot.lane.b32.xlu0 %v9211, 12
      %v9296 = vpop.permute.xlu0 %9295
      %9297 = vrot.lane.b32.xlu0 %v9212, 12
      %v9298 = vpop.permute.xlu0 %9297
      %9299 = vrot.lane.b32.xlu0 %v9213, 12
      %v9300 = vpop.permute.xlu0 %9299
      %9301 = vrot.lane.b32.xlu0 %v9214, 12
      %v9302 = vpop.permute.xlu0 %9301
      %9303 = vrot.lane.b32.xlu0 %v9215, 12
      %v9304 = vpop.permute.xlu0 %9303
      %9305 = vrot.lane.b32.xlu0 %v9216, 12
      %v9306 = vpop.permute.xlu0 %9305
      %9307 = vrot.lane.b32.xlu0 %v9217, 12
      %v9308 = vpop.permute.xlu0 %9307
      %9309 = vrot.lane.b32.xlu0 %v9218, 12
      %v9310 = vpop.permute.xlu0 %9309
      %9311 = vrot.lane.b32.xlu0 %v9219, 12
      %v9312 = vpop.permute.xlu0 %9311
      %9313 = vrot.lane.b32.xlu0 %v9220, 12
      %v9314 = vpop.permute.xlu0 %9313
      %9315 = vrot.lane.b32.xlu0 %v9221, 12
      %v9316 = vpop.permute.xlu0 %9315
      %9317 = vrot.lane.b32.xlu0 %v9222, 12
      %v9318 = vpop.permute.xlu0 %9317
      %9351 = vst.msk [vmem:[#allocation3] sm:$0xff] %vm938, %v9256
      %9352 = vst.msk [vmem:[#allocation3 + $0x8] sm:$0xff] %vm938, %v9258
      %9353 = vst.msk [vmem:[#allocation3 + $0x10] sm:$0xff] %vm938, %v9260
      %9354 = vst.msk [vmem:[#allocation3 + $0x18] sm:$0xff] %vm938, %v9262
      %9355 = vst.msk [vmem:[#allocation3 + $0x20] sm:$0xff] %vm938, %v9264
      %9356 = vst.msk [vmem:[#allocation3 + $0x28] sm:$0xff] %vm938, %v9266
      %9357 = vst.msk [vmem:[#allocation3 + $0x30] sm:$0xff] %vm938, %v9268
      %9358 = vst.msk [vmem:[#allocation3 + $0x38] sm:$0xff] %vm938, %v9270
      %9359 = vst.msk [vmem:[#allocation3 + $0x40] sm:$0xff] %vm938, %v9272
      %9360 = vst.msk [vmem:[#allocation3 + $0x48] sm:$0xff] %vm938, %v9274
      %9361 = vst.msk [vmem:[#allocation3 + $0x50] sm:$0xff] %vm938, %v9276
      %9362 = vst.msk [vmem:[#allocation3 + $0x58] sm:$0xff] %vm938, %v9278
      %9363 = vst.msk [vmem:[#allocation3 + $0x60] sm:$0xff] %vm938, %v9280
      %9364 = vst.msk [vmem:[#allocation3 + $0x68] sm:$0xff] %vm938, %v9282
      %9365 = vst.msk [vmem:[#allocation3 + $0x70] sm:$0xff] %vm938, %v9284
      %9366 = vst.msk [vmem:[#allocation3 + $0x78] sm:$0xff] %vm938, %v9286
      %9367 = vst.msk [vmem:[#allocation3 + $0x80] sm:$0xff] %vm938, %v9288
      %9368 = vst.msk [vmem:[#allocation3 + $0x88] sm:$0xff] %vm938, %v9290
      %9369 = vst.msk [vmem:[#allocation3 + $0x90] sm:$0xff] %vm938, %v9292
      %9370 = vst.msk [vmem:[#allocation3 + $0x98] sm:$0xff] %vm938, %v9294
      %9371 = vst.msk [vmem:[#allocation3 + $0xa0] sm:$0xff] %vm938, %v9296
      %9372 = vst.msk [vmem:[#allocation3 + $0xa8] sm:$0xff] %vm938, %v9298
      %9373 = vst.msk [vmem:[#allocation3 + $0xb0] sm:$0xff] %vm938, %v9300
      %9374 = vst.msk [vmem:[#allocation3 + $0xb8] sm:$0xff] %vm938, %v9302
      %9375 = vst.msk [vmem:[#allocation3 + $0xc0] sm:$0xff] %vm938, %v9304
      %9376 = vst.msk [vmem:[#allocation3 + $0xc8] sm:$0xff] %vm938, %v9306
      %9377 = vst.msk [vmem:[#allocation3 + $0xd0] sm:$0xff] %vm938, %v9308
      %9378 = vst.msk [vmem:[#allocation3 + $0xd8] sm:$0xff] %vm938, %v9310
      %9379 = vst.msk [vmem:[#allocation3 + $0xe0] sm:$0xff] %vm938, %v9312
      %9380 = vst.msk [vmem:[#allocation3 + $0xe8] sm:$0xff] %vm938, %v9314
      %9381 = vst.msk [vmem:[#allocation3 + $0xf0] sm:$0xff] %vm938, %v9316
      %9382 = vst.msk [vmem:[#allocation3 + $0xf8] sm:$0xff] %vm938, %v9318
      %v9383 = vld [vmem:[%s4867 + $0x1] sm:$0xff]
      %v9384 = vld [vmem:[%s4867 + $0x9] sm:$0xff]
      %v9385 = vld [vmem:[%s4867 + $0x19] sm:$0xff]
      %v9386 = vld [vmem:[%s4867 + $0x21] sm:$0xff]
      %v9387 = vld [vmem:[%s4867 + $0x31] sm:$0xff]
      %v9388 = vld [vmem:[%s4867 + $0x39] sm:$0xff]
      %v9389 = vld [vmem:[%s4867 + $0x49] sm:$0xff]
      %v9390 = vld [vmem:[%s4867 + $0x51] sm:$0xff]
      %v9391 = vld [vmem:[%s4867 + $0x61] sm:$0xff]
      %v9392 = vld [vmem:[%s4867 + $0x69] sm:$0xff]
      %v9393 = vld [vmem:[%s4867 + $0x79] sm:$0xff]
      %v9394 = vld [vmem:[%s4867 + $0x81] sm:$0xff]
      %v9395 = vld [vmem:[%s4867 + $0x91] sm:$0xff]
      %v9396 = vld [vmem:[%s4867 + $0x99] sm:$0xff]
      %v9397 = vld [vmem:[%s4867 + $0xa9] sm:$0xff]
      %v9398 = vld [vmem:[%s4867 + $0xb1] sm:$0xff]
      %v9399 = vld [vmem:[%s4867 + $0xc1] sm:$0xff]
      %v9400 = vld [vmem:[%s4867 + $0xc9] sm:$0xff]
      %v9401 = vld [vmem:[%s4867 + $0xd9] sm:$0xff]
      %v9402 = vld [vmem:[%s4867 + $0xe1] sm:$0xff]
      %v9403 = vld [vmem:[%s4867 + $0xf1] sm:$0xff]
      %v9404 = vld [vmem:[%s4867 + $0xf9] sm:$0xff]
      %v9405 = vld [vmem:[%s4867 + $0x109] sm:$0xff]
      %v9406 = vld [vmem:[%s4867 + $0x111] sm:$0xff]
      %v9407 = vld [vmem:[%s4867 + $0x121] sm:$0xff]
      %v9408 = vld [vmem:[%s4867 + $0x129] sm:$0xff]
      %v9409 = vld [vmem:[%s4867 + $0x139] sm:$0xff]
      %v9410 = vld [vmem:[%s4867 + $0x141] sm:$0xff]
      %v9411 = vld [vmem:[%s4867 + $0x151] sm:$0xff]
      %v9412 = vld [vmem:[%s4867 + $0x159] sm:$0xff]
      %v9413 = vld [vmem:[%s4867 + $0x169] sm:$0xff]
      %v9414 = vld [vmem:[%s4867 + $0x171] sm:$0xff]
      %9447 = vrot.lane.b32.xlu0 %v9383, 16
      %v9448 = vpop.permute.xlu0 %9447
      %9449 = vrot.lane.b32.xlu0 %v9384, 16
      %v9450 = vpop.permute.xlu0 %9449
      %9451 = vrot.lane.b32.xlu0 %v9385, 16
      %v9452 = vpop.permute.xlu0 %9451
      %9453 = vrot.lane.b32.xlu0 %v9386, 16
      %v9454 = vpop.permute.xlu0 %9453
      %9455 = vrot.lane.b32.xlu0 %v9387, 16
      %v9456 = vpop.permute.xlu0 %9455
      %9457 = vrot.lane.b32.xlu0 %v9388, 16
      %v9458 = vpop.permute.xlu0 %9457
      %9459 = vrot.lane.b32.xlu0 %v9389, 16
      %v9460 = vpop.permute.xlu0 %9459
      %9461 = vrot.lane.b32.xlu0 %v9390, 16
      %v9462 = vpop.permute.xlu0 %9461
      %9463 = vrot.lane.b32.xlu0 %v9391, 16
      %v9464 = vpop.permute.xlu0 %9463
      %9465 = vrot.lane.b32.xlu0 %v9392, 16
      %v9466 = vpop.permute.xlu0 %9465
      %9467 = vrot.lane.b32.xlu0 %v9393, 16
      %v9468 = vpop.permute.xlu0 %9467
      %9469 = vrot.lane.b32.xlu0 %v9394, 16
      %v9470 = vpop.permute.xlu0 %9469
      %9471 = vrot.lane.b32.xlu0 %v9395, 16
      %v9472 = vpop.permute.xlu0 %9471
      %9473 = vrot.lane.b32.xlu0 %v9396, 16
      %v9474 = vpop.permute.xlu0 %9473
      %9475 = vrot.lane.b32.xlu0 %v9397, 16
      %v9476 = vpop.permute.xlu0 %9475
      %9477 = vrot.lane.b32.xlu0 %v9398, 16
      %v9478 = vpop.permute.xlu0 %9477
      %9479 = vrot.lane.b32.xlu0 %v9399, 16
      %v9480 = vpop.permute.xlu0 %9479
      %9481 = vrot.lane.b32.xlu0 %v9400, 16
      %v9482 = vpop.permute.xlu0 %9481
      %9483 = vrot.lane.b32.xlu0 %v9401, 16
      %v9484 = vpop.permute.xlu0 %9483
      %9485 = vrot.lane.b32.xlu0 %v9402, 16
      %v9486 = vpop.permute.xlu0 %9485
      %9487 = vrot.lane.b32.xlu0 %v9403, 16
      %v9488 = vpop.permute.xlu0 %9487
      %9489 = vrot.lane.b32.xlu0 %v9404, 16
      %v9490 = vpop.permute.xlu0 %9489
      %9491 = vrot.lane.b32.xlu0 %v9405, 16
      %v9492 = vpop.permute.xlu0 %9491
      %9493 = vrot.lane.b32.xlu0 %v9406, 16
      %v9494 = vpop.permute.xlu0 %9493
      %9495 = vrot.lane.b32.xlu0 %v9407, 16
      %v9496 = vpop.permute.xlu0 %9495
      %9497 = vrot.lane.b32.xlu0 %v9408, 16
      %v9498 = vpop.permute.xlu0 %9497
      %9499 = vrot.lane.b32.xlu0 %v9409, 16
      %v9500 = vpop.permute.xlu0 %9499
      %9501 = vrot.lane.b32.xlu0 %v9410, 16
      %v9502 = vpop.permute.xlu0 %9501
      %9503 = vrot.lane.b32.xlu0 %v9411, 16
      %v9504 = vpop.permute.xlu0 %9503
      %9505 = vrot.lane.b32.xlu0 %v9412, 16
      %v9506 = vpop.permute.xlu0 %9505
      %9507 = vrot.lane.b32.xlu0 %v9413, 16
      %v9508 = vpop.permute.xlu0 %9507
      %9509 = vrot.lane.b32.xlu0 %v9414, 16
      %v9510 = vpop.permute.xlu0 %9509
      %9543 = vst.msk [vmem:[#allocation3] sm:$0xff] %vm1131, %v9448
      %9544 = vst.msk [vmem:[#allocation3 + $0x8] sm:$0xff] %vm1131, %v9450
      %9545 = vst.msk [vmem:[#allocation3 + $0x10] sm:$0xff] %vm1131, %v9452
      %9546 = vst.msk [vmem:[#allocation3 + $0x18] sm:$0xff] %vm1131, %v9454
      %9547 = vst.msk [vmem:[#allocation3 + $0x20] sm:$0xff] %vm1131, %v9456
      %9548 = vst.msk [vmem:[#allocation3 + $0x28] sm:$0xff] %vm1131, %v9458
      %9549 = vst.msk [vmem:[#allocation3 + $0x30] sm:$0xff] %vm1131, %v9460
      %9550 = vst.msk [vmem:[#allocation3 + $0x38] sm:$0xff] %vm1131, %v9462
      %9551 = vst.msk [vmem:[#allocation3 + $0x40] sm:$0xff] %vm1131, %v9464
      %9552 = vst.msk [vmem:[#allocation3 + $0x48] sm:$0xff] %vm1131, %v9466
      %9553 = vst.msk [vmem:[#allocation3 + $0x50] sm:$0xff] %vm1131, %v9468
      %9554 = vst.msk [vmem:[#allocation3 + $0x58] sm:$0xff] %vm1131, %v9470
      %9555 = vst.msk [vmem:[#allocation3 + $0x60] sm:$0xff] %vm1131, %v9472
      %9556 = vst.msk [vmem:[#allocation3 + $0x68] sm:$0xff] %vm1131, %v9474
      %9557 = vst.msk [vmem:[#allocation3 + $0x70] sm:$0xff] %vm1131, %v9476
      %9558 = vst.msk [vmem:[#allocation3 + $0x78] sm:$0xff] %vm1131, %v9478
      %9559 = vst.msk [vmem:[#allocation3 + $0x80] sm:$0xff] %vm1131, %v9480
      %9560 = vst.msk [vmem:[#allocation3 + $0x88] sm:$0xff] %vm1131, %v9482
      %9561 = vst.msk [vmem:[#allocation3 + $0x90] sm:$0xff] %vm1131, %v9484
      %9562 = vst.msk [vmem:[#allocation3 + $0x98] sm:$0xff] %vm1131, %v9486
      %9563 = vst.msk [vmem:[#allocation3 + $0xa0] sm:$0xff] %vm1131, %v9488
      %9564 = vst.msk [vmem:[#allocation3 + $0xa8] sm:$0xff] %vm1131, %v9490
      %9565 = vst.msk [vmem:[#allocation3 + $0xb0] sm:$0xff] %vm1131, %v9492
      %9566 = vst.msk [vmem:[#allocation3 + $0xb8] sm:$0xff] %vm1131, %v9494
      %9567 = vst.msk [vmem:[#allocation3 + $0xc0] sm:$0xff] %vm1131, %v9496
      %9568 = vst.msk [vmem:[#allocation3 + $0xc8] sm:$0xff] %vm1131, %v9498
      %9569 = vst.msk [vmem:[#allocation3 + $0xd0] sm:$0xff] %vm1131, %v9500
      %9570 = vst.msk [vmem:[#allocation3 + $0xd8] sm:$0xff] %vm1131, %v9502
      %9571 = vst.msk [vmem:[#allocation3 + $0xe0] sm:$0xff] %vm1131, %v9504
      %9572 = vst.msk [vmem:[#allocation3 + $0xe8] sm:$0xff] %vm1131, %v9506
      %9573 = vst.msk [vmem:[#allocation3 + $0xf0] sm:$0xff] %vm1131, %v9508
      %9574 = vst.msk [vmem:[#allocation3 + $0xf8] sm:$0xff] %vm1131, %v9510
      %v9575 = vld [vmem:[%s4867 + $0x2] sm:$0xff]
      %v9576 = vld [vmem:[%s4867 + $0xa] sm:$0xff]
      %v9577 = vld [vmem:[%s4867 + $0x1a] sm:$0xff]
      %v9578 = vld [vmem:[%s4867 + $0x22] sm:$0xff]
      %v9579 = vld [vmem:[%s4867 + $0x32] sm:$0xff]
      %v9580 = vld [vmem:[%s4867 + $0x3a] sm:$0xff]
      %v9581 = vld [vmem:[%s4867 + $0x4a] sm:$0xff]
      %v9582 = vld [vmem:[%s4867 + $0x52] sm:$0xff]
      %v9583 = vld [vmem:[%s4867 + $0x62] sm:$0xff]
      %v9584 = vld [vmem:[%s4867 + $0x6a] sm:$0xff]
      %v9585 = vld [vmem:[%s4867 + $0x7a] sm:$0xff]
      %v9586 = vld [vmem:[%s4867 + $0x82] sm:$0xff]
      %v9587 = vld [vmem:[%s4867 + $0x92] sm:$0xff]
      %v9588 = vld [vmem:[%s4867 + $0x9a] sm:$0xff]
      %v9589 = vld [vmem:[%s4867 + $0xaa] sm:$0xff]
      %v9590 = vld [vmem:[%s4867 + $0xb2] sm:$0xff]
      %v9591 = vld [vmem:[%s4867 + $0xc2] sm:$0xff]
      %v9592 = vld [vmem:[%s4867 + $0xca] sm:$0xff]
      %v9593 = vld [vmem:[%s4867 + $0xda] sm:$0xff]
      %v9594 = vld [vmem:[%s4867 + $0xe2] sm:$0xff]
      %v9595 = vld [vmem:[%s4867 + $0xf2] sm:$0xff]
      %v9596 = vld [vmem:[%s4867 + $0xfa] sm:$0xff]
      %v9597 = vld [vmem:[%s4867 + $0x10a] sm:$0xff]
      %v9598 = vld [vmem:[%s4867 + $0x112] sm:$0xff]
      %v9599 = vld [vmem:[%s4867 + $0x122] sm:$0xff]
      %v9600 = vld [vmem:[%s4867 + $0x12a] sm:$0xff]
      %v9601 = vld [vmem:[%s4867 + $0x13a] sm:$0xff]
      %v9602 = vld [vmem:[%s4867 + $0x142] sm:$0xff]
      %v9603 = vld [vmem:[%s4867 + $0x152] sm:$0xff]
      %v9604 = vld [vmem:[%s4867 + $0x15a] sm:$0xff]
      %v9605 = vld [vmem:[%s4867 + $0x16a] sm:$0xff]
      %v9606 = vld [vmem:[%s4867 + $0x172] sm:$0xff]
      %9639 = vrot.lane.b32.xlu0 %v9575, 20
      %v9640 = vpop.permute.xlu0 %9639
      %9641 = vrot.lane.b32.xlu0 %v9576, 20
      %v9642 = vpop.permute.xlu0 %9641
      %9643 = vrot.lane.b32.xlu0 %v9577, 20
      %v9644 = vpop.permute.xlu0 %9643
      %9645 = vrot.lane.b32.xlu0 %v9578, 20
      %v9646 = vpop.permute.xlu0 %9645
      %9647 = vrot.lane.b32.xlu0 %v9579, 20
      %v9648 = vpop.permute.xlu0 %9647
      %9649 = vrot.lane.b32.xlu0 %v9580, 20
      %v9650 = vpop.permute.xlu0 %9649
      %9651 = vrot.lane.b32.xlu0 %v9581, 20
      %v9652 = vpop.permute.xlu0 %9651
      %9653 = vrot.lane.b32.xlu0 %v9582, 20
      %v9654 = vpop.permute.xlu0 %9653
      %9655 = vrot.lane.b32.xlu0 %v9583, 20
      %v9656 = vpop.permute.xlu0 %9655
      %9657 = vrot.lane.b32.xlu0 %v9584, 20
      %v9658 = vpop.permute.xlu0 %9657
      %9659 = vrot.lane.b32.xlu0 %v9585, 20
      %v9660 = vpop.permute.xlu0 %9659
      %9661 = vrot.lane.b32.xlu0 %v9586, 20
      %v9662 = vpop.permute.xlu0 %9661
      %9663 = vrot.lane.b32.xlu0 %v9587, 20
      %v9664 = vpop.permute.xlu0 %9663
      %9665 = vrot.lane.b32.xlu0 %v9588, 20
      %v9666 = vpop.permute.xlu0 %9665
      %9667 = vrot.lane.b32.xlu0 %v9589, 20
      %v9668 = vpop.permute.xlu0 %9667
      %9669 = vrot.lane.b32.xlu0 %v9590, 20
      %v9670 = vpop.permute.xlu0 %9669
      %9671 = vrot.lane.b32.xlu0 %v9591, 20
      %v9672 = vpop.permute.xlu0 %9671
      %9673 = vrot.lane.b32.xlu0 %v9592, 20
      %v9674 = vpop.permute.xlu0 %9673
      %9675 = vrot.lane.b32.xlu0 %v9593, 20
      %v9676 = vpop.permute.xlu0 %9675
      %9677 = vrot.lane.b32.xlu0 %v9594, 20
      %v9678 = vpop.permute.xlu0 %9677
      %9679 = vrot.lane.b32.xlu0 %v9595, 20
      %v9680 = vpop.permute.xlu0 %9679
      %9681 = vrot.lane.b32.xlu0 %v9596, 20
      %v9682 = vpop.permute.xlu0 %9681
      %9683 = vrot.lane.b32.xlu0 %v9597, 20
      %v9684 = vpop.permute.xlu0 %9683
      %9685 = vrot.lane.b32.xlu0 %v9598, 20
      %v9686 = vpop.permute.xlu0 %9685
      %9687 = vrot.lane.b32.xlu0 %v9599, 20
      %v9688 = vpop.permute.xlu0 %9687
      %9689 = vrot.lane.b32.xlu0 %v9600, 20
      %v9690 = vpop.permute.xlu0 %9689
      %9691 = vrot.lane.b32.xlu0 %v9601, 20
      %v9692 = vpop.permute.xlu0 %9691
      %9693 = vrot.lane.b32.xlu0 %v9602, 20
      %v9694 = vpop.permute.xlu0 %9693
      %9695 = vrot.lane.b32.xlu0 %v9603, 20
      %v9696 = vpop.permute.xlu0 %9695
      %9697 = vrot.lane.b32.xlu0 %v9604, 20
      %v9698 = vpop.permute.xlu0 %9697
      %9699 = vrot.lane.b32.xlu0 %v9605, 20
      %v9700 = vpop.permute.xlu0 %9699
      %9701 = vrot.lane.b32.xlu0 %v9606, 20
      %v9702 = vpop.permute.xlu0 %9701
      %9735 = vst.msk [vmem:[#allocation3] sm:$0xff] %vm1324, %v9640
      %9736 = vst.msk [vmem:[#allocation3 + $0x8] sm:$0xff] %vm1324, %v9642
      %9737 = vst.msk [vmem:[#allocation3 + $0x10] sm:$0xff] %vm1324, %v9644
      %9738 = vst.msk [vmem:[#allocation3 + $0x18] sm:$0xff] %vm1324, %v9646
      %9739 = vst.msk [vmem:[#allocation3 + $0x20] sm:$0xff] %vm1324, %v9648
      %9740 = vst.msk [vmem:[#allocation3 + $0x28] sm:$0xff] %vm1324, %v9650
      %9741 = vst.msk [vmem:[#allocation3 + $0x30] sm:$0xff] %vm1324, %v9652
      %9742 = vst.msk [vmem:[#allocation3 + $0x38] sm:$0xff] %vm1324, %v9654
      %9743 = vst.msk [vmem:[#allocation3 + $0x40] sm:$0xff] %vm1324, %v9656
      %9744 = vst.msk [vmem:[#allocation3 + $0x48] sm:$0xff] %vm1324, %v9658
      %9745 = vst.msk [vmem:[#allocation3 + $0x50] sm:$0xff] %vm1324, %v9660
      %9746 = vst.msk [vmem:[#allocation3 + $0x58] sm:$0xff] %vm1324, %v9662
      %9747 = vst.msk [vmem:[#allocation3 + $0x60] sm:$0xff] %vm1324, %v9664
      %9748 = vst.msk [vmem:[#allocation3 + $0x68] sm:$0xff] %vm1324, %v9666
      %9749 = vst.msk [vmem:[#allocation3 + $0x70] sm:$0xff] %vm1324, %v9668
      %9750 = vst.msk [vmem:[#allocation3 + $0x78] sm:$0xff] %vm1324, %v9670
      %9751 = vst.msk [vmem:[#allocation3 + $0x80] sm:$0xff] %vm1324, %v9672
      %9752 = vst.msk [vmem:[#allocation3 + $0x88] sm:$0xff] %vm1324, %v9674
      %9753 = vst.msk [vmem:[#allocation3 + $0x90] sm:$0xff] %vm1324, %v9676
      %9754 = vst.msk [vmem:[#allocation3 + $0x98] sm:$0xff] %vm1324, %v9678
      %9755 = vst.msk [vmem:[#allocation3 + $0xa0] sm:$0xff] %vm1324, %v9680
      %9756 = vst.msk [vmem:[#allocation3 + $0xa8] sm:$0xff] %vm1324, %v9682
      %9757 = vst.msk [vmem:[#allocation3 + $0xb0] sm:$0xff] %vm1324, %v9684
      %9758 = vst.msk [vmem:[#allocation3 + $0xb8] sm:$0xff] %vm1324, %v9686
      %9759 = vst.msk [vmem:[#allocation3 + $0xc0] sm:$0xff] %vm1324, %v9688
      %9760 = vst.msk [vmem:[#allocation3 + $0xc8] sm:$0xff] %vm1324, %v9690
      %9761 = vst.msk [vmem:[#allocation3 + $0xd0] sm:$0xff] %vm1324, %v9692
      %9762 = vst.msk [vmem:[#allocation3 + $0xd8] sm:$0xff] %vm1324, %v9694
      %9763 = vst.msk [vmem:[#allocation3 + $0xe0] sm:$0xff] %vm1324, %v9696
      %9764 = vst.msk [vmem:[#allocation3 + $0xe8] sm:$0xff] %vm1324, %v9698
      %9765 = vst.msk [vmem:[#allocation3 + $0xf0] sm:$0xff] %vm1324, %v9700
      %9766 = vst.msk [vmem:[#allocation3 + $0xf8] sm:$0xff] %vm1324, %v9702
      %v9767 = vld [vmem:[%s5924] sm:$0xff]
      %v9768 = vld [vmem:[%s5924 + $0x8] sm:$0xff]
      %v9769 = vld [vmem:[%s5924 + $0x18] sm:$0xff]
      %v9770 = vld [vmem:[%s5924 + $0x20] sm:$0xff]
      %v9771 = vld [vmem:[%s5924 + $0x30] sm:$0xff]
      %v9772 = vld [vmem:[%s5924 + $0x38] sm:$0xff]
      %v9773 = vld [vmem:[%s5924 + $0x48] sm:$0xff]
      %v9774 = vld [vmem:[%s5924 + $0x50] sm:$0xff]
      %v9775 = vld [vmem:[%s5924 + $0x60] sm:$0xff]
      %v9776 = vld [vmem:[%s5924 + $0x68] sm:$0xff]
      %v9777 = vld [vmem:[%s5924 + $0x78] sm:$0xff]
      %v9778 = vld [vmem:[%s5924 + $0x80] sm:$0xff]
      %v9779 = vld [vmem:[%s5924 + $0x90] sm:$0xff]
      %v9780 = vld [vmem:[%s5924 + $0x98] sm:$0xff]
      %v9781 = vld [vmem:[%s5924 + $0xa8] sm:$0xff]
      %v9782 = vld [vmem:[%s5924 + $0xb0] sm:$0xff]
      %v9783 = vld [vmem:[%s5924 + $0xc0] sm:$0xff]
      %v9784 = vld [vmem:[%s5924 + $0xc8] sm:$0xff]
      %v9785 = vld [vmem:[%s5924 + $0xd8] sm:$0xff]
      %v9786 = vld [vmem:[%s5924 + $0xe0] sm:$0xff]
      %v9787 = vld [vmem:[%s5924 + $0xf0] sm:$0xff]
      %v9788 = vld [vmem:[%s5924 + $0xf8] sm:$0xff]
      %v9789 = vld [vmem:[%s5924 + $0x108] sm:$0xff]
      %v9790 = vld [vmem:[%s5924 + $0x110] sm:$0xff]
      %v9791 = vld [vmem:[%s5924 + $0x120] sm:$0xff]
      %v9792 = vld [vmem:[%s5924 + $0x128] sm:$0xff]
      %v9793 = vld [vmem:[%s5924 + $0x138] sm:$0xff]
      %v9794 = vld [vmem:[%s5924 + $0x140] sm:$0xff]
      %v9795 = vld [vmem:[%s5924 + $0x150] sm:$0xff]
      %v9796 = vld [vmem:[%s5924 + $0x158] sm:$0xff]
      %v9797 = vld [vmem:[%s5924 + $0x168] sm:$0xff]
      %v9798 = vld [vmem:[%s5924 + $0x170] sm:$0xff]
      %9831 = vrot.lane.b32.xlu0 %v9767, 24
      %v9832 = vpop.permute.xlu0 %9831
      %9833 = vrot.lane.b32.xlu0 %v9768, 24
      %v9834 = vpop.permute.xlu0 %9833
      %9835 = vrot.lane.b32.xlu0 %v9769, 24
      %v9836 = vpop.permute.xlu0 %9835
      %9837 = vrot.lane.b32.xlu0 %v9770, 24
      %v9838 = vpop.permute.xlu0 %9837
      %9839 = vrot.lane.b32.xlu0 %v9771, 24
      %v9840 = vpop.permute.xlu0 %9839
      %9841 = vrot.lane.b32.xlu0 %v9772, 24
      %v9842 = vpop.permute.xlu0 %9841
      %9843 = vrot.lane.b32.xlu0 %v9773, 24
      %v9844 = vpop.permute.xlu0 %9843
      %9845 = vrot.lane.b32.xlu0 %v9774, 24
      %v9846 = vpop.permute.xlu0 %9845
      %9847 = vrot.lane.b32.xlu0 %v9775, 24
      %v9848 = vpop.permute.xlu0 %9847
      %9849 = vrot.lane.b32.xlu0 %v9776, 24
      %v9850 = vpop.permute.xlu0 %9849
      %9851 = vrot.lane.b32.xlu0 %v9777, 24
      %v9852 = vpop.permute.xlu0 %9851
      %9853 = vrot.lane.b32.xlu0 %v9778, 24
      %v9854 = vpop.permute.xlu0 %9853
      %9855 = vrot.lane.b32.xlu0 %v9779, 24
      %v9856 = vpop.permute.xlu0 %9855
      %9857 = vrot.lane.b32.xlu0 %v9780, 24
      %v9858 = vpop.permute.xlu0 %9857
      %9859 = vrot.lane.b32.xlu0 %v9781, 24
      %v9860 = vpop.permute.xlu0 %9859
      %9861 = vrot.lane.b32.xlu0 %v9782, 24
      %v9862 = vpop.permute.xlu0 %9861
      %9863 = vrot.lane.b32.xlu0 %v9783, 24
      %v9864 = vpop.permute.xlu0 %9863
      %9865 = vrot.lane.b32.xlu0 %v9784, 24
      %v9866 = vpop.permute.xlu0 %9865
      %9867 = vrot.lane.b32.xlu0 %v9785, 24
      %v9868 = vpop.permute.xlu0 %9867
      %9869 = vrot.lane.b32.xlu0 %v9786, 24
      %v9870 = vpop.permute.xlu0 %9869
      %9871 = vrot.lane.b32.xlu0 %v9787, 24
      %v9872 = vpop.permute.xlu0 %9871
      %9873 = vrot.lane.b32.xlu0 %v9788, 24
      %v9874 = vpop.permute.xlu0 %9873
      %9875 = vrot.lane.b32.xlu0 %v9789, 24
      %v9876 = vpop.permute.xlu0 %9875
      %9877 = vrot.lane.b32.xlu0 %v9790, 24
      %v9878 = vpop.permute.xlu0 %9877
      %9879 = vrot.lane.b32.xlu0 %v9791, 24
      %v9880 = vpop.permute.xlu0 %9879
      %9881 = vrot.lane.b32.xlu0 %v9792, 24
      %v9882 = vpop.permute.xlu0 %9881
      %9883 = vrot.lane.b32.xlu0 %v9793, 24
      %v9884 = vpop.permute.xlu0 %9883
      %9885 = vrot.lane.b32.xlu0 %v9794, 24
      %v9886 = vpop.permute.xlu0 %9885
      %9887 = vrot.lane.b32.xlu0 %v9795, 24
      %v9888 = vpop.permute.xlu0 %9887
      %9889 = vrot.lane.b32.xlu0 %v9796, 24
      %v9890 = vpop.permute.xlu0 %9889
      %9891 = vrot.lane.b32.xlu0 %v9797, 24
      %v9892 = vpop.permute.xlu0 %9891
      %9893 = vrot.lane.b32.xlu0 %v9798, 24
      %v9894 = vpop.permute.xlu0 %9893
      %9927 = vst.msk [vmem:[#allocation3] sm:$0xff] %vm1518, %v9832
      %9928 = vst.msk [vmem:[#allocation3 + $0x8] sm:$0xff] %vm1518, %v9834
      %9929 = vst.msk [vmem:[#allocation3 + $0x10] sm:$0xff] %vm1518, %v9836
      %9930 = vst.msk [vmem:[#allocation3 + $0x18] sm:$0xff] %vm1518, %v9838
      %9931 = vst.msk [vmem:[#allocation3 + $0x20] sm:$0xff] %vm1518, %v9840
      %9932 = vst.msk [vmem:[#allocation3 + $0x28] sm:$0xff] %vm1518, %v9842
      %9933 = vst.msk [vmem:[#allocation3 + $0x30] sm:$0xff] %vm1518, %v9844
      %9934 = vst.msk [vmem:[#allocation3 + $0x38] sm:$0xff] %vm1518, %v9846
      %9935 = vst.msk [vmem:[#allocation3 + $0x40] sm:$0xff] %vm1518, %v9848
      %9936 = vst.msk [vmem:[#allocation3 + $0x48] sm:$0xff] %vm1518, %v9850
      %9937 = vst.msk [vmem:[#allocation3 + $0x50] sm:$0xff] %vm1518, %v9852
      %9938 = vst.msk [vmem:[#allocation3 + $0x58] sm:$0xff] %vm1518, %v9854
      %9939 = vst.msk [vmem:[#allocation3 + $0x60] sm:$0xff] %vm1518, %v9856
      %9940 = vst.msk [vmem:[#allocation3 + $0x68] sm:$0xff] %vm1518, %v9858
      %9941 = vst.msk [vmem:[#allocation3 + $0x70] sm:$0xff] %vm1518, %v9860
      %9942 = vst.msk [vmem:[#allocation3 + $0x78] sm:$0xff] %vm1518, %v9862
      %9943 = vst.msk [vmem:[#allocation3 + $0x80] sm:$0xff] %vm1518, %v9864
      %9944 = vst.msk [vmem:[#allocation3 + $0x88] sm:$0xff] %vm1518, %v9866
      %9945 = vst.msk [vmem:[#allocation3 + $0x90] sm:$0xff] %vm1518, %v9868
      %9946 = vst.msk [vmem:[#allocation3 + $0x98] sm:$0xff] %vm1518, %v9870
      %9947 = vst.msk [vmem:[#allocation3 + $0xa0] sm:$0xff] %vm1518, %v9872
      %9948 = vst.msk [vmem:[#allocation3 + $0xa8] sm:$0xff] %vm1518, %v9874
      %9949 = vst.msk [vmem:[#allocation3 + $0xb0] sm:$0xff] %vm1518, %v9876
      %9950 = vst.msk [vmem:[#allocation3 + $0xb8] sm:$0xff] %vm1518, %v9878
      %9951 = vst.msk [vmem:[#allocation3 + $0xc0] sm:$0xff] %vm1518, %v9880
      %9952 = vst.msk [vmem:[#allocation3 + $0xc8] sm:$0xff] %vm1518, %v9882
      %9953 = vst.msk [vmem:[#allocation3 + $0xd0] sm:$0xff] %vm1518, %v9884
      %9954 = vst.msk [vmem:[#allocation3 + $0xd8] sm:$0xff] %vm1518, %v9886
      %9955 = vst.msk [vmem:[#allocation3 + $0xe0] sm:$0xff] %vm1518, %v9888
      %9956 = vst.msk [vmem:[#allocation3 + $0xe8] sm:$0xff] %vm1518, %v9890
      %9957 = vst.msk [vmem:[#allocation3 + $0xf0] sm:$0xff] %vm1518, %v9892
      %9958 = vst.msk [vmem:[#allocation3 + $0xf8] sm:$0xff] %vm1518, %v9894
      %v9959 = vld [vmem:[%s5924 + $0x1] sm:$0xff]
      %v9960 = vld [vmem:[%s5924 + $0x9] sm:$0xff]
      %v9961 = vld [vmem:[%s5924 + $0x19] sm:$0xff]
      %v9962 = vld [vmem:[%s5924 + $0x21] sm:$0xff]
      %v9963 = vld [vmem:[%s5924 + $0x31] sm:$0xff]
      %v9964 = vld [vmem:[%s5924 + $0x39] sm:$0xff]
      %v9965 = vld [vmem:[%s5924 + $0x49] sm:$0xff]
      %v9966 = vld [vmem:[%s5924 + $0x51] sm:$0xff]
      %v9967 = vld [vmem:[%s5924 + $0x61] sm:$0xff]
      %v9968 = vld [vmem:[%s5924 + $0x69] sm:$0xff]
      %v9969 = vld [vmem:[%s5924 + $0x79] sm:$0xff]
      %v9970 = vld [vmem:[%s5924 + $0x81] sm:$0xff]
      %v9971 = vld [vmem:[%s5924 + $0x91] sm:$0xff]
      %v9972 = vld [vmem:[%s5924 + $0x99] sm:$0xff]
      %v9973 = vld [vmem:[%s5924 + $0xa9] sm:$0xff]
      %v9974 = vld [vmem:[%s5924 + $0xb1] sm:$0xff]
      %v9975 = vld [vmem:[%s5924 + $0xc1] sm:$0xff]
      %v9976 = vld [vmem:[%s5924 + $0xc9] sm:$0xff]
      %v9977 = vld [vmem:[%s5924 + $0xd9] sm:$0xff]
      %v9978 = vld [vmem:[%s5924 + $0xe1] sm:$0xff]
      %v9979 = vld [vmem:[%s5924 + $0xf1] sm:$0xff]
      %v9980 = vld [vmem:[%s5924 + $0xf9] sm:$0xff]
      %v9981 = vld [vmem:[%s5924 + $0x109] sm:$0xff]
      %v9982 = vld [vmem:[%s5924 + $0x111] sm:$0xff]
      %v9983 = vld [vmem:[%s5924 + $0x121] sm:$0xff]
      %v9984 = vld [vmem:[%s5924 + $0x129] sm:$0xff]
      %v9985 = vld [vmem:[%s5924 + $0x139] sm:$0xff]
      %v9986 = vld [vmem:[%s5924 + $0x141] sm:$0xff]
      %v9987 = vld [vmem:[%s5924 + $0x151] sm:$0xff]
      %v9988 = vld [vmem:[%s5924 + $0x159] sm:$0xff]
      %v9989 = vld [vmem:[%s5924 + $0x169] sm:$0xff]
      %v9990 = vld [vmem:[%s5924 + $0x171] sm:$0xff]
      %10023 = vrot.lane.b32.xlu0 %v9959, 28
      %v10024 = vpop.permute.xlu0 %10023
      %10025 = vrot.lane.b32.xlu0 %v9960, 28
      %v10026 = vpop.permute.xlu0 %10025
      %10027 = vrot.lane.b32.xlu0 %v9961, 28
      %v10028 = vpop.permute.xlu0 %10027
      %10029 = vrot.lane.b32.xlu0 %v9962, 28
      %v10030 = vpop.permute.xlu0 %10029
      %10031 = vrot.lane.b32.xlu0 %v9963, 28
      %v10032 = vpop.permute.xlu0 %10031
      %10033 = vrot.lane.b32.xlu0 %v9964, 28
      %v10034 = vpop.permute.xlu0 %10033
      %10035 = vrot.lane.b32.xlu0 %v9965, 28
      %v10036 = vpop.permute.xlu0 %10035
      %10037 = vrot.lane.b32.xlu0 %v9966, 28
      %v10038 = vpop.permute.xlu0 %10037
      %10039 = vrot.lane.b32.xlu0 %v9967, 28
      %v10040 = vpop.permute.xlu0 %10039
      %10041 = vrot.lane.b32.xlu0 %v9968, 28
      %v10042 = vpop.permute.xlu0 %10041
      %10043 = vrot.lane.b32.xlu0 %v9969, 28
      %v10044 = vpop.permute.xlu0 %10043
      %10045 = vrot.lane.b32.xlu0 %v9970, 28
      %v10046 = vpop.permute.xlu0 %10045
      %10047 = vrot.lane.b32.xlu0 %v9971, 28
      %v10048 = vpop.permute.xlu0 %10047
      %10049 = vrot.lane.b32.xlu0 %v9972, 28
      %v10050 = vpop.permute.xlu0 %10049
      %10051 = vrot.lane.b32.xlu0 %v9973, 28
      %v10052 = vpop.permute.xlu0 %10051
      %10053 = vrot.lane.b32.xlu0 %v9974, 28
      %v10054 = vpop.permute.xlu0 %10053
      %10055 = vrot.lane.b32.xlu0 %v9975, 28
      %v10056 = vpop.permute.xlu0 %10055
      %10057 = vrot.lane.b32.xlu0 %v9976, 28
      %v10058 = vpop.permute.xlu0 %10057
      %10059 = vrot.lane.b32.xlu0 %v9977, 28
      %v10060 = vpop.permute.xlu0 %10059
      %10061 = vrot.lane.b32.xlu0 %v9978, 28
      %v10062 = vpop.permute.xlu0 %10061
      %10063 = vrot.lane.b32.xlu0 %v9979, 28
      %v10064 = vpop.permute.xlu0 %10063
      %10065 = vrot.lane.b32.xlu0 %v9980, 28
      %v10066 = vpop.permute.xlu0 %10065
      %10067 = vrot.lane.b32.xlu0 %v9981, 28
      %v10068 = vpop.permute.xlu0 %10067
      %10069 = vrot.lane.b32.xlu0 %v9982, 28
      %v10070 = vpop.permute.xlu0 %10069
      %10071 = vrot.lane.b32.xlu0 %v9983, 28
      %v10072 = vpop.permute.xlu0 %10071
      %10073 = vrot.lane.b32.xlu0 %v9984, 28
      %v10074 = vpop.permute.xlu0 %10073
      %10075 = vrot.lane.b32.xlu0 %v9985, 28
      %v10076 = vpop.permute.xlu0 %10075
      %10077 = vrot.lane.b32.xlu0 %v9986, 28
      %v10078 = vpop.permute.xlu0 %10077
      %10079 = vrot.lane.b32.xlu0 %v9987, 28
      %v10080 = vpop.permute.xlu0 %10079
      %10081 = vrot.lane.b32.xlu0 %v9988, 28
      %v10082 = vpop.permute.xlu0 %10081
      %10083 = vrot.lane.b32.xlu0 %v9989, 28
      %v10084 = vpop.permute.xlu0 %10083
      %10085 = vrot.lane.b32.xlu0 %v9990, 28
      %v10086 = vpop.permute.xlu0 %10085
      %10119 = vst.msk [vmem:[#allocation3] sm:$0xff] %vm1711, %v10024
      %10120 = vst.msk [vmem:[#allocation3 + $0x8] sm:$0xff] %vm1711, %v10026
      %10121 = vst.msk [vmem:[#allocation3 + $0x10] sm:$0xff] %vm1711, %v10028
      %10122 = vst.msk [vmem:[#allocation3 + $0x18] sm:$0xff] %vm1711, %v10030
      %10123 = vst.msk [vmem:[#allocation3 + $0x20] sm:$0xff] %vm1711, %v10032
      %10124 = vst.msk [vmem:[#allocation3 + $0x28] sm:$0xff] %vm1711, %v10034
      %10125 = vst.msk [vmem:[#allocation3 + $0x30] sm:$0xff] %vm1711, %v10036
      %10126 = vst.msk [vmem:[#allocation3 + $0x38] sm:$0xff] %vm1711, %v10038
      %10127 = vst.msk [vmem:[#allocation3 + $0x40] sm:$0xff] %vm1711, %v10040
      %10128 = vst.msk [vmem:[#allocation3 + $0x48] sm:$0xff] %vm1711, %v10042
      %10129 = vst.msk [vmem:[#allocation3 + $0x50] sm:$0xff] %vm1711, %v10044
      %10130 = vst.msk [vmem:[#allocation3 + $0x58] sm:$0xff] %vm1711, %v10046
      %10131 = vst.msk [vmem:[#allocation3 + $0x60] sm:$0xff] %vm1711, %v10048
      %10132 = vst.msk [vmem:[#allocation3 + $0x68] sm:$0xff] %vm1711, %v10050
      %10133 = vst.msk [vmem:[#allocation3 + $0x70] sm:$0xff] %vm1711, %v10052
      %10134 = vst.msk [vmem:[#allocation3 + $0x78] sm:$0xff] %vm1711, %v10054
      %10135 = vst.msk [vmem:[#allocation3 + $0x80] sm:$0xff] %vm1711, %v10056
      %10136 = vst.msk [vmem:[#allocation3 + $0x88] sm:$0xff] %vm1711, %v10058
      %10137 = vst.msk [vmem:[#allocation3 + $0x90] sm:$0xff] %vm1711, %v10060
      %10138 = vst.msk [vmem:[#allocation3 + $0x98] sm:$0xff] %vm1711, %v10062
      %10139 = vst.msk [vmem:[#allocation3 + $0xa0] sm:$0xff] %vm1711, %v10064
      %10140 = vst.msk [vmem:[#allocation3 + $0xa8] sm:$0xff] %vm1711, %v10066
      %10141 = vst.msk [vmem:[#allocation3 + $0xb0] sm:$0xff] %vm1711, %v10068
      %10142 = vst.msk [vmem:[#allocation3 + $0xb8] sm:$0xff] %vm1711, %v10070
      %10143 = vst.msk [vmem:[#allocation3 + $0xc0] sm:$0xff] %vm1711, %v10072
      %10144 = vst.msk [vmem:[#allocation3 + $0xc8] sm:$0xff] %vm1711, %v10074
      %10145 = vst.msk [vmem:[#allocation3 + $0xd0] sm:$0xff] %vm1711, %v10076
      %10146 = vst.msk [vmem:[#allocation3 + $0xd8] sm:$0xff] %vm1711, %v10078
      %10147 = vst.msk [vmem:[#allocation3 + $0xe0] sm:$0xff] %vm1711, %v10080
      %10148 = vst.msk [vmem:[#allocation3 + $0xe8] sm:$0xff] %vm1711, %v10082
      %10149 = vst.msk [vmem:[#allocation3 + $0xf0] sm:$0xff] %vm1711, %v10084
      %10150 = vst.msk [vmem:[#allocation3 + $0xf8] sm:$0xff] %vm1711, %v10086
      %v10151 = vld [vmem:[%s5924 + $0x2] sm:$0xff]
      %v10152 = vld [vmem:[%s5924 + $0xa] sm:$0xff]
      %v10153 = vld [vmem:[%s5924 + $0x1a] sm:$0xff]
      %v10154 = vld [vmem:[%s5924 + $0x22] sm:$0xff]
      %v10155 = vld [vmem:[%s5924 + $0x32] sm:$0xff]
      %v10156 = vld [vmem:[%s5924 + $0x3a] sm:$0xff]
      %v10157 = vld [vmem:[%s5924 + $0x4a] sm:$0xff]
      %v10158 = vld [vmem:[%s5924 + $0x52] sm:$0xff]
      %v10159 = vld [vmem:[%s5924 + $0x62] sm:$0xff]
      %v10160 = vld [vmem:[%s5924 + $0x6a] sm:$0xff]
      %v10161 = vld [vmem:[%s5924 + $0x7a] sm:$0xff]
      %v10162 = vld [vmem:[%s5924 + $0x82] sm:$0xff]
      %v10163 = vld [vmem:[%s5924 + $0x92] sm:$0xff]
      %v10164 = vld [vmem:[%s5924 + $0x9a] sm:$0xff]
      %v10165 = vld [vmem:[%s5924 + $0xaa] sm:$0xff]
      %v10166 = vld [vmem:[%s5924 + $0xb2] sm:$0xff]
      %v10167 = vld [vmem:[%s5924 + $0xc2] sm:$0xff]
      %v10168 = vld [vmem:[%s5924 + $0xca] sm:$0xff]
      %v10169 = vld [vmem:[%s5924 + $0xda] sm:$0xff]
      %v10170 = vld [vmem:[%s5924 + $0xe2] sm:$0xff]
      %v10171 = vld [vmem:[%s5924 + $0xf2] sm:$0xff]
      %v10172 = vld [vmem:[%s5924 + $0xfa] sm:$0xff]
      %v10173 = vld [vmem:[%s5924 + $0x10a] sm:$0xff]
      %v10174 = vld [vmem:[%s5924 + $0x112] sm:$0xff]
      %v10175 = vld [vmem:[%s5924 + $0x122] sm:$0xff]
      %v10176 = vld [vmem:[%s5924 + $0x12a] sm:$0xff]
      %v10177 = vld [vmem:[%s5924 + $0x13a] sm:$0xff]
      %v10178 = vld [vmem:[%s5924 + $0x142] sm:$0xff]
      %v10179 = vld [vmem:[%s5924 + $0x152] sm:$0xff]
      %v10180 = vld [vmem:[%s5924 + $0x15a] sm:$0xff]
      %v10181 = vld [vmem:[%s5924 + $0x16a] sm:$0xff]
      %v10182 = vld [vmem:[%s5924 + $0x172] sm:$0xff]
      %10215 = vrot.lane.b32.xlu0 %v10151, 32
      %v10216 = vpop.permute.xlu0 %10215
      %10217 = vrot.lane.b32.xlu0 %v10152, 32
      %v10218 = vpop.permute.xlu0 %10217
      %10219 = vrot.lane.b32.xlu0 %v10153, 32
      %v10220 = vpop.permute.xlu0 %10219
      %10221 = vrot.lane.b32.xlu0 %v10154, 32
      %v10222 = vpop.permute.xlu0 %10221
      %10223 = vrot.lane.b32.xlu0 %v10155, 32
      %v10224 = vpop.permute.xlu0 %10223
      %10225 = vrot.lane.b32.xlu0 %v10156, 32
      %v10226 = vpop.permute.xlu0 %10225
      %10227 = vrot.lane.b32.xlu0 %v10157, 32
      %v10228 = vpop.permute.xlu0 %10227
      %10229 = vrot.lane.b32.xlu0 %v10158, 32
      %v10230 = vpop.permute.xlu0 %10229
      %10231 = vrot.lane.b32.xlu0 %v10159, 32
      %v10232 = vpop.permute.xlu0 %10231
      %10233 = vrot.lane.b32.xlu0 %v10160, 32
      %v10234 = vpop.permute.xlu0 %10233
      %10235 = vrot.lane.b32.xlu0 %v10161, 32
      %v10236 = vpop.permute.xlu0 %10235
      %10237 = vrot.lane.b32.xlu0 %v10162, 32
      %v10238 = vpop.permute.xlu0 %10237
      %10239 = vrot.lane.b32.xlu0 %v10163, 32
      %v10240 = vpop.permute.xlu0 %10239
      %10241 = vrot.lane.b32.xlu0 %v10164, 32
      %v10242 = vpop.permute.xlu0 %10241
      %10243 = vrot.lane.b32.xlu0 %v10165, 32
      %v10244 = vpop.permute.xlu0 %10243
      %10245 = vrot.lane.b32.xlu0 %v10166, 32
      %v10246 = vpop.permute.xlu0 %10245
      %10247 = vrot.lane.b32.xlu0 %v10167, 32
      %v10248 = vpop.permute.xlu0 %10247
      %10249 = vrot.lane.b32.xlu0 %v10168, 32
      %v10250 = vpop.permute.xlu0 %10249
      %10251 = vrot.lane.b32.xlu0 %v10169, 32
      %v10252 = vpop.permute.xlu0 %10251
      %10253 = vrot.lane.b32.xlu0 %v10170, 32
      %v10254 = vpop.permute.xlu0 %10253
      %10255 = vrot.lane.b32.xlu0 %v10171, 32
      %v10256 = vpop.permute.xlu0 %10255
      %10257 = vrot.lane.b32.xlu0 %v10172, 32
      %v10258 = vpop.permute.xlu0 %10257
      %10259 = vrot.lane.b32.xlu0 %v10173, 32
      %v10260 = vpop.permute.xlu0 %10259
      %10261 = vrot.lane.b32.xlu0 %v10174, 32
      %v10262 = vpop.permute.xlu0 %10261
      %10263 = vrot.lane.b32.xlu0 %v10175, 32
      %v10264 = vpop.permute.xlu0 %10263
      %10265 = vrot.lane.b32.xlu0 %v10176, 32
      %v10266 = vpop.permute.xlu0 %10265
      %10267 = vrot.lane.b32.xlu0 %v10177, 32
      %v10268 = vpop.permute.xlu0 %10267
      %10269 = vrot.lane.b32.xlu0 %v10178, 32
      %v10270 = vpop.permute.xlu0 %10269
      %10271 = vrot.lane.b32.xlu0 %v10179, 32
      %v10272 = vpop.permute.xlu0 %10271
      %10273 = vrot.lane.b32.xlu0 %v10180, 32
      %v10274 = vpop.permute.xlu0 %10273
      %10275 = vrot.lane.b32.xlu0 %v10181, 32
      %v10276 = vpop.permute.xlu0 %10275
      %10277 = vrot.lane.b32.xlu0 %v10182, 32
      %v10278 = vpop.permute.xlu0 %10277
      %10311 = vst.msk [vmem:[#allocation3] sm:$0xff] %vm1904, %v10216
      %10312 = vst.msk [vmem:[#allocation3 + $0x8] sm:$0xff] %vm1904, %v10218
      %10313 = vst.msk [vmem:[#allocation3 + $0x10] sm:$0xff] %vm1904, %v10220
      %10314 = vst.msk [vmem:[#allocation3 + $0x18] sm:$0xff] %vm1904, %v10222
      %10315 = vst.msk [vmem:[#allocation3 + $0x20] sm:$0xff] %vm1904, %v10224
      %10316 = vst.msk [vmem:[#allocation3 + $0x28] sm:$0xff] %vm1904, %v10226
      %10317 = vst.msk [vmem:[#allocation3 + $0x30] sm:$0xff] %vm1904, %v10228
      %10318 = vst.msk [vmem:[#allocation3 + $0x38] sm:$0xff] %vm1904, %v10230
      %10319 = vst.msk [vmem:[#allocation3 + $0x40] sm:$0xff] %vm1904, %v10232
      %10320 = vst.msk [vmem:[#allocation3 + $0x48] sm:$0xff] %vm1904, %v10234
      %10321 = vst.msk [vmem:[#allocation3 + $0x50] sm:$0xff] %vm1904, %v10236
      %10322 = vst.msk [vmem:[#allocation3 + $0x58] sm:$0xff] %vm1904, %v10238
      %10323 = vst.msk [vmem:[#allocation3 + $0x60] sm:$0xff] %vm1904, %v10240
      %10324 = vst.msk [vmem:[#allocation3 + $0x68] sm:$0xff] %vm1904, %v10242
      %10325 = vst.msk [vmem:[#allocation3 + $0x70] sm:$0xff] %vm1904, %v10244
      %10326 = vst.msk [vmem:[#allocation3 + $0x78] sm:$0xff] %vm1904, %v10246
      %10327 = vst.msk [vmem:[#allocation3 + $0x80] sm:$0xff] %vm1904, %v10248
      %10328 = vst.msk [vmem:[#allocation3 + $0x88] sm:$0xff] %vm1904, %v10250
      %10329 = vst.msk [vmem:[#allocation3 + $0x90] sm:$0xff] %vm1904, %v10252
      %10330 = vst.msk [vmem:[#allocation3 + $0x98] sm:$0xff] %vm1904, %v10254
      %10331 = vst.msk [vmem:[#allocation3 + $0xa0] sm:$0xff] %vm1904, %v10256
      %10332 = vst.msk [vmem:[#allocation3 + $0xa8] sm:$0xff] %vm1904, %v10258
      %10333 = vst.msk [vmem:[#allocation3 + $0xb0] sm:$0xff] %vm1904, %v10260
      %10334 = vst.msk [vmem:[#allocation3 + $0xb8] sm:$0xff] %vm1904, %v10262
      %10335 = vst.msk [vmem:[#allocation3 + $0xc0] sm:$0xff] %vm1904, %v10264
      %10336 = vst.msk [vmem:[#allocation3 + $0xc8] sm:$0xff] %vm1904, %v10266
      %10337 = vst.msk [vmem:[#allocation3 + $0xd0] sm:$0xff] %vm1904, %v10268
      %10338 = vst.msk [vmem:[#allocation3 + $0xd8] sm:$0xff] %vm1904, %v10270
      %10339 = vst.msk [vmem:[#allocation3 + $0xe0] sm:$0xff] %vm1904, %v10272
      %10340 = vst.msk [vmem:[#allocation3 + $0xe8] sm:$0xff] %vm1904, %v10274
      %10341 = vst.msk [vmem:[#allocation3 + $0xf0] sm:$0xff] %vm1904, %v10276
      %10342 = vst.msk [vmem:[#allocation3 + $0xf8] sm:$0xff] %vm1904, %v10278
      %v10343 = vld [vmem:[#allocation3] sm:$0xff]
      %v10344 = vld [vmem:[#allocation3 + $0x8] sm:$0xff]
      %v10345 = vld [vmem:[#allocation3 + $0x10] sm:$0xff]
      %v10346 = vld [vmem:[#allocation3 + $0x18] sm:$0xff]
      %v10347 = vld [vmem:[#allocation3 + $0x20] sm:$0xff]
      %v10348 = vld [vmem:[#allocation3 + $0x28] sm:$0xff]
      %v10349 = vld [vmem:[#allocation3 + $0x30] sm:$0xff]
      %v10350 = vld [vmem:[#allocation3 + $0x38] sm:$0xff]
      %v10351 = vld [vmem:[#allocation3 + $0x40] sm:$0xff]
      %v10352 = vld [vmem:[#allocation3 + $0x48] sm:$0xff]
      %v10353 = vld [vmem:[#allocation3 + $0x50] sm:$0xff]
      %v10354 = vld [vmem:[#allocation3 + $0x58] sm:$0xff]
      %v10355 = vld [vmem:[#allocation3 + $0x60] sm:$0xff]
      %v10356 = vld [vmem:[#allocation3 + $0x68] sm:$0xff]
      %v10357 = vld [vmem:[#allocation3 + $0x70] sm:$0xff]
      %v10358 = vld [vmem:[#allocation3 + $0x78] sm:$0xff]
      %v10359 = vld [vmem:[#allocation3 + $0x80] sm:$0xff]
      %v10360 = vld [vmem:[#allocation3 + $0x88] sm:$0xff]
      %v10361 = vld [vmem:[#allocation3 + $0x90] sm:$0xff]
      %v10362 = vld [vmem:[#allocation3 + $0x98] sm:$0xff]
      %v10363 = vld [vmem:[#allocation3 + $0xa0] sm:$0xff]
      %v10364 = vld [vmem:[#allocation3 + $0xa8] sm:$0xff]
      %v10365 = vld [vmem:[#allocation3 + $0xb0] sm:$0xff]
      %v10366 = vld [vmem:[#allocation3 + $0xb8] sm:$0xff]
      %v10367 = vld [vmem:[#allocation3 + $0xc0] sm:$0xff]
      %v10368 = vld [vmem:[#allocation3 + $0xc8] sm:$0xff]
      %v10369 = vld [vmem:[#allocation3 + $0xd0] sm:$0xff]
      %v10370 = vld [vmem:[#allocation3 + $0xd8] sm:$0xff]
      %v10371 = vld [vmem:[#allocation3 + $0xe0] sm:$0xff]
      %v10372 = vld [vmem:[#allocation3 + $0xe8] sm:$0xff]
      %v10373 = vld [vmem:[#allocation3 + $0xf0] sm:$0xff]
      %v10374 = vld [vmem:[#allocation3 + $0xf8] sm:$0xff]
      %s10375 = scalar_lea.vmem %s6, 40
      %v10376 = vld [vmem:[%s10375] sm:$0xff]
      %v10377 = vld [vmem:[%s10375 + $0x8] sm:$0xff]
      %v10378 = vld [vmem:[%s10375 + $0x10] sm:$0xff]
      %v10379 = vld [vmem:[%s10375 + $0x18] sm:$0xff]
      %v10380 = vld [vmem:[%s10375 + $0x20] sm:$0xf]
      %s10381 = scalar_lea.vmem %s7, 1
      %v10382 = vld [vmem:[%s10381] sm:$0x1]
      %v10384 = vperm.slane %v10382, 0
      %v10387 = vsel %vm1985, %v10343, 0
      %v10390 = vsel %vm1985, %v10344, 0
      %v10393 = vsel %vm1985, %v10345, 0
      %v10396 = vsel %vm1985, %v10346, 0
      %v10399 = vsel %vm1985, %v10347, 0
      %v10402 = vsel %vm1985, %v10348, 0
      %v10405 = vsel %vm1985, %v10349, 0
      %v10408 = vsel %vm1985, %v10350, 0
      %v10411 = vsel %vm1985, %v10351, 0
      %v10414 = vsel %vm1985, %v10352, 0
      %v10417 = vsel %vm1985, %v10353, 0
      %v10420 = vsel %vm1985, %v10354, 0
      %v10423 = vsel %vm1985, %v10355, 0
      %v10426 = vsel %vm1985, %v10356, 0
      %v10429 = vsel %vm1985, %v10357, 0
      %v10432 = vsel %vm1985, %v10358, 0
      %v10435 = vsel %vm1985, %v10359, 0
      %v10438 = vsel %vm1985, %v10360, 0
      %v10441 = vsel %vm1985, %v10361, 0
      %v10444 = vsel %vm1985, %v10362, 0
      %v10447 = vsel %vm1985, %v10363, 0
      %v10450 = vsel %vm1985, %v10364, 0
      %v10453 = vsel %vm1985, %v10365, 0
      %v10456 = vsel %vm1985, %v10366, 0
      %v10459 = vsel %vm1985, %v10367, 0
      %v10462 = vsel %vm1985, %v10368, 0
      %v10465 = vsel %vm1985, %v10369, 0
      %v10468 = vsel %vm1985, %v10370, 0
      %v10471 = vsel %vm1985, %v10371, 0
      %v10474 = vsel %vm1985, %v10372, 0
      %v10477 = vsel %vm1985, %v10373, 0
      %v10480 = vsel %vm1985, %v10374, 0
      %v10483 = vsel %vm2082, %v10380, 0
      %10485 = vmatpush.msra.mxu0 0.0
      %10486 = vmatpush.msra.mxu0 0.0
      %10487 = vmatpush.msra.mxu0 0.0
      %10488 = vmatpush.msra.mxu0 0.0
      %10489 = vmatpush.msra.mxu0 0.0
      %10490 = vmatpush.msra.mxu0 0.0
      %10491 = vmatpush.msra.mxu0 0.0
      %10492 = vmatpush.msra.mxu0 0.0
      %10493 = vmatpush.msra.mxu0 0.0
      %10494 = vmatpush.msra.mxu0 0.0
      %10495 = vmatpush.msra.mxu0 0.0
      %10496 = vmatpush.msra.mxu0 %v10483
      %10497 = vmatpush.msra.mxu0 %v10379
      %10498 = vmatpush.msra.mxu0 %v10378
      %10499 = vmatpush.msra.mxu0 %v10377
      %10500 = vmatpush.msra.mxu0 %v10376
      %10501 = vmatmul.f32.gmra.mxu0 %v10387
      %v10502 = vpop.f32.mrf.mxu0
      %v10503 = vadd.f32 %v10384, %v10502
      %10504 = vmatmul.f32.gmra.mxu0 %v10390
      %v10505 = vpop.f32.mrf.mxu0
      %v10506 = vadd.f32 %v10384, %v10505
      %10507 = vmatmul.f32.gmra.mxu0 %v10393
      %v10508 = vpop.f32.mrf.mxu0
      %v10509 = vadd.f32 %v10384, %v10508
      %10510 = vmatmul.f32.gmra.mxu0 %v10396
      %v10511 = vpop.f32.mrf.mxu0
      %v10512 = vadd.f32 %v10384, %v10511
      %10513 = vmatmul.f32.gmra.mxu0 %v10399
      %v10514 = vpop.f32.mrf.mxu0
      %v10515 = vadd.f32 %v10384, %v10514
      %10516 = vmatmul.f32.gmra.mxu0 %v10402
      %v10517 = vpop.f32.mrf.mxu0
      %v10518 = vadd.f32 %v10384, %v10517
      %10519 = vmatmul.f32.gmra.mxu0 %v10405
      %v10520 = vpop.f32.mrf.mxu0
      %v10521 = vadd.f32 %v10384, %v10520
      %10522 = vmatmul.f32.gmra.mxu0 %v10408
      %v10523 = vpop.f32.mrf.mxu0
      %v10524 = vadd.f32 %v10384, %v10523
      %10525 = vmatmul.f32.gmra.mxu0 %v10411
      %v10526 = vpop.f32.mrf.mxu0
      %v10527 = vadd.f32 %v10384, %v10526
      %10528 = vmatmul.f32.gmra.mxu0 %v10414
      %v10529 = vpop.f32.mrf.mxu0
      %v10530 = vadd.f32 %v10384, %v10529
      %10531 = vmatmul.f32.gmra.mxu0 %v10417
      %v10532 = vpop.f32.mrf.mxu0
      %v10533 = vadd.f32 %v10384, %v10532
      %10534 = vmatmul.f32.gmra.mxu0 %v10420
      %v10535 = vpop.f32.mrf.mxu0
      %v10536 = vadd.f32 %v10384, %v10535
      %10537 = vmatmul.f32.gmra.mxu0 %v10423
      %v10538 = vpop.f32.mrf.mxu0
      %v10539 = vadd.f32 %v10384, %v10538
      %10540 = vmatmul.f32.gmra.mxu0 %v10426
      %v10541 = vpop.f32.mrf.mxu0
      %v10542 = vadd.f32 %v10384, %v10541
      %10543 = vmatmul.f32.gmra.mxu0 %v10429
      %v10544 = vpop.f32.mrf.mxu0
      %v10545 = vadd.f32 %v10384, %v10544
      %10546 = vmatmul.f32.gmra.mxu0 %v10432
      %v10547 = vpop.f32.mrf.mxu0
      %v10548 = vadd.f32 %v10384, %v10547
      %10549 = vmatmul.f32.gmra.mxu0 %v10435
      %v10550 = vpop.f32.mrf.mxu0
      %v10551 = vadd.f32 %v10384, %v10550
      %10552 = vmatmul.f32.gmra.mxu0 %v10438
      %v10553 = vpop.f32.mrf.mxu0
      %v10554 = vadd.f32 %v10384, %v10553
      %10555 = vmatmul.f32.gmra.mxu0 %v10441
      %v10556 = vpop.f32.mrf.mxu0
      %v10557 = vadd.f32 %v10384, %v10556
      %10558 = vmatmul.f32.gmra.mxu0 %v10444
      %v10559 = vpop.f32.mrf.mxu0
      %v10560 = vadd.f32 %v10384, %v10559
      %10561 = vmatmul.f32.gmra.mxu0 %v10447
      %v10562 = vpop.f32.mrf.mxu0
      %v10563 = vadd.f32 %v10384, %v10562
      %10564 = vmatmul.f32.gmra.mxu0 %v10450
      %v10565 = vpop.f32.mrf.mxu0
      %v10566 = vadd.f32 %v10384, %v10565
      %10567 = vmatmul.f32.gmra.mxu0 %v10453
      %v10568 = vpop.f32.mrf.mxu0
      %v10569 = vadd.f32 %v10384, %v10568
      %10570 = vmatmul.f32.gmra.mxu0 %v10456
      %v10571 = vpop.f32.mrf.mxu0
      %v10572 = vadd.f32 %v10384, %v10571
      %10573 = vmatmul.f32.gmra.mxu0 %v10459
      %v10574 = vpop.f32.mrf.mxu0
      %v10575 = vadd.f32 %v10384, %v10574
      %10576 = vmatmul.f32.gmra.mxu0 %v10462
      %v10577 = vpop.f32.mrf.mxu0
      %v10578 = vadd.f32 %v10384, %v10577
      %10579 = vmatmul.f32.gmra.mxu0 %v10465
      %v10580 = vpop.f32.mrf.mxu0
      %v10581 = vadd.f32 %v10384, %v10580
      %10582 = vmatmul.f32.gmra.mxu0 %v10468
      %v10583 = vpop.f32.mrf.mxu0
      %v10584 = vadd.f32 %v10384, %v10583
      %10585 = vmatmul.f32.gmra.mxu0 %v10471
      %v10586 = vpop.f32.mrf.mxu0
      %v10587 = vadd.f32 %v10384, %v10586
      %10588 = vmatmul.f32.gmra.mxu0 %v10474
      %v10589 = vpop.f32.mrf.mxu0
      %v10590 = vadd.f32 %v10384, %v10589
      %10591 = vmatmul.f32.gmra.mxu0 %v10477
      %v10592 = vpop.f32.mrf.mxu0
      %v10593 = vadd.f32 %v10384, %v10592
      %10594 = vmatmul.f32.gmra.mxu0 %v10480
      %v10595 = vpop.f32.mrf.mxu0
      %v10596 = vadd.f32 %v10384, %v10595
      %10597 = vdwg.mxu0
      %v10598 = vadd.f32 %v2877, %v10503
      %v10599 = vadd.f32 %v2878, %v10506
      %v10600 = vadd.f32 %v2879, %v10509
      %v10601 = vadd.f32 %v2880, %v10512
      %v10602 = vadd.f32 %v2881, %v10515
      %v10603 = vadd.f32 %v2882, %v10518
      %v10604 = vadd.f32 %v2883, %v10521
      %v10605 = vadd.f32 %v2884, %v10524
      %v10606 = vadd.f32 %v2885, %v10527
      %v10607 = vadd.f32 %v2886, %v10530
      %v10608 = vadd.f32 %v2887, %v10533
      %v10609 = vadd.f32 %v2888, %v10536
      %v10610 = vadd.f32 %v2889, %v10539
      %v10611 = vadd.f32 %v2890, %v10542
      %v10612 = vadd.f32 %v2891, %v10545
      %v10613 = vadd.f32 %v2892, %v10548
      %v10614 = vadd.f32 %v2893, %v10551
      %v10615 = vadd.f32 %v2894, %v10554
      %v10616 = vadd.f32 %v2895, %v10557
      %v10617 = vadd.f32 %v2896, %v10560
      %v10618 = vadd.f32 %v2897, %v10563
      %v10619 = vadd.f32 %v2898, %v10566
      %v10620 = vadd.f32 %v2899, %v10569
      %v10621 = vadd.f32 %v2900, %v10572
      %v10622 = vadd.f32 %v2901, %v10575
      %v10623 = vadd.f32 %v2902, %v10578
      %v10624 = vadd.f32 %v2903, %v10581
      %v10625 = vadd.f32 %v2904, %v10584
      %v10626 = vadd.f32 %v2905, %v10587
      %v10627 = vadd.f32 %v2906, %v10590
      %v10628 = vadd.f32 %v2907, %v10593
      %v10629 = vadd.f32 %v2908, %v10596
      %10630 = vst.msk [vmem:[%s325] sm:$0xff] %vm358, %v10598
      %10631 = vst.msk [vmem:[%s325 + $0x8] sm:$0xff] %vm358, %v10599
      %10632 = vst.msk [vmem:[%s325 + $0x10] sm:$0xff] %vm358, %v10600
      %10633 = vst.msk [vmem:[%s325 + $0x18] sm:$0xff] %vm358, %v10601
      %10634 = vst.msk [vmem:[%s325 + $0x20] sm:$0xff] %vm358, %v10602
      %10635 = vst.msk [vmem:[%s325 + $0x28] sm:$0xff] %vm358, %v10603
      %10636 = vst.msk [vmem:[%s325 + $0x30] sm:$0xff] %vm358, %v10604
      %10637 = vst.msk [vmem:[%s325 + $0x38] sm:$0xff] %vm358, %v10605
      %10638 = vst.msk [vmem:[%s325 + $0x40] sm:$0xff] %vm358, %v10606
      %10639 = vst.msk [vmem:[%s325 + $0x48] sm:$0xff] %vm358, %v10607
      %10640 = vst.msk [vmem:[%s325 + $0x50] sm:$0xff] %vm358, %v10608
      %10641 = vst.msk [vmem:[%s325 + $0x58] sm:$0xff] %vm358, %v10609
      %10642 = vst.msk [vmem:[%s325 + $0x60] sm:$0xff] %vm358, %v10610
      %10643 = vst.msk [vmem:[%s325 + $0x68] sm:$0xff] %vm358, %v10611
      %10644 = vst.msk [vmem:[%s325 + $0x70] sm:$0xff] %vm358, %v10612
      %10645 = vst.msk [vmem:[%s325 + $0x78] sm:$0xff] %vm358, %v10613
      %10646 = vst.msk [vmem:[%s325 + $0x80] sm:$0xff] %vm358, %v10614
      %10647 = vst.msk [vmem:[%s325 + $0x88] sm:$0xff] %vm358, %v10615
      %10648 = vst.msk [vmem:[%s325 + $0x90] sm:$0xff] %vm358, %v10616
      %10649 = vst.msk [vmem:[%s325 + $0x98] sm:$0xff] %vm358, %v10617
      %10650 = vst.msk [vmem:[%s325 + $0xa0] sm:$0xff] %vm358, %v10618
      %10651 = vst.msk [vmem:[%s325 + $0xa8] sm:$0xff] %vm358, %v10619
      %10652 = vst.msk [vmem:[%s325 + $0xb0] sm:$0xff] %vm358, %v10620
      %10653 = vst.msk [vmem:[%s325 + $0xb8] sm:$0xff] %vm358, %v10621
      %10654 = vst.msk [vmem:[%s325 + $0xc0] sm:$0xff] %vm358, %v10622
      %10655 = vst.msk [vmem:[%s325 + $0xc8] sm:$0xff] %vm358, %v10623
      %10656 = vst.msk [vmem:[%s325 + $0xd0] sm:$0xff] %vm358, %v10624
      %10657 = vst.msk [vmem:[%s325 + $0xd8] sm:$0xff] %vm358, %v10625
      %10658 = vst.msk [vmem:[%s325 + $0xe0] sm:$0xff] %vm358, %v10626
      %10659 = vst.msk [vmem:[%s325 + $0xe8] sm:$0xff] %vm358, %v10627
      %10660 = vst.msk [vmem:[%s325 + $0xf0] sm:$0xff] %vm358, %v10628
      %10661 = vst.msk [vmem:[%s325 + $0xf8] sm:$0xff] %vm358, %v10629
      %p10662 = scmp.lt.s32.totalorder %s19, 1
      %s10663 = scalar_select %p10662, %s19, 1
      %s10664 = smul.addr %s10663, 32
      %s10665 = smul.addr %s10664, 8
      %s10666 = scalar_lea.vmem %s8, %s10665
      // Predicated region
      $region53: #{sft_resblk_forward.1} parent=51 // pred_check
        %p10667 = pneg %p215
      $region54: #{sft_resblk_forward.1} parent=51 // pred_check_branch
        %10669 = sbr.rel (%p10667) target = $region56
      $region55: #{sft_resblk_forward.1} parent=51 // pred_region
        _
      $region56: #{sft_resblk_forward.1} parent=51 // pred_fallthru
        _
    $region52: #{sft_resblk_forward.1} parent=5 // pred_fallthru
      _
    %p10670 = scmp.le.s32.totalorder 2, %s14
    // Predicated region
    $region57: #{sft_resblk_forward.1} parent=5 // pred_check
      %p10671 = pneg %p10670
    $region58: #{sft_resblk_forward.1} parent=5 // pred_check_branch
      %10673 = sbr.rel (%p10671) target = $region60
    $region59: #{sft_resblk_forward.1} parent=5 // pred_region
      %s10674 = ssub.s32 %s14, 2
      // Predicated region
      $region61: #{sft_resblk_forward.1} parent=59 // pred_check
        %p10675 = pneg %p221
      $region62: #{sft_resblk_forward.1} parent=59 // pred_check_branch
        %10677 = sbr.rel (%p10675) target = $region64
      $region63: #{sft_resblk_forward.1} parent=59 // pred_region
        %p10678 = scmp.lt.s32.totalorder %s20, 1
        %s10679 = scalar_select %p10678, %s20, 1
        %s10680 = smul.addr %s10679, 32
        %s10681 = smul.addr %s10680, 8
        %s10682 = scalar_lea.vmem %s8, %s10681
      $region64: #{sft_resblk_forward.1} parent=59 // pred_fallthru
        _
    $region60: #{sft_resblk_forward.1} parent=5 // pred_fallthru
      _
  $region6: #{sft_resblk_forward.1} parent=0 // loop_footer
    %s18 = sadd.s32 1, %s14
  $region7: #{sft_resblk_forward.1} parent=0 // loop_footer_branch
    %13 = sbr.rel target = $region3
  $region8: #{sft_resblk_forward.1} parent=0 // loop_exit
    _

</llo_original>
